<compile_context>
chip_gen: v7x
topology: tpu7x:2x2x1
jax: 0.10.0
libtpu: 0.0.40
codegen_flags: <defaults>
</compile_context>

<pallas_src>
import functools

import jax
import jax.numpy as jnp
from jax.experimental import pallas as pl
from jax.experimental.pallas import tpu as pltpu

BN_EPS = 1e-5


# ----------------------------- Pallas kernel --------------------------------

def conv_bn_kernel(*refs, taps, oh, ow, apply_relu, has_residual):
    """Fused conv (tap accumulation) + folded-BN affine + (residual) + ReLU.

    refs = (x_ref, w_ref, scale_ref, bias_ref[, res_ref], o_ref)
      x_ref:     (P, HH, WW, Cin)  bf16  phase-decomposed padded input planes
      w_ref:     (T, Cin, TCout)   bf16  per-tap weight matrices
      scale_ref: (1, TCout)        f32   folded BN scale
      bias_ref:  (1, TCout)        f32   folded BN bias
      res_ref:   (OH, OW, TCout)   f32   residual added before ReLU (optional)
      o_ref:     (OH, OW, TCout)         output tile
    """
    if has_residual:
        x_ref, w_ref, scale_ref, bias_ref, res_ref, o_ref = refs
    else:
        x_ref, w_ref, scale_ref, bias_ref, o_ref = refs
        res_ref = None

    cin = x_ref.shape[-1]
    tcout = o_ref.shape[-1]

    # Load each distinct phase plane once (<= 4 loads), slice per tap.
    phases = sorted({p for (p, _, _) in taps})
    planes = {p: x_ref[p] for p in phases}              # (HH, WW, Cin) bf16

    acc = jnp.zeros((oh * ow, tcout), jnp.float32)
    for t, (p, r0, c0) in enumerate(taps):              # fully unrolled, <= 9 taps
        win = jax.lax.slice(planes[p], (r0, c0, 0), (r0 + oh, c0 + ow, cin))
        acc = acc + jnp.dot(win.reshape(oh * ow, cin), w_ref[t],
                            preferred_element_type=jnp.float32)

    y = acc * scale_ref[...] + bias_ref[...]             # folded BN affine
    y = y.reshape(oh, ow, tcout)
    if has_residual:
        y = y + res_ref[...]
    if apply_relu:
        y = jnp.maximum(y, 0.0)
    o_ref[...] = y.astype(o_ref.dtype)


# ------------------------------- wrappers ------------------------------------

def _phase_planes(x, k, stride, pad):
    """NHWC -> (N, P, HH, WW, C) planes + per-tap (plane, row_off, col_off).

    stride 1: one spatially padded plane; every tap is a contiguous window.
    stride 2: stride-2 phase planes (built once, ~1x data volume) so every tap
              window is a contiguous slice in-kernel (no strided loads).
    """
    n, h, w, c = x.shape
    oh = (h + 2 * pad - k) // stride + 1
    ow = (w + 2 * pad - k) // stride + 1
    if pad:
        x = jnp.pad(x, ((0, 0), (pad, pad), (pad, pad), (0, 0)))

    if stride == 1:
        taps = [(0, ki, kj) for ki in range(k) for kj in range(k)]
        return x[:, None], taps, (oh, ow)

    assert stride == 2, "BasicBlock only uses stride 1 or 2"
    used = sorted({(ki % 2, kj % 2) for ki in range(k) for kj in range(k)})
    phase_idx = {pc: i for i, pc in enumerate(used)}
    maxo = (k - 1) // 2
    hh, ww = oh + maxo, ow + maxo
    planes = []
    for (pr, pc) in used:
        pln = x[:, pr::2, pc::2, :]
        ph, pw = pln.shape[1], pln.shape[2]
        if ph < hh or pw < ww:
            pln = jnp.pad(pln, ((0, 0), (0, max(0, hh - ph)),
                                (0, max(0, ww - pw)), (0, 0)))
        planes.append(pln[:, :hh, :ww, :])
    xph = jnp.stack(planes, axis=1)                       # (N, P, HH, WW, C)
    taps = [(phase_idx[(ki % 2, kj % 2)], ki // 2, kj // 2)
            for ki in range(k) for kj in range(k)]
    return xph, taps, (oh, ow)


def fused_conv_bn(x, w_taps, scale, bias, *, kernel_size, stride, pad,
                  relu, residual=None, out_dtype=jnp.float32):
    """conv(kxk, stride, pad, bias=False) + folded BN + (residual) + ReLU."""
    n, h, w, cin = x.shape
    t, _, cout = w_taps.shape
    xph, taps, (oh, ow) = _phase_planes(x.astype(jnp.bfloat16),
                                        kernel_size, stride, pad)
    p, hh, ww = xph.shape[1], xph.shape[2], xph.shape[3]

    # lane-dense 128-wide out-channel tiles when possible, else one full block
    tcout = 128 if cout % 128 == 0 else cout
    n_cblk = cout // tcout

    kern = functools.partial(conv_bn_kernel, taps=tuple(taps), oh=oh, ow=ow,
                             apply_relu=relu, has_residual=residual is not None)

    in_specs = [
        pl.BlockSpec((None, p, hh, ww, cin), lambda b, j: (b, 0, 0, 0, 0)),
        pl.BlockSpec((t, cin, tcout), lambda b, j: (0, 0, j)),
        pl.BlockSpec((1, tcout), lambda b, j: (0, j)),
        pl.BlockSpec((1, tcout), lambda b, j: (0, j)),
    ]
    args = [xph, w_taps, scale.reshape(1, cout), bias.reshape(1, cout)]
    if residual is not None:
        in_specs.append(pl.BlockSpec((None, oh, ow, tcout),
                                     lambda b, j: (b, 0, 0, j)))
        args.append(residual.astype(jnp.float32))

    return pl.pallas_call(
        kern,
        out_shape=jax.ShapeDtypeStruct((n, oh, ow, cout), out_dtype),
        grid=(n, n_cblk),
        in_specs=in_specs,
        out_specs=pl.BlockSpec((None, oh, ow, tcout), lambda b, j: (b, 0, 0, j)),
        compiler_params=pltpu.CompilerParams(
            dimension_semantics=("parallel", "parallel")),
    )(*args)


# ------------------------------ parameters -----------------------------------

def init_raw_basic_block(key, in_c, out_c, stride):
    """PyTorch-style raw parameters (conv weights OIHW, BN gamma/beta/mean/var)."""
    keys = iter(jax.random.split(key, 16))

    def conv_w(o, i, k):
        return 0.1 * jax.random.normal(next(keys), (o, i, k, k), jnp.float32)

    def bn_p(c):
        return dict(
            gamma=1.0 + 0.1 * jax.random.normal(next(keys), (c,), jnp.float32),
            beta=0.1 * jax.random.normal(next(keys), (c,), jnp.float32),
            mean=0.1 * jax.random.normal(next(keys), (c,), jnp.float32),
            var=1.0 + 0.1 * jnp.abs(jax.random.normal(next(keys), (c,), jnp.float32)),
        )

    raw = dict(stride=stride,
               conv1=conv_w(out_c, in_c, 3), bn1=bn_p(out_c),
               conv2=conv_w(out_c, out_c, 3), bn2=bn_p(out_c))
    if stride != 1 or in_c != out_c:                  # downsampling = 1x1 conv + BN
        raw["down_conv"] = conv_w(out_c, in_c, 1)
        raw["down_bn"] = bn_p(out_c)
    return raw


def _fold_bn(bn):
    scale = bn["gamma"] / jnp.sqrt(bn["var"] + BN_EPS)
    return scale, bn["beta"] - bn["mean"] * scale


def _fold_conv(w_oihw):
    o, i, kh, kw = w_oihw.shape
    return jnp.transpose(w_oihw, (2, 3, 1, 0)).reshape(kh * kw, i, o).astype(jnp.bfloat16)


def fold_basic_block_params(raw):
    """Precompute kernel-ready params once: folded BN scale/bias + bf16 tap weights."""
    p = dict(stride=raw["stride"])
    p["w1"] = _fold_conv(raw["conv1"]); p["s1"], p["b1"] = _fold_bn(raw["bn1"])
    p["w2"] = _fold_conv(raw["conv2"]); p["s2"], p["b2"] = _fold_bn(raw["bn2"])
    if "down_conv" in raw:
        p["wd"] = _fold_conv(raw["down_conv"]); p["sd"], p["bd"] = _fold_bn(raw["down_bn"])
    return p


# ------------------------------- forward --------------------------------------

def basic_block_forward(x_nchw, params):
    """PyTorch BasicBlock.forward (eval-mode BN). NCHW in / NCHW out."""
    # TODO(synk): training-mode BatchNorm (batch statistics + running-stat update)
    # is not implemented; this is the standard eval-mode folded-BN lowering.
    x = jnp.transpose(x_nchw.astype(jnp.float32), (0, 2, 3, 1))    # NHWC

    if "wd" in params:      # downsampling shortcut: 1x1 conv (stride) + BN
        identity = fused_conv_bn(x, params["wd"], params["sd"], params["bd"],
                                 kernel_size=1, stride=params["stride"], pad=0,
                                 relu=False, out_dtype=jnp.float32)
    else:
        identity = x

    # conv1 output only feeds conv2's bf16 MXU operands -> keep it bf16 in HBM.
    y = fused_conv_bn(x, params["w1"], params["s1"], params["b1"],
                      kernel_size=3, stride=params["stride"], pad=1, relu=True,
                      out_dtype=jnp.bfloat16)
    # conv2 + bn2 + residual add + ReLU fused into one kernel epilogue.
    y = fused_conv_bn(y, params["w2"], params["s2"], params["b2"],
                      kernel_size=3, stride=1, pad=1, relu=True,
                      residual=identity, out_dtype=jnp.float32)
    return jnp.transpose(y, (0, 3, 1, 2))                           # back to NCHW


# ------------------------- pure-JAX reference (check) -------------------------

def _ref_conv(x_nchw, w_oihw, stride, pad):
    return jax.lax.conv_general_dilated(
        x_nchw, w_oihw, window_strides=(stride, stride),
        padding=((pad, pad), (pad, pad)),
        dimension_numbers=("NCHW", "OIHW", "NCHW"))


def _ref_bn(x, bn):
    s = bn["gamma"] / jnp.sqrt(bn["var"] + BN_EPS)
    b = bn["beta"] - bn["mean"] * s
    return x * s[None, :, None, None] + b[None, :, None, None]


def basic_block_reference(x, raw):
    idn = x
    y = jax.nn.relu(_ref_bn(_ref_conv(x, raw["conv1"], raw["stride"], 1), raw["bn1"]))
    y = _ref_bn(_ref_conv(y, raw["conv2"], 1, 1), raw["bn2"])
    if "down_conv" in raw:
        idn = _ref_bn(_ref_conv(x, raw["down_conv"], raw["stride"], 0), raw["down_bn"])
    return jax.nn.relu(y + idn)


# --------------------------------- main ---------------------------------------

if __name__ == "__main__":
    key = jax.random.PRNGKey(0)
    k_a, k_b, k_x = jax.random.split(key, 3)

    # Block A: 64 -> 128 channels, stride 2, downsampling shortcut (1x1 conv + BN).
    # Block B: 128 -> 128 channels, stride 1, identity shortcut.
    raw_a = init_raw_basic_block(k_a, 64, 128, stride=2)
    raw_b = init_raw_basic_block(k_b, 128, 128, stride=1)
    params_a = fold_basic_block_params(raw_a)
    params_b = fold_basic_block_params(raw_b)

    x = jax.random.normal(k_x, (2, 64, 16, 16), jnp.float32)        # NCHW (PyTorch)

    @jax.jit
    def fwd(x):
        y = basic_block_forward(x, params_a)
        return basic_block_forward(y, params_b)

    out = jax.block_until_ready(fwd(x))
    assert out.shape == (2, 128, 8, 8) and out.dtype == jnp.float32

    # sanity check vs. pure-JAX f32 reference (loose tol: bf16 MXU operands)
    ref = basic_block_reference(basic_block_reference(x, raw_a), raw_b)
    rel_err = jnp.max(jnp.abs(out - ref)) / (jnp.max(jnp.abs(ref)) + 1e-6)
    assert float(rel_err) < 0.05, f"mismatch vs reference: rel_err={float(rel_err)}"

    print("KERNEL_OK")
</pallas_src>

<mosaic_0001>
module attributes {stable_mosaic.version = 11 : i64} {
  func.func @conv_bn_kernel(%arg0: i32, %arg1: i32, %arg2: memref<1x1x8x8x64xbf16, #tpu.memory_space<vmem>>, %arg3: memref<1x64x128xbf16, #tpu.memory_space<vmem>>, %arg4: memref<1x128xf32, #tpu.memory_space<vmem>>, %arg5: memref<1x128xf32, #tpu.memory_space<vmem>>, %arg6: memref<1x8x8x128xf32, #tpu.memory_space<vmem>>) attributes {dimension_semantics = [#tpu.dimension_semantics<parallel>, #tpu.dimension_semantics<parallel>], iteration_bounds = array<i64: 2, 1>, scalar_prefetch = 0 : i64, scratch_operands = 0 : i64, tpu.core_type = #tpu.core_type<tc>, window_params = [{transform_indices = @transform_0, window_bounds = array<i64: 1, 1, 8, 8, 64>}, {transform_indices = @transform_1, window_bounds = array<i64: 1, 64, 128>}, {transform_indices = @transform_2, window_bounds = array<i64: 1, 128>}, {transform_indices = @transform_3, window_bounds = array<i64: 1, 128>}, {transform_indices = @transform_4, window_bounds = array<i64: 1, 8, 8, 128>}]} {
    %c0 = arith.constant 0 : index
    %c0_0 = arith.constant 0 : index
    %c0_1 = arith.constant 0 : index
    %c0_2 = arith.constant 0 : index
    %c0_3 = arith.constant 0 : index
    %0 = vector.load %arg2[%c0, %c0_0, %c0_1, %c0_2, %c0_3] : memref<1x1x8x8x64xbf16, #tpu.memory_space<vmem>>, vector<1x1x8x8x64xbf16>
    %1 = vector.shape_cast %0 : vector<1x1x8x8x64xbf16> to vector<8x8x64xbf16>
    %cst = arith.constant 0.000000e+00 : f32
    %2 = vector.broadcast %cst : f32 to vector<64x128xf32>
    %3 = vector.extract_strided_slice %1 {offsets = [0, 0, 0], sizes = [8, 8, 64], strides = [1, 1, 1]} : vector<8x8x64xbf16> to vector<8x8x64xbf16>
    %4 = vector.shape_cast %3 : vector<8x8x64xbf16> to vector<64x64xbf16>
    %c0_4 = arith.constant 0 : index
    %c0_5 = arith.constant 0 : index
    %c0_6 = arith.constant 0 : index
    %5 = vector.load %arg3[%c0_4, %c0_5, %c0_6] : memref<1x64x128xbf16, #tpu.memory_space<vmem>>, vector<1x64x128xbf16>
    %6 = vector.shape_cast %5 : vector<1x64x128xbf16> to vector<64x128xbf16>
    %cst_7 = arith.constant dense<0.000000e+00> : vector<64x128xf32>
    %7 = tpu.matmul %4, %6, %cst_7 {dimension_numbers = #tpu.dot_dimension_numbers<[1], [0], [0], [1], [0, 0, 1, 1], [], []>} : vector<64x64xbf16>, vector<64x128xbf16>, vector<64x128xf32> -> vector<64x128xf32>
    %8 = arith.addf %2, %7 : vector<64x128xf32>
    %c0_8 = arith.constant 0 : index
    %c0_9 = arith.constant 0 : index
    %9 = vector.load %arg4[%c0_8, %c0_9] : memref<1x128xf32, #tpu.memory_space<vmem>>, vector<1x128xf32>
    %10 = vector.broadcast %9 : vector<1x128xf32> to vector<64x128xf32>
    %11 = arith.mulf %8, %10 : vector<64x128xf32>
    %c0_10 = arith.constant 0 : index
    %c0_11 = arith.constant 0 : index
    %12 = vector.load %arg5[%c0_10, %c0_11] : memref<1x128xf32, #tpu.memory_space<vmem>>, vector<1x128xf32>
    %13 = vector.broadcast %12 : vector<1x128xf32> to vector<64x128xf32>
    %14 = arith.addf %11, %13 : vector<64x128xf32>
    %15 = vector.shape_cast %14 : vector<64x128xf32> to vector<8x8x128xf32>
    %c0_12 = arith.constant 0 : index
    %c0_13 = arith.constant 0 : index
    %c0_14 = arith.constant 0 : index
    %c0_15 = arith.constant 0 : index
    %16 = vector.load %arg6[%c0_12, %c0_13, %c0_14, %c0_15] : memref<1x8x8x128xf32, #tpu.memory_space<vmem>>, vector<1x8x8x128xf32>
    %17 = vector.shape_cast %16 : vector<1x8x8x128xf32> to vector<8x8x128xf32>
    %18 = vector.shape_cast %15 : vector<8x8x128xf32> to vector<1x8x8x128xf32>
    tpu.vector_store %arg6[%c0_12, %c0_13, %c0_14, %c0_15], %18 {strides = array<i32>} : memref<1x8x8x128xf32, #tpu.memory_space<vmem>>, vector<1x8x8x128xf32>,
    return
  }
  func.func @transform_0(%arg0: i32, %arg1: i32) -> (i32, i32, i32, i32, i32) {
    %c0_i32 = arith.constant 0 : i32
    %c0_i32_0 = arith.constant 0 : i32
    %c0_i32_1 = arith.constant 0 : i32
    %c0_i32_2 = arith.constant 0 : i32
    %c0_i32_3 = arith.constant 0 : i32
    return %arg0, %c0_i32, %c0_i32_0, %c0_i32_1, %c0_i32_2 : i32, i32, i32, i32, i32
  }
  func.func @transform_1(%arg0: i32, %arg1: i32) -> (i32, i32, i32) {
    %c0_i32 = arith.constant 0 : i32
    %c0_i32_0 = arith.constant 0 : i32
    %c0_i32_1 = arith.constant 0 : i32
    return %c0_i32, %c0_i32_0, %arg1 : i32, i32, i32
  }
  func.func @transform_2(%arg0: i32, %arg1: i32) -> (i32, i32) {
    %c0_i32 = arith.constant 0 : i32
    %c0_i32_0 = arith.constant 0 : i32
    return %c0_i32, %arg1 : i32, i32
  }
  func.func @transform_3(%arg0: i32, %arg1: i32) -> (i32, i32) {
    %c0_i32 = arith.constant 0 : i32
    %c0_i32_0 = arith.constant 0 : i32
    return %c0_i32, %arg1 : i32, i32
  }
  func.func @transform_4(%arg0: i32, %arg1: i32) -> (i32, i32, i32, i32) {
    %c0_i32 = arith.constant 0 : i32
    %c0_i32_0 = arith.constant 0 : i32
    %c0_i32_1 = arith.constant 0 : i32
    return %arg0, %c0_i32, %c0_i32_0, %arg1 : i32, i32, i32, i32
  }
}

module attributes {stable_mosaic.version = 11 : i64} {
  func.func @conv_bn_kernel(%arg0: i32, %arg1: i32, %arg2: memref<1x4x9x9x64xbf16, #tpu.memory_space<vmem>>, %arg3: memref<9x64x128xbf16, #tpu.memory_space<vmem>>, %arg4: memref<1x128xf32, #tpu.memory_space<vmem>>, %arg5: memref<1x128xf32, #tpu.memory_space<vmem>>, %arg6: memref<1x8x8x128xbf16, #tpu.memory_space<vmem>>) attributes {dimension_semantics = [#tpu.dimension_semantics<parallel>, #tpu.dimension_semantics<parallel>], iteration_bounds = array<i64: 2, 1>, scalar_prefetch = 0 : i64, scratch_operands = 0 : i64, tpu.core_type = #tpu.core_type<tc>, window_params = [{transform_indices = @transform_0, window_bounds = array<i64: 1, 4, 9, 9, 64>}, {transform_indices = @transform_1, window_bounds = array<i64: 9, 64, 128>}, {transform_indices = @transform_2, window_bounds = array<i64: 1, 128>}, {transform_indices = @transform_3, window_bounds = array<i64: 1, 128>}, {transform_indices = @transform_4, window_bounds = array<i64: 1, 8, 8, 128>}]} {
    %c0 = arith.constant 0 : index
    %c0_0 = arith.constant 0 : index
    %c0_1 = arith.constant 0 : index
    %c0_2 = arith.constant 0 : index
    %c0_3 = arith.constant 0 : index
    %0 = vector.load %arg2[%c0, %c0_0, %c0_1, %c0_2, %c0_3] : memref<1x4x9x9x64xbf16, #tpu.memory_space<vmem>>, vector<1x1x9x9x64xbf16>
    %1 = vector.shape_cast %0 : vector<1x1x9x9x64xbf16> to vector<9x9x64xbf16>
    %c0_4 = arith.constant 0 : index
    %c1 = arith.constant 1 : index
    %c0_5 = arith.constant 0 : index
    %c0_6 = arith.constant 0 : index
    %c0_7 = arith.constant 0 : index
    %2 = vector.load %arg2[%c0_4, %c1, %c0_5, %c0_6, %c0_7] : memref<1x4x9x9x64xbf16, #tpu.memory_space<vmem>>, vector<1x1x9x9x64xbf16>
    %3 = vector.shape_cast %2 : vector<1x1x9x9x64xbf16> to vector<9x9x64xbf16>
    %c0_8 = arith.constant 0 : index
    %c2 = arith.constant 2 : index
    %c0_9 = arith.constant 0 : index
    %c0_10 = arith.constant 0 : index
    %c0_11 = arith.constant 0 : index
    %4 = vector.load %arg2[%c0_8, %c2, %c0_9, %c0_10, %c0_11] : memref<1x4x9x9x64xbf16, #tpu.memory_space<vmem>>, vector<1x1x9x9x64xbf16>
    %5 = vector.shape_cast %4 : vector<1x1x9x9x64xbf16> to vector<9x9x64xbf16>
    %c0_12 = arith.constant 0 : index
    %c3 = arith.constant 3 : index
    %c0_13 = arith.constant 0 : index
    %c0_14 = arith.constant 0 : index
    %c0_15 = arith.constant 0 : index
    %6 = vector.load %arg2[%c0_12, %c3, %c0_13, %c0_14, %c0_15] : memref<1x4x9x9x64xbf16, #tpu.memory_space<vmem>>, vector<1x1x9x9x64xbf16>
    %7 = vector.shape_cast %6 : vector<1x1x9x9x64xbf16> to vector<9x9x64xbf16>
    %cst = arith.constant 0.000000e+00 : f32
    %8 = vector.broadcast %cst : f32 to vector<64x128xf32>
    %9 = vector.extract_strided_slice %1 {offsets = [0, 0, 0], sizes = [8, 8, 64], strides = [1, 1, 1]} : vector<9x9x64xbf16> to vector<8x8x64xbf16>
    %10 = vector.shape_cast %9 : vector<8x8x64xbf16> to vector<64x64xbf16>
    %c0_16 = arith.constant 0 : index
    %c0_17 = arith.constant 0 : index
    %c0_18 = arith.constant 0 : index
    %11 = vector.load %arg3[%c0_16, %c0_17, %c0_18] : memref<9x64x128xbf16, #tpu.memory_space<vmem>>, vector<1x64x128xbf16>
    %12 = vector.shape_cast %11 : vector<1x64x128xbf16> to vector<64x128xbf16>
    %cst_19 = arith.constant dense<0.000000e+00> : vector<64x128xf32>
    %13 = tpu.matmul %10, %12, %cst_19 {dimension_numbers = #tpu.dot_dimension_numbers<[1], [0], [0], [1], [0, 0, 1, 1], [], []>} : vector<64x64xbf16>, vector<64x128xbf16>, vector<64x128xf32> -> vector<64x128xf32>
    %14 = arith.addf %8, %13 : vector<64x128xf32>
    %15 = vector.extract_strided_slice %3 {offsets = [0, 0, 0], sizes = [8, 8, 64], strides = [1, 1, 1]} : vector<9x9x64xbf16> to vector<8x8x64xbf16>
    %16 = vector.shape_cast %15 : vector<8x8x64xbf16> to vector<64x64xbf16>
    %c1_20 = arith.constant 1 : index
    %c0_21 = arith.constant 0 : index
    %c0_22 = arith.constant 0 : index
    %17 = vector.load %arg3[%c1_20, %c0_21, %c0_22] : memref<9x64x128xbf16, #tpu.memory_space<vmem>>, vector<1x64x128xbf16>
    %18 = vector.shape_cast %17 : vector<1x64x128xbf16> to vector<64x128xbf16>
    %cst_23 = arith.constant dense<0.000000e+00> : vector<64x128xf32>
    %19 = tpu.matmul %16, %18, %cst_23 {dimension_numbers = #tpu.dot_dimension_numbers<[1], [0], [0], [1], [0, 0, 1, 1], [], []>} : vector<64x64xbf16>, vector<64x128xbf16>, vector<64x128xf32> -> vector<64x128xf32>
    %20 = arith.addf %14, %19 : vector<64x128xf32>
    %21 = vector.extract_strided_slice %1 {offsets = [0, 1, 0], sizes = [8, 8, 64], strides = [1, 1, 1]} : vector<9x9x64xbf16> to vector<8x8x64xbf16>
    %22 = vector.shape_cast %21 : vector<8x8x64xbf16> to vector<64x64xbf16>
    %c2_24 = arith.constant 2 : index
    %c0_25 = arith.constant 0 : index
    %c0_26 = arith.constant 0 : index
    %23 = vector.load %arg3[%c2_24, %c0_25, %c0_26] : memref<9x64x128xbf16, #tpu.memory_space<vmem>>, vector<1x64x128xbf16>
    %24 = vector.shape_cast %23 : vector<1x64x128xbf16> to vector<64x128xbf16>
    %cst_27 = arith.constant dense<0.000000e+00> : vector<64x128xf32>
    %25 = tpu.matmul %22, %24, %cst_27 {dimension_numbers = #tpu.dot_dimension_numbers<[1], [0], [0], [1], [0, 0, 1, 1], [], []>} : vector<64x64xbf16>, vector<64x128xbf16>, vector<64x128xf32> -> vector<64x128xf32>
    %26 = arith.addf %20, %25 : vector<64x128xf32>
    %27 = vector.extract_strided_slice %5 {offsets = [0, 0, 0], sizes = [8, 8, 64], strides = [1, 1, 1]} : vector<9x9x64xbf16> to vector<8x8x64xbf16>
    %28 = vector.shape_cast %27 : vector<8x8x64xbf16> to vector<64x64xbf16>
    %c3_28 = arith.constant 3 : index
    %c0_29 = arith.constant 0 : index
    %c0_30 = arith.constant 0 : index
    %29 = vector.load %arg3[%c3_28, %c0_29, %c0_30] : memref<9x64x128xbf16, #tpu.memory_space<vmem>>, vector<1x64x128xbf16>
    %30 = vector.shape_cast %29 : vector<1x64x128xbf16> to vector<64x128xbf16>
    %cst_31 = arith.constant dense<0.000000e+00> : vector<64x128xf32>
    %31 = tpu.matmul %28, %30, %cst_31 {dimension_numbers = #tpu.dot_dimension_numbers<[1], [0], [0], [1], [0, 0, 1, 1], [], []>} : vector<64x64xbf16>, vector<64x128xbf16>, vector<64x128xf32> -> vector<64x128xf32>
    %32 = arith.addf %26, %31 : vector<64x128xf32>
    %33 = vector.extract_strided_slice %7 {offsets = [0, 0, 0], sizes = [8, 8, 64], strides = [1, 1, 1]} : vector<9x9x64xbf16> to vector<8x8x64xbf16>
    %34 = vector.shape_cast %33 : vector<8x8x64xbf16> to vector<64x64xbf16>
    %c4 = arith.constant 4 : index
    %c0_32 = arith.constant 0 : index
    %c0_33 = arith.constant 0 : index
    %35 = vector.load %arg3[%c4, %c0_32, %c0_33] : memref<9x64x128xbf16, #tpu.memory_space<vmem>>, vector<1x64x128xbf16>
    %36 = vector.shape_cast %35 : vector<1x64x128xbf16> to vector<64x128xbf16>
    %cst_34 = arith.constant dense<0.000000e+00> : vector<64x128xf32>
    %37 = tpu.matmul %34, %36, %cst_34 {dimension_numbers = #tpu.dot_dimension_numbers<[1], [0], [0], [1], [0, 0, 1, 1], [], []>} : vector<64x64xbf16>, vector<64x128xbf16>, vector<64x128xf32> -> vector<64x128xf32>
    %38 = arith.addf %32, %37 : vector<64x128xf32>
    %39 = vector.extract_strided_slice %5 {offsets = [0, 1, 0], sizes = [8, 8, 64], strides = [1, 1, 1]} : vector<9x9x64xbf16> to vector<8x8x64xbf16>
    %40 = vector.shape_cast %39 : vector<8x8x64xbf16> to vector<64x64xbf16>
    %c5 = arith.constant 5 : index
    %c0_35 = arith.constant 0 : index
    %c0_36 = arith.constant 0 : index
    %41 = vector.load %arg3[%c5, %c0_35, %c0_36] : memref<9x64x128xbf16, #tpu.memory_space<vmem>>, vector<1x64x128xbf16>
    %42 = vector.shape_cast %41 : vector<1x64x128xbf16> to vector<64x128xbf16>
    %cst_37 = arith.constant dense<0.000000e+00> : vector<64x128xf32>
    %43 = tpu.matmul %40, %42, %cst_37 {dimension_numbers = #tpu.dot_dimension_numbers<[1], [0], [0], [1], [0, 0, 1, 1], [], []>} : vector<64x64xbf16>, vector<64x128xbf16>, vector<64x128xf32> -> vector<64x128xf32>
    %44 = arith.addf %38, %43 : vector<64x128xf32>
    %45 = vector.extract_strided_slice %1 {offsets = [1, 0, 0], sizes = [8, 8, 64], strides = [1, 1, 1]} : vector<9x9x64xbf16> to vector<8x8x64xbf16>
    %46 = vector.shape_cast %45 : vector<8x8x64xbf16> to vector<64x64xbf16>
    %c6 = arith.constant 6 : index
    %c0_38 = arith.constant 0 : index
    %c0_39 = arith.constant 0 : index
    %47 = vector.load %arg3[%c6, %c0_38, %c0_39] : memref<9x64x128xbf16, #tpu.memory_space<vmem>>, vector<1x64x128xbf16>
    %48 = vector.shape_cast %47 : vector<1x64x128xbf16> to vector<64x128xbf16>
    %cst_40 = arith.constant dense<0.000000e+00> : vector<64x128xf32>
    %49 = tpu.matmul %46, %48, %cst_40 {dimension_numbers = #tpu.dot_dimension_numbers<[1], [0], [0], [1], [0, 0, 1, 1], [], []>} : vector<64x64xbf16>, vector<64x128xbf16>, vector<64x128xf32> -> vector<64x128xf32>
    %50 = arith.addf %44, %49 : vector<64x128xf32>
    %51 = vector.extract_strided_slice %3 {offsets = [1, 0, 0], sizes = [8, 8, 64], strides = [1, 1, 1]} : vector<9x9x64xbf16> to vector<8x8x64xbf16>
    %52 = vector.shape_cast %51 : vector<8x8x64xbf16> to vector<64x64xbf16>
    %c7 = arith.constant 7 : index
    %c0_41 = arith.constant 0 : index
    %c0_42 = arith.constant 0 : index
    %53 = vector.load %arg3[%c7, %c0_41, %c0_42] : memref<9x64x128xbf16, #tpu.memory_space<vmem>>, vector<1x64x128xbf16>
    %54 = vector.shape_cast %53 : vector<1x64x128xbf16> to vector<64x128xbf16>
    %cst_43 = arith.constant dense<0.000000e+00> : vector<64x128xf32>
    %55 = tpu.matmul %52, %54, %cst_43 {dimension_numbers = #tpu.dot_dimension_numbers<[1], [0], [0], [1], [0, 0, 1, 1], [], []>} : vector<64x64xbf16>, vector<64x128xbf16>, vector<64x128xf32> -> vector<64x128xf32>
    %56 = arith.addf %50, %55 : vector<64x128xf32>
    %57 = vector.extract_strided_slice %1 {offsets = [1, 1, 0], sizes = [8, 8, 64], strides = [1, 1, 1]} : vector<9x9x64xbf16> to vector<8x8x64xbf16>
    %58 = vector.shape_cast %57 : vector<8x8x64xbf16> to vector<64x64xbf16>
    %c8 = arith.constant 8 : index
    %c0_44 = arith.constant 0 : index
    %c0_45 = arith.constant 0 : index
    %59 = vector.load %arg3[%c8, %c0_44, %c0_45] : memref<9x64x128xbf16, #tpu.memory_space<vmem>>, vector<1x64x128xbf16>
    %60 = vector.shape_cast %59 : vector<1x64x128xbf16> to vector<64x128xbf16>
    %cst_46 = arith.constant dense<0.000000e+00> : vector<64x128xf32>
    %61 = tpu.matmul %58, %60, %cst_46 {dimension_numbers = #tpu.dot_dimension_numbers<[1], [0], [0], [1], [0, 0, 1, 1], [], []>} : vector<64x64xbf16>, vector<64x128xbf16>, vector<64x128xf32> -> vector<64x128xf32>
    %62 = arith.addf %56, %61 : vector<64x128xf32>
    %c0_47 = arith.constant 0 : index
    %c0_48 = arith.constant 0 : index
    %63 = vector.load %arg4[%c0_47, %c0_48] : memref<1x128xf32, #tpu.memory_space<vmem>>, vector<1x128xf32>
    %64 = vector.broadcast %63 : vector<1x128xf32> to vector<64x128xf32>
    %65 = arith.mulf %62, %64 : vector<64x128xf32>
    %c0_49 = arith.constant 0 : index
    %c0_50 = arith.constant 0 : index
    %66 = vector.load %arg5[%c0_49, %c0_50] : memref<1x128xf32, #tpu.memory_space<vmem>>, vector<1x128xf32>
    %67 = vector.broadcast %66 : vector<1x128xf32> to vector<64x128xf32>
    %68 = arith.addf %65, %67 : vector<64x128xf32>
    %69 = vector.shape_cast %68 : vector<64x128xf32> to vector<8x8x128xf32>
    %cst_51 = arith.constant 0.000000e+00 : f32
    %70 = vector.broadcast %cst_51 : f32 to vector<8x8x128xf32>
    %71 = arith.maximumf %69, %70 : vector<8x8x128xf32>
    %72 = arith.truncf %71 : vector<8x8x128xf32> to vector<8x8x128xbf16>
    %c0_52 = arith.constant 0 : index
    %c0_53 = arith.constant 0 : index
    %c0_54 = arith.constant 0 : index
    %c0_55 = arith.constant 0 : index
    %73 = vector.load %arg6[%c0_52, %c0_53, %c0_54, %c0_55] : memref<1x8x8x128xbf16, #tpu.memory_space<vmem>>, vector<1x8x8x128xbf16>
    %74 = vector.shape_cast %73 : vector<1x8x8x128xbf16> to vector<8x8x128xbf16>
    %75 = vector.shape_cast %72 : vector<8x8x128xbf16> to vector<1x8x8x128xbf16>
    tpu.vector_store %arg6[%c0_52, %c0_53, %c0_54, %c0_55], %75 {strides = array<i32>} : memref<1x8x8x128xbf16, #tpu.memory_space<vmem>>, vector<1x8x8x128xbf16>,
    return
  }
  func.func @transform_0(%arg0: i32, %arg1: i32) -> (i32, i32, i32, i32, i32) {
    %c0_i32 = arith.constant 0 : i32
    %c0_i32_0 = arith.constant 0 : i32
    %c0_i32_1 = arith.constant 0 : i32
    %c0_i32_2 = arith.constant 0 : i32
    %c0_i32_3 = arith.constant 0 : i32
    return %arg0, %c0_i32, %c0_i32_0, %c0_i32_1, %c0_i32_2 : i32, i32, i32, i32, i32
  }
  func.func @transform_1(%arg0: i32, %arg1: i32) -> (i32, i32, i32) {
    %c0_i32 = arith.constant 0 : i32
    %c0_i32_0 = arith.constant 0 : i32
    %c0_i32_1 = arith.constant 0 : i32
    return %c0_i32, %c0_i32_0, %arg1 : i32, i32, i32
  }
  func.func @transform_2(%arg0: i32, %arg1: i32) -> (i32, i32) {
    %c0_i32 = arith.constant 0 : i32
    %c0_i32_0 = arith.constant 0 : i32
    return %c0_i32, %arg1 : i32, i32
  }
  func.func @transform_3(%arg0: i32, %arg1: i32) -> (i32, i32) {
    %c0_i32 = arith.constant 0 : i32
    %c0_i32_0 = arith.constant 0 : i32
    return %c0_i32, %arg1 : i32, i32
  }
  func.func @transform_4(%arg0: i32, %arg1: i32) -> (i32, i32, i32, i32) {
    %c0_i32 = arith.constant 0 : i32
    %c0_i32_0 = arith.constant 0 : i32
    %c0_i32_1 = arith.constant 0 : i32
    return %arg0, %c0_i32, %c0_i32_0, %arg1 : i32, i32, i32, i32
  }
}

module attributes {stable_mosaic.version = 11 : i64} {
  func.func @conv_bn_kernel(%arg0: i32, %arg1: i32, %arg2: memref<1x1x10x10x128xbf16, #tpu.memory_space<vmem>>, %arg3: memref<9x128x128xbf16, #tpu.memory_space<vmem>>, %arg4: memref<1x128xf32, #tpu.memory_space<vmem>>, %arg5: memref<1x128xf32, #tpu.memory_space<vmem>>, %arg6: memref<1x8x8x128xbf16, #tpu.memory_space<vmem>>) attributes {dimension_semantics = [#tpu.dimension_semantics<parallel>, #tpu.dimension_semantics<parallel>], iteration_bounds = array<i64: 2, 1>, scalar_prefetch = 0 : i64, scratch_operands = 0 : i64, tpu.core_type = #tpu.core_type<tc>, window_params = [{transform_indices = @transform_0, window_bounds = array<i64: 1, 1, 10, 10, 128>}, {transform_indices = @transform_1, window_bounds = array<i64: 9, 128, 128>}, {transform_indices = @transform_2, window_bounds = array<i64: 1, 128>}, {transform_indices = @transform_3, window_bounds = array<i64: 1, 128>}, {transform_indices = @transform_4, window_bounds = array<i64: 1, 8, 8, 128>}]} {
    %c0 = arith.constant 0 : index
    %c0_0 = arith.constant 0 : index
    %c0_1 = arith.constant 0 : index
    %c0_2 = arith.constant 0 : index
    %c0_3 = arith.constant 0 : index
    %0 = vector.load %arg2[%c0, %c0_0, %c0_1, %c0_2, %c0_3] : memref<1x1x10x10x128xbf16, #tpu.memory_space<vmem>>, vector<1x1x10x10x128xbf16>
    %1 = vector.shape_cast %0 : vector<1x1x10x10x128xbf16> to vector<10x10x128xbf16>
    %cst = arith.constant 0.000000e+00 : f32
    %2 = vector.broadcast %cst : f32 to vector<64x128xf32>
    %3 = vector.extract_strided_slice %1 {offsets = [0, 0, 0], sizes = [8, 8, 128], strides = [1, 1, 1]} : vector<10x10x128xbf16> to vector<8x8x128xbf16>
    %4 = vector.shape_cast %3 : vector<8x8x128xbf16> to vector<64x128xbf16>
    %c0_4 = arith.constant 0 : index
    %c0_5 = arith.constant 0 : index
    %c0_6 = arith.constant 0 : index
    %5 = vector.load %arg3[%c0_4, %c0_5, %c0_6] : memref<9x128x128xbf16, #tpu.memory_space<vmem>>, vector<1x128x128xbf16>
    %6 = vector.shape_cast %5 : vector<1x128x128xbf16> to vector<128x128xbf16>
    %cst_7 = arith.constant dense<0.000000e+00> : vector<64x128xf32>
    %7 = tpu.matmul %4, %6, %cst_7 {dimension_numbers = #tpu.dot_dimension_numbers<[1], [0], [0], [1], [0, 0, 1, 1], [], []>} : vector<64x128xbf16>, vector<128x128xbf16>, vector<64x128xf32> -> vector<64x128xf32>
    %8 = arith.addf %2, %7 : vector<64x128xf32>
    %9 = vector.extract_strided_slice %1 {offsets = [0, 1, 0], sizes = [8, 8, 128], strides = [1, 1, 1]} : vector<10x10x128xbf16> to vector<8x8x128xbf16>
    %10 = vector.shape_cast %9 : vector<8x8x128xbf16> to vector<64x128xbf16>
    %c1 = arith.constant 1 : index
    %c0_8 = arith.constant 0 : index
    %c0_9 = arith.constant 0 : index
    %11 = vector.load %arg3[%c1, %c0_8, %c0_9] : memref<9x128x128xbf16, #tpu.memory_space<vmem>>, vector<1x128x128xbf16>
    %12 = vector.shape_cast %11 : vector<1x128x128xbf16> to vector<128x128xbf16>
    %cst_10 = arith.constant dense<0.000000e+00> : vector<64x128xf32>
    %13 = tpu.matmul %10, %12, %cst_10 {dimension_numbers = #tpu.dot_dimension_numbers<[1], [0], [0], [1], [0, 0, 1, 1], [], []>} : vector<64x128xbf16>, vector<128x128xbf16>, vector<64x128xf32> -> vector<64x128xf32>
    %14 = arith.addf %8, %13 : vector<64x128xf32>
    %15 = vector.extract_strided_slice %1 {offsets = [0, 2, 0], sizes = [8, 8, 128], strides = [1, 1, 1]} : vector<10x10x128xbf16> to vector<8x8x128xbf16>
    %16 = vector.shape_cast %15 : vector<8x8x128xbf16> to vector<64x128xbf16>
    %c2 = arith.constant 2 : index
    %c0_11 = arith.constant 0 : index
    %c0_12 = arith.constant 0 : index
    %17 = vector.load %arg3[%c2, %c0_11, %c0_12] : memref<9x128x128xbf16, #tpu.memory_space<vmem>>, vector<1x128x128xbf16>
    %18 = vector.shape_cast %17 : vector<1x128x128xbf16> to vector<128x128xbf16>
    %cst_13 = arith.constant dense<0.000000e+00> : vector<64x128xf32>
    %19 = tpu.matmul %16, %18, %cst_13 {dimension_numbers = #tpu.dot_dimension_numbers<[1], [0], [0], [1], [0, 0, 1, 1], [], []>} : vector<64x128xbf16>, vector<128x128xbf16>, vector<64x128xf32> -> vector<64x128xf32>
    %20 = arith.addf %14, %19 : vector<64x128xf32>
    %21 = vector.extract_strided_slice %1 {offsets = [1, 0, 0], sizes = [8, 8, 128], strides = [1, 1, 1]} : vector<10x10x128xbf16> to vector<8x8x128xbf16>
    %22 = vector.shape_cast %21 : vector<8x8x128xbf16> to vector<64x128xbf16>
    %c3 = arith.constant 3 : index
    %c0_14 = arith.constant 0 : index
    %c0_15 = arith.constant 0 : index
    %23 = vector.load %arg3[%c3, %c0_14, %c0_15] : memref<9x128x128xbf16, #tpu.memory_space<vmem>>, vector<1x128x128xbf16>
    %24 = vector.shape_cast %23 : vector<1x128x128xbf16> to vector<128x128xbf16>
    %cst_16 = arith.constant dense<0.000000e+00> : vector<64x128xf32>
    %25 = tpu.matmul %22, %24, %cst_16 {dimension_numbers = #tpu.dot_dimension_numbers<[1], [0], [0], [1], [0, 0, 1, 1], [], []>} : vector<64x128xbf16>, vector<128x128xbf16>, vector<64x128xf32> -> vector<64x128xf32>
    %26 = arith.addf %20, %25 : vector<64x128xf32>
    %27 = vector.extract_strided_slice %1 {offsets = [1, 1, 0], sizes = [8, 8, 128], strides = [1, 1, 1]} : vector<10x10x128xbf16> to vector<8x8x128xbf16>
    %28 = vector.shape_cast %27 : vector<8x8x128xbf16> to vector<64x128xbf16>
    %c4 = arith.constant 4 : index
    %c0_17 = arith.constant 0 : index
    %c0_18 = arith.constant 0 : index
    %29 = vector.load %arg3[%c4, %c0_17, %c0_18] : memref<9x128x128xbf16, #tpu.memory_space<vmem>>, vector<1x128x128xbf16>
    %30 = vector.shape_cast %29 : vector<1x128x128xbf16> to vector<128x128xbf16>
    %cst_19 = arith.constant dense<0.000000e+00> : vector<64x128xf32>
    %31 = tpu.matmul %28, %30, %cst_19 {dimension_numbers = #tpu.dot_dimension_numbers<[1], [0], [0], [1], [0, 0, 1, 1], [], []>} : vector<64x128xbf16>, vector<128x128xbf16>, vector<64x128xf32> -> vector<64x128xf32>
    %32 = arith.addf %26, %31 : vector<64x128xf32>
    %33 = vector.extract_strided_slice %1 {offsets = [1, 2, 0], sizes = [8, 8, 128], strides = [1, 1, 1]} : vector<10x10x128xbf16> to vector<8x8x128xbf16>
    %34 = vector.shape_cast %33 : vector<8x8x128xbf16> to vector<64x128xbf16>
    %c5 = arith.constant 5 : index
    %c0_20 = arith.constant 0 : index
    %c0_21 = arith.constant 0 : index
    %35 = vector.load %arg3[%c5, %c0_20, %c0_21] : memref<9x128x128xbf16, #tpu.memory_space<vmem>>, vector<1x128x128xbf16>
    %36 = vector.shape_cast %35 : vector<1x128x128xbf16> to vector<128x128xbf16>
    %cst_22 = arith.constant dense<0.000000e+00> : vector<64x128xf32>
    %37 = tpu.matmul %34, %36, %cst_22 {dimension_numbers = #tpu.dot_dimension_numbers<[1], [0], [0], [1], [0, 0, 1, 1], [], []>} : vector<64x128xbf16>, vector<128x128xbf16>, vector<64x128xf32> -> vector<64x128xf32>
    %38 = arith.addf %32, %37 : vector<64x128xf32>
    %39 = vector.extract_strided_slice %1 {offsets = [2, 0, 0], sizes = [8, 8, 128], strides = [1, 1, 1]} : vector<10x10x128xbf16> to vector<8x8x128xbf16>
    %40 = vector.shape_cast %39 : vector<8x8x128xbf16> to vector<64x128xbf16>
    %c6 = arith.constant 6 : index
    %c0_23 = arith.constant 0 : index
    %c0_24 = arith.constant 0 : index
    %41 = vector.load %arg3[%c6, %c0_23, %c0_24] : memref<9x128x128xbf16, #tpu.memory_space<vmem>>, vector<1x128x128xbf16>
    %42 = vector.shape_cast %41 : vector<1x128x128xbf16> to vector<128x128xbf16>
    %cst_25 = arith.constant dense<0.000000e+00> : vector<64x128xf32>
    %43 = tpu.matmul %40, %42, %cst_25 {dimension_numbers = #tpu.dot_dimension_numbers<[1], [0], [0], [1], [0, 0, 1, 1], [], []>} : vector<64x128xbf16>, vector<128x128xbf16>, vector<64x128xf32> -> vector<64x128xf32>
    %44 = arith.addf %38, %43 : vector<64x128xf32>
    %45 = vector.extract_strided_slice %1 {offsets = [2, 1, 0], sizes = [8, 8, 128], strides = [1, 1, 1]} : vector<10x10x128xbf16> to vector<8x8x128xbf16>
    %46 = vector.shape_cast %45 : vector<8x8x128xbf16> to vector<64x128xbf16>
    %c7 = arith.constant 7 : index
    %c0_26 = arith.constant 0 : index
    %c0_27 = arith.constant 0 : index
    %47 = vector.load %arg3[%c7, %c0_26, %c0_27] : memref<9x128x128xbf16, #tpu.memory_space<vmem>>, vector<1x128x128xbf16>
    %48 = vector.shape_cast %47 : vector<1x128x128xbf16> to vector<128x128xbf16>
    %cst_28 = arith.constant dense<0.000000e+00> : vector<64x128xf32>
    %49 = tpu.matmul %46, %48, %cst_28 {dimension_numbers = #tpu.dot_dimension_numbers<[1], [0], [0], [1], [0, 0, 1, 1], [], []>} : vector<64x128xbf16>, vector<128x128xbf16>, vector<64x128xf32> -> vector<64x128xf32>
    %50 = arith.addf %44, %49 : vector<64x128xf32>
    %51 = vector.extract_strided_slice %1 {offsets = [2, 2, 0], sizes = [8, 8, 128], strides = [1, 1, 1]} : vector<10x10x128xbf16> to vector<8x8x128xbf16>
    %52 = vector.shape_cast %51 : vector<8x8x128xbf16> to vector<64x128xbf16>
    %c8 = arith.constant 8 : index
    %c0_29 = arith.constant 0 : index
    %c0_30 = arith.constant 0 : index
    %53 = vector.load %arg3[%c8, %c0_29, %c0_30] : memref<9x128x128xbf16, #tpu.memory_space<vmem>>, vector<1x128x128xbf16>
    %54 = vector.shape_cast %53 : vector<1x128x128xbf16> to vector<128x128xbf16>
    %cst_31 = arith.constant dense<0.000000e+00> : vector<64x128xf32>
    %55 = tpu.matmul %52, %54, %cst_31 {dimension_numbers = #tpu.dot_dimension_numbers<[1], [0], [0], [1], [0, 0, 1, 1], [], []>} : vector<64x128xbf16>, vector<128x128xbf16>, vector<64x128xf32> -> vector<64x128xf32>
    %56 = arith.addf %50, %55 : vector<64x128xf32>
    %c0_32 = arith.constant 0 : index
    %c0_33 = arith.constant 0 : index
    %57 = vector.load %arg4[%c0_32, %c0_33] : memref<1x128xf32, #tpu.memory_space<vmem>>, vector<1x128xf32>
    %58 = vector.broadcast %57 : vector<1x128xf32> to vector<64x128xf32>
    %59 = arith.mulf %56, %58 : vector<64x128xf32>
    %c0_34 = arith.constant 0 : index
    %c0_35 = arith.constant 0 : index
    %60 = vector.load %arg5[%c0_34, %c0_35] : memref<1x128xf32, #tpu.memory_space<vmem>>, vector<1x128xf32>
    %61 = vector.broadcast %60 : vector<1x128xf32> to vector<64x128xf32>
    %62 = arith.addf %59, %61 : vector<64x128xf32>
    %63 = vector.shape_cast %62 : vector<64x128xf32> to vector<8x8x128xf32>
    %cst_36 = arith.constant 0.000000e+00 : f32
    %64 = vector.broadcast %cst_36 : f32 to vector<8x8x128xf32>
    %65 = arith.maximumf %63, %64 : vector<8x8x128xf32>
    %66 = arith.truncf %65 : vector<8x8x128xf32> to vector<8x8x128xbf16>
    %c0_37 = arith.constant 0 : index
    %c0_38 = arith.constant 0 : index
    %c0_39 = arith.constant 0 : index
    %c0_40 = arith.constant 0 : index
    %67 = vector.load %arg6[%c0_37, %c0_38, %c0_39, %c0_40] : memref<1x8x8x128xbf16, #tpu.memory_space<vmem>>, vector<1x8x8x128xbf16>
    %68 = vector.shape_cast %67 : vector<1x8x8x128xbf16> to vector<8x8x128xbf16>
    %69 = vector.shape_cast %66 : vector<8x8x128xbf16> to vector<1x8x8x128xbf16>
    tpu.vector_store %arg6[%c0_37, %c0_38, %c0_39, %c0_40], %69 {strides = array<i32>} : memref<1x8x8x128xbf16, #tpu.memory_space<vmem>>, vector<1x8x8x128xbf16>,
    return
  }
  func.func @transform_0(%arg0: i32, %arg1: i32) -> (i32, i32, i32, i32, i32) {
    %c0_i32 = arith.constant 0 : i32
    %c0_i32_0 = arith.constant 0 : i32
    %c0_i32_1 = arith.constant 0 : i32
    %c0_i32_2 = arith.constant 0 : i32
    %c0_i32_3 = arith.constant 0 : i32
    return %arg0, %c0_i32, %c0_i32_0, %c0_i32_1, %c0_i32_2 : i32, i32, i32, i32, i32
  }
  func.func @transform_1(%arg0: i32, %arg1: i32) -> (i32, i32, i32) {
    %c0_i32 = arith.constant 0 : i32
    %c0_i32_0 = arith.constant 0 : i32
    %c0_i32_1 = arith.constant 0 : i32
    return %c0_i32, %c0_i32_0, %arg1 : i32, i32, i32
  }
  func.func @transform_2(%arg0: i32, %arg1: i32) -> (i32, i32) {
    %c0_i32 = arith.constant 0 : i32
    %c0_i32_0 = arith.constant 0 : i32
    return %c0_i32, %arg1 : i32, i32
  }
  func.func @transform_3(%arg0: i32, %arg1: i32) -> (i32, i32) {
    %c0_i32 = arith.constant 0 : i32
    %c0_i32_0 = arith.constant 0 : i32
    return %c0_i32, %arg1 : i32, i32
  }
  func.func @transform_4(%arg0: i32, %arg1: i32) -> (i32, i32, i32, i32) {
    %c0_i32 = arith.constant 0 : i32
    %c0_i32_0 = arith.constant 0 : i32
    %c0_i32_1 = arith.constant 0 : i32
    return %arg0, %c0_i32, %c0_i32_0, %arg1 : i32, i32, i32, i32
  }
}

module attributes {stable_mosaic.version = 11 : i64} {
  func.func @conv_bn_kernel(%arg0: i32, %arg1: i32, %arg2: memref<1x1x10x10x128xbf16, #tpu.memory_space<vmem>>, %arg3: memref<9x128x128xbf16, #tpu.memory_space<vmem>>, %arg4: memref<1x128xf32, #tpu.memory_space<vmem>>, %arg5: memref<1x128xf32, #tpu.memory_space<vmem>>, %arg6: memref<1x8x8x128xf32, #tpu.memory_space<vmem>>, %arg7: memref<1x8x8x128xf32, #tpu.memory_space<vmem>>) attributes {dimension_semantics = [#tpu.dimension_semantics<parallel>, #tpu.dimension_semantics<parallel>], iteration_bounds = array<i64: 2, 1>, scalar_prefetch = 0 : i64, scratch_operands = 0 : i64, tpu.core_type = #tpu.core_type<tc>, window_params = [{transform_indices = @transform_0, window_bounds = array<i64: 1, 1, 10, 10, 128>}, {transform_indices = @transform_1, window_bounds = array<i64: 9, 128, 128>}, {transform_indices = @transform_2, window_bounds = array<i64: 1, 128>}, {transform_indices = @transform_3, window_bounds = array<i64: 1, 128>}, {transform_indices = @transform_4, window_bounds = array<i64: 1, 8, 8, 128>}, {transform_indices = @transform_5, window_bounds = array<i64: 1, 8, 8, 128>}]} {
    %c0 = arith.constant 0 : index
    %c0_0 = arith.constant 0 : index
    %c0_1 = arith.constant 0 : index
    %c0_2 = arith.constant 0 : index
    %c0_3 = arith.constant 0 : index
    %0 = vector.load %arg2[%c0, %c0_0, %c0_1, %c0_2, %c0_3] : memref<1x1x10x10x128xbf16, #tpu.memory_space<vmem>>, vector<1x1x10x10x128xbf16>
    %1 = vector.shape_cast %0 : vector<1x1x10x10x128xbf16> to vector<10x10x128xbf16>
    %cst = arith.constant 0.000000e+00 : f32
    %2 = vector.broadcast %cst : f32 to vector<64x128xf32>
    %3 = vector.extract_strided_slice %1 {offsets = [0, 0, 0], sizes = [8, 8, 128], strides = [1, 1, 1]} : vector<10x10x128xbf16> to vector<8x8x128xbf16>
    %4 = vector.shape_cast %3 : vector<8x8x128xbf16> to vector<64x128xbf16>
    %c0_4 = arith.constant 0 : index
    %c0_5 = arith.constant 0 : index
    %c0_6 = arith.constant 0 : index
    %5 = vector.load %arg3[%c0_4, %c0_5, %c0_6] : memref<9x128x128xbf16, #tpu.memory_space<vmem>>, vector<1x128x128xbf16>
    %6 = vector.shape_cast %5 : vector<1x128x128xbf16> to vector<128x128xbf16>
    %cst_7 = arith.constant dense<0.000000e+00> : vector<64x128xf32>
    %7 = tpu.matmul %4, %6, %cst_7 {dimension_numbers = #tpu.dot_dimension_numbers<[1], [0], [0], [1], [0, 0, 1, 1], [], []>} : vector<64x128xbf16>, vector<128x128xbf16>, vector<64x128xf32> -> vector<64x128xf32>
    %8 = arith.addf %2, %7 : vector<64x128xf32>
    %9 = vector.extract_strided_slice %1 {offsets = [0, 1, 0], sizes = [8, 8, 128], strides = [1, 1, 1]} : vector<10x10x128xbf16> to vector<8x8x128xbf16>
    %10 = vector.shape_cast %9 : vector<8x8x128xbf16> to vector<64x128xbf16>
    %c1 = arith.constant 1 : index
    %c0_8 = arith.constant 0 : index
    %c0_9 = arith.constant 0 : index
    %11 = vector.load %arg3[%c1, %c0_8, %c0_9] : memref<9x128x128xbf16, #tpu.memory_space<vmem>>, vector<1x128x128xbf16>
    %12 = vector.shape_cast %11 : vector<1x128x128xbf16> to vector<128x128xbf16>
    %cst_10 = arith.constant dense<0.000000e+00> : vector<64x128xf32>
    %13 = tpu.matmul %10, %12, %cst_10 {dimension_numbers = #tpu.dot_dimension_numbers<[1], [0], [0], [1], [0, 0, 1, 1], [], []>} : vector<64x128xbf16>, vector<128x128xbf16>, vector<64x128xf32> -> vector<64x128xf32>
    %14 = arith.addf %8, %13 : vector<64x128xf32>
    %15 = vector.extract_strided_slice %1 {offsets = [0, 2, 0], sizes = [8, 8, 128], strides = [1, 1, 1]} : vector<10x10x128xbf16> to vector<8x8x128xbf16>
    %16 = vector.shape_cast %15 : vector<8x8x128xbf16> to vector<64x128xbf16>
    %c2 = arith.constant 2 : index
    %c0_11 = arith.constant 0 : index
    %c0_12 = arith.constant 0 : index
    %17 = vector.load %arg3[%c2, %c0_11, %c0_12] : memref<9x128x128xbf16, #tpu.memory_space<vmem>>, vector<1x128x128xbf16>
    %18 = vector.shape_cast %17 : vector<1x128x128xbf16> to vector<128x128xbf16>
    %cst_13 = arith.constant dense<0.000000e+00> : vector<64x128xf32>
    %19 = tpu.matmul %16, %18, %cst_13 {dimension_numbers = #tpu.dot_dimension_numbers<[1], [0], [0], [1], [0, 0, 1, 1], [], []>} : vector<64x128xbf16>, vector<128x128xbf16>, vector<64x128xf32> -> vector<64x128xf32>
    %20 = arith.addf %14, %19 : vector<64x128xf32>
    %21 = vector.extract_strided_slice %1 {offsets = [1, 0, 0], sizes = [8, 8, 128], strides = [1, 1, 1]} : vector<10x10x128xbf16> to vector<8x8x128xbf16>
    %22 = vector.shape_cast %21 : vector<8x8x128xbf16> to vector<64x128xbf16>
    %c3 = arith.constant 3 : index
    %c0_14 = arith.constant 0 : index
    %c0_15 = arith.constant 0 : index
    %23 = vector.load %arg3[%c3, %c0_14, %c0_15] : memref<9x128x128xbf16, #tpu.memory_space<vmem>>, vector<1x128x128xbf16>
    %24 = vector.shape_cast %23 : vector<1x128x128xbf16> to vector<128x128xbf16>
    %cst_16 = arith.constant dense<0.000000e+00> : vector<64x128xf32>
    %25 = tpu.matmul %22, %24, %cst_16 {dimension_numbers = #tpu.dot_dimension_numbers<[1], [0], [0], [1], [0, 0, 1, 1], [], []>} : vector<64x128xbf16>, vector<128x128xbf16>, vector<64x128xf32> -> vector<64x128xf32>
    %26 = arith.addf %20, %25 : vector<64x128xf32>
    %27 = vector.extract_strided_slice %1 {offsets = [1, 1, 0], sizes = [8, 8, 128], strides = [1, 1, 1]} : vector<10x10x128xbf16> to vector<8x8x128xbf16>
    %28 = vector.shape_cast %27 : vector<8x8x128xbf16> to vector<64x128xbf16>
    %c4 = arith.constant 4 : index
    %c0_17 = arith.constant 0 : index
    %c0_18 = arith.constant 0 : index
    %29 = vector.load %arg3[%c4, %c0_17, %c0_18] : memref<9x128x128xbf16, #tpu.memory_space<vmem>>, vector<1x128x128xbf16>
    %30 = vector.shape_cast %29 : vector<1x128x128xbf16> to vector<128x128xbf16>
    %cst_19 = arith.constant dense<0.000000e+00> : vector<64x128xf32>
    %31 = tpu.matmul %28, %30, %cst_19 {dimension_numbers = #tpu.dot_dimension_numbers<[1], [0], [0], [1], [0, 0, 1, 1], [], []>} : vector<64x128xbf16>, vector<128x128xbf16>, vector<64x128xf32> -> vector<64x128xf32>
    %32 = arith.addf %26, %31 : vector<64x128xf32>
    %33 = vector.extract_strided_slice %1 {offsets = [1, 2, 0], sizes = [8, 8, 128], strides = [1, 1, 1]} : vector<10x10x128xbf16> to vector<8x8x128xbf16>
    %34 = vector.shape_cast %33 : vector<8x8x128xbf16> to vector<64x128xbf16>
    %c5 = arith.constant 5 : index
    %c0_20 = arith.constant 0 : index
    %c0_21 = arith.constant 0 : index
    %35 = vector.load %arg3[%c5, %c0_20, %c0_21] : memref<9x128x128xbf16, #tpu.memory_space<vmem>>, vector<1x128x128xbf16>
    %36 = vector.shape_cast %35 : vector<1x128x128xbf16> to vector<128x128xbf16>
    %cst_22 = arith.constant dense<0.000000e+00> : vector<64x128xf32>
    %37 = tpu.matmul %34, %36, %cst_22 {dimension_numbers = #tpu.dot_dimension_numbers<[1], [0], [0], [1], [0, 0, 1, 1], [], []>} : vector<64x128xbf16>, vector<128x128xbf16>, vector<64x128xf32> -> vector<64x128xf32>
    %38 = arith.addf %32, %37 : vector<64x128xf32>
    %39 = vector.extract_strided_slice %1 {offsets = [2, 0, 0], sizes = [8, 8, 128], strides = [1, 1, 1]} : vector<10x10x128xbf16> to vector<8x8x128xbf16>
    %40 = vector.shape_cast %39 : vector<8x8x128xbf16> to vector<64x128xbf16>
    %c6 = arith.constant 6 : index
    %c0_23 = arith.constant 0 : index
    %c0_24 = arith.constant 0 : index
    %41 = vector.load %arg3[%c6, %c0_23, %c0_24] : memref<9x128x128xbf16, #tpu.memory_space<vmem>>, vector<1x128x128xbf16>
    %42 = vector.shape_cast %41 : vector<1x128x128xbf16> to vector<128x128xbf16>
    %cst_25 = arith.constant dense<0.000000e+00> : vector<64x128xf32>
    %43 = tpu.matmul %40, %42, %cst_25 {dimension_numbers = #tpu.dot_dimension_numbers<[1], [0], [0], [1], [0, 0, 1, 1], [], []>} : vector<64x128xbf16>, vector<128x128xbf16>, vector<64x128xf32> -> vector<64x128xf32>
    %44 = arith.addf %38, %43 : vector<64x128xf32>
    %45 = vector.extract_strided_slice %1 {offsets = [2, 1, 0], sizes = [8, 8, 128], strides = [1, 1, 1]} : vector<10x10x128xbf16> to vector<8x8x128xbf16>
    %46 = vector.shape_cast %45 : vector<8x8x128xbf16> to vector<64x128xbf16>
    %c7 = arith.constant 7 : index
    %c0_26 = arith.constant 0 : index
    %c0_27 = arith.constant 0 : index
    %47 = vector.load %arg3[%c7, %c0_26, %c0_27] : memref<9x128x128xbf16, #tpu.memory_space<vmem>>, vector<1x128x128xbf16>
    %48 = vector.shape_cast %47 : vector<1x128x128xbf16> to vector<128x128xbf16>
    %cst_28 = arith.constant dense<0.000000e+00> : vector<64x128xf32>
    %49 = tpu.matmul %46, %48, %cst_28 {dimension_numbers = #tpu.dot_dimension_numbers<[1], [0], [0], [1], [0, 0, 1, 1], [], []>} : vector<64x128xbf16>, vector<128x128xbf16>, vector<64x128xf32> -> vector<64x128xf32>
    %50 = arith.addf %44, %49 : vector<64x128xf32>
    %51 = vector.extract_strided_slice %1 {offsets = [2, 2, 0], sizes = [8, 8, 128], strides = [1, 1, 1]} : vector<10x10x128xbf16> to vector<8x8x128xbf16>
    %52 = vector.shape_cast %51 : vector<8x8x128xbf16> to vector<64x128xbf16>
    %c8 = arith.constant 8 : index
    %c0_29 = arith.constant 0 : index
    %c0_30 = arith.constant 0 : index
    %53 = vector.load %arg3[%c8, %c0_29, %c0_30] : memref<9x128x128xbf16, #tpu.memory_space<vmem>>, vector<1x128x128xbf16>
    %54 = vector.shape_cast %53 : vector<1x128x128xbf16> to vector<128x128xbf16>
    %cst_31 = arith.constant dense<0.000000e+00> : vector<64x128xf32>
    %55 = tpu.matmul %52, %54, %cst_31 {dimension_numbers = #tpu.dot_dimension_numbers<[1], [0], [0], [1], [0, 0, 1, 1], [], []>} : vector<64x128xbf16>, vector<128x128xbf16>, vector<64x128xf32> -> vector<64x128xf32>
    %56 = arith.addf %50, %55 : vector<64x128xf32>
    %c0_32 = arith.constant 0 : index
    %c0_33 = arith.constant 0 : index
    %57 = vector.load %arg4[%c0_32, %c0_33] : memref<1x128xf32, #tpu.memory_space<vmem>>, vector<1x128xf32>
    %58 = vector.broadcast %57 : vector<1x128xf32> to vector<64x128xf32>
    %59 = arith.mulf %56, %58 : vector<64x128xf32>
    %c0_34 = arith.constant 0 : index
    %c0_35 = arith.constant 0 : index
    %60 = vector.load %arg5[%c0_34, %c0_35] : memref<1x128xf32, #tpu.memory_space<vmem>>, vector<1x128xf32>
    %61 = vector.broadcast %60 : vector<1x128xf32> to vector<64x128xf32>
    %62 = arith.addf %59, %61 : vector<64x128xf32>
    %63 = vector.shape_cast %62 : vector<64x128xf32> to vector<8x8x128xf32>
    %c0_36 = arith.constant 0 : index
    %c0_37 = arith.constant 0 : index
    %c0_38 = arith.constant 0 : index
    %c0_39 = arith.constant 0 : index
    %64 = vector.load %arg6[%c0_36, %c0_37, %c0_38, %c0_39] : memref<1x8x8x128xf32, #tpu.memory_space<vmem>>, vector<1x8x8x128xf32>
    %65 = vector.shape_cast %64 : vector<1x8x8x128xf32> to vector<8x8x128xf32>
    %66 = arith.addf %63, %65 : vector<8x8x128xf32>
    %cst_40 = arith.constant 0.000000e+00 : f32
    %67 = vector.broadcast %cst_40 : f32 to vector<8x8x128xf32>
    %68 = arith.maximumf %66, %67 : vector<8x8x128xf32>
    %c0_41 = arith.constant 0 : index
    %c0_42 = arith.constant 0 : index
    %c0_43 = arith.constant 0 : index
    %c0_44 = arith.constant 0 : index
    %69 = vector.load %arg7[%c0_41, %c0_42, %c0_43, %c0_44] : memref<1x8x8x128xf32, #tpu.memory_space<vmem>>, vector<1x8x8x128xf32>
    %70 = vector.shape_cast %69 : vector<1x8x8x128xf32> to vector<8x8x128xf32>
    %71 = vector.shape_cast %68 : vector<8x8x128xf32> to vector<1x8x8x128xf32>
    tpu.vector_store %arg7[%c0_41, %c0_42, %c0_43, %c0_44], %71 {strides = array<i32>} : memref<1x8x8x128xf32, #tpu.memory_space<vmem>>, vector<1x8x8x128xf32>,
    return
  }
  func.func @transform_0(%arg0: i32, %arg1: i32) -> (i32, i32, i32, i32, i32) {
    %c0_i32 = arith.constant 0 : i32
    %c0_i32_0 = arith.constant 0 : i32
    %c0_i32_1 = arith.constant 0 : i32
    %c0_i32_2 = arith.constant 0 : i32
    %c0_i32_3 = arith.constant 0 : i32
    return %arg0, %c0_i32, %c0_i32_0, %c0_i32_1, %c0_i32_2 : i32, i32, i32, i32, i32
  }
  func.func @transform_1(%arg0: i32, %arg1: i32) -> (i32, i32, i32) {
    %c0_i32 = arith.constant 0 : i32
    %c0_i32_0 = arith.constant 0 : i32
    %c0_i32_1 = arith.constant 0 : i32
    return %c0_i32, %c0_i32_0, %arg1 : i32, i32, i32
  }
  func.func @transform_2(%arg0: i32, %arg1: i32) -> (i32, i32) {
    %c0_i32 = arith.constant 0 : i32
    %c0_i32_0 = arith.constant 0 : i32
    return %c0_i32, %arg1 : i32, i32
  }
  func.func @transform_3(%arg0: i32, %arg1: i32) -> (i32, i32) {
    %c0_i32 = arith.constant 0 : i32
    %c0_i32_0 = arith.constant 0 : i32
    return %c0_i32, %arg1 : i32, i32
  }
  func.func @transform_4(%arg0: i32, %arg1: i32) -> (i32, i32, i32, i32) {
    %c0_i32 = arith.constant 0 : i32
    %c0_i32_0 = arith.constant 0 : i32
    %c0_i32_1 = arith.constant 0 : i32
    return %arg0, %c0_i32, %c0_i32_0, %arg1 : i32, i32, i32, i32
  }
  func.func @transform_5(%arg0: i32, %arg1: i32) -> (i32, i32, i32, i32) {
    %c0_i32 = arith.constant 0 : i32
    %c0_i32_0 = arith.constant 0 : i32
    %c0_i32_1 = arith.constant 0 : i32
    return %arg0, %c0_i32, %c0_i32_0, %arg1 : i32, i32, i32, i32
  }
}

module attributes {stable_mosaic.version = 11 : i64} {
  func.func @conv_bn_kernel(%arg0: i32, %arg1: i32, %arg2: memref<1x1x10x10x128xbf16, #tpu.memory_space<vmem>>, %arg3: memref<9x128x128xbf16, #tpu.memory_space<vmem>>, %arg4: memref<1x128xf32, #tpu.memory_space<vmem>>, %arg5: memref<1x128xf32, #tpu.memory_space<vmem>>, %arg6: memref<1x8x8x128xf32, #tpu.memory_space<vmem>>, %arg7: memref<1x8x8x128xf32, #tpu.memory_space<vmem>>) attributes {dimension_semantics = [#tpu.dimension_semantics<parallel>, #tpu.dimension_semantics<parallel>], iteration_bounds = array<i64: 2, 1>, scalar_prefetch = 0 : i64, scratch_operands = 0 : i64, tpu.core_type = #tpu.core_type<tc>, window_params = [{transform_indices = @transform_0, window_bounds = array<i64: 1, 1, 10, 10, 128>}, {transform_indices = @transform_1, window_bounds = array<i64: 9, 128, 128>}, {transform_indices = @transform_2, window_bounds = array<i64: 1, 128>}, {transform_indices = @transform_3, window_bounds = array<i64: 1, 128>}, {transform_indices = @transform_4, window_bounds = array<i64: 1, 8, 8, 128>}, {transform_indices = @transform_5, window_bounds = array<i64: 1, 8, 8, 128>}]} {
    %c0 = arith.constant 0 : index
    %c0_0 = arith.constant 0 : index
    %c0_1 = arith.constant 0 : index
    %c0_2 = arith.constant 0 : index
    %c0_3 = arith.constant 0 : index
    %0 = vector.load %arg2[%c0, %c0_0, %c0_1, %c0_2, %c0_3] : memref<1x1x10x10x128xbf16, #tpu.memory_space<vmem>>, vector<1x1x10x10x128xbf16>
    %1 = vector.shape_cast %0 : vector<1x1x10x10x128xbf16> to vector<10x10x128xbf16>
    %cst = arith.constant 0.000000e+00 : f32
    %2 = vector.broadcast %cst : f32 to vector<64x128xf32>
    %3 = vector.extract_strided_slice %1 {offsets = [0, 0, 0], sizes = [8, 8, 128], strides = [1, 1, 1]} : vector<10x10x128xbf16> to vector<8x8x128xbf16>
    %4 = vector.shape_cast %3 : vector<8x8x128xbf16> to vector<64x128xbf16>
    %c0_4 = arith.constant 0 : index
    %c0_5 = arith.constant 0 : index
    %c0_6 = arith.constant 0 : index
    %5 = vector.load %arg3[%c0_4, %c0_5, %c0_6] : memref<9x128x128xbf16, #tpu.memory_space<vmem>>, vector<1x128x128xbf16>
    %6 = vector.shape_cast %5 : vector<1x128x128xbf16> to vector<128x128xbf16>
    %cst_7 = arith.constant dense<0.000000e+00> : vector<64x128xf32>
    %7 = tpu.matmul %4, %6, %cst_7 {dimension_numbers = #tpu.dot_dimension_numbers<[1], [0], [0], [1], [0, 0, 1, 1], [], []>} : vector<64x128xbf16>, vector<128x128xbf16>, vector<64x128xf32> -> vector<64x128xf32>
    %8 = arith.addf %2, %7 : vector<64x128xf32>
    %9 = vector.extract_strided_slice %1 {offsets = [0, 1, 0], sizes = [8, 8, 128], strides = [1, 1, 1]} : vector<10x10x128xbf16> to vector<8x8x128xbf16>
    %10 = vector.shape_cast %9 : vector<8x8x128xbf16> to vector<64x128xbf16>
    %c1 = arith.constant 1 : index
    %c0_8 = arith.constant 0 : index
    %c0_9 = arith.constant 0 : index
    %11 = vector.load %arg3[%c1, %c0_8, %c0_9] : memref<9x128x128xbf16, #tpu.memory_space<vmem>>, vector<1x128x128xbf16>
    %12 = vector.shape_cast %11 : vector<1x128x128xbf16> to vector<128x128xbf16>
    %cst_10 = arith.constant dense<0.000000e+00> : vector<64x128xf32>
    %13 = tpu.matmul %10, %12, %cst_10 {dimension_numbers = #tpu.dot_dimension_numbers<[1], [0], [0], [1], [0, 0, 1, 1], [], []>} : vector<64x128xbf16>, vector<128x128xbf16>, vector<64x128xf32> -> vector<64x128xf32>
    %14 = arith.addf %8, %13 : vector<64x128xf32>
    %15 = vector.extract_strided_slice %1 {offsets = [0, 2, 0], sizes = [8, 8, 128], strides = [1, 1, 1]} : vector<10x10x128xbf16> to vector<8x8x128xbf16>
    %16 = vector.shape_cast %15 : vector<8x8x128xbf16> to vector<64x128xbf16>
    %c2 = arith.constant 2 : index
    %c0_11 = arith.constant 0 : index
    %c0_12 = arith.constant 0 : index
    %17 = vector.load %arg3[%c2, %c0_11, %c0_12] : memref<9x128x128xbf16, #tpu.memory_space<vmem>>, vector<1x128x128xbf16>
    %18 = vector.shape_cast %17 : vector<1x128x128xbf16> to vector<128x128xbf16>
    %cst_13 = arith.constant dense<0.000000e+00> : vector<64x128xf32>
    %19 = tpu.matmul %16, %18, %cst_13 {dimension_numbers = #tpu.dot_dimension_numbers<[1], [0], [0], [1], [0, 0, 1, 1], [], []>} : vector<64x128xbf16>, vector<128x128xbf16>, vector<64x128xf32> -> vector<64x128xf32>
    %20 = arith.addf %14, %19 : vector<64x128xf32>
    %21 = vector.extract_strided_slice %1 {offsets = [1, 0, 0], sizes = [8, 8, 128], strides = [1, 1, 1]} : vector<10x10x128xbf16> to vector<8x8x128xbf16>
    %22 = vector.shape_cast %21 : vector<8x8x128xbf16> to vector<64x128xbf16>
    %c3 = arith.constant 3 : index
    %c0_14 = arith.constant 0 : index
    %c0_15 = arith.constant 0 : index
    %23 = vector.load %arg3[%c3, %c0_14, %c0_15] : memref<9x128x128xbf16, #tpu.memory_space<vmem>>, vector<1x128x128xbf16>
    %24 = vector.shape_cast %23 : vector<1x128x128xbf16> to vector<128x128xbf16>
    %cst_16 = arith.constant dense<0.000000e+00> : vector<64x128xf32>
    %25 = tpu.matmul %22, %24, %cst_16 {dimension_numbers = #tpu.dot_dimension_numbers<[1], [0], [0], [1], [0, 0, 1, 1], [], []>} : vector<64x128xbf16>, vector<128x128xbf16>, vector<64x128xf32> -> vector<64x128xf32>
    %26 = arith.addf %20, %25 : vector<64x128xf32>
    %27 = vector.extract_strided_slice %1 {offsets = [1, 1, 0], sizes = [8, 8, 128], strides = [1, 1, 1]} : vector<10x10x128xbf16> to vector<8x8x128xbf16>
    %28 = vector.shape_cast %27 : vector<8x8x128xbf16> to vector<64x128xbf16>
    %c4 = arith.constant 4 : index
    %c0_17 = arith.constant 0 : index
    %c0_18 = arith.constant 0 : index
    %29 = vector.load %arg3[%c4, %c0_17, %c0_18] : memref<9x128x128xbf16, #tpu.memory_space<vmem>>, vector<1x128x128xbf16>
    %30 = vector.shape_cast %29 : vector<1x128x128xbf16> to vector<128x128xbf16>
    %cst_19 = arith.constant dense<0.000000e+00> : vector<64x128xf32>
    %31 = tpu.matmul %28, %30, %cst_19 {dimension_numbers = #tpu.dot_dimension_numbers<[1], [0], [0], [1], [0, 0, 1, 1], [], []>} : vector<64x128xbf16>, vector<128x128xbf16>, vector<64x128xf32> -> vector<64x128xf32>
    %32 = arith.addf %26, %31 : vector<64x128xf32>
    %33 = vector.extract_strided_slice %1 {offsets = [1, 2, 0], sizes = [8, 8, 128], strides = [1, 1, 1]} : vector<10x10x128xbf16> to vector<8x8x128xbf16>
    %34 = vector.shape_cast %33 : vector<8x8x128xbf16> to vector<64x128xbf16>
    %c5 = arith.constant 5 : index
    %c0_20 = arith.constant 0 : index
    %c0_21 = arith.constant 0 : index
    %35 = vector.load %arg3[%c5, %c0_20, %c0_21] : memref<9x128x128xbf16, #tpu.memory_space<vmem>>, vector<1x128x128xbf16>
    %36 = vector.shape_cast %35 : vector<1x128x128xbf16> to vector<128x128xbf16>
    %cst_22 = arith.constant dense<0.000000e+00> : vector<64x128xf32>
    %37 = tpu.matmul %34, %36, %cst_22 {dimension_numbers = #tpu.dot_dimension_numbers<[1], [0], [0], [1], [0, 0, 1, 1], [], []>} : vector<64x128xbf16>, vector<128x128xbf16>, vector<64x128xf32> -> vector<64x128xf32>
    %38 = arith.addf %32, %37 : vector<64x128xf32>
    %39 = vector.extract_strided_slice %1 {offsets = [2, 0, 0], sizes = [8, 8, 128], strides = [1, 1, 1]} : vector<10x10x128xbf16> to vector<8x8x128xbf16>
    %40 = vector.shape_cast %39 : vector<8x8x128xbf16> to vector<64x128xbf16>
    %c6 = arith.constant 6 : index
    %c0_23 = arith.constant 0 : index
    %c0_24 = arith.constant 0 : index
    %41 = vector.load %arg3[%c6, %c0_23, %c0_24] : memref<9x128x128xbf16, #tpu.memory_space<vmem>>, vector<1x128x128xbf16>
    %42 = vector.shape_cast %41 : vector<1x128x128xbf16> to vector<128x128xbf16>
    %cst_25 = arith.constant dense<0.000000e+00> : vector<64x128xf32>
    %43 = tpu.matmul %40, %42, %cst_25 {dimension_numbers = #tpu.dot_dimension_numbers<[1], [0], [0], [1], [0, 0, 1, 1], [], []>} : vector<64x128xbf16>, vector<128x128xbf16>, vector<64x128xf32> -> vector<64x128xf32>
    %44 = arith.addf %38, %43 : vector<64x128xf32>
    %45 = vector.extract_strided_slice %1 {offsets = [2, 1, 0], sizes = [8, 8, 128], strides = [1, 1, 1]} : vector<10x10x128xbf16> to vector<8x8x128xbf16>
    %46 = vector.shape_cast %45 : vector<8x8x128xbf16> to vector<64x128xbf16>
    %c7 = arith.constant 7 : index
    %c0_26 = arith.constant 0 : index
    %c0_27 = arith.constant 0 : index
    %47 = vector.load %arg3[%c7, %c0_26, %c0_27] : memref<9x128x128xbf16, #tpu.memory_space<vmem>>, vector<1x128x128xbf16>
    %48 = vector.shape_cast %47 : vector<1x128x128xbf16> to vector<128x128xbf16>
    %cst_28 = arith.constant dense<0.000000e+00> : vector<64x128xf32>
    %49 = tpu.matmul %46, %48, %cst_28 {dimension_numbers = #tpu.dot_dimension_numbers<[1], [0], [0], [1], [0, 0, 1, 1], [], []>} : vector<64x128xbf16>, vector<128x128xbf16>, vector<64x128xf32> -> vector<64x128xf32>
    %50 = arith.addf %44, %49 : vector<64x128xf32>
    %51 = vector.extract_strided_slice %1 {offsets = [2, 2, 0], sizes = [8, 8, 128], strides = [1, 1, 1]} : vector<10x10x128xbf16> to vector<8x8x128xbf16>
    %52 = vector.shape_cast %51 : vector<8x8x128xbf16> to vector<64x128xbf16>
    %c8 = arith.constant 8 : index
    %c0_29 = arith.constant 0 : index
    %c0_30 = arith.constant 0 : index
    %53 = vector.load %arg3[%c8, %c0_29, %c0_30] : memref<9x128x128xbf16, #tpu.memory_space<vmem>>, vector<1x128x128xbf16>
    %54 = vector.shape_cast %53 : vector<1x128x128xbf16> to vector<128x128xbf16>
    %cst_31 = arith.constant dense<0.000000e+00> : vector<64x128xf32>
    %55 = tpu.matmul %52, %54, %cst_31 {dimension_numbers = #tpu.dot_dimension_numbers<[1], [0], [0], [1], [0, 0, 1, 1], [], []>} : vector<64x128xbf16>, vector<128x128xbf16>, vector<64x128xf32> -> vector<64x128xf32>
    %56 = arith.addf %50, %55 : vector<64x128xf32>
    %c0_32 = arith.constant 0 : index
    %c0_33 = arith.constant 0 : index
    %57 = vector.load %arg4[%c0_32, %c0_33] : memref<1x128xf32, #tpu.memory_space<vmem>>, vector<1x128xf32>
    %58 = vector.broadcast %57 : vector<1x128xf32> to vector<64x128xf32>
    %59 = arith.mulf %56, %58 : vector<64x128xf32>
    %c0_34 = arith.constant 0 : index
    %c0_35 = arith.constant 0 : index
    %60 = vector.load %arg5[%c0_34, %c0_35] : memref<1x128xf32, #tpu.memory_space<vmem>>, vector<1x128xf32>
    %61 = vector.broadcast %60 : vector<1x128xf32> to vector<64x128xf32>
    %62 = arith.addf %59, %61 : vector<64x128xf32>
    %63 = vector.shape_cast %62 : vector<64x128xf32> to vector<8x8x128xf32>
    %c0_36 = arith.constant 0 : index
    %c0_37 = arith.constant 0 : index
    %c0_38 = arith.constant 0 : index
    %c0_39 = arith.constant 0 : index
    %64 = vector.load %arg6[%c0_36, %c0_37, %c0_38, %c0_39] : memref<1x8x8x128xf32, #tpu.memory_space<vmem>>, vector<1x8x8x128xf32>
    %65 = vector.shape_cast %64 : vector<1x8x8x128xf32> to vector<8x8x128xf32>
    %66 = arith.addf %63, %65 : vector<8x8x128xf32>
    %cst_40 = arith.constant 0.000000e+00 : f32
    %67 = vector.broadcast %cst_40 : f32 to vector<8x8x128xf32>
    %68 = arith.maximumf %66, %67 : vector<8x8x128xf32>
    %c0_41 = arith.constant 0 : index
    %c0_42 = arith.constant 0 : index
    %c0_43 = arith.constant 0 : index
    %c0_44 = arith.constant 0 : index
    %69 = vector.load %arg7[%c0_41, %c0_42, %c0_43, %c0_44] : memref<1x8x8x128xf32, #tpu.memory_space<vmem>>, vector<1x8x8x128xf32>
    %70 = vector.shape_cast %69 : vector<1x8x8x128xf32> to vector<8x8x128xf32>
    %71 = vector.shape_cast %68 : vector<8x8x128xf32> to vector<1x8x8x128xf32>
    tpu.vector_store %arg7[%c0_41, %c0_42, %c0_43, %c0_44], %71 {strides = array<i32>} : memref<1x8x8x128xf32, #tpu.memory_space<vmem>>, vector<1x8x8x128xf32>,
    return
  }
  func.func @transform_0(%arg0: i32, %arg1: i32) -> (i32, i32, i32, i32, i32) {
    %c0_i32 = arith.constant 0 : i32
    %c0_i32_0 = arith.constant 0 : i32
    %c0_i32_1 = arith.constant 0 : i32
    %c0_i32_2 = arith.constant 0 : i32
    %c0_i32_3 = arith.constant 0 : i32
    return %arg0, %c0_i32, %c0_i32_0, %c0_i32_1, %c0_i32_2 : i32, i32, i32, i32, i32
  }
  func.func @transform_1(%arg0: i32, %arg1: i32) -> (i32, i32, i32) {
    %c0_i32 = arith.constant 0 : i32
    %c0_i32_0 = arith.constant 0 : i32
    %c0_i32_1 = arith.constant 0 : i32
    return %c0_i32, %c0_i32_0, %arg1 : i32, i32, i32
  }
  func.func @transform_2(%arg0: i32, %arg1: i32) -> (i32, i32) {
    %c0_i32 = arith.constant 0 : i32
    %c0_i32_0 = arith.constant 0 : i32
    return %c0_i32, %arg1 : i32, i32
  }
  func.func @transform_3(%arg0: i32, %arg1: i32) -> (i32, i32) {
    %c0_i32 = arith.constant 0 : i32
    %c0_i32_0 = arith.constant 0 : i32
    return %c0_i32, %arg1 : i32, i32
  }
  func.func @transform_4(%arg0: i32, %arg1: i32) -> (i32, i32, i32, i32) {
    %c0_i32 = arith.constant 0 : i32
    %c0_i32_0 = arith.constant 0 : i32
    %c0_i32_1 = arith.constant 0 : i32
    return %arg0, %c0_i32, %c0_i32_0, %arg1 : i32, i32, i32, i32
  }
  func.func @transform_5(%arg0: i32, %arg1: i32) -> (i32, i32, i32, i32) {
    %c0_i32 = arith.constant 0 : i32
    %c0_i32_0 = arith.constant 0 : i32
    %c0_i32_1 = arith.constant 0 : i32
    return %arg0, %c0_i32, %c0_i32_0, %arg1 : i32, i32, i32, i32
  }
}

</mosaic_0001>

<llo_original>
// kernel: fwd.5
$region0: #{fwd.5}
  #allocation0 [shape = 'u32[]', space=smem, size = 0x4, offset = 0x4, fixed_abs, tag = 'smem constant byte address 0x4 - core index']
  #allocation1 [shape = 'u32[144,128]{1,0:T(1,128)}', space=vmem, size = 0x12000, scoped, tag = 'internal scratch']
  %s0 = inlined_call_operand.vmem [shape: bf16[2,1,8,8,64], index: 0, kind: input, shape index: {}]
  %s1 = inlined_call_operand.vmem [shape: bf16[1,64,128], index: 1, kind: input, shape index: {}]
  %s2 = inlined_call_operand.vmem [shape: f32[1,128], index: 2, kind: input, shape index: {}]
  %s3 = inlined_call_operand.vmem [shape: f32[1,128], index: 3, kind: input, shape index: {}]
  %s4 = inlined_call_operand.vmem [shape: f32[2,8,8,128], index: 4, kind: output, shape index: {}]
  %s5 = sld [smem:[#allocation0]]
  $region49: #{fwd.5} parent=0
    _
  %s7 = ssub.s32 1, %s5
  %s8 = scalar_select 0, %s7, %s5
  loop: start=0, step=1, limit=4
  $region2: #{fwd.5} parent=0 // loop_pre_header
    _
  $region3: #{fwd.5} parent=0 // loop_header
    %s10 = sphi 0, %s14
    %p11 = scmp.ge.s32.totalorder %s10, 4
    %s17 = sphi 0, %s29
    %s18 = sphi 0, %s25
    %s19 = sphi 0, %s17
    %s20 = sphi 0, %s18
    %s21 = sphi 0, %s19
    %s22 = sphi 0, %s20
    %s32 = sphi 0, %s34
    %s35 = sphi 0, %s32
    %s36 = sphi 0, %s35
    %s52 = sphi 0, %s36
    %s58 = sphi 0, %s60
    %s61 = sphi 0, %s58
    %s62 = sphi 0, %s61
    %s78 = sphi 0, %s62
    %s84 = sphi 0, %s86
    %s87 = sphi 0, %s84
    %s88 = sphi 0, %s87
    %s104 = sphi 0, %s88
    %s110 = sphi 0, %s112
    %s113 = sphi 0, %s110
    %s114 = sphi 0, %s113
    %s130 = sphi 0, %s114
    %s138 = sphi 0, %s140
    %s141 = sphi 0, %s138
    %s142 = sphi 0, %s141
    %s158 = sphi 0, %s142
  $region4: #{fwd.5} parent=0 // loop_header_branch
    %13 = sbr.rel (%p11) target = $region8
  $region5: #{fwd.5} parent=0 // loop_body
    %s15 = ssub.s32 %s10, 1
    %s16 = ssub.s32 %s10, 2
    %s23 = sadd.s32 1, %s18
    %p24 = scmp.ge.s32.totalorder %s23, 1
    %s25 = scalar_select %p24, 0, %s23
    %s26 = sadd.s32 1, %s17
    %s27 = scalar_select %p24, %s26, %s17
    %p28 = scmp.ge.s32.totalorder %s27, 2
    %s29 = scalar_select %p28, 0, %s27
    %s30 = ssub.s32 %s17, %s29
    %p31 = scmp.eq.s32.totalorder %s30, 0
    %s33 = sadd.s32 %s32, 1
    %s34 = scalar_select %p31, %s32, %s33
    %p37 = pneg %p31
    %p38 = scmp.eq.s32.totalorder %s10, 1
    %p39 = por %p37, %p38
    %p40 = scmp.ne.s32.totalorder %s32, %s35
    %p41 = scmp.eq.s32.totalorder %s10, 0
    %p42 = por %p40, %p41
    %p43 = scmp.ne.s32.totalorder %s32, %s35
    %p44 = scmp.eq.s32.totalorder %s15, 1
    %p45 = por %p43, %p44
    %p46 = scmp.ne.s32.totalorder %s35, %s36
    %p47 = scmp.eq.s32.totalorder %s15, 0
    %p48 = por %p46, %p47
    %p49 = scmp.ne.s32.totalorder %s35, %s36
    %p50 = scmp.eq.s32.totalorder %s16, 1
    %p51 = por %p49, %p50
    %p53 = scmp.ne.s32.totalorder %s36, %s52
    %p54 = scmp.eq.s32.totalorder %s16, 0
    %p55 = por %p53, %p54
    %s56 = ssub.s32 %s18, %s25
    %p57 = scmp.eq.s32.totalorder %s56, 0
    %s59 = sadd.s32 %s58, 1
    %s60 = scalar_select %p57, %s58, %s59
    %p63 = pneg %p57
    %p64 = scmp.eq.s32.totalorder %s10, 1
    %p65 = por %p63, %p64
    %p66 = scmp.ne.s32.totalorder %s58, %s61
    %p67 = scmp.eq.s32.totalorder %s10, 0
    %p68 = por %p66, %p67
    %p69 = scmp.ne.s32.totalorder %s58, %s61
    %p70 = scmp.eq.s32.totalorder %s15, 1
    %p71 = por %p69, %p70
    %p72 = scmp.ne.s32.totalorder %s61, %s62
    %p73 = scmp.eq.s32.totalorder %s15, 0
    %p74 = por %p72, %p73
    %p75 = scmp.ne.s32.totalorder %s61, %s62
    %p76 = scmp.eq.s32.totalorder %s16, 1
    %p77 = por %p75, %p76
    %p79 = scmp.ne.s32.totalorder %s62, %s78
    %p80 = scmp.eq.s32.totalorder %s16, 0
    %p81 = por %p79, %p80
    %s82 = ssub.s32 %s18, %s25
    %p83 = scmp.eq.s32.totalorder %s82, 0
    %s85 = sadd.s32 %s84, 1
    %s86 = scalar_select %p83, %s84, %s85
    %p89 = pneg %p83
    %p90 = scmp.eq.s32.totalorder %s10, 1
    %p91 = por %p89, %p90
    %p92 = scmp.ne.s32.totalorder %s84, %s87
    %p93 = scmp.eq.s32.totalorder %s10, 0
    %p94 = por %p92, %p93
    %p95 = scmp.ne.s32.totalorder %s84, %s87
    %p96 = scmp.eq.s32.totalorder %s15, 1
    %p97 = por %p95, %p96
    %p98 = scmp.ne.s32.totalorder %s87, %s88
    %p99 = scmp.eq.s32.totalorder %s15, 0
    %p100 = por %p98, %p99
    %p101 = scmp.ne.s32.totalorder %s87, %s88
    %p102 = scmp.eq.s32.totalorder %s16, 1
    %p103 = por %p101, %p102
    %p105 = scmp.ne.s32.totalorder %s88, %s104
    %p106 = scmp.eq.s32.totalorder %s16, 0
    %p107 = por %p105, %p106
    %s108 = ssub.s32 %s18, %s25
    %p109 = scmp.eq.s32.totalorder %s108, 0
    %s111 = sadd.s32 %s110, 1
    %s112 = scalar_select %p109, %s110, %s111
    %p115 = pneg %p109
    %p116 = scmp.eq.s32.totalorder %s10, 1
    %p117 = por %p115, %p116
    %p118 = scmp.ne.s32.totalorder %s110, %s113
    %p119 = scmp.eq.s32.totalorder %s10, 0
    %p120 = por %p118, %p119
    %p121 = scmp.ne.s32.totalorder %s110, %s113
    %p122 = scmp.eq.s32.totalorder %s15, 1
    %p123 = por %p121, %p122
    %p124 = scmp.ne.s32.totalorder %s113, %s114
    %p125 = scmp.eq.s32.totalorder %s15, 0
    %p126 = por %p124, %p125
    %p127 = scmp.ne.s32.totalorder %s113, %s114
    %p128 = scmp.eq.s32.totalorder %s16, 1
    %p129 = por %p127, %p128
    %p131 = scmp.ne.s32.totalorder %s114, %s130
    %p132 = scmp.eq.s32.totalorder %s16, 0
    %p133 = por %p131, %p132
    %s134 = ssub.s32 %s17, %s29
    %s135 = ssub.s32 %s18, %s25
    %s136 = sor.u32 %s134, %s135
    %p137 = scmp.eq.s32.totalorder %s136, 0
    %s139 = sadd.s32 %s138, 1
    %s140 = scalar_select %p137, %s138, %s139
    %p143 = pneg %p137
    %p144 = scmp.eq.s32.totalorder %s10, 1
    %p145 = por %p143, %p144
    %p146 = scmp.ne.s32.totalorder %s138, %s141
    %p147 = scmp.eq.s32.totalorder %s10, 0
    %p148 = por %p146, %p147
    %p149 = scmp.ne.s32.totalorder %s138, %s141
    %p150 = scmp.eq.s32.totalorder %s15, 1
    %p151 = por %p149, %p150
    %p152 = scmp.ne.s32.totalorder %s141, %s142
    %p153 = scmp.eq.s32.totalorder %s15, 0
    %p154 = por %p152, %p153
    %p155 = scmp.ne.s32.totalorder %s141, %s142
    %p156 = scmp.eq.s32.totalorder %s16, 1
    %p157 = por %p155, %p156
    %p159 = scmp.ne.s32.totalorder %s142, %s158
    %p160 = scmp.eq.s32.totalorder %s16, 0
    %p161 = por %p159, %p160
    %p162 = scmp.le.s32.totalorder 1, %s10
    %p163 = scmp.lt.s32.totalorder %s10, 3
    %p164 = pnand %p162, %p163
    %p165 = pneg %p164
    // Predicated region
    $region9: #{fwd.5} parent=5 // pred_check
      _
    $region10: #{fwd.5} parent=5 // pred_check_branch
      %167 = sbr.rel (%p164) target = $region12
    $region11: #{fwd.5} parent=5 // pred_region
      %s168 = ssub.s32 %s10, 1
      // Predicated region
      $region13: #{fwd.5} parent=11 // pred_check
        %p169 = pneg %p74
      $region14: #{fwd.5} parent=11 // pred_check_branch
        %171 = sbr.rel (%p169) target = $region16
      $region15: #{fwd.5} parent=11 // pred_region
        %p172 = scmp.lt.s32.totalorder %s20, 0
        %s173 = scalar_select %p172, %s20, 0
        %s174 = smul.addr %s173, 4
        %s175 = scalar_lea.vmem %s1, %s174
      $region16: #{fwd.5} parent=11 // pred_fallthru
        _
      // Predicated region
      $region17: #{fwd.5} parent=11 // pred_check
        %p176 = pneg %p100
      $region18: #{fwd.5} parent=11 // pred_check_branch
        %178 = sbr.rel (%p176) target = $region20
      $region19: #{fwd.5} parent=11 // pred_region
        %p179 = scmp.lt.s32.totalorder %s20, 0
        %s180 = scalar_select %p179, %s20, 0
        %s181 = scalar_lea.vmem %s2, %s180
      $region20: #{fwd.5} parent=11 // pred_fallthru
        _
      // Predicated region
      $region21: #{fwd.5} parent=11 // pred_check
        %p182 = pneg %p126
      $region22: #{fwd.5} parent=11 // pred_check_branch
        %184 = sbr.rel (%p182) target = $region24
      $region23: #{fwd.5} parent=11 // pred_region
        %p185 = scmp.lt.s32.totalorder %s20, 0
        %s186 = scalar_select %p185, %s20, 0
        %s187 = scalar_lea.vmem %s3, %s186
      $region24: #{fwd.5} parent=11 // pred_fallthru
        _
    $region12: #{fwd.5} parent=5 // pred_fallthru
      _
    %p188 = scmp.lt.s32.totalorder %s10, 2
    // Predicated region
    $region25: #{fwd.5} parent=5 // pred_check
      %p189 = pneg %p188
    $region26: #{fwd.5} parent=5 // pred_check_branch
      %191 = sbr.rel (%p189) target = $region28
    $region27: #{fwd.5} parent=5 // pred_region
      // Predicated region
      $region29: #{fwd.5} parent=27 // pred_check
        %p192 = pneg %p42
      $region30: #{fwd.5} parent=27 // pred_check_branch
        %194 = sbr.rel (%p192) target = $region32
      $region31: #{fwd.5} parent=27 // pred_region
        %p195 = scmp.lt.s32.totalorder %s17, 1
        %s196 = scalar_select %p195, %s17, 1
        %s197 = smul.addr %s196, 8
        %s198 = smul.addr %s197, 4
        %s199 = scalar_lea.vmem %s0, %s198
      $region32: #{fwd.5} parent=27 // pred_fallthru
        _
    $region28: #{fwd.5} parent=5 // pred_fallthru
      _
    %p200 = scmp.le.s32.totalorder 1, %s10
    %p201 = scmp.lt.s32.totalorder %s10, 3
    %p202 = pnand %p200, %p201
    %p203 = pneg %p202
    // Predicated region
    $region33: #{fwd.5} parent=5 // pred_check
      _
    $region34: #{fwd.5} parent=5 // pred_check_branch
      %205 = sbr.rel (%p202) target = $region36
    $region35: #{fwd.5} parent=5 // pred_region
      %s206 = ssub.s32 %s10, 1
      %p207 = scmp.lt.s32.totalorder %s19, 1
      %s208 = scalar_select %p207, %s19, 1
      %s209 = smul.addr %s208, 8
      %s210 = smul.addr %s209, 4
      %s211 = scalar_lea.vmem %s0, %s210
      %p212 = pneg %p48
      %p213 = pneg %p45
      %p214 = scmp.lt.s32.totalorder %s20, 0
      %s215 = scalar_select %p214, %s20, 0
      %s216 = smul.addr %s215, 4
      %s217 = scalar_lea.vmem %s1, %s216
      %p218 = pneg %p74
      %p219 = pneg %p71
      %p220 = scmp.lt.s32.totalorder %s20, 0
      %s221 = scalar_select %p220, %s20, 0
      %s222 = scalar_lea.vmem %s2, %s221
      %p223 = pneg %p100
      %p224 = pneg %p97
      %p225 = scmp.lt.s32.totalorder %s20, 0
      %s226 = scalar_select %p225, %s20, 0
      %s227 = scalar_lea.vmem %s3, %s226
      %p228 = pneg %p126
      %p229 = pneg %p123
      %p230 = pneg %p154
      %p231 = pneg %p151
      %p232 = scmp.lt.s32.totalorder %s19, 1
      %s233 = scalar_select %p232, %s19, 1
      %p234 = scmp.lt.s32.totalorder %s20, 0
      %s235 = scalar_select %p234, %s20, 0
      %s236 = smul.addr %s233, 8
      %s237 = sadd.s32 %s235, %s236
      %s238 = smul.addr %s237, 8
      %s239 = scalar_lea.vmem %s4, %s238
      %p240 = scmp.lt.s32.totalorder %s19, 1
      %s241 = scalar_select %p240, %s19, 1
      %s242 = smul.addr %s241, 8
      %s243 = smul.addr %s242, 4
      %s244 = scalar_lea.vmem %s0, %s243
      %p245 = scmp.lt.s32.totalorder %s20, 0
      %s246 = scalar_select %p245, %s20, 0
      %s247 = smul.addr %s246, 4
      %s248 = scalar_lea.vmem %s1, %s247
      %p249 = scmp.lt.s32.totalorder %s20, 0
      %s250 = scalar_select %p249, %s20, 0
      %s251 = scalar_lea.vmem %s2, %s250
      %p252 = scmp.lt.s32.totalorder %s20, 0
      %s253 = scalar_select %p252, %s20, 0
      %s254 = scalar_lea.vmem %s3, %s253
      %p255 = scmp.lt.s32.totalorder %s19, 1
      %s256 = scalar_select %p255, %s19, 1
      %p257 = scmp.lt.s32.totalorder %s20, 0
      %s258 = scalar_select %p257, %s20, 0
      %s259 = smul.addr %s256, 8
      %s260 = sadd.s32 %s258, %s259
      %s261 = smul.addr %s260, 8
      %s262 = scalar_lea.vmem %s4, %s261
      %v264 = vld [vmem:[%s244] sm:$0xf]
      %v265 = vld [vmem:[%s244 + $0x4] sm:$0xf]
      %v266 = vld [vmem:[%s244 + $0x8] sm:$0xf]
      %v267 = vld [vmem:[%s244 + $0xc] sm:$0xf]
      %v268 = vld [vmem:[%s244 + $0x10] sm:$0xf]
      %v269 = vld [vmem:[%s244 + $0x14] sm:$0xf]
      %v270 = vld [vmem:[%s244 + $0x18] sm:$0xf]
      %v271 = vld [vmem:[%s244 + $0x1c] sm:$0xf]
      %v272 = vld [vmem:[%s248] sm:$0xf]
      %v273 = vld [vmem:[%s248 + $0x4] sm:$0xf]
      %v274 = vld [vmem:[%s248 + $0x8] sm:$0xf]
      %v275 = vld [vmem:[%s248 + $0xc] sm:$0xf]
      %v276 = vld [vmem:[%s248 + $0x10] sm:$0xf]
      %v277 = vld [vmem:[%s248 + $0x14] sm:$0xf]
      %v278 = vld [vmem:[%s248 + $0x18] sm:$0xf]
      %v279 = vld [vmem:[%s248 + $0x1c] sm:$0xf]
      %v288 = vunpack.c.l.b16 %v264
      %v289 = vunpack.c.l.b16 %v265
      %v290 = vunpack.c.l.b16 %v266
      %v291 = vunpack.c.l.b16 %v267
      %v292 = vunpack.c.l.b16 %v268
      %v293 = vunpack.c.l.b16 %v269
      %v294 = vunpack.c.l.b16 %v270
      %v295 = vunpack.c.l.b16 %v271
      %v296 = vpack.c.b16 %v289, %v288
      %v297 = vpack.c.b16 %v291, %v290
      %v298 = vpack.c.b16 %v293, %v292
      %v299 = vpack.c.b16 %v295, %v294
      %v308 = vunpack.c.l.b16 %v272
      %v309 = vunpack.c.l.b16 %v273
      %v310 = vunpack.c.l.b16 %v274
      %v311 = vunpack.c.l.b16 %v275
      %v312 = vunpack.c.l.b16 %v276
      %v313 = vunpack.c.l.b16 %v277
      %v314 = vunpack.c.l.b16 %v278
      %v315 = vunpack.c.l.b16 %v279
      %v316 = vpack.c.b16 %v309, %v308
      %v317 = vpack.c.b16 %v311, %v310
      %v318 = vpack.c.b16 %v313, %v312
      %v319 = vpack.c.b16 %v315, %v314
      %vm324 = vcmask 523264
      %v326 = vsel %vm324, %v296, 0
      %v329 = vsel %vm324, %v297, 0
      %v332 = vsel %vm324, %v298, 0
      %v335 = vsel %vm324, %v299, 0
      %337 = vmatprep.subr.bf16.mxu0 0
      %338 = vmatpush1.bf16.msra.mxu0 %v316
      %339 = vmatprep.subr.bf16.mxu0 0
      %340 = vmatpush1.bf16.msra.mxu0 %v317
      %341 = vmatprep.subr.bf16.mxu0 0
      %342 = vmatpush1.bf16.msra.mxu0 %v318
      %343 = vmatprep.subr.bf16.mxu0 0
      %344 = vmatpush1.bf16.msra.mxu0 %v319
      %345 = vmatprep.subr.bf16.mxu0 0
      %346 = vmatpush1.bf16.msra.mxu0 0
      %347 = vmatprep.subr.bf16.mxu0 0
      %348 = vmatpush1.bf16.msra.mxu0 0
      %349 = vmatprep.subr.bf16.mxu0 0
      %350 = vmatpush1.bf16.msra.mxu0 0
      %351 = vmatprep.subr.bf16.mxu0 0
      %352 = vmatpush1.bf16.msra.mxu0 0
      %353 = vmatprep.subr.bf16.mxu0 0
      %354 = vmatpush1.bf16.msra.mxu0 0
      %355 = vmatprep.subr.bf16.mxu0 0
      %356 = vmatpush1.bf16.msra.mxu0 0
      %357 = vmatprep.subr.bf16.mxu0 0
      %358 = vmatpush1.bf16.msra.mxu0 0
      %359 = vmatprep.subr.bf16.mxu0 0
      %360 = vmatpush1.bf16.msra.mxu0 0
      %361 = vmatprep.subr.bf16.mxu0 0
      %362 = vmatpush1.bf16.msra.mxu0 0
      %363 = vmatprep.subr.bf16.mxu0 0
      %364 = vmatpush1.bf16.msra.mxu0 0
      %365 = vmatprep.subr.bf16.mxu0 0
      %366 = vmatpush1.bf16.msra.mxu0 0
      %367 = vmatprep.subr.bf16.mxu0 0
      %368 = vmatpush1.bf16.msra.mxu0 0
      %369 = vmatprep.mubr.bf16.mxu0 0
      %370 = vmatmul.mubr.bf16.gmra.mrb[0].mxu0 %v326
      %v371 = vpop.f32.mrb[0].mxu0
      %v372 = vadd.f32 0.0, %v371
      %v373 = vpop.f32.mrb[0].mxu0
      %v374 = vpop.f32.mrb[0].mxu0
      %v375 = vadd.f32 0.0, %v374
      %v376 = vpop.f32.mrb[0].mxu0
      %377 = vmatprep.mubr.bf16.mxu0 0
      %378 = vmatmul.mubr.bf16.gmra.mrb[0].mxu0 %v329
      %v379 = vpop.f32.mrb[0].mxu0
      %v380 = vadd.f32 0.0, %v379
      %v381 = vpop.f32.mrb[0].mxu0
      %v382 = vpop.f32.mrb[0].mxu0
      %v383 = vadd.f32 0.0, %v382
      %v384 = vpop.f32.mrb[0].mxu0
      %385 = vmatprep.mubr.bf16.mxu0 0
      %386 = vmatmul.mubr.bf16.gmra.mrb[0].mxu0 %v332
      %v387 = vpop.f32.mrb[0].mxu0
      %v388 = vadd.f32 0.0, %v387
      %v389 = vpop.f32.mrb[0].mxu0
      %v390 = vpop.f32.mrb[0].mxu0
      %v391 = vadd.f32 0.0, %v390
      %v392 = vpop.f32.mrb[0].mxu0
      %393 = vmatprep.mubr.bf16.mxu0 0
      %394 = vmatmul.mubr.bf16.gmra.mrb[0].mxu0 %v335
      %v395 = vpop.f32.mrb[0].mxu0
      %v396 = vadd.f32 0.0, %v395
      %v397 = vpop.f32.mrb[0].mxu0
      %v398 = vpop.f32.mrb[0].mxu0
      %v399 = vadd.f32 0.0, %v398
      %v400 = vpop.f32.mrb[0].mxu0
      %401 = vdwg.mxu0
      %v402 = vld [vmem:[%s251] sm:$0x1]
      %v404 = vlaneseq
      %v405 = vshrl.u32 %v404, 7
      %v406 = vsub.s32 0, %v405
      %v407 = vrot.slane %v402, %v406
      %v409 = vmul.f32 %v372, %v407
      %v410 = vmul.f32 %v375, %v407
      %v411 = vmul.f32 %v380, %v407
      %v412 = vmul.f32 %v383, %v407
      %v413 = vmul.f32 %v388, %v407
      %v414 = vmul.f32 %v391, %v407
      %v415 = vmul.f32 %v396, %v407
      %v416 = vmul.f32 %v399, %v407
      %v417 = vld [vmem:[%s254] sm:$0x1]
      %v419 = vlaneseq
      %v420 = vshrl.u32 %v419, 7
      %v421 = vsub.s32 0, %v420
      %v422 = vrot.slane %v417, %v421
      %v424 = vadd.f32 %v409, %v422
      %v425 = vadd.f32 %v410, %v422
      %v426 = vadd.f32 %v411, %v422
      %v427 = vadd.f32 %v412, %v422
      %v428 = vadd.f32 %v413, %v422
      %v429 = vadd.f32 %v414, %v422
      %v430 = vadd.f32 %v415, %v422
      %v431 = vadd.f32 %v416, %v422
      %432 = vst [vmem:[%s262] sm:$0xff] %v424
      %433 = vst [vmem:[%s262 + $0x8] sm:$0xff] %v425
      %434 = vst [vmem:[%s262 + $0x10] sm:$0xff] %v426
      %435 = vst [vmem:[%s262 + $0x18] sm:$0xff] %v427
      %436 = vst [vmem:[%s262 + $0x20] sm:$0xff] %v428
      %437 = vst [vmem:[%s262 + $0x28] sm:$0xff] %v429
      %438 = vst [vmem:[%s262 + $0x30] sm:$0xff] %v430
      %439 = vst [vmem:[%s262 + $0x38] sm:$0xff] %v431
      %p440 = scmp.lt.s32.totalorder %s19, 1
      %s441 = scalar_select %p440, %s19, 1
      %p442 = scmp.lt.s32.totalorder %s20, 0
      %s443 = scalar_select %p442, %s20, 0
      %s444 = smul.addr %s441, 8
      %s445 = sadd.s32 %s443, %s444
      %s446 = smul.addr %s445, 8
      %s447 = scalar_lea.vmem %s4, %s446
      // Predicated region
      $region37: #{fwd.5} parent=35 // pred_check
        %p448 = pneg %p151
      $region38: #{fwd.5} parent=35 // pred_check_branch
        %450 = sbr.rel (%p448) target = $region40
      $region39: #{fwd.5} parent=35 // pred_region
        _
      $region40: #{fwd.5} parent=35 // pred_fallthru
        _
    $region36: #{fwd.5} parent=5 // pred_fallthru
      _
    %p451 = scmp.le.s32.totalorder 2, %s10
    // Predicated region
    $region41: #{fwd.5} parent=5 // pred_check
      %p452 = pneg %p451
    $region42: #{fwd.5} parent=5 // pred_check_branch
      %454 = sbr.rel (%p452) target = $region44
    $region43: #{fwd.5} parent=5 // pred_region
      %s455 = ssub.s32 %s10, 2
      // Predicated region
      $region45: #{fwd.5} parent=43 // pred_check
        %p456 = pneg %p157
      $region46: #{fwd.5} parent=43 // pred_check_branch
        %458 = sbr.rel (%p456) target = $region48
      $region47: #{fwd.5} parent=43 // pred_region
        %p459 = scmp.lt.s32.totalorder %s21, 1
        %s460 = scalar_select %p459, %s21, 1
        %p461 = scmp.lt.s32.totalorder %s22, 0
        %s462 = scalar_select %p461, %s22, 0
        %s463 = smul.addr %s460, 8
        %s464 = sadd.s32 %s462, %s463
        %s465 = smul.addr %s464, 8
        %s466 = scalar_lea.vmem %s4, %s465
      $region48: #{fwd.5} parent=43 // pred_fallthru
        _
    $region44: #{fwd.5} parent=5 // pred_fallthru
      _
  $region6: #{fwd.5} parent=0 // loop_footer
    %s14 = sadd.s32 1, %s10
  $region7: #{fwd.5} parent=0 // loop_footer_branch
    %9 = sbr.rel target = $region3
  $region8: #{fwd.5} parent=0 // loop_exit
    _

// kernel: fwd.6
$region0: #{fwd.6}
  #allocation0 [shape = 'u32[]', space=smem, size = 0x4, offset = 0x4, fixed_abs, tag = 'smem constant byte address 0x4 - core index']
  #allocation1 [shape = 'u32[144,128]{1,0:T(1,128)}', space=vmem, size = 0x12000, scoped, tag = 'internal scratch']
  %s0 = inlined_call_operand.vmem [shape: bf16[2,4,9,9,64], index: 0, kind: input, shape index: {}]
  %s1 = inlined_call_operand.vmem [shape: bf16[9,64,128], index: 1, kind: input, shape index: {}]
  %s2 = inlined_call_operand.vmem [shape: f32[1,128], index: 2, kind: input, shape index: {}]
  %s3 = inlined_call_operand.vmem [shape: f32[1,128], index: 3, kind: input, shape index: {}]
  %s4 = inlined_call_operand.vmem [shape: bf16[2,8,8,128], index: 4, kind: output, shape index: {}]
  %s5 = sld [smem:[#allocation0]]
  $region49: #{fwd.6} parent=0
    _
  %s7 = ssub.s32 1, %s5
  %s8 = scalar_select 0, %s7, %s5
  loop: start=0, step=1, limit=4
  $region2: #{fwd.6} parent=0 // loop_pre_header
    _
  $region3: #{fwd.6} parent=0 // loop_header
    %s10 = sphi 0, %s14
    %p11 = scmp.ge.s32.totalorder %s10, 4
    %s17 = sphi 0, %s29
    %s18 = sphi 0, %s25
    %s19 = sphi 0, %s17
    %s20 = sphi 0, %s18
    %s21 = sphi 0, %s19
    %s22 = sphi 0, %s20
    %s32 = sphi 0, %s34
    %s35 = sphi 0, %s32
    %s36 = sphi 0, %s35
    %s52 = sphi 0, %s36
    %s58 = sphi 0, %s60
    %s61 = sphi 0, %s58
    %s62 = sphi 0, %s61
    %s78 = sphi 0, %s62
    %s84 = sphi 0, %s86
    %s87 = sphi 0, %s84
    %s88 = sphi 0, %s87
    %s104 = sphi 0, %s88
    %s110 = sphi 0, %s112
    %s113 = sphi 0, %s110
    %s114 = sphi 0, %s113
    %s130 = sphi 0, %s114
    %s138 = sphi 0, %s140
    %s141 = sphi 0, %s138
    %s142 = sphi 0, %s141
    %s158 = sphi 0, %s142
  $region4: #{fwd.6} parent=0 // loop_header_branch
    %13 = sbr.rel (%p11) target = $region8
  $region5: #{fwd.6} parent=0 // loop_body
    %s15 = ssub.s32 %s10, 1
    %s16 = ssub.s32 %s10, 2
    %s23 = sadd.s32 1, %s18
    %p24 = scmp.ge.s32.totalorder %s23, 1
    %s25 = scalar_select %p24, 0, %s23
    %s26 = sadd.s32 1, %s17
    %s27 = scalar_select %p24, %s26, %s17
    %p28 = scmp.ge.s32.totalorder %s27, 2
    %s29 = scalar_select %p28, 0, %s27
    %s30 = ssub.s32 %s17, %s29
    %p31 = scmp.eq.s32.totalorder %s30, 0
    %s33 = sadd.s32 %s32, 1
    %s34 = scalar_select %p31, %s32, %s33
    %p37 = pneg %p31
    %p38 = scmp.eq.s32.totalorder %s10, 1
    %p39 = por %p37, %p38
    %p40 = scmp.ne.s32.totalorder %s32, %s35
    %p41 = scmp.eq.s32.totalorder %s10, 0
    %p42 = por %p40, %p41
    %p43 = scmp.ne.s32.totalorder %s32, %s35
    %p44 = scmp.eq.s32.totalorder %s15, 1
    %p45 = por %p43, %p44
    %p46 = scmp.ne.s32.totalorder %s35, %s36
    %p47 = scmp.eq.s32.totalorder %s15, 0
    %p48 = por %p46, %p47
    %p49 = scmp.ne.s32.totalorder %s35, %s36
    %p50 = scmp.eq.s32.totalorder %s16, 1
    %p51 = por %p49, %p50
    %p53 = scmp.ne.s32.totalorder %s36, %s52
    %p54 = scmp.eq.s32.totalorder %s16, 0
    %p55 = por %p53, %p54
    %s56 = ssub.s32 %s18, %s25
    %p57 = scmp.eq.s32.totalorder %s56, 0
    %s59 = sadd.s32 %s58, 1
    %s60 = scalar_select %p57, %s58, %s59
    %p63 = pneg %p57
    %p64 = scmp.eq.s32.totalorder %s10, 1
    %p65 = por %p63, %p64
    %p66 = scmp.ne.s32.totalorder %s58, %s61
    %p67 = scmp.eq.s32.totalorder %s10, 0
    %p68 = por %p66, %p67
    %p69 = scmp.ne.s32.totalorder %s58, %s61
    %p70 = scmp.eq.s32.totalorder %s15, 1
    %p71 = por %p69, %p70
    %p72 = scmp.ne.s32.totalorder %s61, %s62
    %p73 = scmp.eq.s32.totalorder %s15, 0
    %p74 = por %p72, %p73
    %p75 = scmp.ne.s32.totalorder %s61, %s62
    %p76 = scmp.eq.s32.totalorder %s16, 1
    %p77 = por %p75, %p76
    %p79 = scmp.ne.s32.totalorder %s62, %s78
    %p80 = scmp.eq.s32.totalorder %s16, 0
    %p81 = por %p79, %p80
    %s82 = ssub.s32 %s18, %s25
    %p83 = scmp.eq.s32.totalorder %s82, 0
    %s85 = sadd.s32 %s84, 1
    %s86 = scalar_select %p83, %s84, %s85
    %p89 = pneg %p83
    %p90 = scmp.eq.s32.totalorder %s10, 1
    %p91 = por %p89, %p90
    %p92 = scmp.ne.s32.totalorder %s84, %s87
    %p93 = scmp.eq.s32.totalorder %s10, 0
    %p94 = por %p92, %p93
    %p95 = scmp.ne.s32.totalorder %s84, %s87
    %p96 = scmp.eq.s32.totalorder %s15, 1
    %p97 = por %p95, %p96
    %p98 = scmp.ne.s32.totalorder %s87, %s88
    %p99 = scmp.eq.s32.totalorder %s15, 0
    %p100 = por %p98, %p99
    %p101 = scmp.ne.s32.totalorder %s87, %s88
    %p102 = scmp.eq.s32.totalorder %s16, 1
    %p103 = por %p101, %p102
    %p105 = scmp.ne.s32.totalorder %s88, %s104
    %p106 = scmp.eq.s32.totalorder %s16, 0
    %p107 = por %p105, %p106
    %s108 = ssub.s32 %s18, %s25
    %p109 = scmp.eq.s32.totalorder %s108, 0
    %s111 = sadd.s32 %s110, 1
    %s112 = scalar_select %p109, %s110, %s111
    %p115 = pneg %p109
    %p116 = scmp.eq.s32.totalorder %s10, 1
    %p117 = por %p115, %p116
    %p118 = scmp.ne.s32.totalorder %s110, %s113
    %p119 = scmp.eq.s32.totalorder %s10, 0
    %p120 = por %p118, %p119
    %p121 = scmp.ne.s32.totalorder %s110, %s113
    %p122 = scmp.eq.s32.totalorder %s15, 1
    %p123 = por %p121, %p122
    %p124 = scmp.ne.s32.totalorder %s113, %s114
    %p125 = scmp.eq.s32.totalorder %s15, 0
    %p126 = por %p124, %p125
    %p127 = scmp.ne.s32.totalorder %s113, %s114
    %p128 = scmp.eq.s32.totalorder %s16, 1
    %p129 = por %p127, %p128
    %p131 = scmp.ne.s32.totalorder %s114, %s130
    %p132 = scmp.eq.s32.totalorder %s16, 0
    %p133 = por %p131, %p132
    %s134 = ssub.s32 %s17, %s29
    %s135 = ssub.s32 %s18, %s25
    %s136 = sor.u32 %s134, %s135
    %p137 = scmp.eq.s32.totalorder %s136, 0
    %s139 = sadd.s32 %s138, 1
    %s140 = scalar_select %p137, %s138, %s139
    %p143 = pneg %p137
    %p144 = scmp.eq.s32.totalorder %s10, 1
    %p145 = por %p143, %p144
    %p146 = scmp.ne.s32.totalorder %s138, %s141
    %p147 = scmp.eq.s32.totalorder %s10, 0
    %p148 = por %p146, %p147
    %p149 = scmp.ne.s32.totalorder %s138, %s141
    %p150 = scmp.eq.s32.totalorder %s15, 1
    %p151 = por %p149, %p150
    %p152 = scmp.ne.s32.totalorder %s141, %s142
    %p153 = scmp.eq.s32.totalorder %s15, 0
    %p154 = por %p152, %p153
    %p155 = scmp.ne.s32.totalorder %s141, %s142
    %p156 = scmp.eq.s32.totalorder %s16, 1
    %p157 = por %p155, %p156
    %p159 = scmp.ne.s32.totalorder %s142, %s158
    %p160 = scmp.eq.s32.totalorder %s16, 0
    %p161 = por %p159, %p160
    %p162 = scmp.le.s32.totalorder 1, %s10
    %p163 = scmp.lt.s32.totalorder %s10, 3
    %p164 = pnand %p162, %p163
    %p165 = pneg %p164
    // Predicated region
    $region9: #{fwd.6} parent=5 // pred_check
      _
    $region10: #{fwd.6} parent=5 // pred_check_branch
      %167 = sbr.rel (%p164) target = $region12
    $region11: #{fwd.6} parent=5 // pred_region
      %s168 = ssub.s32 %s10, 1
      // Predicated region
      $region13: #{fwd.6} parent=11 // pred_check
        %p169 = pneg %p74
      $region14: #{fwd.6} parent=11 // pred_check_branch
        %171 = sbr.rel (%p169) target = $region16
      $region15: #{fwd.6} parent=11 // pred_region
        %p172 = scmp.lt.s32.totalorder %s20, 0
        %s173 = scalar_select %p172, %s20, 0
        %s174 = smul.addr %s173, 4
        %s175 = scalar_lea.vmem %s1, %s174
      $region16: #{fwd.6} parent=11 // pred_fallthru
        _
      // Predicated region
      $region17: #{fwd.6} parent=11 // pred_check
        %p176 = pneg %p100
      $region18: #{fwd.6} parent=11 // pred_check_branch
        %178 = sbr.rel (%p176) target = $region20
      $region19: #{fwd.6} parent=11 // pred_region
        %p179 = scmp.lt.s32.totalorder %s20, 0
        %s180 = scalar_select %p179, %s20, 0
        %s181 = scalar_lea.vmem %s2, %s180
      $region20: #{fwd.6} parent=11 // pred_fallthru
        _
      // Predicated region
      $region21: #{fwd.6} parent=11 // pred_check
        %p182 = pneg %p126
      $region22: #{fwd.6} parent=11 // pred_check_branch
        %184 = sbr.rel (%p182) target = $region24
      $region23: #{fwd.6} parent=11 // pred_region
        %p185 = scmp.lt.s32.totalorder %s20, 0
        %s186 = scalar_select %p185, %s20, 0
        %s187 = scalar_lea.vmem %s3, %s186
      $region24: #{fwd.6} parent=11 // pred_fallthru
        _
    $region12: #{fwd.6} parent=5 // pred_fallthru
      _
    %p188 = scmp.lt.s32.totalorder %s10, 2
    // Predicated region
    $region25: #{fwd.6} parent=5 // pred_check
      %p189 = pneg %p188
    $region26: #{fwd.6} parent=5 // pred_check_branch
      %191 = sbr.rel (%p189) target = $region28
    $region27: #{fwd.6} parent=5 // pred_region
      // Predicated region
      $region29: #{fwd.6} parent=27 // pred_check
        %p192 = pneg %p42
      $region30: #{fwd.6} parent=27 // pred_check_branch
        %194 = sbr.rel (%p192) target = $region32
      $region31: #{fwd.6} parent=27 // pred_region
        %p195 = scmp.lt.s32.totalorder %s17, 1
        %s196 = scalar_select %p195, %s17, 1
        %s197 = smul.addr %s196, 72
        %s198 = smul.addr %s197, 4
        %s199 = scalar_lea.vmem %s0, %s198
      $region32: #{fwd.6} parent=27 // pred_fallthru
        _
    $region28: #{fwd.6} parent=5 // pred_fallthru
      _
    %p200 = scmp.le.s32.totalorder 1, %s10
    %p201 = scmp.lt.s32.totalorder %s10, 3
    %p202 = pnand %p200, %p201
    %p203 = pneg %p202
    // Predicated region
    $region33: #{fwd.6} parent=5 // pred_check
      _
    $region34: #{fwd.6} parent=5 // pred_check_branch
      %205 = sbr.rel (%p202) target = $region36
    $region35: #{fwd.6} parent=5 // pred_region
      %s206 = ssub.s32 %s10, 1
      %p207 = scmp.lt.s32.totalorder %s19, 1
      %s208 = scalar_select %p207, %s19, 1
      %s209 = smul.addr %s208, 72
      %s210 = smul.addr %s209, 4
      %s211 = scalar_lea.vmem %s0, %s210
      %p212 = pneg %p48
      %p213 = pneg %p45
      %p214 = scmp.lt.s32.totalorder %s20, 0
      %s215 = scalar_select %p214, %s20, 0
      %s216 = smul.addr %s215, 4
      %s217 = scalar_lea.vmem %s1, %s216
      %p218 = pneg %p74
      %p219 = pneg %p71
      %p220 = scmp.lt.s32.totalorder %s20, 0
      %s221 = scalar_select %p220, %s20, 0
      %s222 = scalar_lea.vmem %s2, %s221
      %p223 = pneg %p100
      %p224 = pneg %p97
      %p225 = scmp.lt.s32.totalorder %s20, 0
      %s226 = scalar_select %p225, %s20, 0
      %s227 = scalar_lea.vmem %s3, %s226
      %p228 = pneg %p126
      %p229 = pneg %p123
      %p230 = pneg %p154
      %p231 = pneg %p151
      %p232 = scmp.lt.s32.totalorder %s19, 1
      %s233 = scalar_select %p232, %s19, 1
      %p234 = scmp.lt.s32.totalorder %s20, 0
      %s235 = scalar_select %p234, %s20, 0
      %s236 = smul.addr %s233, 8
      %s237 = sadd.s32 %s235, %s236
      %s238 = smul.addr %s237, 4
      %s239 = scalar_lea.vmem %s4, %s238
      %p240 = scmp.lt.s32.totalorder %s19, 1
      %s241 = scalar_select %p240, %s19, 1
      %s242 = smul.addr %s241, 72
      %s243 = smul.addr %s242, 4
      %s244 = scalar_lea.vmem %s0, %s243
      %p245 = scmp.lt.s32.totalorder %s20, 0
      %s246 = scalar_select %p245, %s20, 0
      %s247 = smul.addr %s246, 4
      %s248 = scalar_lea.vmem %s1, %s247
      %p249 = scmp.lt.s32.totalorder %s20, 0
      %s250 = scalar_select %p249, %s20, 0
      %s251 = scalar_lea.vmem %s2, %s250
      %p252 = scmp.lt.s32.totalorder %s20, 0
      %s253 = scalar_select %p252, %s20, 0
      %s254 = scalar_lea.vmem %s3, %s253
      %p255 = scmp.lt.s32.totalorder %s19, 1
      %s256 = scalar_select %p255, %s19, 1
      %p257 = scmp.lt.s32.totalorder %s20, 0
      %s258 = scalar_select %p257, %s20, 0
      %s259 = smul.addr %s256, 8
      %s260 = sadd.s32 %s258, %s259
      %s261 = smul.addr %s260, 4
      %s262 = scalar_lea.vmem %s4, %s261
      %v264 = vld [vmem:[%s244] sm:$0xf]
      %v265 = vld [vmem:[%s244 + $0x4] sm:$0x1]
      %v266 = vld [vmem:[%s244 + $0x8] sm:$0xf]
      %v267 = vld [vmem:[%s244 + $0xc] sm:$0x1]
      %v268 = vld [vmem:[%s244 + $0x10] sm:$0xf]
      %v269 = vld [vmem:[%s244 + $0x14] sm:$0x1]
      %v270 = vld [vmem:[%s244 + $0x18] sm:$0xf]
      %v271 = vld [vmem:[%s244 + $0x1c] sm:$0x1]
      %v272 = vld [vmem:[%s244 + $0x20] sm:$0xf]
      %v273 = vld [vmem:[%s244 + $0x24] sm:$0x1]
      %v274 = vld [vmem:[%s244 + $0x28] sm:$0xf]
      %v275 = vld [vmem:[%s244 + $0x2c] sm:$0x1]
      %v276 = vld [vmem:[%s244 + $0x30] sm:$0xf]
      %v277 = vld [vmem:[%s244 + $0x34] sm:$0x1]
      %v278 = vld [vmem:[%s244 + $0x38] sm:$0xf]
      %v279 = vld [vmem:[%s244 + $0x3c] sm:$0x1]
      %v280 = vld [vmem:[%s244 + $0x40] sm:$0xf]
      %v281 = vld [vmem:[%s244 + $0x44] sm:$0x1]
      %s282 = scalar_lea.vmem %s244, 72
      %v283 = vld [vmem:[%s282] sm:$0xf]
      %v284 = vld [vmem:[%s282 + $0x8] sm:$0xf]
      %v285 = vld [vmem:[%s282 + $0x10] sm:$0xf]
      %v286 = vld [vmem:[%s282 + $0x18] sm:$0xf]
      %v287 = vld [vmem:[%s282 + $0x20] sm:$0xf]
      %v288 = vld [vmem:[%s282 + $0x28] sm:$0xf]
      %v289 = vld [vmem:[%s282 + $0x30] sm:$0xf]
      %v290 = vld [vmem:[%s282 + $0x38] sm:$0xf]
      %v291 = vld [vmem:[%s282 + $0x40] sm:$0xf]
      %s292 = scalar_lea.vmem %s244, 144
      %v293 = vld [vmem:[%s292] sm:$0xf]
      %v294 = vld [vmem:[%s292 + $0x4] sm:$0x1]
      %v295 = vld [vmem:[%s292 + $0x8] sm:$0xf]
      %v296 = vld [vmem:[%s292 + $0xc] sm:$0x1]
      %v297 = vld [vmem:[%s292 + $0x10] sm:$0xf]
      %v298 = vld [vmem:[%s292 + $0x14] sm:$0x1]
      %v299 = vld [vmem:[%s292 + $0x18] sm:$0xf]
      %v300 = vld [vmem:[%s292 + $0x1c] sm:$0x1]
      %v301 = vld [vmem:[%s292 + $0x20] sm:$0xf]
      %v302 = vld [vmem:[%s292 + $0x24] sm:$0x1]
      %v303 = vld [vmem:[%s292 + $0x28] sm:$0xf]
      %v304 = vld [vmem:[%s292 + $0x2c] sm:$0x1]
      %v305 = vld [vmem:[%s292 + $0x30] sm:$0xf]
      %v306 = vld [vmem:[%s292 + $0x34] sm:$0x1]
      %v307 = vld [vmem:[%s292 + $0x38] sm:$0xf]
      %v308 = vld [vmem:[%s292 + $0x3c] sm:$0x1]
      %s309 = scalar_lea.vmem %s244, 216
      %v310 = vld [vmem:[%s309] sm:$0xf]
      %v311 = vld [vmem:[%s309 + $0x8] sm:$0xf]
      %v312 = vld [vmem:[%s309 + $0x10] sm:$0xf]
      %v313 = vld [vmem:[%s309 + $0x18] sm:$0xf]
      %v314 = vld [vmem:[%s309 + $0x20] sm:$0xf]
      %v315 = vld [vmem:[%s309 + $0x28] sm:$0xf]
      %v316 = vld [vmem:[%s309 + $0x30] sm:$0xf]
      %v317 = vld [vmem:[%s309 + $0x38] sm:$0xf]
      %v318 = vld [vmem:[%s248] sm:$0xf]
      %v319 = vld [vmem:[%s248 + $0x4] sm:$0xf]
      %v320 = vld [vmem:[%s248 + $0x8] sm:$0xf]
      %v321 = vld [vmem:[%s248 + $0xc] sm:$0xf]
      %v322 = vld [vmem:[%s248 + $0x10] sm:$0xf]
      %v323 = vld [vmem:[%s248 + $0x14] sm:$0xf]
      %v324 = vld [vmem:[%s248 + $0x18] sm:$0xf]
      %v325 = vld [vmem:[%s248 + $0x1c] sm:$0xf]
      %s326 = scalar_lea.vmem %s248, 32
      %v327 = vld [vmem:[%s326] sm:$0xf]
      %v328 = vld [vmem:[%s326 + $0x4] sm:$0xf]
      %v329 = vld [vmem:[%s326 + $0x8] sm:$0xf]
      %v330 = vld [vmem:[%s326 + $0xc] sm:$0xf]
      %v331 = vld [vmem:[%s326 + $0x10] sm:$0xf]
      %v332 = vld [vmem:[%s326 + $0x14] sm:$0xf]
      %v333 = vld [vmem:[%s326 + $0x18] sm:$0xf]
      %v334 = vld [vmem:[%s326 + $0x1c] sm:$0xf]
      %v343 = vunpack.c.l.b16 %v283
      %v344 = vunpack.c.l.b16 %v284
      %v345 = vunpack.c.l.b16 %v285
      %v346 = vunpack.c.l.b16 %v286
      %v347 = vunpack.c.l.b16 %v287
      %v348 = vunpack.c.l.b16 %v288
      %v349 = vunpack.c.l.b16 %v289
      %v350 = vunpack.c.l.b16 %v290
      %v351 = vpack.c.b16 %v344, %v343
      %v352 = vpack.c.b16 %v346, %v345
      %v353 = vpack.c.b16 %v348, %v347
      %v354 = vpack.c.b16 %v350, %v349
      %v363 = vunpack.c.l.b16 %v327
      %v364 = vunpack.c.l.b16 %v328
      %v365 = vunpack.c.l.b16 %v329
      %v366 = vunpack.c.l.b16 %v330
      %v367 = vunpack.c.l.b16 %v331
      %v368 = vunpack.c.l.b16 %v332
      %v369 = vunpack.c.l.b16 %v333
      %v370 = vunpack.c.l.b16 %v334
      %v371 = vpack.c.b16 %v364, %v363
      %v372 = vpack.c.b16 %v366, %v365
      %v373 = vpack.c.b16 %v368, %v367
      %v374 = vpack.c.b16 %v370, %v369
      %vm379 = vcmask 523264
      %v381 = vsel %vm379, %v351, 0
      %v384 = vsel %vm379, %v352, 0
      %v387 = vsel %vm379, %v353, 0
      %v390 = vsel %vm379, %v354, 0
      %392 = vmatprep.subr.bf16.mxu0 0
      %393 = vmatpush1.bf16.msra.mxu0 %v371
      %394 = vmatprep.subr.bf16.mxu0 0
      %395 = vmatpush1.bf16.msra.mxu0 %v372
      %396 = vmatprep.subr.bf16.mxu0 0
      %397 = vmatpush1.bf16.msra.mxu0 %v373
      %398 = vmatprep.subr.bf16.mxu0 0
      %399 = vmatpush1.bf16.msra.mxu0 %v374
      %400 = vmatprep.subr.bf16.mxu0 0
      %401 = vmatpush1.bf16.msra.mxu0 0
      %402 = vmatprep.subr.bf16.mxu0 0
      %403 = vmatpush1.bf16.msra.mxu0 0
      %404 = vmatprep.subr.bf16.mxu0 0
      %405 = vmatpush1.bf16.msra.mxu0 0
      %406 = vmatprep.subr.bf16.mxu0 0
      %407 = vmatpush1.bf16.msra.mxu0 0
      %408 = vmatprep.subr.bf16.mxu0 0
      %409 = vmatpush1.bf16.msra.mxu0 0
      %410 = vmatprep.subr.bf16.mxu0 0
      %411 = vmatpush1.bf16.msra.mxu0 0
      %412 = vmatprep.subr.bf16.mxu0 0
      %413 = vmatpush1.bf16.msra.mxu0 0
      %414 = vmatprep.subr.bf16.mxu0 0
      %415 = vmatpush1.bf16.msra.mxu0 0
      %416 = vmatprep.subr.bf16.mxu0 0
      %417 = vmatpush1.bf16.msra.mxu0 0
      %418 = vmatprep.subr.bf16.mxu0 0
      %419 = vmatpush1.bf16.msra.mxu0 0
      %420 = vmatprep.subr.bf16.mxu0 0
      %421 = vmatpush1.bf16.msra.mxu0 0
      %422 = vmatprep.subr.bf16.mxu0 0
      %423 = vmatpush1.bf16.msra.mxu0 0
      %424 = vmatprep.mubr.bf16.mxu0 0
      %425 = vmatmul.mubr.bf16.gmra.mrb[0].mxu0 %v381
      %v426 = vpop.f32.mrb[0].mxu0
      %v427 = vadd.f32 0.0, %v426
      %v428 = vpop.f32.mrb[0].mxu0
      %v429 = vpop.f32.mrb[0].mxu0
      %v430 = vadd.f32 0.0, %v429
      %v431 = vpop.f32.mrb[0].mxu0
      %432 = vmatprep.mubr.bf16.mxu0 0
      %433 = vmatmul.mubr.bf16.gmra.mrb[0].mxu0 %v384
      %v434 = vpop.f32.mrb[0].mxu0
      %v435 = vadd.f32 0.0, %v434
      %v436 = vpop.f32.mrb[0].mxu0
      %v437 = vpop.f32.mrb[0].mxu0
      %v438 = vadd.f32 0.0, %v437
      %v439 = vpop.f32.mrb[0].mxu0
      %440 = vmatprep.mubr.bf16.mxu0 0
      %441 = vmatmul.mubr.bf16.gmra.mrb[0].mxu0 %v387
      %v442 = vpop.f32.mrb[0].mxu0
      %v443 = vadd.f32 0.0, %v442
      %v444 = vpop.f32.mrb[0].mxu0
      %v445 = vpop.f32.mrb[0].mxu0
      %v446 = vadd.f32 0.0, %v445
      %v447 = vpop.f32.mrb[0].mxu0
      %448 = vmatprep.mubr.bf16.mxu0 0
      %449 = vmatmul.mubr.bf16.gmra.mrb[0].mxu0 %v390
      %v450 = vpop.f32.mrb[0].mxu0
      %v451 = vadd.f32 0.0, %v450
      %v452 = vpop.f32.mrb[0].mxu0
      %v453 = vpop.f32.mrb[0].mxu0
      %v454 = vadd.f32 0.0, %v453
      %v455 = vpop.f32.mrb[0].mxu0
      %456 = vdwg.mxu0
      %v465 = vunpack.c.l.b16 %v264
      %v466 = vunpack.c.l.b16 %v266
      %v467 = vunpack.c.l.b16 %v268
      %v468 = vunpack.c.l.b16 %v270
      %v469 = vunpack.c.l.b16 %v272
      %v470 = vunpack.c.l.b16 %v274
      %v471 = vunpack.c.l.b16 %v276
      %v472 = vunpack.c.l.b16 %v278
      %v473 = vpack.c.b16 %v466, %v465
      %v474 = vpack.c.b16 %v468, %v467
      %v475 = vpack.c.b16 %v470, %v469
      %v476 = vpack.c.b16 %v472, %v471
      %v485 = vunpack.c.l.b16 %v318
      %v486 = vunpack.c.l.b16 %v319
      %v487 = vunpack.c.l.b16 %v320
      %v488 = vunpack.c.l.b16 %v321
      %v489 = vunpack.c.l.b16 %v322
      %v490 = vunpack.c.l.b16 %v323
      %v491 = vunpack.c.l.b16 %v324
      %v492 = vunpack.c.l.b16 %v325
      %v493 = vpack.c.b16 %v486, %v485
      %v494 = vpack.c.b16 %v488, %v487
      %v495 = vpack.c.b16 %v490, %v489
      %v496 = vpack.c.b16 %v492, %v491
      %v502 = vsel %vm379, %v473, 0
      %v505 = vsel %vm379, %v474, 0
      %v508 = vsel %vm379, %v475, 0
      %v511 = vsel %vm379, %v476, 0
      %513 = vmatprep.subr.bf16.mxu0 0
      %514 = vmatpush1.bf16.msra.mxu0 %v493
      %515 = vmatprep.subr.bf16.mxu0 0
      %516 = vmatpush1.bf16.msra.mxu0 %v494
      %517 = vmatprep.subr.bf16.mxu0 0
      %518 = vmatpush1.bf16.msra.mxu0 %v495
      %519 = vmatprep.subr.bf16.mxu0 0
      %520 = vmatpush1.bf16.msra.mxu0 %v496
      %521 = vmatprep.subr.bf16.mxu0 0
      %522 = vmatpush1.bf16.msra.mxu0 0
      %523 = vmatprep.subr.bf16.mxu0 0
      %524 = vmatpush1.bf16.msra.mxu0 0
      %525 = vmatprep.subr.bf16.mxu0 0
      %526 = vmatpush1.bf16.msra.mxu0 0
      %527 = vmatprep.subr.bf16.mxu0 0
      %528 = vmatpush1.bf16.msra.mxu0 0
      %529 = vmatprep.subr.bf16.mxu0 0
      %530 = vmatpush1.bf16.msra.mxu0 0
      %531 = vmatprep.subr.bf16.mxu0 0
      %532 = vmatpush1.bf16.msra.mxu0 0
      %533 = vmatprep.subr.bf16.mxu0 0
      %534 = vmatpush1.bf16.msra.mxu0 0
      %535 = vmatprep.subr.bf16.mxu0 0
      %536 = vmatpush1.bf16.msra.mxu0 0
      %537 = vmatprep.subr.bf16.mxu0 0
      %538 = vmatpush1.bf16.msra.mxu0 0
      %539 = vmatprep.subr.bf16.mxu0 0
      %540 = vmatpush1.bf16.msra.mxu0 0
      %541 = vmatprep.subr.bf16.mxu0 0
      %542 = vmatpush1.bf16.msra.mxu0 0
      %543 = vmatprep.subr.bf16.mxu0 0
      %544 = vmatpush1.bf16.msra.mxu0 0
      %545 = vmatprep.mubr.bf16.mxu0 0
      %546 = vmatmul.mubr.bf16.gmra.mrb[0].mxu0 %v502
      %v547 = vpop.f32.mrb[0].mxu0
      %v548 = vadd.f32 %v427, %v547
      %v549 = vpop.f32.mrb[0].mxu0
      %v550 = vpop.f32.mrb[0].mxu0
      %v551 = vadd.f32 %v430, %v550
      %v552 = vpop.f32.mrb[0].mxu0
      %553 = vmatprep.mubr.bf16.mxu0 0
      %554 = vmatmul.mubr.bf16.gmra.mrb[0].mxu0 %v505
      %v555 = vpop.f32.mrb[0].mxu0
      %v556 = vadd.f32 %v435, %v555
      %v557 = vpop.f32.mrb[0].mxu0
      %v558 = vpop.f32.mrb[0].mxu0
      %v559 = vadd.f32 %v438, %v558
      %v560 = vpop.f32.mrb[0].mxu0
      %561 = vmatprep.mubr.bf16.mxu0 0
      %562 = vmatmul.mubr.bf16.gmra.mrb[0].mxu0 %v508
      %v563 = vpop.f32.mrb[0].mxu0
      %v564 = vadd.f32 %v443, %v563
      %v565 = vpop.f32.mrb[0].mxu0
      %v566 = vpop.f32.mrb[0].mxu0
      %v567 = vadd.f32 %v446, %v566
      %v568 = vpop.f32.mrb[0].mxu0
      %569 = vmatprep.mubr.bf16.mxu0 0
      %570 = vmatmul.mubr.bf16.gmra.mrb[0].mxu0 %v511
      %v571 = vpop.f32.mrb[0].mxu0
      %v572 = vadd.f32 %v451, %v571
      %v573 = vpop.f32.mrb[0].mxu0
      %v574 = vpop.f32.mrb[0].mxu0
      %v575 = vadd.f32 %v454, %v574
      %v576 = vpop.f32.mrb[0].mxu0
      %577 = vdwg.mxu0
      %vm578 = vsmask.f32 3328
      %vm579 = vsmask.f32 7440
      %vm580 = vmor %vm578, %vm579
      %v582 = vshrl.u32 %v264, 16
      %v584 = vrot.slane %v582, 4
      %v585 = vshll.u32 %v264, 16
      %v587 = vrot.slane %v585, 5
      %v588 = vor.u32 %v584, %v587
      %v589 = vrot.slane %v588, 4
      %v591 = vshll.u32 %v265, 16
      %v593 = vrot.slane %v591, 5
      %v594 = vsel %vm580, %v589, %v593
      %v596 = vshrl.u32 %v266, 16
      %v598 = vrot.slane %v596, 4
      %v599 = vshll.u32 %v266, 16
      %v601 = vrot.slane %v599, 5
      %v602 = vor.u32 %v598, %v601
      %v603 = vrot.slane %v602, 4
      %v605 = vshll.u32 %v267, 16
      %v607 = vrot.slane %v605, 5
      %v608 = vsel %vm580, %v603, %v607
      %v610 = vshrl.u32 %v268, 16
      %v612 = vrot.slane %v610, 4
      %v613 = vshll.u32 %v268, 16
      %v615 = vrot.slane %v613, 5
      %v616 = vor.u32 %v612, %v615
      %v617 = vrot.slane %v616, 4
      %v619 = vshll.u32 %v269, 16
      %v621 = vrot.slane %v619, 5
      %v622 = vsel %vm580, %v617, %v621
      %v624 = vshrl.u32 %v270, 16
      %v626 = vrot.slane %v624, 4
      %v627 = vshll.u32 %v270, 16
      %v629 = vrot.slane %v627, 5
      %v630 = vor.u32 %v626, %v629
      %v631 = vrot.slane %v630, 4
      %v633 = vshll.u32 %v271, 16
      %v635 = vrot.slane %v633, 5
      %v636 = vsel %vm580, %v631, %v635
      %v638 = vshrl.u32 %v272, 16
      %v640 = vrot.slane %v638, 4
      %v641 = vshll.u32 %v272, 16
      %v643 = vrot.slane %v641, 5
      %v644 = vor.u32 %v640, %v643
      %v645 = vrot.slane %v644, 4
      %v647 = vshll.u32 %v273, 16
      %v649 = vrot.slane %v647, 5
      %v650 = vsel %vm580, %v645, %v649
      %v652 = vshrl.u32 %v274, 16
      %v654 = vrot.slane %v652, 4
      %v655 = vshll.u32 %v274, 16
      %v657 = vrot.slane %v655, 5
      %v658 = vor.u32 %v654, %v657
      %v659 = vrot.slane %v658, 4
      %v661 = vshll.u32 %v275, 16
      %v663 = vrot.slane %v661, 5
      %v664 = vsel %vm580, %v659, %v663
      %v666 = vshrl.u32 %v276, 16
      %v668 = vrot.slane %v666, 4
      %v669 = vshll.u32 %v276, 16
      %v671 = vrot.slane %v669, 5
      %v672 = vor.u32 %v668, %v671
      %v673 = vrot.slane %v672, 4
      %v675 = vshll.u32 %v277, 16
      %v677 = vrot.slane %v675, 5
      %v678 = vsel %vm580, %v673, %v677
      %v680 = vshrl.u32 %v278, 16
      %v682 = vrot.slane %v680, 4
      %v683 = vshll.u32 %v278, 16
      %v685 = vrot.slane %v683, 5
      %v686 = vor.u32 %v682, %v685
      %v687 = vrot.slane %v686, 4
      %v689 = vshll.u32 %v279, 16
      %v691 = vrot.slane %v689, 5
      %v692 = vsel %vm580, %v687, %v691
      %s693 = scalar_lea.vmem %s248, 64
      %v694 = vld [vmem:[%s693] sm:$0xf]
      %v695 = vld [vmem:[%s693 + $0x4] sm:$0xf]
      %v696 = vld [vmem:[%s693 + $0x8] sm:$0xf]
      %v697 = vld [vmem:[%s693 + $0xc] sm:$0xf]
      %v698 = vld [vmem:[%s693 + $0x10] sm:$0xf]
      %v699 = vld [vmem:[%s693 + $0x14] sm:$0xf]
      %v700 = vld [vmem:[%s693 + $0x18] sm:$0xf]
      %v701 = vld [vmem:[%s693 + $0x1c] sm:$0xf]
      %v702 = vunpack.c.l.b16 %v594
      %v703 = vunpack.c.l.b16 %v608
      %v704 = vunpack.c.l.b16 %v622
      %v705 = vunpack.c.l.b16 %v636
      %v706 = vunpack.c.l.b16 %v650
      %v707 = vunpack.c.l.b16 %v664
      %v708 = vunpack.c.l.b16 %v678
      %v709 = vunpack.c.l.b16 %v692
      %v710 = vpack.c.b16 %v703, %v702
      %v711 = vpack.c.b16 %v705, %v704
      %v712 = vpack.c.b16 %v707, %v706
      %v713 = vpack.c.b16 %v709, %v708
      %v722 = vunpack.c.l.b16 %v694
      %v723 = vunpack.c.l.b16 %v695
      %v724 = vunpack.c.l.b16 %v696
      %v725 = vunpack.c.l.b16 %v697
      %v726 = vunpack.c.l.b16 %v698
      %v727 = vunpack.c.l.b16 %v699
      %v728 = vunpack.c.l.b16 %v700
      %v729 = vunpack.c.l.b16 %v701
      %v730 = vpack.c.b16 %v723, %v722
      %v731 = vpack.c.b16 %v725, %v724
      %v732 = vpack.c.b16 %v727, %v726
      %v733 = vpack.c.b16 %v729, %v728
      %v739 = vsel %vm379, %v710, 0
      %v742 = vsel %vm379, %v711, 0
      %v745 = vsel %vm379, %v712, 0
      %v748 = vsel %vm379, %v713, 0
      %750 = vmatprep.subr.bf16.mxu0 0
      %751 = vmatpush1.bf16.msra.mxu0 %v730
      %752 = vmatprep.subr.bf16.mxu0 0
      %753 = vmatpush1.bf16.msra.mxu0 %v731
      %754 = vmatprep.subr.bf16.mxu0 0
      %755 = vmatpush1.bf16.msra.mxu0 %v732
      %756 = vmatprep.subr.bf16.mxu0 0
      %757 = vmatpush1.bf16.msra.mxu0 %v733
      %758 = vmatprep.subr.bf16.mxu0 0
      %759 = vmatpush1.bf16.msra.mxu0 0
      %760 = vmatprep.subr.bf16.mxu0 0
      %761 = vmatpush1.bf16.msra.mxu0 0
      %762 = vmatprep.subr.bf16.mxu0 0
      %763 = vmatpush1.bf16.msra.mxu0 0
      %764 = vmatprep.subr.bf16.mxu0 0
      %765 = vmatpush1.bf16.msra.mxu0 0
      %766 = vmatprep.subr.bf16.mxu0 0
      %767 = vmatpush1.bf16.msra.mxu0 0
      %768 = vmatprep.subr.bf16.mxu0 0
      %769 = vmatpush1.bf16.msra.mxu0 0
      %770 = vmatprep.subr.bf16.mxu0 0
      %771 = vmatpush1.bf16.msra.mxu0 0
      %772 = vmatprep.subr.bf16.mxu0 0
      %773 = vmatpush1.bf16.msra.mxu0 0
      %774 = vmatprep.subr.bf16.mxu0 0
      %775 = vmatpush1.bf16.msra.mxu0 0
      %776 = vmatprep.subr.bf16.mxu0 0
      %777 = vmatpush1.bf16.msra.mxu0 0
      %778 = vmatprep.subr.bf16.mxu0 0
      %779 = vmatpush1.bf16.msra.mxu0 0
      %780 = vmatprep.subr.bf16.mxu0 0
      %781 = vmatpush1.bf16.msra.mxu0 0
      %782 = vmatprep.mubr.bf16.mxu0 0
      %783 = vmatmul.mubr.bf16.gmra.mrb[0].mxu0 %v739
      %v784 = vpop.f32.mrb[0].mxu0
      %v785 = vadd.f32 0.0, %v784
      %v786 = vpop.f32.mrb[0].mxu0
      %v787 = vpop.f32.mrb[0].mxu0
      %v788 = vadd.f32 0.0, %v787
      %v789 = vpop.f32.mrb[0].mxu0
      %790 = vmatprep.mubr.bf16.mxu0 0
      %791 = vmatmul.mubr.bf16.gmra.mrb[0].mxu0 %v742
      %v792 = vpop.f32.mrb[0].mxu0
      %v793 = vadd.f32 0.0, %v792
      %v794 = vpop.f32.mrb[0].mxu0
      %v795 = vpop.f32.mrb[0].mxu0
      %v796 = vadd.f32 0.0, %v795
      %v797 = vpop.f32.mrb[0].mxu0
      %798 = vmatprep.mubr.bf16.mxu0 0
      %799 = vmatmul.mubr.bf16.gmra.mrb[0].mxu0 %v745
      %v800 = vpop.f32.mrb[0].mxu0
      %v801 = vadd.f32 0.0, %v800
      %v802 = vpop.f32.mrb[0].mxu0
      %v803 = vpop.f32.mrb[0].mxu0
      %v804 = vadd.f32 0.0, %v803
      %v805 = vpop.f32.mrb[0].mxu0
      %806 = vmatprep.mubr.bf16.mxu0 0
      %807 = vmatmul.mubr.bf16.gmra.mrb[0].mxu0 %v748
      %v808 = vpop.f32.mrb[0].mxu0
      %v809 = vadd.f32 0.0, %v808
      %v810 = vpop.f32.mrb[0].mxu0
      %v811 = vpop.f32.mrb[0].mxu0
      %v812 = vadd.f32 0.0, %v811
      %v813 = vpop.f32.mrb[0].mxu0
      %814 = vdwg.mxu0
      %v815 = vadd.f32 %v548, %v785
      %v816 = vadd.f32 %v551, %v788
      %v817 = vadd.f32 %v556, %v793
      %v818 = vadd.f32 %v559, %v796
      %v819 = vadd.f32 %v564, %v801
      %v820 = vadd.f32 %v567, %v804
      %v821 = vadd.f32 %v572, %v809
      %v822 = vadd.f32 %v575, %v812
      %s823 = scalar_lea.vmem %s248, 96
      %v824 = vld [vmem:[%s823] sm:$0xf]
      %v825 = vld [vmem:[%s823 + $0x4] sm:$0xf]
      %v826 = vld [vmem:[%s823 + $0x8] sm:$0xf]
      %v827 = vld [vmem:[%s823 + $0xc] sm:$0xf]
      %v828 = vld [vmem:[%s823 + $0x10] sm:$0xf]
      %v829 = vld [vmem:[%s823 + $0x14] sm:$0xf]
      %v830 = vld [vmem:[%s823 + $0x18] sm:$0xf]
      %v831 = vld [vmem:[%s823 + $0x1c] sm:$0xf]
      %v840 = vunpack.c.l.b16 %v293
      %v841 = vunpack.c.l.b16 %v295
      %v842 = vunpack.c.l.b16 %v297
      %v843 = vunpack.c.l.b16 %v299
      %v844 = vunpack.c.l.b16 %v301
      %v845 = vunpack.c.l.b16 %v303
      %v846 = vunpack.c.l.b16 %v305
      %v847 = vunpack.c.l.b16 %v307
      %v848 = vpack.c.b16 %v841, %v840
      %v849 = vpack.c.b16 %v843, %v842
      %v850 = vpack.c.b16 %v845, %v844
      %v851 = vpack.c.b16 %v847, %v846
      %v860 = vunpack.c.l.b16 %v824
      %v861 = vunpack.c.l.b16 %v825
      %v862 = vunpack.c.l.b16 %v826
      %v863 = vunpack.c.l.b16 %v827
      %v864 = vunpack.c.l.b16 %v828
      %v865 = vunpack.c.l.b16 %v829
      %v866 = vunpack.c.l.b16 %v830
      %v867 = vunpack.c.l.b16 %v831
      %v868 = vpack.c.b16 %v861, %v860
      %v869 = vpack.c.b16 %v863, %v862
      %v870 = vpack.c.b16 %v865, %v864
      %v871 = vpack.c.b16 %v867, %v866
      %v877 = vsel %vm379, %v848, 0
      %v880 = vsel %vm379, %v849, 0
      %v883 = vsel %vm379, %v850, 0
      %v886 = vsel %vm379, %v851, 0
      %888 = vmatprep.subr.bf16.mxu0 0
      %889 = vmatpush1.bf16.msra.mxu0 %v868
      %890 = vmatprep.subr.bf16.mxu0 0
      %891 = vmatpush1.bf16.msra.mxu0 %v869
      %892 = vmatprep.subr.bf16.mxu0 0
      %893 = vmatpush1.bf16.msra.mxu0 %v870
      %894 = vmatprep.subr.bf16.mxu0 0
      %895 = vmatpush1.bf16.msra.mxu0 %v871
      %896 = vmatprep.subr.bf16.mxu0 0
      %897 = vmatpush1.bf16.msra.mxu0 0
      %898 = vmatprep.subr.bf16.mxu0 0
      %899 = vmatpush1.bf16.msra.mxu0 0
      %900 = vmatprep.subr.bf16.mxu0 0
      %901 = vmatpush1.bf16.msra.mxu0 0
      %902 = vmatprep.subr.bf16.mxu0 0
      %903 = vmatpush1.bf16.msra.mxu0 0
      %904 = vmatprep.subr.bf16.mxu0 0
      %905 = vmatpush1.bf16.msra.mxu0 0
      %906 = vmatprep.subr.bf16.mxu0 0
      %907 = vmatpush1.bf16.msra.mxu0 0
      %908 = vmatprep.subr.bf16.mxu0 0
      %909 = vmatpush1.bf16.msra.mxu0 0
      %910 = vmatprep.subr.bf16.mxu0 0
      %911 = vmatpush1.bf16.msra.mxu0 0
      %912 = vmatprep.subr.bf16.mxu0 0
      %913 = vmatpush1.bf16.msra.mxu0 0
      %914 = vmatprep.subr.bf16.mxu0 0
      %915 = vmatpush1.bf16.msra.mxu0 0
      %916 = vmatprep.subr.bf16.mxu0 0
      %917 = vmatpush1.bf16.msra.mxu0 0
      %918 = vmatprep.subr.bf16.mxu0 0
      %919 = vmatpush1.bf16.msra.mxu0 0
      %920 = vmatprep.mubr.bf16.mxu0 0
      %921 = vmatmul.mubr.bf16.gmra.mrb[0].mxu0 %v877
      %v922 = vpop.f32.mrb[0].mxu0
      %v923 = vadd.f32 0.0, %v922
      %v924 = vpop.f32.mrb[0].mxu0
      %v925 = vpop.f32.mrb[0].mxu0
      %v926 = vadd.f32 0.0, %v925
      %v927 = vpop.f32.mrb[0].mxu0
      %928 = vmatprep.mubr.bf16.mxu0 0
      %929 = vmatmul.mubr.bf16.gmra.mrb[0].mxu0 %v880
      %v930 = vpop.f32.mrb[0].mxu0
      %v931 = vadd.f32 0.0, %v930
      %v932 = vpop.f32.mrb[0].mxu0
      %v933 = vpop.f32.mrb[0].mxu0
      %v934 = vadd.f32 0.0, %v933
      %v935 = vpop.f32.mrb[0].mxu0
      %936 = vmatprep.mubr.bf16.mxu0 0
      %937 = vmatmul.mubr.bf16.gmra.mrb[0].mxu0 %v883
      %v938 = vpop.f32.mrb[0].mxu0
      %v939 = vadd.f32 0.0, %v938
      %v940 = vpop.f32.mrb[0].mxu0
      %v941 = vpop.f32.mrb[0].mxu0
      %v942 = vadd.f32 0.0, %v941
      %v943 = vpop.f32.mrb[0].mxu0
      %944 = vmatprep.mubr.bf16.mxu0 0
      %945 = vmatmul.mubr.bf16.gmra.mrb[0].mxu0 %v886
      %v946 = vpop.f32.mrb[0].mxu0
      %v947 = vadd.f32 0.0, %v946
      %v948 = vpop.f32.mrb[0].mxu0
      %v949 = vpop.f32.mrb[0].mxu0
      %v950 = vadd.f32 0.0, %v949
      %v951 = vpop.f32.mrb[0].mxu0
      %952 = vdwg.mxu0
      %v953 = vadd.f32 %v815, %v923
      %v954 = vadd.f32 %v816, %v926
      %v955 = vadd.f32 %v817, %v931
      %v956 = vadd.f32 %v818, %v934
      %v957 = vadd.f32 %v819, %v939
      %v958 = vadd.f32 %v820, %v942
      %v959 = vadd.f32 %v821, %v947
      %v960 = vadd.f32 %v822, %v950
      %s961 = scalar_lea.vmem %s248, 128
      %v962 = vld [vmem:[%s961] sm:$0xf]
      %v963 = vld [vmem:[%s961 + $0x4] sm:$0xf]
      %v964 = vld [vmem:[%s961 + $0x8] sm:$0xf]
      %v965 = vld [vmem:[%s961 + $0xc] sm:$0xf]
      %v966 = vld [vmem:[%s961 + $0x10] sm:$0xf]
      %v967 = vld [vmem:[%s961 + $0x14] sm:$0xf]
      %v968 = vld [vmem:[%s961 + $0x18] sm:$0xf]
      %v969 = vld [vmem:[%s961 + $0x1c] sm:$0xf]
      %v978 = vunpack.c.l.b16 %v310
      %v979 = vunpack.c.l.b16 %v311
      %v980 = vunpack.c.l.b16 %v312
      %v981 = vunpack.c.l.b16 %v313
      %v982 = vunpack.c.l.b16 %v314
      %v983 = vunpack.c.l.b16 %v315
      %v984 = vunpack.c.l.b16 %v316
      %v985 = vunpack.c.l.b16 %v317
      %v986 = vpack.c.b16 %v979, %v978
      %v987 = vpack.c.b16 %v981, %v980
      %v988 = vpack.c.b16 %v983, %v982
      %v989 = vpack.c.b16 %v985, %v984
      %v998 = vunpack.c.l.b16 %v962
      %v999 = vunpack.c.l.b16 %v963
      %v1000 = vunpack.c.l.b16 %v964
      %v1001 = vunpack.c.l.b16 %v965
      %v1002 = vunpack.c.l.b16 %v966
      %v1003 = vunpack.c.l.b16 %v967
      %v1004 = vunpack.c.l.b16 %v968
      %v1005 = vunpack.c.l.b16 %v969
      %v1006 = vpack.c.b16 %v999, %v998
      %v1007 = vpack.c.b16 %v1001, %v1000
      %v1008 = vpack.c.b16 %v1003, %v1002
      %v1009 = vpack.c.b16 %v1005, %v1004
      %v1015 = vsel %vm379, %v986, 0
      %v1018 = vsel %vm379, %v987, 0
      %v1021 = vsel %vm379, %v988, 0
      %v1024 = vsel %vm379, %v989, 0
      %1026 = vmatprep.subr.bf16.mxu0 0
      %1027 = vmatpush1.bf16.msra.mxu0 %v1006
      %1028 = vmatprep.subr.bf16.mxu0 0
      %1029 = vmatpush1.bf16.msra.mxu0 %v1007
      %1030 = vmatprep.subr.bf16.mxu0 0
      %1031 = vmatpush1.bf16.msra.mxu0 %v1008
      %1032 = vmatprep.subr.bf16.mxu0 0
      %1033 = vmatpush1.bf16.msra.mxu0 %v1009
      %1034 = vmatprep.subr.bf16.mxu0 0
      %1035 = vmatpush1.bf16.msra.mxu0 0
      %1036 = vmatprep.subr.bf16.mxu0 0
      %1037 = vmatpush1.bf16.msra.mxu0 0
      %1038 = vmatprep.subr.bf16.mxu0 0
      %1039 = vmatpush1.bf16.msra.mxu0 0
      %1040 = vmatprep.subr.bf16.mxu0 0
      %1041 = vmatpush1.bf16.msra.mxu0 0
      %1042 = vmatprep.subr.bf16.mxu0 0
      %1043 = vmatpush1.bf16.msra.mxu0 0
      %1044 = vmatprep.subr.bf16.mxu0 0
      %1045 = vmatpush1.bf16.msra.mxu0 0
      %1046 = vmatprep.subr.bf16.mxu0 0
      %1047 = vmatpush1.bf16.msra.mxu0 0
      %1048 = vmatprep.subr.bf16.mxu0 0
      %1049 = vmatpush1.bf16.msra.mxu0 0
      %1050 = vmatprep.subr.bf16.mxu0 0
      %1051 = vmatpush1.bf16.msra.mxu0 0
      %1052 = vmatprep.subr.bf16.mxu0 0
      %1053 = vmatpush1.bf16.msra.mxu0 0
      %1054 = vmatprep.subr.bf16.mxu0 0
      %1055 = vmatpush1.bf16.msra.mxu0 0
      %1056 = vmatprep.subr.bf16.mxu0 0
      %1057 = vmatpush1.bf16.msra.mxu0 0
      %1058 = vmatprep.mubr.bf16.mxu0 0
      %1059 = vmatmul.mubr.bf16.gmra.mrb[0].mxu0 %v1015
      %v1060 = vpop.f32.mrb[0].mxu0
      %v1061 = vadd.f32 0.0, %v1060
      %v1062 = vpop.f32.mrb[0].mxu0
      %v1063 = vpop.f32.mrb[0].mxu0
      %v1064 = vadd.f32 0.0, %v1063
      %v1065 = vpop.f32.mrb[0].mxu0
      %1066 = vmatprep.mubr.bf16.mxu0 0
      %1067 = vmatmul.mubr.bf16.gmra.mrb[0].mxu0 %v1018
      %v1068 = vpop.f32.mrb[0].mxu0
      %v1069 = vadd.f32 0.0, %v1068
      %v1070 = vpop.f32.mrb[0].mxu0
      %v1071 = vpop.f32.mrb[0].mxu0
      %v1072 = vadd.f32 0.0, %v1071
      %v1073 = vpop.f32.mrb[0].mxu0
      %1074 = vmatprep.mubr.bf16.mxu0 0
      %1075 = vmatmul.mubr.bf16.gmra.mrb[0].mxu0 %v1021
      %v1076 = vpop.f32.mrb[0].mxu0
      %v1077 = vadd.f32 0.0, %v1076
      %v1078 = vpop.f32.mrb[0].mxu0
      %v1079 = vpop.f32.mrb[0].mxu0
      %v1080 = vadd.f32 0.0, %v1079
      %v1081 = vpop.f32.mrb[0].mxu0
      %1082 = vmatprep.mubr.bf16.mxu0 0
      %1083 = vmatmul.mubr.bf16.gmra.mrb[0].mxu0 %v1024
      %v1084 = vpop.f32.mrb[0].mxu0
      %v1085 = vadd.f32 0.0, %v1084
      %v1086 = vpop.f32.mrb[0].mxu0
      %v1087 = vpop.f32.mrb[0].mxu0
      %v1088 = vadd.f32 0.0, %v1087
      %v1089 = vpop.f32.mrb[0].mxu0
      %1090 = vdwg.mxu0
      %v1091 = vadd.f32 %v953, %v1061
      %v1092 = vadd.f32 %v954, %v1064
      %v1093 = vadd.f32 %v955, %v1069
      %v1094 = vadd.f32 %v956, %v1072
      %v1095 = vadd.f32 %v957, %v1077
      %v1096 = vadd.f32 %v958, %v1080
      %v1097 = vadd.f32 %v959, %v1085
      %v1098 = vadd.f32 %v960, %v1088
      %v1100 = vshrl.u32 %v293, 16
      %v1102 = vrot.slane %v1100, 4
      %v1103 = vshll.u32 %v293, 16
      %v1105 = vrot.slane %v1103, 5
      %v1106 = vor.u32 %v1102, %v1105
      %v1107 = vrot.slane %v1106, 4
      %v1109 = vshll.u32 %v294, 16
      %v1111 = vrot.slane %v1109, 5
      %v1112 = vsel %vm580, %v1107, %v1111
      %v1114 = vshrl.u32 %v295, 16
      %v1116 = vrot.slane %v1114, 4
      %v1117 = vshll.u32 %v295, 16
      %v1119 = vrot.slane %v1117, 5
      %v1120 = vor.u32 %v1116, %v1119
      %v1121 = vrot.slane %v1120, 4
      %v1123 = vshll.u32 %v296, 16
      %v1125 = vrot.slane %v1123, 5
      %v1126 = vsel %vm580, %v1121, %v1125
      %v1128 = vshrl.u32 %v297, 16
      %v1130 = vrot.slane %v1128, 4
      %v1131 = vshll.u32 %v297, 16
      %v1133 = vrot.slane %v1131, 5
      %v1134 = vor.u32 %v1130, %v1133
      %v1135 = vrot.slane %v1134, 4
      %v1137 = vshll.u32 %v298, 16
      %v1139 = vrot.slane %v1137, 5
      %v1140 = vsel %vm580, %v1135, %v1139
      %v1142 = vshrl.u32 %v299, 16
      %v1144 = vrot.slane %v1142, 4
      %v1145 = vshll.u32 %v299, 16
      %v1147 = vrot.slane %v1145, 5
      %v1148 = vor.u32 %v1144, %v1147
      %v1149 = vrot.slane %v1148, 4
      %v1151 = vshll.u32 %v300, 16
      %v1153 = vrot.slane %v1151, 5
      %v1154 = vsel %vm580, %v1149, %v1153
      %v1156 = vshrl.u32 %v301, 16
      %v1158 = vrot.slane %v1156, 4
      %v1159 = vshll.u32 %v301, 16
      %v1161 = vrot.slane %v1159, 5
      %v1162 = vor.u32 %v1158, %v1161
      %v1163 = vrot.slane %v1162, 4
      %v1165 = vshll.u32 %v302, 16
      %v1167 = vrot.slane %v1165, 5
      %v1168 = vsel %vm580, %v1163, %v1167
      %v1170 = vshrl.u32 %v303, 16
      %v1172 = vrot.slane %v1170, 4
      %v1173 = vshll.u32 %v303, 16
      %v1175 = vrot.slane %v1173, 5
      %v1176 = vor.u32 %v1172, %v1175
      %v1177 = vrot.slane %v1176, 4
      %v1179 = vshll.u32 %v304, 16
      %v1181 = vrot.slane %v1179, 5
      %v1182 = vsel %vm580, %v1177, %v1181
      %v1184 = vshrl.u32 %v305, 16
      %v1186 = vrot.slane %v1184, 4
      %v1187 = vshll.u32 %v305, 16
      %v1189 = vrot.slane %v1187, 5
      %v1190 = vor.u32 %v1186, %v1189
      %v1191 = vrot.slane %v1190, 4
      %v1193 = vshll.u32 %v306, 16
      %v1195 = vrot.slane %v1193, 5
      %v1196 = vsel %vm580, %v1191, %v1195
      %v1198 = vshrl.u32 %v307, 16
      %v1200 = vrot.slane %v1198, 4
      %v1201 = vshll.u32 %v307, 16
      %v1203 = vrot.slane %v1201, 5
      %v1204 = vor.u32 %v1200, %v1203
      %v1205 = vrot.slane %v1204, 4
      %v1207 = vshll.u32 %v308, 16
      %v1209 = vrot.slane %v1207, 5
      %v1210 = vsel %vm580, %v1205, %v1209
      %s1211 = scalar_lea.vmem %s248, 160
      %v1212 = vld [vmem:[%s1211] sm:$0xf]
      %v1213 = vld [vmem:[%s1211 + $0x4] sm:$0xf]
      %v1214 = vld [vmem:[%s1211 + $0x8] sm:$0xf]
      %v1215 = vld [vmem:[%s1211 + $0xc] sm:$0xf]
      %v1216 = vld [vmem:[%s1211 + $0x10] sm:$0xf]
      %v1217 = vld [vmem:[%s1211 + $0x14] sm:$0xf]
      %v1218 = vld [vmem:[%s1211 + $0x18] sm:$0xf]
      %v1219 = vld [vmem:[%s1211 + $0x1c] sm:$0xf]
      %v1220 = vunpack.c.l.b16 %v1112
      %v1221 = vunpack.c.l.b16 %v1126
      %v1222 = vunpack.c.l.b16 %v1140
      %v1223 = vunpack.c.l.b16 %v1154
      %v1224 = vunpack.c.l.b16 %v1168
      %v1225 = vunpack.c.l.b16 %v1182
      %v1226 = vunpack.c.l.b16 %v1196
      %v1227 = vunpack.c.l.b16 %v1210
      %v1228 = vpack.c.b16 %v1221, %v1220
      %v1229 = vpack.c.b16 %v1223, %v1222
      %v1230 = vpack.c.b16 %v1225, %v1224
      %v1231 = vpack.c.b16 %v1227, %v1226
      %v1240 = vunpack.c.l.b16 %v1212
      %v1241 = vunpack.c.l.b16 %v1213
      %v1242 = vunpack.c.l.b16 %v1214
      %v1243 = vunpack.c.l.b16 %v1215
      %v1244 = vunpack.c.l.b16 %v1216
      %v1245 = vunpack.c.l.b16 %v1217
      %v1246 = vunpack.c.l.b16 %v1218
      %v1247 = vunpack.c.l.b16 %v1219
      %v1248 = vpack.c.b16 %v1241, %v1240
      %v1249 = vpack.c.b16 %v1243, %v1242
      %v1250 = vpack.c.b16 %v1245, %v1244
      %v1251 = vpack.c.b16 %v1247, %v1246
      %v1257 = vsel %vm379, %v1228, 0
      %v1260 = vsel %vm379, %v1229, 0
      %v1263 = vsel %vm379, %v1230, 0
      %v1266 = vsel %vm379, %v1231, 0
      %1268 = vmatprep.subr.bf16.mxu0 0
      %1269 = vmatpush1.bf16.msra.mxu0 %v1248
      %1270 = vmatprep.subr.bf16.mxu0 0
      %1271 = vmatpush1.bf16.msra.mxu0 %v1249
      %1272 = vmatprep.subr.bf16.mxu0 0
      %1273 = vmatpush1.bf16.msra.mxu0 %v1250
      %1274 = vmatprep.subr.bf16.mxu0 0
      %1275 = vmatpush1.bf16.msra.mxu0 %v1251
      %1276 = vmatprep.subr.bf16.mxu0 0
      %1277 = vmatpush1.bf16.msra.mxu0 0
      %1278 = vmatprep.subr.bf16.mxu0 0
      %1279 = vmatpush1.bf16.msra.mxu0 0
      %1280 = vmatprep.subr.bf16.mxu0 0
      %1281 = vmatpush1.bf16.msra.mxu0 0
      %1282 = vmatprep.subr.bf16.mxu0 0
      %1283 = vmatpush1.bf16.msra.mxu0 0
      %1284 = vmatprep.subr.bf16.mxu0 0
      %1285 = vmatpush1.bf16.msra.mxu0 0
      %1286 = vmatprep.subr.bf16.mxu0 0
      %1287 = vmatpush1.bf16.msra.mxu0 0
      %1288 = vmatprep.subr.bf16.mxu0 0
      %1289 = vmatpush1.bf16.msra.mxu0 0
      %1290 = vmatprep.subr.bf16.mxu0 0
      %1291 = vmatpush1.bf16.msra.mxu0 0
      %1292 = vmatprep.subr.bf16.mxu0 0
      %1293 = vmatpush1.bf16.msra.mxu0 0
      %1294 = vmatprep.subr.bf16.mxu0 0
      %1295 = vmatpush1.bf16.msra.mxu0 0
      %1296 = vmatprep.subr.bf16.mxu0 0
      %1297 = vmatpush1.bf16.msra.mxu0 0
      %1298 = vmatprep.subr.bf16.mxu0 0
      %1299 = vmatpush1.bf16.msra.mxu0 0
      %1300 = vmatprep.mubr.bf16.mxu0 0
      %1301 = vmatmul.mubr.bf16.gmra.mrb[0].mxu0 %v1257
      %v1302 = vpop.f32.mrb[0].mxu0
      %v1303 = vadd.f32 0.0, %v1302
      %v1304 = vpop.f32.mrb[0].mxu0
      %v1305 = vpop.f32.mrb[0].mxu0
      %v1306 = vadd.f32 0.0, %v1305
      %v1307 = vpop.f32.mrb[0].mxu0
      %1308 = vmatprep.mubr.bf16.mxu0 0
      %1309 = vmatmul.mubr.bf16.gmra.mrb[0].mxu0 %v1260
      %v1310 = vpop.f32.mrb[0].mxu0
      %v1311 = vadd.f32 0.0, %v1310
      %v1312 = vpop.f32.mrb[0].mxu0
      %v1313 = vpop.f32.mrb[0].mxu0
      %v1314 = vadd.f32 0.0, %v1313
      %v1315 = vpop.f32.mrb[0].mxu0
      %1316 = vmatprep.mubr.bf16.mxu0 0
      %1317 = vmatmul.mubr.bf16.gmra.mrb[0].mxu0 %v1263
      %v1318 = vpop.f32.mrb[0].mxu0
      %v1319 = vadd.f32 0.0, %v1318
      %v1320 = vpop.f32.mrb[0].mxu0
      %v1321 = vpop.f32.mrb[0].mxu0
      %v1322 = vadd.f32 0.0, %v1321
      %v1323 = vpop.f32.mrb[0].mxu0
      %1324 = vmatprep.mubr.bf16.mxu0 0
      %1325 = vmatmul.mubr.bf16.gmra.mrb[0].mxu0 %v1266
      %v1326 = vpop.f32.mrb[0].mxu0
      %v1327 = vadd.f32 0.0, %v1326
      %v1328 = vpop.f32.mrb[0].mxu0
      %v1329 = vpop.f32.mrb[0].mxu0
      %v1330 = vadd.f32 0.0, %v1329
      %v1331 = vpop.f32.mrb[0].mxu0
      %1332 = vdwg.mxu0
      %v1333 = vadd.f32 %v1091, %v1303
      %v1334 = vadd.f32 %v1092, %v1306
      %v1335 = vadd.f32 %v1093, %v1311
      %v1336 = vadd.f32 %v1094, %v1314
      %v1337 = vadd.f32 %v1095, %v1319
      %v1338 = vadd.f32 %v1096, %v1322
      %v1339 = vadd.f32 %v1097, %v1327
      %v1340 = vadd.f32 %v1098, %v1330
      %s1341 = scalar_lea.vmem %s248, 192
      %v1342 = vld [vmem:[%s1341] sm:$0xf]
      %v1343 = vld [vmem:[%s1341 + $0x4] sm:$0xf]
      %v1344 = vld [vmem:[%s1341 + $0x8] sm:$0xf]
      %v1345 = vld [vmem:[%s1341 + $0xc] sm:$0xf]
      %v1346 = vld [vmem:[%s1341 + $0x10] sm:$0xf]
      %v1347 = vld [vmem:[%s1341 + $0x14] sm:$0xf]
      %v1348 = vld [vmem:[%s1341 + $0x18] sm:$0xf]
      %v1349 = vld [vmem:[%s1341 + $0x1c] sm:$0xf]
      %v1351 = vunpack.c.l.b16 %v280
      %v1352 = vpack.c.b16 %v467, %v466
      %v1353 = vpack.c.b16 %v469, %v468
      %v1354 = vpack.c.b16 %v471, %v470
      %v1355 = vpack.c.b16 %v1351, %v472
      %v1364 = vunpack.c.l.b16 %v1342
      %v1365 = vunpack.c.l.b16 %v1343
      %v1366 = vunpack.c.l.b16 %v1344
      %v1367 = vunpack.c.l.b16 %v1345
      %v1368 = vunpack.c.l.b16 %v1346
      %v1369 = vunpack.c.l.b16 %v1347
      %v1370 = vunpack.c.l.b16 %v1348
      %v1371 = vunpack.c.l.b16 %v1349
      %v1372 = vpack.c.b16 %v1365, %v1364
      %v1373 = vpack.c.b16 %v1367, %v1366
      %v1374 = vpack.c.b16 %v1369, %v1368
      %v1375 = vpack.c.b16 %v1371, %v1370
      %v1381 = vsel %vm379, %v1352, 0
      %v1384 = vsel %vm379, %v1353, 0
      %v1387 = vsel %vm379, %v1354, 0
      %v1390 = vsel %vm379, %v1355, 0
      %1392 = vmatprep.subr.bf16.mxu0 0
      %1393 = vmatpush1.bf16.msra.mxu0 %v1372
      %1394 = vmatprep.subr.bf16.mxu0 0
      %1395 = vmatpush1.bf16.msra.mxu0 %v1373
      %1396 = vmatprep.subr.bf16.mxu0 0
      %1397 = vmatpush1.bf16.msra.mxu0 %v1374
      %1398 = vmatprep.subr.bf16.mxu0 0
      %1399 = vmatpush1.bf16.msra.mxu0 %v1375
      %1400 = vmatprep.subr.bf16.mxu0 0
      %1401 = vmatpush1.bf16.msra.mxu0 0
      %1402 = vmatprep.subr.bf16.mxu0 0
      %1403 = vmatpush1.bf16.msra.mxu0 0
      %1404 = vmatprep.subr.bf16.mxu0 0
      %1405 = vmatpush1.bf16.msra.mxu0 0
      %1406 = vmatprep.subr.bf16.mxu0 0
      %1407 = vmatpush1.bf16.msra.mxu0 0
      %1408 = vmatprep.subr.bf16.mxu0 0
      %1409 = vmatpush1.bf16.msra.mxu0 0
      %1410 = vmatprep.subr.bf16.mxu0 0
      %1411 = vmatpush1.bf16.msra.mxu0 0
      %1412 = vmatprep.subr.bf16.mxu0 0
      %1413 = vmatpush1.bf16.msra.mxu0 0
      %1414 = vmatprep.subr.bf16.mxu0 0
      %1415 = vmatpush1.bf16.msra.mxu0 0
      %1416 = vmatprep.subr.bf16.mxu0 0
      %1417 = vmatpush1.bf16.msra.mxu0 0
      %1418 = vmatprep.subr.bf16.mxu0 0
      %1419 = vmatpush1.bf16.msra.mxu0 0
      %1420 = vmatprep.subr.bf16.mxu0 0
      %1421 = vmatpush1.bf16.msra.mxu0 0
      %1422 = vmatprep.subr.bf16.mxu0 0
      %1423 = vmatpush1.bf16.msra.mxu0 0
      %1424 = vmatprep.mubr.bf16.mxu0 0
      %1425 = vmatmul.mubr.bf16.gmra.mrb[0].mxu0 %v1381
      %v1426 = vpop.f32.mrb[0].mxu0
      %v1427 = vadd.f32 0.0, %v1426
      %v1428 = vpop.f32.mrb[0].mxu0
      %v1429 = vpop.f32.mrb[0].mxu0
      %v1430 = vadd.f32 0.0, %v1429
      %v1431 = vpop.f32.mrb[0].mxu0
      %1432 = vmatprep.mubr.bf16.mxu0 0
      %1433 = vmatmul.mubr.bf16.gmra.mrb[0].mxu0 %v1384
      %v1434 = vpop.f32.mrb[0].mxu0
      %v1435 = vadd.f32 0.0, %v1434
      %v1436 = vpop.f32.mrb[0].mxu0
      %v1437 = vpop.f32.mrb[0].mxu0
      %v1438 = vadd.f32 0.0, %v1437
      %v1439 = vpop.f32.mrb[0].mxu0
      %1440 = vmatprep.mubr.bf16.mxu0 0
      %1441 = vmatmul.mubr.bf16.gmra.mrb[0].mxu0 %v1387
      %v1442 = vpop.f32.mrb[0].mxu0
      %v1443 = vadd.f32 0.0, %v1442
      %v1444 = vpop.f32.mrb[0].mxu0
      %v1445 = vpop.f32.mrb[0].mxu0
      %v1446 = vadd.f32 0.0, %v1445
      %v1447 = vpop.f32.mrb[0].mxu0
      %1448 = vmatprep.mubr.bf16.mxu0 0
      %1449 = vmatmul.mubr.bf16.gmra.mrb[0].mxu0 %v1390
      %v1450 = vpop.f32.mrb[0].mxu0
      %v1451 = vadd.f32 0.0, %v1450
      %v1452 = vpop.f32.mrb[0].mxu0
      %v1453 = vpop.f32.mrb[0].mxu0
      %v1454 = vadd.f32 0.0, %v1453
      %v1455 = vpop.f32.mrb[0].mxu0
      %1456 = vdwg.mxu0
      %v1457 = vadd.f32 %v1333, %v1427
      %v1458 = vadd.f32 %v1334, %v1430
      %v1459 = vadd.f32 %v1335, %v1435
      %v1460 = vadd.f32 %v1336, %v1438
      %v1461 = vadd.f32 %v1337, %v1443
      %v1462 = vadd.f32 %v1338, %v1446
      %v1463 = vadd.f32 %v1339, %v1451
      %v1464 = vadd.f32 %v1340, %v1454
      %s1465 = scalar_lea.vmem %s248, 224
      %v1466 = vld [vmem:[%s1465] sm:$0xf]
      %v1467 = vld [vmem:[%s1465 + $0x4] sm:$0xf]
      %v1468 = vld [vmem:[%s1465 + $0x8] sm:$0xf]
      %v1469 = vld [vmem:[%s1465 + $0xc] sm:$0xf]
      %v1470 = vld [vmem:[%s1465 + $0x10] sm:$0xf]
      %v1471 = vld [vmem:[%s1465 + $0x14] sm:$0xf]
      %v1472 = vld [vmem:[%s1465 + $0x18] sm:$0xf]
      %v1473 = vld [vmem:[%s1465 + $0x1c] sm:$0xf]
      %v1475 = vunpack.c.l.b16 %v291
      %v1476 = vpack.c.b16 %v345, %v344
      %v1477 = vpack.c.b16 %v347, %v346
      %v1478 = vpack.c.b16 %v349, %v348
      %v1479 = vpack.c.b16 %v1475, %v350
      %v1488 = vunpack.c.l.b16 %v1466
      %v1489 = vunpack.c.l.b16 %v1467
      %v1490 = vunpack.c.l.b16 %v1468
      %v1491 = vunpack.c.l.b16 %v1469
      %v1492 = vunpack.c.l.b16 %v1470
      %v1493 = vunpack.c.l.b16 %v1471
      %v1494 = vunpack.c.l.b16 %v1472
      %v1495 = vunpack.c.l.b16 %v1473
      %v1496 = vpack.c.b16 %v1489, %v1488
      %v1497 = vpack.c.b16 %v1491, %v1490
      %v1498 = vpack.c.b16 %v1493, %v1492
      %v1499 = vpack.c.b16 %v1495, %v1494
      %v1505 = vsel %vm379, %v1476, 0
      %v1508 = vsel %vm379, %v1477, 0
      %v1511 = vsel %vm379, %v1478, 0
      %v1514 = vsel %vm379, %v1479, 0
      %1516 = vmatprep.subr.bf16.mxu0 0
      %1517 = vmatpush1.bf16.msra.mxu0 %v1496
      %1518 = vmatprep.subr.bf16.mxu0 0
      %1519 = vmatpush1.bf16.msra.mxu0 %v1497
      %1520 = vmatprep.subr.bf16.mxu0 0
      %1521 = vmatpush1.bf16.msra.mxu0 %v1498
      %1522 = vmatprep.subr.bf16.mxu0 0
      %1523 = vmatpush1.bf16.msra.mxu0 %v1499
      %1524 = vmatprep.subr.bf16.mxu0 0
      %1525 = vmatpush1.bf16.msra.mxu0 0
      %1526 = vmatprep.subr.bf16.mxu0 0
      %1527 = vmatpush1.bf16.msra.mxu0 0
      %1528 = vmatprep.subr.bf16.mxu0 0
      %1529 = vmatpush1.bf16.msra.mxu0 0
      %1530 = vmatprep.subr.bf16.mxu0 0
      %1531 = vmatpush1.bf16.msra.mxu0 0
      %1532 = vmatprep.subr.bf16.mxu0 0
      %1533 = vmatpush1.bf16.msra.mxu0 0
      %1534 = vmatprep.subr.bf16.mxu0 0
      %1535 = vmatpush1.bf16.msra.mxu0 0
      %1536 = vmatprep.subr.bf16.mxu0 0
      %1537 = vmatpush1.bf16.msra.mxu0 0
      %1538 = vmatprep.subr.bf16.mxu0 0
      %1539 = vmatpush1.bf16.msra.mxu0 0
      %1540 = vmatprep.subr.bf16.mxu0 0
      %1541 = vmatpush1.bf16.msra.mxu0 0
      %1542 = vmatprep.subr.bf16.mxu0 0
      %1543 = vmatpush1.bf16.msra.mxu0 0
      %1544 = vmatprep.subr.bf16.mxu0 0
      %1545 = vmatpush1.bf16.msra.mxu0 0
      %1546 = vmatprep.subr.bf16.mxu0 0
      %1547 = vmatpush1.bf16.msra.mxu0 0
      %1548 = vmatprep.mubr.bf16.mxu0 0
      %1549 = vmatmul.mubr.bf16.gmra.mrb[0].mxu0 %v1505
      %v1550 = vpop.f32.mrb[0].mxu0
      %v1551 = vadd.f32 0.0, %v1550
      %v1552 = vpop.f32.mrb[0].mxu0
      %v1553 = vpop.f32.mrb[0].mxu0
      %v1554 = vadd.f32 0.0, %v1553
      %v1555 = vpop.f32.mrb[0].mxu0
      %1556 = vmatprep.mubr.bf16.mxu0 0
      %1557 = vmatmul.mubr.bf16.gmra.mrb[0].mxu0 %v1508
      %v1558 = vpop.f32.mrb[0].mxu0
      %v1559 = vadd.f32 0.0, %v1558
      %v1560 = vpop.f32.mrb[0].mxu0
      %v1561 = vpop.f32.mrb[0].mxu0
      %v1562 = vadd.f32 0.0, %v1561
      %v1563 = vpop.f32.mrb[0].mxu0
      %1564 = vmatprep.mubr.bf16.mxu0 0
      %1565 = vmatmul.mubr.bf16.gmra.mrb[0].mxu0 %v1511
      %v1566 = vpop.f32.mrb[0].mxu0
      %v1567 = vadd.f32 0.0, %v1566
      %v1568 = vpop.f32.mrb[0].mxu0
      %v1569 = vpop.f32.mrb[0].mxu0
      %v1570 = vadd.f32 0.0, %v1569
      %v1571 = vpop.f32.mrb[0].mxu0
      %1572 = vmatprep.mubr.bf16.mxu0 0
      %1573 = vmatmul.mubr.bf16.gmra.mrb[0].mxu0 %v1514
      %v1574 = vpop.f32.mrb[0].mxu0
      %v1575 = vadd.f32 0.0, %v1574
      %v1576 = vpop.f32.mrb[0].mxu0
      %v1577 = vpop.f32.mrb[0].mxu0
      %v1578 = vadd.f32 0.0, %v1577
      %v1579 = vpop.f32.mrb[0].mxu0
      %1580 = vdwg.mxu0
      %v1581 = vadd.f32 %v1457, %v1551
      %v1582 = vadd.f32 %v1458, %v1554
      %v1583 = vadd.f32 %v1459, %v1559
      %v1584 = vadd.f32 %v1460, %v1562
      %v1585 = vadd.f32 %v1461, %v1567
      %v1586 = vadd.f32 %v1462, %v1570
      %v1587 = vadd.f32 %v1463, %v1575
      %v1588 = vadd.f32 %v1464, %v1578
      %v1590 = vshrl.u32 %v280, 16
      %v1592 = vrot.slane %v1590, 4
      %v1593 = vshll.u32 %v280, 16
      %v1595 = vrot.slane %v1593, 5
      %v1596 = vor.u32 %v1592, %v1595
      %v1597 = vrot.slane %v1596, 4
      %v1599 = vshll.u32 %v281, 16
      %v1601 = vrot.slane %v1599, 5
      %v1602 = vsel %vm580, %v1597, %v1601
      %s1603 = scalar_lea.vmem %s248, 256
      %v1604 = vld [vmem:[%s1603] sm:$0xf]
      %v1605 = vld [vmem:[%s1603 + $0x4] sm:$0xf]
      %v1606 = vld [vmem:[%s1603 + $0x8] sm:$0xf]
      %v1607 = vld [vmem:[%s1603 + $0xc] sm:$0xf]
      %v1608 = vld [vmem:[%s1603 + $0x10] sm:$0xf]
      %v1609 = vld [vmem:[%s1603 + $0x14] sm:$0xf]
      %v1610 = vld [vmem:[%s1603 + $0x18] sm:$0xf]
      %v1611 = vld [vmem:[%s1603 + $0x1c] sm:$0xf]
      %v1612 = vunpack.c.l.b16 %v1602
      %v1613 = vpack.c.b16 %v704, %v703
      %v1614 = vpack.c.b16 %v706, %v705
      %v1615 = vpack.c.b16 %v708, %v707
      %v1616 = vpack.c.b16 %v1612, %v709
      %v1625 = vunpack.c.l.b16 %v1604
      %v1626 = vunpack.c.l.b16 %v1605
      %v1627 = vunpack.c.l.b16 %v1606
      %v1628 = vunpack.c.l.b16 %v1607
      %v1629 = vunpack.c.l.b16 %v1608
      %v1630 = vunpack.c.l.b16 %v1609
      %v1631 = vunpack.c.l.b16 %v1610
      %v1632 = vunpack.c.l.b16 %v1611
      %v1633 = vpack.c.b16 %v1626, %v1625
      %v1634 = vpack.c.b16 %v1628, %v1627
      %v1635 = vpack.c.b16 %v1630, %v1629
      %v1636 = vpack.c.b16 %v1632, %v1631
      %v1642 = vsel %vm379, %v1613, 0
      %v1645 = vsel %vm379, %v1614, 0
      %v1648 = vsel %vm379, %v1615, 0
      %v1651 = vsel %vm379, %v1616, 0
      %1653 = vmatprep.subr.bf16.mxu0 0
      %1654 = vmatpush1.bf16.msra.mxu0 %v1633
      %1655 = vmatprep.subr.bf16.mxu0 0
      %1656 = vmatpush1.bf16.msra.mxu0 %v1634
      %1657 = vmatprep.subr.bf16.mxu0 0
      %1658 = vmatpush1.bf16.msra.mxu0 %v1635
      %1659 = vmatprep.subr.bf16.mxu0 0
      %1660 = vmatpush1.bf16.msra.mxu0 %v1636
      %1661 = vmatprep.subr.bf16.mxu0 0
      %1662 = vmatpush1.bf16.msra.mxu0 0
      %1663 = vmatprep.subr.bf16.mxu0 0
      %1664 = vmatpush1.bf16.msra.mxu0 0
      %1665 = vmatprep.subr.bf16.mxu0 0
      %1666 = vmatpush1.bf16.msra.mxu0 0
      %1667 = vmatprep.subr.bf16.mxu0 0
      %1668 = vmatpush1.bf16.msra.mxu0 0
      %1669 = vmatprep.subr.bf16.mxu0 0
      %1670 = vmatpush1.bf16.msra.mxu0 0
      %1671 = vmatprep.subr.bf16.mxu0 0
      %1672 = vmatpush1.bf16.msra.mxu0 0
      %1673 = vmatprep.subr.bf16.mxu0 0
      %1674 = vmatpush1.bf16.msra.mxu0 0
      %1675 = vmatprep.subr.bf16.mxu0 0
      %1676 = vmatpush1.bf16.msra.mxu0 0
      %1677 = vmatprep.subr.bf16.mxu0 0
      %1678 = vmatpush1.bf16.msra.mxu0 0
      %1679 = vmatprep.subr.bf16.mxu0 0
      %1680 = vmatpush1.bf16.msra.mxu0 0
      %1681 = vmatprep.subr.bf16.mxu0 0
      %1682 = vmatpush1.bf16.msra.mxu0 0
      %1683 = vmatprep.subr.bf16.mxu0 0
      %1684 = vmatpush1.bf16.msra.mxu0 0
      %1685 = vmatprep.mubr.bf16.mxu0 0
      %1686 = vmatmul.mubr.bf16.gmra.mrb[0].mxu0 %v1642
      %v1687 = vpop.f32.mrb[0].mxu0
      %v1688 = vadd.f32 0.0, %v1687
      %v1689 = vpop.f32.mrb[0].mxu0
      %v1690 = vpop.f32.mrb[0].mxu0
      %v1691 = vadd.f32 0.0, %v1690
      %v1692 = vpop.f32.mrb[0].mxu0
      %1693 = vmatprep.mubr.bf16.mxu0 0
      %1694 = vmatmul.mubr.bf16.gmra.mrb[0].mxu0 %v1645
      %v1695 = vpop.f32.mrb[0].mxu0
      %v1696 = vadd.f32 0.0, %v1695
      %v1697 = vpop.f32.mrb[0].mxu0
      %v1698 = vpop.f32.mrb[0].mxu0
      %v1699 = vadd.f32 0.0, %v1698
      %v1700 = vpop.f32.mrb[0].mxu0
      %1701 = vmatprep.mubr.bf16.mxu0 0
      %1702 = vmatmul.mubr.bf16.gmra.mrb[0].mxu0 %v1648
      %v1703 = vpop.f32.mrb[0].mxu0
      %v1704 = vadd.f32 0.0, %v1703
      %v1705 = vpop.f32.mrb[0].mxu0
      %v1706 = vpop.f32.mrb[0].mxu0
      %v1707 = vadd.f32 0.0, %v1706
      %v1708 = vpop.f32.mrb[0].mxu0
      %1709 = vmatprep.mubr.bf16.mxu0 0
      %1710 = vmatmul.mubr.bf16.gmra.mrb[0].mxu0 %v1651
      %v1711 = vpop.f32.mrb[0].mxu0
      %v1712 = vadd.f32 0.0, %v1711
      %v1713 = vpop.f32.mrb[0].mxu0
      %v1714 = vpop.f32.mrb[0].mxu0
      %v1715 = vadd.f32 0.0, %v1714
      %v1716 = vpop.f32.mrb[0].mxu0
      %1717 = vdwg.mxu0
      %v1718 = vadd.f32 %v1581, %v1688
      %v1719 = vadd.f32 %v1582, %v1691
      %v1720 = vadd.f32 %v1583, %v1696
      %v1721 = vadd.f32 %v1584, %v1699
      %v1722 = vadd.f32 %v1585, %v1704
      %v1723 = vadd.f32 %v1586, %v1707
      %v1724 = vadd.f32 %v1587, %v1712
      %v1725 = vadd.f32 %v1588, %v1715
      %v1726 = vld [vmem:[%s251] sm:$0x1]
      %v1728 = vlaneseq
      %v1729 = vshrl.u32 %v1728, 7
      %v1730 = vsub.s32 0, %v1729
      %v1731 = vrot.slane %v1726, %v1730
      %v1733 = vmul.f32 %v1718, %v1731
      %v1734 = vmul.f32 %v1719, %v1731
      %v1735 = vmul.f32 %v1720, %v1731
      %v1736 = vmul.f32 %v1721, %v1731
      %v1737 = vmul.f32 %v1722, %v1731
      %v1738 = vmul.f32 %v1723, %v1731
      %v1739 = vmul.f32 %v1724, %v1731
      %v1740 = vmul.f32 %v1725, %v1731
      %v1741 = vld [vmem:[%s254] sm:$0x1]
      %v1743 = vlaneseq
      %v1744 = vshrl.u32 %v1743, 7
      %v1745 = vsub.s32 0, %v1744
      %v1746 = vrot.slane %v1741, %v1745
      %v1748 = vadd.f32 %v1733, %v1746
      %v1749 = vadd.f32 %v1734, %v1746
      %v1750 = vadd.f32 %v1735, %v1746
      %v1751 = vadd.f32 %v1736, %v1746
      %v1752 = vadd.f32 %v1737, %v1746
      %v1753 = vadd.f32 %v1738, %v1746
      %v1754 = vadd.f32 %v1739, %v1746
      %v1755 = vadd.f32 %v1740, %v1746
      %v1756 = vmax.f32 %v1748, 0.0
      %v1757 = vmax.f32 %v1749, 0.0
      %v1758 = vmax.f32 %v1750, 0.0
      %v1759 = vmax.f32 %v1751, 0.0
      %v1760 = vmax.f32 %v1752, 0.0
      %v1761 = vmax.f32 %v1753, 0.0
      %v1762 = vmax.f32 %v1754, 0.0
      %v1763 = vmax.f32 %v1755, 0.0
      %v1764 = vpack.c.bf16 %v1756, %v1756
      %v1765 = vpack.c.bf16 %v1757, %v1757
      %v1766 = vpack.c.bf16 %v1758, %v1758
      %v1767 = vpack.c.bf16 %v1759, %v1759
      %v1768 = vpack.c.bf16 %v1760, %v1760
      %v1769 = vpack.c.bf16 %v1761, %v1761
      %v1770 = vpack.c.bf16 %v1762, %v1762
      %v1771 = vpack.c.bf16 %v1763, %v1763
      %1772 = vst [vmem:[%s262] sm:$0xf] %v1764
      %1773 = vst [vmem:[%s262 + $0x4] sm:$0xf] %v1765
      %1774 = vst [vmem:[%s262 + $0x8] sm:$0xf] %v1766
      %1775 = vst [vmem:[%s262 + $0xc] sm:$0xf] %v1767
      %1776 = vst [vmem:[%s262 + $0x10] sm:$0xf] %v1768
      %1777 = vst [vmem:[%s262 + $0x14] sm:$0xf] %v1769
      %1778 = vst [vmem:[%s262 + $0x18] sm:$0xf] %v1770
      %1779 = vst [vmem:[%s262 + $0x1c] sm:$0xf] %v1771
      %p1780 = scmp.lt.s32.totalorder %s19, 1
      %s1781 = scalar_select %p1780, %s19, 1
      %p1782 = scmp.lt.s32.totalorder %s20, 0
      %s1783 = scalar_select %p1782, %s20, 0
      %s1784 = smul.addr %s1781, 8
      %s1785 = sadd.s32 %s1783, %s1784
      %s1786 = smul.addr %s1785, 4
      %s1787 = scalar_lea.vmem %s4, %s1786
      // Predicated region
      $region37: #{fwd.6} parent=35 // pred_check
        %p1788 = pneg %p151
      $region38: #{fwd.6} parent=35 // pred_check_branch
        %1790 = sbr.rel (%p1788) target = $region40
      $region39: #{fwd.6} parent=35 // pred_region
        _
      $region40: #{fwd.6} parent=35 // pred_fallthru
        _
    $region36: #{fwd.6} parent=5 // pred_fallthru
      _
    %p1791 = scmp.le.s32.totalorder 2, %s10
    // Predicated region
    $region41: #{fwd.6} parent=5 // pred_check
      %p1792 = pneg %p1791
    $region42: #{fwd.6} parent=5 // pred_check_branch
      %1794 = sbr.rel (%p1792) target = $region44
    $region43: #{fwd.6} parent=5 // pred_region
      %s1795 = ssub.s32 %s10, 2
      // Predicated region
      $region45: #{fwd.6} parent=43 // pred_check
        %p1796 = pneg %p157
      $region46: #{fwd.6} parent=43 // pred_check_branch
        %1798 = sbr.rel (%p1796) target = $region48
      $region47: #{fwd.6} parent=43 // pred_region
        %p1799 = scmp.lt.s32.totalorder %s21, 1
        %s1800 = scalar_select %p1799, %s21, 1
        %p1801 = scmp.lt.s32.totalorder %s22, 0
        %s1802 = scalar_select %p1801, %s22, 0
        %s1803 = smul.addr %s1800, 8
        %s1804 = sadd.s32 %s1802, %s1803
        %s1805 = smul.addr %s1804, 4
        %s1806 = scalar_lea.vmem %s4, %s1805
      $region48: #{fwd.6} parent=43 // pred_fallthru
        _
    $region44: #{fwd.6} parent=5 // pred_fallthru
      _
  $region6: #{fwd.6} parent=0 // loop_footer
    %s14 = sadd.s32 1, %s10
  $region7: #{fwd.6} parent=0 // loop_footer_branch
    %9 = sbr.rel target = $region3
  $region8: #{fwd.6} parent=0 // loop_exit
    _

// kernel: fwd.8
$region0: #{fwd.8}
  #allocation0 [shape = 'u32[]', space=smem, size = 0x4, offset = 0x4, fixed_abs, tag = 'smem constant byte address 0x4 - core index']
  #allocation1 [shape = 'u32[144,128]{1,0:T(1,128)}', space=vmem, size = 0x12000, scoped, tag = 'internal scratch']
  %s0 = inlined_call_operand.vmem [shape: bf16[2,1,10,10,128], index: 0, kind: input, shape index: {}]
  %s1 = inlined_call_operand.vmem [shape: bf16[9,128,128], index: 1, kind: input, shape index: {}]
  %s2 = inlined_call_operand.vmem [shape: f32[1,128], index: 2, kind: input, shape index: {}]
  %s3 = inlined_call_operand.vmem [shape: f32[1,128], index: 3, kind: input, shape index: {}]
  %s4 = inlined_call_operand.vmem [shape: bf16[2,8,8,128], index: 4, kind: output, shape index: {}]
  %s5 = sld [smem:[#allocation0]]
  $region49: #{fwd.8} parent=0
    _
  %s7 = ssub.s32 1, %s5
  %s8 = scalar_select 0, %s7, %s5
  loop: start=0, step=1, limit=4
  $region2: #{fwd.8} parent=0 // loop_pre_header
    _
  $region3: #{fwd.8} parent=0 // loop_header
    %s10 = sphi 0, %s14
    %p11 = scmp.ge.s32.totalorder %s10, 4
    %s17 = sphi 0, %s29
    %s18 = sphi 0, %s25
    %s19 = sphi 0, %s17
    %s20 = sphi 0, %s18
    %s21 = sphi 0, %s19
    %s22 = sphi 0, %s20
    %s32 = sphi 0, %s34
    %s35 = sphi 0, %s32
    %s36 = sphi 0, %s35
    %s52 = sphi 0, %s36
    %s58 = sphi 0, %s60
    %s61 = sphi 0, %s58
    %s62 = sphi 0, %s61
    %s78 = sphi 0, %s62
    %s84 = sphi 0, %s86
    %s87 = sphi 0, %s84
    %s88 = sphi 0, %s87
    %s104 = sphi 0, %s88
    %s110 = sphi 0, %s112
    %s113 = sphi 0, %s110
    %s114 = sphi 0, %s113
    %s130 = sphi 0, %s114
    %s138 = sphi 0, %s140
    %s141 = sphi 0, %s138
    %s142 = sphi 0, %s141
    %s158 = sphi 0, %s142
  $region4: #{fwd.8} parent=0 // loop_header_branch
    %13 = sbr.rel (%p11) target = $region8
  $region5: #{fwd.8} parent=0 // loop_body
    %s15 = ssub.s32 %s10, 1
    %s16 = ssub.s32 %s10, 2
    %s23 = sadd.s32 1, %s18
    %p24 = scmp.ge.s32.totalorder %s23, 1
    %s25 = scalar_select %p24, 0, %s23
    %s26 = sadd.s32 1, %s17
    %s27 = scalar_select %p24, %s26, %s17
    %p28 = scmp.ge.s32.totalorder %s27, 2
    %s29 = scalar_select %p28, 0, %s27
    %s30 = ssub.s32 %s17, %s29
    %p31 = scmp.eq.s32.totalorder %s30, 0
    %s33 = sadd.s32 %s32, 1
    %s34 = scalar_select %p31, %s32, %s33
    %p37 = pneg %p31
    %p38 = scmp.eq.s32.totalorder %s10, 1
    %p39 = por %p37, %p38
    %p40 = scmp.ne.s32.totalorder %s32, %s35
    %p41 = scmp.eq.s32.totalorder %s10, 0
    %p42 = por %p40, %p41
    %p43 = scmp.ne.s32.totalorder %s32, %s35
    %p44 = scmp.eq.s32.totalorder %s15, 1
    %p45 = por %p43, %p44
    %p46 = scmp.ne.s32.totalorder %s35, %s36
    %p47 = scmp.eq.s32.totalorder %s15, 0
    %p48 = por %p46, %p47
    %p49 = scmp.ne.s32.totalorder %s35, %s36
    %p50 = scmp.eq.s32.totalorder %s16, 1
    %p51 = por %p49, %p50
    %p53 = scmp.ne.s32.totalorder %s36, %s52
    %p54 = scmp.eq.s32.totalorder %s16, 0
    %p55 = por %p53, %p54
    %s56 = ssub.s32 %s18, %s25
    %p57 = scmp.eq.s32.totalorder %s56, 0
    %s59 = sadd.s32 %s58, 1
    %s60 = scalar_select %p57, %s58, %s59
    %p63 = pneg %p57
    %p64 = scmp.eq.s32.totalorder %s10, 1
    %p65 = por %p63, %p64
    %p66 = scmp.ne.s32.totalorder %s58, %s61
    %p67 = scmp.eq.s32.totalorder %s10, 0
    %p68 = por %p66, %p67
    %p69 = scmp.ne.s32.totalorder %s58, %s61
    %p70 = scmp.eq.s32.totalorder %s15, 1
    %p71 = por %p69, %p70
    %p72 = scmp.ne.s32.totalorder %s61, %s62
    %p73 = scmp.eq.s32.totalorder %s15, 0
    %p74 = por %p72, %p73
    %p75 = scmp.ne.s32.totalorder %s61, %s62
    %p76 = scmp.eq.s32.totalorder %s16, 1
    %p77 = por %p75, %p76
    %p79 = scmp.ne.s32.totalorder %s62, %s78
    %p80 = scmp.eq.s32.totalorder %s16, 0
    %p81 = por %p79, %p80
    %s82 = ssub.s32 %s18, %s25
    %p83 = scmp.eq.s32.totalorder %s82, 0
    %s85 = sadd.s32 %s84, 1
    %s86 = scalar_select %p83, %s84, %s85
    %p89 = pneg %p83
    %p90 = scmp.eq.s32.totalorder %s10, 1
    %p91 = por %p89, %p90
    %p92 = scmp.ne.s32.totalorder %s84, %s87
    %p93 = scmp.eq.s32.totalorder %s10, 0
    %p94 = por %p92, %p93
    %p95 = scmp.ne.s32.totalorder %s84, %s87
    %p96 = scmp.eq.s32.totalorder %s15, 1
    %p97 = por %p95, %p96
    %p98 = scmp.ne.s32.totalorder %s87, %s88
    %p99 = scmp.eq.s32.totalorder %s15, 0
    %p100 = por %p98, %p99
    %p101 = scmp.ne.s32.totalorder %s87, %s88
    %p102 = scmp.eq.s32.totalorder %s16, 1
    %p103 = por %p101, %p102
    %p105 = scmp.ne.s32.totalorder %s88, %s104
    %p106 = scmp.eq.s32.totalorder %s16, 0
    %p107 = por %p105, %p106
    %s108 = ssub.s32 %s18, %s25
    %p109 = scmp.eq.s32.totalorder %s108, 0
    %s111 = sadd.s32 %s110, 1
    %s112 = scalar_select %p109, %s110, %s111
    %p115 = pneg %p109
    %p116 = scmp.eq.s32.totalorder %s10, 1
    %p117 = por %p115, %p116
    %p118 = scmp.ne.s32.totalorder %s110, %s113
    %p119 = scmp.eq.s32.totalorder %s10, 0
    %p120 = por %p118, %p119
    %p121 = scmp.ne.s32.totalorder %s110, %s113
    %p122 = scmp.eq.s32.totalorder %s15, 1
    %p123 = por %p121, %p122
    %p124 = scmp.ne.s32.totalorder %s113, %s114
    %p125 = scmp.eq.s32.totalorder %s15, 0
    %p126 = por %p124, %p125
    %p127 = scmp.ne.s32.totalorder %s113, %s114
    %p128 = scmp.eq.s32.totalorder %s16, 1
    %p129 = por %p127, %p128
    %p131 = scmp.ne.s32.totalorder %s114, %s130
    %p132 = scmp.eq.s32.totalorder %s16, 0
    %p133 = por %p131, %p132
    %s134 = ssub.s32 %s17, %s29
    %s135 = ssub.s32 %s18, %s25
    %s136 = sor.u32 %s134, %s135
    %p137 = scmp.eq.s32.totalorder %s136, 0
    %s139 = sadd.s32 %s138, 1
    %s140 = scalar_select %p137, %s138, %s139
    %p143 = pneg %p137
    %p144 = scmp.eq.s32.totalorder %s10, 1
    %p145 = por %p143, %p144
    %p146 = scmp.ne.s32.totalorder %s138, %s141
    %p147 = scmp.eq.s32.totalorder %s10, 0
    %p148 = por %p146, %p147
    %p149 = scmp.ne.s32.totalorder %s138, %s141
    %p150 = scmp.eq.s32.totalorder %s15, 1
    %p151 = por %p149, %p150
    %p152 = scmp.ne.s32.totalorder %s141, %s142
    %p153 = scmp.eq.s32.totalorder %s15, 0
    %p154 = por %p152, %p153
    %p155 = scmp.ne.s32.totalorder %s141, %s142
    %p156 = scmp.eq.s32.totalorder %s16, 1
    %p157 = por %p155, %p156
    %p159 = scmp.ne.s32.totalorder %s142, %s158
    %p160 = scmp.eq.s32.totalorder %s16, 0
    %p161 = por %p159, %p160
    %p162 = scmp.le.s32.totalorder 1, %s10
    %p163 = scmp.lt.s32.totalorder %s10, 3
    %p164 = pnand %p162, %p163
    %p165 = pneg %p164
    // Predicated region
    $region9: #{fwd.8} parent=5 // pred_check
      _
    $region10: #{fwd.8} parent=5 // pred_check_branch
      %167 = sbr.rel (%p164) target = $region12
    $region11: #{fwd.8} parent=5 // pred_region
      %s168 = ssub.s32 %s10, 1
      // Predicated region
      $region13: #{fwd.8} parent=11 // pred_check
        %p169 = pneg %p74
      $region14: #{fwd.8} parent=11 // pred_check_branch
        %171 = sbr.rel (%p169) target = $region16
      $region15: #{fwd.8} parent=11 // pred_region
        %p172 = scmp.lt.s32.totalorder %s20, 0
        %s173 = scalar_select %p172, %s20, 0
        %s174 = smul.addr %s173, 4
        %s175 = scalar_lea.vmem %s1, %s174
      $region16: #{fwd.8} parent=11 // pred_fallthru
        _
      // Predicated region
      $region17: #{fwd.8} parent=11 // pred_check
        %p176 = pneg %p100
      $region18: #{fwd.8} parent=11 // pred_check_branch
        %178 = sbr.rel (%p176) target = $region20
      $region19: #{fwd.8} parent=11 // pred_region
        %p179 = scmp.lt.s32.totalorder %s20, 0
        %s180 = scalar_select %p179, %s20, 0
        %s181 = scalar_lea.vmem %s2, %s180
      $region20: #{fwd.8} parent=11 // pred_fallthru
        _
      // Predicated region
      $region21: #{fwd.8} parent=11 // pred_check
        %p182 = pneg %p126
      $region22: #{fwd.8} parent=11 // pred_check_branch
        %184 = sbr.rel (%p182) target = $region24
      $region23: #{fwd.8} parent=11 // pred_region
        %p185 = scmp.lt.s32.totalorder %s20, 0
        %s186 = scalar_select %p185, %s20, 0
        %s187 = scalar_lea.vmem %s3, %s186
      $region24: #{fwd.8} parent=11 // pred_fallthru
        _
    $region12: #{fwd.8} parent=5 // pred_fallthru
      _
    %p188 = scmp.lt.s32.totalorder %s10, 2
    // Predicated region
    $region25: #{fwd.8} parent=5 // pred_check
      %p189 = pneg %p188
    $region26: #{fwd.8} parent=5 // pred_check_branch
      %191 = sbr.rel (%p189) target = $region28
    $region27: #{fwd.8} parent=5 // pred_region
      // Predicated region
      $region29: #{fwd.8} parent=27 // pred_check
        %p192 = pneg %p42
      $region30: #{fwd.8} parent=27 // pred_check_branch
        %194 = sbr.rel (%p192) target = $region32
      $region31: #{fwd.8} parent=27 // pred_region
        %p195 = scmp.lt.s32.totalorder %s17, 1
        %s196 = scalar_select %p195, %s17, 1
        %s197 = smul.addr %s196, 20
        %s198 = smul.addr %s197, 4
        %s199 = scalar_lea.vmem %s0, %s198
      $region32: #{fwd.8} parent=27 // pred_fallthru
        _
    $region28: #{fwd.8} parent=5 // pred_fallthru
      _
    %p200 = scmp.le.s32.totalorder 1, %s10
    %p201 = scmp.lt.s32.totalorder %s10, 3
    %p202 = pnand %p200, %p201
    %p203 = pneg %p202
    // Predicated region
    $region33: #{fwd.8} parent=5 // pred_check
      _
    $region34: #{fwd.8} parent=5 // pred_check_branch
      %205 = sbr.rel (%p202) target = $region36
    $region35: #{fwd.8} parent=5 // pred_region
      %s206 = ssub.s32 %s10, 1
      %p207 = scmp.lt.s32.totalorder %s19, 1
      %s208 = scalar_select %p207, %s19, 1
      %s209 = smul.addr %s208, 20
      %s210 = smul.addr %s209, 4
      %s211 = scalar_lea.vmem %s0, %s210
      %p212 = pneg %p48
      %p213 = pneg %p45
      %p214 = scmp.lt.s32.totalorder %s20, 0
      %s215 = scalar_select %p214, %s20, 0
      %s216 = smul.addr %s215, 4
      %s217 = scalar_lea.vmem %s1, %s216
      %p218 = pneg %p74
      %p219 = pneg %p71
      %p220 = scmp.lt.s32.totalorder %s20, 0
      %s221 = scalar_select %p220, %s20, 0
      %s222 = scalar_lea.vmem %s2, %s221
      %p223 = pneg %p100
      %p224 = pneg %p97
      %p225 = scmp.lt.s32.totalorder %s20, 0
      %s226 = scalar_select %p225, %s20, 0
      %s227 = scalar_lea.vmem %s3, %s226
      %p228 = pneg %p126
      %p229 = pneg %p123
      %p230 = pneg %p154
      %p231 = pneg %p151
      %p232 = scmp.lt.s32.totalorder %s19, 1
      %s233 = scalar_select %p232, %s19, 1
      %p234 = scmp.lt.s32.totalorder %s20, 0
      %s235 = scalar_select %p234, %s20, 0
      %s236 = smul.addr %s233, 8
      %s237 = sadd.s32 %s235, %s236
      %s238 = smul.addr %s237, 4
      %s239 = scalar_lea.vmem %s4, %s238
      %p240 = scmp.lt.s32.totalorder %s19, 1
      %s241 = scalar_select %p240, %s19, 1
      %s242 = smul.addr %s241, 20
      %s243 = smul.addr %s242, 4
      %s244 = scalar_lea.vmem %s0, %s243
      %p245 = scmp.lt.s32.totalorder %s20, 0
      %s246 = scalar_select %p245, %s20, 0
      %s247 = smul.addr %s246, 4
      %s248 = scalar_lea.vmem %s1, %s247
      %p249 = scmp.lt.s32.totalorder %s20, 0
      %s250 = scalar_select %p249, %s20, 0
      %s251 = scalar_lea.vmem %s2, %s250
      %p252 = scmp.lt.s32.totalorder %s20, 0
      %s253 = scalar_select %p252, %s20, 0
      %s254 = scalar_lea.vmem %s3, %s253
      %p255 = scmp.lt.s32.totalorder %s19, 1
      %s256 = scalar_select %p255, %s19, 1
      %p257 = scmp.lt.s32.totalorder %s20, 0
      %s258 = scalar_select %p257, %s20, 0
      %s259 = smul.addr %s256, 8
      %s260 = sadd.s32 %s258, %s259
      %s261 = smul.addr %s260, 4
      %s262 = scalar_lea.vmem %s4, %s261
      %v264 = vld [vmem:[%s244] sm:$0xf]
      %v265 = vld [vmem:[%s244 + $0x4] sm:$0x1]
      %v266 = vld [vmem:[%s244 + $0x8] sm:$0xf]
      %v267 = vld [vmem:[%s244 + $0xc] sm:$0x1]
      %v268 = vld [vmem:[%s244 + $0x10] sm:$0xf]
      %v269 = vld [vmem:[%s244 + $0x14] sm:$0x1]
      %v270 = vld [vmem:[%s244 + $0x18] sm:$0xf]
      %v271 = vld [vmem:[%s244 + $0x1c] sm:$0x1]
      %v272 = vld [vmem:[%s244 + $0x20] sm:$0xf]
      %v273 = vld [vmem:[%s244 + $0x24] sm:$0x1]
      %v274 = vld [vmem:[%s244 + $0x28] sm:$0xf]
      %v275 = vld [vmem:[%s244 + $0x2c] sm:$0x1]
      %v276 = vld [vmem:[%s244 + $0x30] sm:$0xf]
      %v277 = vld [vmem:[%s244 + $0x34] sm:$0x1]
      %v278 = vld [vmem:[%s244 + $0x38] sm:$0xf]
      %v279 = vld [vmem:[%s244 + $0x3c] sm:$0x1]
      %v280 = vld [vmem:[%s244 + $0x40] sm:$0xf]
      %v281 = vld [vmem:[%s244 + $0x44] sm:$0x1]
      %v282 = vld [vmem:[%s244 + $0x48] sm:$0xf]
      %v283 = vld [vmem:[%s244 + $0x4c] sm:$0x1]
      %v284 = vld [vmem:[%s248] sm:$0xf]
      %v285 = vld [vmem:[%s248 + $0x4] sm:$0xf]
      %v286 = vld [vmem:[%s248 + $0x8] sm:$0xf]
      %v287 = vld [vmem:[%s248 + $0xc] sm:$0xf]
      %v288 = vld [vmem:[%s248 + $0x10] sm:$0xf]
      %v289 = vld [vmem:[%s248 + $0x14] sm:$0xf]
      %v290 = vld [vmem:[%s248 + $0x18] sm:$0xf]
      %v291 = vld [vmem:[%s248 + $0x1c] sm:$0xf]
      %v292 = vld [vmem:[%s248 + $0x20] sm:$0xf]
      %v293 = vld [vmem:[%s248 + $0x24] sm:$0xf]
      %v294 = vld [vmem:[%s248 + $0x28] sm:$0xf]
      %v295 = vld [vmem:[%s248 + $0x2c] sm:$0xf]
      %v296 = vld [vmem:[%s248 + $0x30] sm:$0xf]
      %v297 = vld [vmem:[%s248 + $0x34] sm:$0xf]
      %v298 = vld [vmem:[%s248 + $0x38] sm:$0xf]
      %v299 = vld [vmem:[%s248 + $0x3c] sm:$0xf]
      %vm300 = vsmask.f32 3328
      %vm301 = vsmask.f32 7440
      %vm302 = vmor %vm300, %vm301
      %v304 = vshrl.u32 %v264, 16
      %v306 = vrot.slane %v304, 4
      %v307 = vshll.u32 %v264, 16
      %v309 = vrot.slane %v307, 5
      %v310 = vor.u32 %v306, %v309
      %v311 = vrot.slane %v310, 4
      %v313 = vshll.u32 %v265, 16
      %v315 = vrot.slane %v313, 5
      %v316 = vsel %vm302, %v311, %v315
      %v318 = vshrl.u32 %v266, 16
      %v320 = vrot.slane %v318, 4
      %v321 = vshll.u32 %v266, 16
      %v323 = vrot.slane %v321, 5
      %v324 = vor.u32 %v320, %v323
      %v325 = vrot.slane %v324, 4
      %v327 = vshll.u32 %v267, 16
      %v329 = vrot.slane %v327, 5
      %v330 = vsel %vm302, %v325, %v329
      %v332 = vshrl.u32 %v268, 16
      %v334 = vrot.slane %v332, 4
      %v335 = vshll.u32 %v268, 16
      %v337 = vrot.slane %v335, 5
      %v338 = vor.u32 %v334, %v337
      %v339 = vrot.slane %v338, 4
      %v341 = vshll.u32 %v269, 16
      %v343 = vrot.slane %v341, 5
      %v344 = vsel %vm302, %v339, %v343
      %v346 = vshrl.u32 %v270, 16
      %v348 = vrot.slane %v346, 4
      %v349 = vshll.u32 %v270, 16
      %v351 = vrot.slane %v349, 5
      %v352 = vor.u32 %v348, %v351
      %v353 = vrot.slane %v352, 4
      %v355 = vshll.u32 %v271, 16
      %v357 = vrot.slane %v355, 5
      %v358 = vsel %vm302, %v353, %v357
      %v360 = vshrl.u32 %v272, 16
      %v362 = vrot.slane %v360, 4
      %v363 = vshll.u32 %v272, 16
      %v365 = vrot.slane %v363, 5
      %v366 = vor.u32 %v362, %v365
      %v367 = vrot.slane %v366, 4
      %v369 = vshll.u32 %v273, 16
      %v371 = vrot.slane %v369, 5
      %v372 = vsel %vm302, %v367, %v371
      %v374 = vshrl.u32 %v274, 16
      %v376 = vrot.slane %v374, 4
      %v377 = vshll.u32 %v274, 16
      %v379 = vrot.slane %v377, 5
      %v380 = vor.u32 %v376, %v379
      %v381 = vrot.slane %v380, 4
      %v383 = vshll.u32 %v275, 16
      %v385 = vrot.slane %v383, 5
      %v386 = vsel %vm302, %v381, %v385
      %v388 = vshrl.u32 %v276, 16
      %v390 = vrot.slane %v388, 4
      %v391 = vshll.u32 %v276, 16
      %v393 = vrot.slane %v391, 5
      %v394 = vor.u32 %v390, %v393
      %v395 = vrot.slane %v394, 4
      %v397 = vshll.u32 %v277, 16
      %v399 = vrot.slane %v397, 5
      %v400 = vsel %vm302, %v395, %v399
      %v402 = vshrl.u32 %v278, 16
      %v404 = vrot.slane %v402, 4
      %v405 = vshll.u32 %v278, 16
      %v407 = vrot.slane %v405, 5
      %v408 = vor.u32 %v404, %v407
      %v409 = vrot.slane %v408, 4
      %v411 = vshll.u32 %v279, 16
      %v413 = vrot.slane %v411, 5
      %v414 = vsel %vm302, %v409, %v413
      %s415 = scalar_lea.vmem %s248, 64
      %v416 = vld [vmem:[%s415] sm:$0xf]
      %v417 = vld [vmem:[%s415 + $0x4] sm:$0xf]
      %v418 = vld [vmem:[%s415 + $0x8] sm:$0xf]
      %v419 = vld [vmem:[%s415 + $0xc] sm:$0xf]
      %v420 = vld [vmem:[%s415 + $0x10] sm:$0xf]
      %v421 = vld [vmem:[%s415 + $0x14] sm:$0xf]
      %v422 = vld [vmem:[%s415 + $0x18] sm:$0xf]
      %v423 = vld [vmem:[%s415 + $0x1c] sm:$0xf]
      %v424 = vld [vmem:[%s415 + $0x20] sm:$0xf]
      %v425 = vld [vmem:[%s415 + $0x24] sm:$0xf]
      %v426 = vld [vmem:[%s415 + $0x28] sm:$0xf]
      %v427 = vld [vmem:[%s415 + $0x2c] sm:$0xf]
      %v428 = vld [vmem:[%s415 + $0x30] sm:$0xf]
      %v429 = vld [vmem:[%s415 + $0x34] sm:$0xf]
      %v430 = vld [vmem:[%s415 + $0x38] sm:$0xf]
      %v431 = vld [vmem:[%s415 + $0x3c] sm:$0xf]
      %v432 = vunpack.c.l.b16 %v316
      %v433 = vunpack.c.l.b16 %v330
      %v434 = vunpack.c.l.b16 %v344
      %v435 = vunpack.c.l.b16 %v358
      %v436 = vunpack.c.l.b16 %v372
      %v437 = vunpack.c.l.b16 %v386
      %v438 = vunpack.c.l.b16 %v400
      %v439 = vunpack.c.l.b16 %v414
      %v440 = vpack.c.b16 %v433, %v432
      %v441 = vpack.c.b16 %v435, %v434
      %v442 = vpack.c.b16 %v437, %v436
      %v443 = vpack.c.b16 %v439, %v438
      %v464 = vunpack.c.l.b16 %v416
      %v465 = vunpack.c.l.b16 %v417
      %v466 = vunpack.c.l.b16 %v418
      %v467 = vunpack.c.l.b16 %v419
      %v468 = vunpack.c.l.b16 %v420
      %v469 = vunpack.c.l.b16 %v421
      %v470 = vunpack.c.l.b16 %v422
      %v471 = vunpack.c.l.b16 %v423
      %v472 = vunpack.c.l.b16 %v424
      %v473 = vunpack.c.l.b16 %v425
      %v474 = vunpack.c.l.b16 %v426
      %v475 = vunpack.c.l.b16 %v427
      %v476 = vunpack.c.l.b16 %v428
      %v477 = vunpack.c.l.b16 %v429
      %v478 = vunpack.c.l.b16 %v430
      %v479 = vunpack.c.l.b16 %v431
      %v480 = vpack.c.b16 %v465, %v464
      %v481 = vpack.c.b16 %v467, %v466
      %v482 = vpack.c.b16 %v469, %v468
      %v483 = vpack.c.b16 %v471, %v470
      %v484 = vpack.c.b16 %v473, %v472
      %v485 = vpack.c.b16 %v475, %v474
      %v486 = vpack.c.b16 %v477, %v476
      %v487 = vpack.c.b16 %v479, %v478
      %496 = vmatprep.subr.bf16.mxu0 0
      %497 = vmatpush1.bf16.msra.mxu0 %v480
      %498 = vmatprep.subr.bf16.mxu0 0
      %499 = vmatpush1.bf16.msra.mxu0 %v481
      %500 = vmatprep.subr.bf16.mxu0 0
      %501 = vmatpush1.bf16.msra.mxu0 %v482
      %502 = vmatprep.subr.bf16.mxu0 0
      %503 = vmatpush1.bf16.msra.mxu0 %v483
      %504 = vmatprep.subr.bf16.mxu0 0
      %505 = vmatpush1.bf16.msra.mxu0 %v484
      %506 = vmatprep.subr.bf16.mxu0 0
      %507 = vmatpush1.bf16.msra.mxu0 %v485
      %508 = vmatprep.subr.bf16.mxu0 0
      %509 = vmatpush1.bf16.msra.mxu0 %v486
      %510 = vmatprep.subr.bf16.mxu0 0
      %511 = vmatpush1.bf16.msra.mxu0 %v487
      %512 = vmatprep.subr.bf16.mxu0 0
      %513 = vmatpush1.bf16.msra.mxu0 0
      %514 = vmatprep.subr.bf16.mxu0 0
      %515 = vmatpush1.bf16.msra.mxu0 0
      %516 = vmatprep.subr.bf16.mxu0 0
      %517 = vmatpush1.bf16.msra.mxu0 0
      %518 = vmatprep.subr.bf16.mxu0 0
      %519 = vmatpush1.bf16.msra.mxu0 0
      %520 = vmatprep.subr.bf16.mxu0 0
      %521 = vmatpush1.bf16.msra.mxu0 0
      %522 = vmatprep.subr.bf16.mxu0 0
      %523 = vmatpush1.bf16.msra.mxu0 0
      %524 = vmatprep.subr.bf16.mxu0 0
      %525 = vmatpush1.bf16.msra.mxu0 0
      %526 = vmatprep.subr.bf16.mxu0 0
      %527 = vmatpush1.bf16.msra.mxu0 0
      %528 = vmatprep.mubr.bf16.mxu0 0
      %529 = vmatmul.mubr.bf16.gmra.mrb[0].mxu0 %v440
      %v530 = vpop.f32.mrb[0].mxu0
      %v531 = vadd.f32 0.0, %v530
      %v532 = vpop.f32.mrb[0].mxu0
      %v533 = vpop.f32.mrb[0].mxu0
      %v534 = vadd.f32 0.0, %v533
      %v535 = vpop.f32.mrb[0].mxu0
      %536 = vmatprep.mubr.bf16.mxu0 0
      %537 = vmatmul.mubr.bf16.gmra.mrb[0].mxu0 %v441
      %v538 = vpop.f32.mrb[0].mxu0
      %v539 = vadd.f32 0.0, %v538
      %v540 = vpop.f32.mrb[0].mxu0
      %v541 = vpop.f32.mrb[0].mxu0
      %v542 = vadd.f32 0.0, %v541
      %v543 = vpop.f32.mrb[0].mxu0
      %544 = vmatprep.mubr.bf16.mxu0 0
      %545 = vmatmul.mubr.bf16.gmra.mrb[0].mxu0 %v442
      %v546 = vpop.f32.mrb[0].mxu0
      %v547 = vadd.f32 0.0, %v546
      %v548 = vpop.f32.mrb[0].mxu0
      %v549 = vpop.f32.mrb[0].mxu0
      %v550 = vadd.f32 0.0, %v549
      %v551 = vpop.f32.mrb[0].mxu0
      %552 = vmatprep.mubr.bf16.mxu0 0
      %553 = vmatmul.mubr.bf16.gmra.mrb[0].mxu0 %v443
      %v554 = vpop.f32.mrb[0].mxu0
      %v555 = vadd.f32 0.0, %v554
      %v556 = vpop.f32.mrb[0].mxu0
      %v557 = vpop.f32.mrb[0].mxu0
      %v558 = vadd.f32 0.0, %v557
      %v559 = vpop.f32.mrb[0].mxu0
      %560 = vdwg.mxu0
      %v569 = vunpack.c.l.b16 %v264
      %v570 = vunpack.c.l.b16 %v266
      %v571 = vunpack.c.l.b16 %v268
      %v572 = vunpack.c.l.b16 %v270
      %v573 = vunpack.c.l.b16 %v272
      %v574 = vunpack.c.l.b16 %v274
      %v575 = vunpack.c.l.b16 %v276
      %v576 = vunpack.c.l.b16 %v278
      %v577 = vpack.c.b16 %v570, %v569
      %v578 = vpack.c.b16 %v572, %v571
      %v579 = vpack.c.b16 %v574, %v573
      %v580 = vpack.c.b16 %v576, %v575
      %v601 = vunpack.c.l.b16 %v284
      %v602 = vunpack.c.l.b16 %v285
      %v603 = vunpack.c.l.b16 %v286
      %v604 = vunpack.c.l.b16 %v287
      %v605 = vunpack.c.l.b16 %v288
      %v606 = vunpack.c.l.b16 %v289
      %v607 = vunpack.c.l.b16 %v290
      %v608 = vunpack.c.l.b16 %v291
      %v609 = vunpack.c.l.b16 %v292
      %v610 = vunpack.c.l.b16 %v293
      %v611 = vunpack.c.l.b16 %v294
      %v612 = vunpack.c.l.b16 %v295
      %v613 = vunpack.c.l.b16 %v296
      %v614 = vunpack.c.l.b16 %v297
      %v615 = vunpack.c.l.b16 %v298
      %v616 = vunpack.c.l.b16 %v299
      %v617 = vpack.c.b16 %v602, %v601
      %v618 = vpack.c.b16 %v604, %v603
      %v619 = vpack.c.b16 %v606, %v605
      %v620 = vpack.c.b16 %v608, %v607
      %v621 = vpack.c.b16 %v610, %v609
      %v622 = vpack.c.b16 %v612, %v611
      %v623 = vpack.c.b16 %v614, %v613
      %v624 = vpack.c.b16 %v616, %v615
      %633 = vmatprep.subr.bf16.mxu0 0
      %634 = vmatpush1.bf16.msra.mxu0 %v617
      %635 = vmatprep.subr.bf16.mxu0 0
      %636 = vmatpush1.bf16.msra.mxu0 %v618
      %637 = vmatprep.subr.bf16.mxu0 0
      %638 = vmatpush1.bf16.msra.mxu0 %v619
      %639 = vmatprep.subr.bf16.mxu0 0
      %640 = vmatpush1.bf16.msra.mxu0 %v620
      %641 = vmatprep.subr.bf16.mxu0 0
      %642 = vmatpush1.bf16.msra.mxu0 %v621
      %643 = vmatprep.subr.bf16.mxu0 0
      %644 = vmatpush1.bf16.msra.mxu0 %v622
      %645 = vmatprep.subr.bf16.mxu0 0
      %646 = vmatpush1.bf16.msra.mxu0 %v623
      %647 = vmatprep.subr.bf16.mxu0 0
      %648 = vmatpush1.bf16.msra.mxu0 %v624
      %649 = vmatprep.subr.bf16.mxu0 0
      %650 = vmatpush1.bf16.msra.mxu0 0
      %651 = vmatprep.subr.bf16.mxu0 0
      %652 = vmatpush1.bf16.msra.mxu0 0
      %653 = vmatprep.subr.bf16.mxu0 0
      %654 = vmatpush1.bf16.msra.mxu0 0
      %655 = vmatprep.subr.bf16.mxu0 0
      %656 = vmatpush1.bf16.msra.mxu0 0
      %657 = vmatprep.subr.bf16.mxu0 0
      %658 = vmatpush1.bf16.msra.mxu0 0
      %659 = vmatprep.subr.bf16.mxu0 0
      %660 = vmatpush1.bf16.msra.mxu0 0
      %661 = vmatprep.subr.bf16.mxu0 0
      %662 = vmatpush1.bf16.msra.mxu0 0
      %663 = vmatprep.subr.bf16.mxu0 0
      %664 = vmatpush1.bf16.msra.mxu0 0
      %665 = vmatprep.mubr.bf16.mxu0 0
      %666 = vmatmul.mubr.bf16.gmra.mrb[0].mxu0 %v577
      %v667 = vpop.f32.mrb[0].mxu0
      %v668 = vadd.f32 %v531, %v667
      %v669 = vpop.f32.mrb[0].mxu0
      %v670 = vpop.f32.mrb[0].mxu0
      %v671 = vadd.f32 %v534, %v670
      %v672 = vpop.f32.mrb[0].mxu0
      %673 = vmatprep.mubr.bf16.mxu0 0
      %674 = vmatmul.mubr.bf16.gmra.mrb[0].mxu0 %v578
      %v675 = vpop.f32.mrb[0].mxu0
      %v676 = vadd.f32 %v539, %v675
      %v677 = vpop.f32.mrb[0].mxu0
      %v678 = vpop.f32.mrb[0].mxu0
      %v679 = vadd.f32 %v542, %v678
      %v680 = vpop.f32.mrb[0].mxu0
      %681 = vmatprep.mubr.bf16.mxu0 0
      %682 = vmatmul.mubr.bf16.gmra.mrb[0].mxu0 %v579
      %v683 = vpop.f32.mrb[0].mxu0
      %v684 = vadd.f32 %v547, %v683
      %v685 = vpop.f32.mrb[0].mxu0
      %v686 = vpop.f32.mrb[0].mxu0
      %v687 = vadd.f32 %v550, %v686
      %v688 = vpop.f32.mrb[0].mxu0
      %689 = vmatprep.mubr.bf16.mxu0 0
      %690 = vmatmul.mubr.bf16.gmra.mrb[0].mxu0 %v580
      %v691 = vpop.f32.mrb[0].mxu0
      %v692 = vadd.f32 %v555, %v691
      %v693 = vpop.f32.mrb[0].mxu0
      %v694 = vpop.f32.mrb[0].mxu0
      %v695 = vadd.f32 %v558, %v694
      %v696 = vpop.f32.mrb[0].mxu0
      %697 = vdwg.mxu0
      %vm706 = vcmask 1042432
      %vm707 = vcmask 1046532
      %vm708 = vmor %vm706, %vm707
      %v709 = vrot.slane %v264, 5
      %v710 = vrot.slane %v709, 4
      %v711 = vrot.slane %v265, 5
      %v712 = vsel %vm708, %v710, %v711
      %v713 = vrot.slane %v266, 5
      %v714 = vrot.slane %v713, 4
      %v715 = vrot.slane %v267, 5
      %v716 = vsel %vm708, %v714, %v715
      %v717 = vrot.slane %v268, 5
      %v718 = vrot.slane %v717, 4
      %v719 = vrot.slane %v269, 5
      %v720 = vsel %vm708, %v718, %v719
      %v721 = vrot.slane %v270, 5
      %v722 = vrot.slane %v721, 4
      %v723 = vrot.slane %v271, 5
      %v724 = vsel %vm708, %v722, %v723
      %v725 = vrot.slane %v272, 5
      %v726 = vrot.slane %v725, 4
      %v727 = vrot.slane %v273, 5
      %v728 = vsel %vm708, %v726, %v727
      %v729 = vrot.slane %v274, 5
      %v730 = vrot.slane %v729, 4
      %v731 = vrot.slane %v275, 5
      %v732 = vsel %vm708, %v730, %v731
      %v733 = vrot.slane %v276, 5
      %v734 = vrot.slane %v733, 4
      %v735 = vrot.slane %v277, 5
      %v736 = vsel %vm708, %v734, %v735
      %v737 = vrot.slane %v278, 5
      %v738 = vrot.slane %v737, 4
      %v739 = vrot.slane %v279, 5
      %v740 = vsel %vm708, %v738, %v739
      %s741 = scalar_lea.vmem %s248, 128
      %v742 = vld [vmem:[%s741] sm:$0xf]
      %v743 = vld [vmem:[%s741 + $0x4] sm:$0xf]
      %v744 = vld [vmem:[%s741 + $0x8] sm:$0xf]
      %v745 = vld [vmem:[%s741 + $0xc] sm:$0xf]
      %v746 = vld [vmem:[%s741 + $0x10] sm:$0xf]
      %v747 = vld [vmem:[%s741 + $0x14] sm:$0xf]
      %v748 = vld [vmem:[%s741 + $0x18] sm:$0xf]
      %v749 = vld [vmem:[%s741 + $0x1c] sm:$0xf]
      %v750 = vld [vmem:[%s741 + $0x20] sm:$0xf]
      %v751 = vld [vmem:[%s741 + $0x24] sm:$0xf]
      %v752 = vld [vmem:[%s741 + $0x28] sm:$0xf]
      %v753 = vld [vmem:[%s741 + $0x2c] sm:$0xf]
      %v754 = vld [vmem:[%s741 + $0x30] sm:$0xf]
      %v755 = vld [vmem:[%s741 + $0x34] sm:$0xf]
      %v756 = vld [vmem:[%s741 + $0x38] sm:$0xf]
      %v757 = vld [vmem:[%s741 + $0x3c] sm:$0xf]
      %v758 = vunpack.c.l.b16 %v712
      %v759 = vunpack.c.l.b16 %v716
      %v760 = vunpack.c.l.b16 %v720
      %v761 = vunpack.c.l.b16 %v724
      %v762 = vunpack.c.l.b16 %v728
      %v763 = vunpack.c.l.b16 %v732
      %v764 = vunpack.c.l.b16 %v736
      %v765 = vunpack.c.l.b16 %v740
      %v766 = vpack.c.b16 %v759, %v758
      %v767 = vpack.c.b16 %v761, %v760
      %v768 = vpack.c.b16 %v763, %v762
      %v769 = vpack.c.b16 %v765, %v764
      %v790 = vunpack.c.l.b16 %v742
      %v791 = vunpack.c.l.b16 %v743
      %v792 = vunpack.c.l.b16 %v744
      %v793 = vunpack.c.l.b16 %v745
      %v794 = vunpack.c.l.b16 %v746
      %v795 = vunpack.c.l.b16 %v747
      %v796 = vunpack.c.l.b16 %v748
      %v797 = vunpack.c.l.b16 %v749
      %v798 = vunpack.c.l.b16 %v750
      %v799 = vunpack.c.l.b16 %v751
      %v800 = vunpack.c.l.b16 %v752
      %v801 = vunpack.c.l.b16 %v753
      %v802 = vunpack.c.l.b16 %v754
      %v803 = vunpack.c.l.b16 %v755
      %v804 = vunpack.c.l.b16 %v756
      %v805 = vunpack.c.l.b16 %v757
      %v806 = vpack.c.b16 %v791, %v790
      %v807 = vpack.c.b16 %v793, %v792
      %v808 = vpack.c.b16 %v795, %v794
      %v809 = vpack.c.b16 %v797, %v796
      %v810 = vpack.c.b16 %v799, %v798
      %v811 = vpack.c.b16 %v801, %v800
      %v812 = vpack.c.b16 %v803, %v802
      %v813 = vpack.c.b16 %v805, %v804
      %822 = vmatprep.subr.bf16.mxu0 0
      %823 = vmatpush1.bf16.msra.mxu0 %v806
      %824 = vmatprep.subr.bf16.mxu0 0
      %825 = vmatpush1.bf16.msra.mxu0 %v807
      %826 = vmatprep.subr.bf16.mxu0 0
      %827 = vmatpush1.bf16.msra.mxu0 %v808
      %828 = vmatprep.subr.bf16.mxu0 0
      %829 = vmatpush1.bf16.msra.mxu0 %v809
      %830 = vmatprep.subr.bf16.mxu0 0
      %831 = vmatpush1.bf16.msra.mxu0 %v810
      %832 = vmatprep.subr.bf16.mxu0 0
      %833 = vmatpush1.bf16.msra.mxu0 %v811
      %834 = vmatprep.subr.bf16.mxu0 0
      %835 = vmatpush1.bf16.msra.mxu0 %v812
      %836 = vmatprep.subr.bf16.mxu0 0
      %837 = vmatpush1.bf16.msra.mxu0 %v813
      %838 = vmatprep.subr.bf16.mxu0 0
      %839 = vmatpush1.bf16.msra.mxu0 0
      %840 = vmatprep.subr.bf16.mxu0 0
      %841 = vmatpush1.bf16.msra.mxu0 0
      %842 = vmatprep.subr.bf16.mxu0 0
      %843 = vmatpush1.bf16.msra.mxu0 0
      %844 = vmatprep.subr.bf16.mxu0 0
      %845 = vmatpush1.bf16.msra.mxu0 0
      %846 = vmatprep.subr.bf16.mxu0 0
      %847 = vmatpush1.bf16.msra.mxu0 0
      %848 = vmatprep.subr.bf16.mxu0 0
      %849 = vmatpush1.bf16.msra.mxu0 0
      %850 = vmatprep.subr.bf16.mxu0 0
      %851 = vmatpush1.bf16.msra.mxu0 0
      %852 = vmatprep.subr.bf16.mxu0 0
      %853 = vmatpush1.bf16.msra.mxu0 0
      %854 = vmatprep.mubr.bf16.mxu0 0
      %855 = vmatmul.mubr.bf16.gmra.mrb[0].mxu0 %v766
      %v856 = vpop.f32.mrb[0].mxu0
      %v857 = vadd.f32 0.0, %v856
      %v858 = vpop.f32.mrb[0].mxu0
      %v859 = vpop.f32.mrb[0].mxu0
      %v860 = vadd.f32 0.0, %v859
      %v861 = vpop.f32.mrb[0].mxu0
      %862 = vmatprep.mubr.bf16.mxu0 0
      %863 = vmatmul.mubr.bf16.gmra.mrb[0].mxu0 %v767
      %v864 = vpop.f32.mrb[0].mxu0
      %v865 = vadd.f32 0.0, %v864
      %v866 = vpop.f32.mrb[0].mxu0
      %v867 = vpop.f32.mrb[0].mxu0
      %v868 = vadd.f32 0.0, %v867
      %v869 = vpop.f32.mrb[0].mxu0
      %870 = vmatprep.mubr.bf16.mxu0 0
      %871 = vmatmul.mubr.bf16.gmra.mrb[0].mxu0 %v768
      %v872 = vpop.f32.mrb[0].mxu0
      %v873 = vadd.f32 0.0, %v872
      %v874 = vpop.f32.mrb[0].mxu0
      %v875 = vpop.f32.mrb[0].mxu0
      %v876 = vadd.f32 0.0, %v875
      %v877 = vpop.f32.mrb[0].mxu0
      %878 = vmatprep.mubr.bf16.mxu0 0
      %879 = vmatmul.mubr.bf16.gmra.mrb[0].mxu0 %v769
      %v880 = vpop.f32.mrb[0].mxu0
      %v881 = vadd.f32 0.0, %v880
      %v882 = vpop.f32.mrb[0].mxu0
      %v883 = vpop.f32.mrb[0].mxu0
      %v884 = vadd.f32 0.0, %v883
      %v885 = vpop.f32.mrb[0].mxu0
      %886 = vdwg.mxu0
      %v887 = vadd.f32 %v668, %v857
      %v888 = vadd.f32 %v671, %v860
      %v889 = vadd.f32 %v676, %v865
      %v890 = vadd.f32 %v679, %v868
      %v891 = vadd.f32 %v684, %v873
      %v892 = vadd.f32 %v687, %v876
      %v893 = vadd.f32 %v692, %v881
      %v894 = vadd.f32 %v695, %v884
      %s895 = scalar_lea.vmem %s248, 192
      %v896 = vld [vmem:[%s895] sm:$0xf]
      %v897 = vld [vmem:[%s895 + $0x4] sm:$0xf]
      %v898 = vld [vmem:[%s895 + $0x8] sm:$0xf]
      %v899 = vld [vmem:[%s895 + $0xc] sm:$0xf]
      %v900 = vld [vmem:[%s895 + $0x10] sm:$0xf]
      %v901 = vld [vmem:[%s895 + $0x14] sm:$0xf]
      %v902 = vld [vmem:[%s895 + $0x18] sm:$0xf]
      %v903 = vld [vmem:[%s895 + $0x1c] sm:$0xf]
      %v904 = vld [vmem:[%s895 + $0x20] sm:$0xf]
      %v905 = vld [vmem:[%s895 + $0x24] sm:$0xf]
      %v906 = vld [vmem:[%s895 + $0x28] sm:$0xf]
      %v907 = vld [vmem:[%s895 + $0x2c] sm:$0xf]
      %v908 = vld [vmem:[%s895 + $0x30] sm:$0xf]
      %v909 = vld [vmem:[%s895 + $0x34] sm:$0xf]
      %v910 = vld [vmem:[%s895 + $0x38] sm:$0xf]
      %v911 = vld [vmem:[%s895 + $0x3c] sm:$0xf]
      %v913 = vunpack.c.l.b16 %v280
      %v914 = vpack.c.b16 %v571, %v570
      %v915 = vpack.c.b16 %v573, %v572
      %v916 = vpack.c.b16 %v575, %v574
      %v917 = vpack.c.b16 %v913, %v576
      %v938 = vunpack.c.l.b16 %v896
      %v939 = vunpack.c.l.b16 %v897
      %v940 = vunpack.c.l.b16 %v898
      %v941 = vunpack.c.l.b16 %v899
      %v942 = vunpack.c.l.b16 %v900
      %v943 = vunpack.c.l.b16 %v901
      %v944 = vunpack.c.l.b16 %v902
      %v945 = vunpack.c.l.b16 %v903
      %v946 = vunpack.c.l.b16 %v904
      %v947 = vunpack.c.l.b16 %v905
      %v948 = vunpack.c.l.b16 %v906
      %v949 = vunpack.c.l.b16 %v907
      %v950 = vunpack.c.l.b16 %v908
      %v951 = vunpack.c.l.b16 %v909
      %v952 = vunpack.c.l.b16 %v910
      %v953 = vunpack.c.l.b16 %v911
      %v954 = vpack.c.b16 %v939, %v938
      %v955 = vpack.c.b16 %v941, %v940
      %v956 = vpack.c.b16 %v943, %v942
      %v957 = vpack.c.b16 %v945, %v944
      %v958 = vpack.c.b16 %v947, %v946
      %v959 = vpack.c.b16 %v949, %v948
      %v960 = vpack.c.b16 %v951, %v950
      %v961 = vpack.c.b16 %v953, %v952
      %970 = vmatprep.subr.bf16.mxu0 0
      %971 = vmatpush1.bf16.msra.mxu0 %v954
      %972 = vmatprep.subr.bf16.mxu0 0
      %973 = vmatpush1.bf16.msra.mxu0 %v955
      %974 = vmatprep.subr.bf16.mxu0 0
      %975 = vmatpush1.bf16.msra.mxu0 %v956
      %976 = vmatprep.subr.bf16.mxu0 0
      %977 = vmatpush1.bf16.msra.mxu0 %v957
      %978 = vmatprep.subr.bf16.mxu0 0
      %979 = vmatpush1.bf16.msra.mxu0 %v958
      %980 = vmatprep.subr.bf16.mxu0 0
      %981 = vmatpush1.bf16.msra.mxu0 %v959
      %982 = vmatprep.subr.bf16.mxu0 0
      %983 = vmatpush1.bf16.msra.mxu0 %v960
      %984 = vmatprep.subr.bf16.mxu0 0
      %985 = vmatpush1.bf16.msra.mxu0 %v961
      %986 = vmatprep.subr.bf16.mxu0 0
      %987 = vmatpush1.bf16.msra.mxu0 0
      %988 = vmatprep.subr.bf16.mxu0 0
      %989 = vmatpush1.bf16.msra.mxu0 0
      %990 = vmatprep.subr.bf16.mxu0 0
      %991 = vmatpush1.bf16.msra.mxu0 0
      %992 = vmatprep.subr.bf16.mxu0 0
      %993 = vmatpush1.bf16.msra.mxu0 0
      %994 = vmatprep.subr.bf16.mxu0 0
      %995 = vmatpush1.bf16.msra.mxu0 0
      %996 = vmatprep.subr.bf16.mxu0 0
      %997 = vmatpush1.bf16.msra.mxu0 0
      %998 = vmatprep.subr.bf16.mxu0 0
      %999 = vmatpush1.bf16.msra.mxu0 0
      %1000 = vmatprep.subr.bf16.mxu0 0
      %1001 = vmatpush1.bf16.msra.mxu0 0
      %1002 = vmatprep.mubr.bf16.mxu0 0
      %1003 = vmatmul.mubr.bf16.gmra.mrb[0].mxu0 %v914
      %v1004 = vpop.f32.mrb[0].mxu0
      %v1005 = vadd.f32 0.0, %v1004
      %v1006 = vpop.f32.mrb[0].mxu0
      %v1007 = vpop.f32.mrb[0].mxu0
      %v1008 = vadd.f32 0.0, %v1007
      %v1009 = vpop.f32.mrb[0].mxu0
      %1010 = vmatprep.mubr.bf16.mxu0 0
      %1011 = vmatmul.mubr.bf16.gmra.mrb[0].mxu0 %v915
      %v1012 = vpop.f32.mrb[0].mxu0
      %v1013 = vadd.f32 0.0, %v1012
      %v1014 = vpop.f32.mrb[0].mxu0
      %v1015 = vpop.f32.mrb[0].mxu0
      %v1016 = vadd.f32 0.0, %v1015
      %v1017 = vpop.f32.mrb[0].mxu0
      %1018 = vmatprep.mubr.bf16.mxu0 0
      %1019 = vmatmul.mubr.bf16.gmra.mrb[0].mxu0 %v916
      %v1020 = vpop.f32.mrb[0].mxu0
      %v1021 = vadd.f32 0.0, %v1020
      %v1022 = vpop.f32.mrb[0].mxu0
      %v1023 = vpop.f32.mrb[0].mxu0
      %v1024 = vadd.f32 0.0, %v1023
      %v1025 = vpop.f32.mrb[0].mxu0
      %1026 = vmatprep.mubr.bf16.mxu0 0
      %1027 = vmatmul.mubr.bf16.gmra.mrb[0].mxu0 %v917
      %v1028 = vpop.f32.mrb[0].mxu0
      %v1029 = vadd.f32 0.0, %v1028
      %v1030 = vpop.f32.mrb[0].mxu0
      %v1031 = vpop.f32.mrb[0].mxu0
      %v1032 = vadd.f32 0.0, %v1031
      %v1033 = vpop.f32.mrb[0].mxu0
      %1034 = vdwg.mxu0
      %v1035 = vadd.f32 %v887, %v1005
      %v1036 = vadd.f32 %v888, %v1008
      %v1037 = vadd.f32 %v889, %v1013
      %v1038 = vadd.f32 %v890, %v1016
      %v1039 = vadd.f32 %v891, %v1021
      %v1040 = vadd.f32 %v892, %v1024
      %v1041 = vadd.f32 %v893, %v1029
      %v1042 = vadd.f32 %v894, %v1032
      %v1044 = vshrl.u32 %v280, 16
      %v1046 = vrot.slane %v1044, 4
      %v1047 = vshll.u32 %v280, 16
      %v1049 = vrot.slane %v1047, 5
      %v1050 = vor.u32 %v1046, %v1049
      %v1051 = vrot.slane %v1050, 4
      %v1053 = vshll.u32 %v281, 16
      %v1055 = vrot.slane %v1053, 5
      %v1056 = vsel %vm302, %v1051, %v1055
      %s1057 = scalar_lea.vmem %s248, 256
      %v1058 = vld [vmem:[%s1057] sm:$0xf]
      %v1059 = vld [vmem:[%s1057 + $0x4] sm:$0xf]
      %v1060 = vld [vmem:[%s1057 + $0x8] sm:$0xf]
      %v1061 = vld [vmem:[%s1057 + $0xc] sm:$0xf]
      %v1062 = vld [vmem:[%s1057 + $0x10] sm:$0xf]
      %v1063 = vld [vmem:[%s1057 + $0x14] sm:$0xf]
      %v1064 = vld [vmem:[%s1057 + $0x18] sm:$0xf]
      %v1065 = vld [vmem:[%s1057 + $0x1c] sm:$0xf]
      %v1066 = vld [vmem:[%s1057 + $0x20] sm:$0xf]
      %v1067 = vld [vmem:[%s1057 + $0x24] sm:$0xf]
      %v1068 = vld [vmem:[%s1057 + $0x28] sm:$0xf]
      %v1069 = vld [vmem:[%s1057 + $0x2c] sm:$0xf]
      %v1070 = vld [vmem:[%s1057 + $0x30] sm:$0xf]
      %v1071 = vld [vmem:[%s1057 + $0x34] sm:$0xf]
      %v1072 = vld [vmem:[%s1057 + $0x38] sm:$0xf]
      %v1073 = vld [vmem:[%s1057 + $0x3c] sm:$0xf]
      %v1074 = vunpack.c.l.b16 %v1056
      %v1075 = vpack.c.b16 %v434, %v433
      %v1076 = vpack.c.b16 %v436, %v435
      %v1077 = vpack.c.b16 %v438, %v437
      %v1078 = vpack.c.b16 %v1074, %v439
      %v1099 = vunpack.c.l.b16 %v1058
      %v1100 = vunpack.c.l.b16 %v1059
      %v1101 = vunpack.c.l.b16 %v1060
      %v1102 = vunpack.c.l.b16 %v1061
      %v1103 = vunpack.c.l.b16 %v1062
      %v1104 = vunpack.c.l.b16 %v1063
      %v1105 = vunpack.c.l.b16 %v1064
      %v1106 = vunpack.c.l.b16 %v1065
      %v1107 = vunpack.c.l.b16 %v1066
      %v1108 = vunpack.c.l.b16 %v1067
      %v1109 = vunpack.c.l.b16 %v1068
      %v1110 = vunpack.c.l.b16 %v1069
      %v1111 = vunpack.c.l.b16 %v1070
      %v1112 = vunpack.c.l.b16 %v1071
      %v1113 = vunpack.c.l.b16 %v1072
      %v1114 = vunpack.c.l.b16 %v1073
      %v1115 = vpack.c.b16 %v1100, %v1099
      %v1116 = vpack.c.b16 %v1102, %v1101
      %v1117 = vpack.c.b16 %v1104, %v1103
      %v1118 = vpack.c.b16 %v1106, %v1105
      %v1119 = vpack.c.b16 %v1108, %v1107
      %v1120 = vpack.c.b16 %v1110, %v1109
      %v1121 = vpack.c.b16 %v1112, %v1111
      %v1122 = vpack.c.b16 %v1114, %v1113
      %1131 = vmatprep.subr.bf16.mxu0 0
      %1132 = vmatpush1.bf16.msra.mxu0 %v1115
      %1133 = vmatprep.subr.bf16.mxu0 0
      %1134 = vmatpush1.bf16.msra.mxu0 %v1116
      %1135 = vmatprep.subr.bf16.mxu0 0
      %1136 = vmatpush1.bf16.msra.mxu0 %v1117
      %1137 = vmatprep.subr.bf16.mxu0 0
      %1138 = vmatpush1.bf16.msra.mxu0 %v1118
      %1139 = vmatprep.subr.bf16.mxu0 0
      %1140 = vmatpush1.bf16.msra.mxu0 %v1119
      %1141 = vmatprep.subr.bf16.mxu0 0
      %1142 = vmatpush1.bf16.msra.mxu0 %v1120
      %1143 = vmatprep.subr.bf16.mxu0 0
      %1144 = vmatpush1.bf16.msra.mxu0 %v1121
      %1145 = vmatprep.subr.bf16.mxu0 0
      %1146 = vmatpush1.bf16.msra.mxu0 %v1122
      %1147 = vmatprep.subr.bf16.mxu0 0
      %1148 = vmatpush1.bf16.msra.mxu0 0
      %1149 = vmatprep.subr.bf16.mxu0 0
      %1150 = vmatpush1.bf16.msra.mxu0 0
      %1151 = vmatprep.subr.bf16.mxu0 0
      %1152 = vmatpush1.bf16.msra.mxu0 0
      %1153 = vmatprep.subr.bf16.mxu0 0
      %1154 = vmatpush1.bf16.msra.mxu0 0
      %1155 = vmatprep.subr.bf16.mxu0 0
      %1156 = vmatpush1.bf16.msra.mxu0 0
      %1157 = vmatprep.subr.bf16.mxu0 0
      %1158 = vmatpush1.bf16.msra.mxu0 0
      %1159 = vmatprep.subr.bf16.mxu0 0
      %1160 = vmatpush1.bf16.msra.mxu0 0
      %1161 = vmatprep.subr.bf16.mxu0 0
      %1162 = vmatpush1.bf16.msra.mxu0 0
      %1163 = vmatprep.mubr.bf16.mxu0 0
      %1164 = vmatmul.mubr.bf16.gmra.mrb[0].mxu0 %v1075
      %v1165 = vpop.f32.mrb[0].mxu0
      %v1166 = vadd.f32 0.0, %v1165
      %v1167 = vpop.f32.mrb[0].mxu0
      %v1168 = vpop.f32.mrb[0].mxu0
      %v1169 = vadd.f32 0.0, %v1168
      %v1170 = vpop.f32.mrb[0].mxu0
      %1171 = vmatprep.mubr.bf16.mxu0 0
      %1172 = vmatmul.mubr.bf16.gmra.mrb[0].mxu0 %v1076
      %v1173 = vpop.f32.mrb[0].mxu0
      %v1174 = vadd.f32 0.0, %v1173
      %v1175 = vpop.f32.mrb[0].mxu0
      %v1176 = vpop.f32.mrb[0].mxu0
      %v1177 = vadd.f32 0.0, %v1176
      %v1178 = vpop.f32.mrb[0].mxu0
      %1179 = vmatprep.mubr.bf16.mxu0 0
      %1180 = vmatmul.mubr.bf16.gmra.mrb[0].mxu0 %v1077
      %v1181 = vpop.f32.mrb[0].mxu0
      %v1182 = vadd.f32 0.0, %v1181
      %v1183 = vpop.f32.mrb[0].mxu0
      %v1184 = vpop.f32.mrb[0].mxu0
      %v1185 = vadd.f32 0.0, %v1184
      %v1186 = vpop.f32.mrb[0].mxu0
      %1187 = vmatprep.mubr.bf16.mxu0 0
      %1188 = vmatmul.mubr.bf16.gmra.mrb[0].mxu0 %v1078
      %v1189 = vpop.f32.mrb[0].mxu0
      %v1190 = vadd.f32 0.0, %v1189
      %v1191 = vpop.f32.mrb[0].mxu0
      %v1192 = vpop.f32.mrb[0].mxu0
      %v1193 = vadd.f32 0.0, %v1192
      %v1194 = vpop.f32.mrb[0].mxu0
      %1195 = vdwg.mxu0
      %v1196 = vadd.f32 %v1035, %v1166
      %v1197 = vadd.f32 %v1036, %v1169
      %v1198 = vadd.f32 %v1037, %v1174
      %v1199 = vadd.f32 %v1038, %v1177
      %v1200 = vadd.f32 %v1039, %v1182
      %v1201 = vadd.f32 %v1040, %v1185
      %v1202 = vadd.f32 %v1041, %v1190
      %v1203 = vadd.f32 %v1042, %v1193
      %v1205 = vrot.slane %v280, 5
      %v1206 = vrot.slane %v1205, 4
      %v1207 = vrot.slane %v281, 5
      %v1208 = vsel %vm708, %v1206, %v1207
      %s1209 = scalar_lea.vmem %s248, 320
      %v1210 = vld [vmem:[%s1209] sm:$0xf]
      %v1211 = vld [vmem:[%s1209 + $0x4] sm:$0xf]
      %v1212 = vld [vmem:[%s1209 + $0x8] sm:$0xf]
      %v1213 = vld [vmem:[%s1209 + $0xc] sm:$0xf]
      %v1214 = vld [vmem:[%s1209 + $0x10] sm:$0xf]
      %v1215 = vld [vmem:[%s1209 + $0x14] sm:$0xf]
      %v1216 = vld [vmem:[%s1209 + $0x18] sm:$0xf]
      %v1217 = vld [vmem:[%s1209 + $0x1c] sm:$0xf]
      %v1218 = vld [vmem:[%s1209 + $0x20] sm:$0xf]
      %v1219 = vld [vmem:[%s1209 + $0x24] sm:$0xf]
      %v1220 = vld [vmem:[%s1209 + $0x28] sm:$0xf]
      %v1221 = vld [vmem:[%s1209 + $0x2c] sm:$0xf]
      %v1222 = vld [vmem:[%s1209 + $0x30] sm:$0xf]
      %v1223 = vld [vmem:[%s1209 + $0x34] sm:$0xf]
      %v1224 = vld [vmem:[%s1209 + $0x38] sm:$0xf]
      %v1225 = vld [vmem:[%s1209 + $0x3c] sm:$0xf]
      %v1226 = vunpack.c.l.b16 %v1208
      %v1227 = vpack.c.b16 %v760, %v759
      %v1228 = vpack.c.b16 %v762, %v761
      %v1229 = vpack.c.b16 %v764, %v763
      %v1230 = vpack.c.b16 %v1226, %v765
      %v1251 = vunpack.c.l.b16 %v1210
      %v1252 = vunpack.c.l.b16 %v1211
      %v1253 = vunpack.c.l.b16 %v1212
      %v1254 = vunpack.c.l.b16 %v1213
      %v1255 = vunpack.c.l.b16 %v1214
      %v1256 = vunpack.c.l.b16 %v1215
      %v1257 = vunpack.c.l.b16 %v1216
      %v1258 = vunpack.c.l.b16 %v1217
      %v1259 = vunpack.c.l.b16 %v1218
      %v1260 = vunpack.c.l.b16 %v1219
      %v1261 = vunpack.c.l.b16 %v1220
      %v1262 = vunpack.c.l.b16 %v1221
      %v1263 = vunpack.c.l.b16 %v1222
      %v1264 = vunpack.c.l.b16 %v1223
      %v1265 = vunpack.c.l.b16 %v1224
      %v1266 = vunpack.c.l.b16 %v1225
      %v1267 = vpack.c.b16 %v1252, %v1251
      %v1268 = vpack.c.b16 %v1254, %v1253
      %v1269 = vpack.c.b16 %v1256, %v1255
      %v1270 = vpack.c.b16 %v1258, %v1257
      %v1271 = vpack.c.b16 %v1260, %v1259
      %v1272 = vpack.c.b16 %v1262, %v1261
      %v1273 = vpack.c.b16 %v1264, %v1263
      %v1274 = vpack.c.b16 %v1266, %v1265
      %1283 = vmatprep.subr.bf16.mxu0 0
      %1284 = vmatpush1.bf16.msra.mxu0 %v1267
      %1285 = vmatprep.subr.bf16.mxu0 0
      %1286 = vmatpush1.bf16.msra.mxu0 %v1268
      %1287 = vmatprep.subr.bf16.mxu0 0
      %1288 = vmatpush1.bf16.msra.mxu0 %v1269
      %1289 = vmatprep.subr.bf16.mxu0 0
      %1290 = vmatpush1.bf16.msra.mxu0 %v1270
      %1291 = vmatprep.subr.bf16.mxu0 0
      %1292 = vmatpush1.bf16.msra.mxu0 %v1271
      %1293 = vmatprep.subr.bf16.mxu0 0
      %1294 = vmatpush1.bf16.msra.mxu0 %v1272
      %1295 = vmatprep.subr.bf16.mxu0 0
      %1296 = vmatpush1.bf16.msra.mxu0 %v1273
      %1297 = vmatprep.subr.bf16.mxu0 0
      %1298 = vmatpush1.bf16.msra.mxu0 %v1274
      %1299 = vmatprep.subr.bf16.mxu0 0
      %1300 = vmatpush1.bf16.msra.mxu0 0
      %1301 = vmatprep.subr.bf16.mxu0 0
      %1302 = vmatpush1.bf16.msra.mxu0 0
      %1303 = vmatprep.subr.bf16.mxu0 0
      %1304 = vmatpush1.bf16.msra.mxu0 0
      %1305 = vmatprep.subr.bf16.mxu0 0
      %1306 = vmatpush1.bf16.msra.mxu0 0
      %1307 = vmatprep.subr.bf16.mxu0 0
      %1308 = vmatpush1.bf16.msra.mxu0 0
      %1309 = vmatprep.subr.bf16.mxu0 0
      %1310 = vmatpush1.bf16.msra.mxu0 0
      %1311 = vmatprep.subr.bf16.mxu0 0
      %1312 = vmatpush1.bf16.msra.mxu0 0
      %1313 = vmatprep.subr.bf16.mxu0 0
      %1314 = vmatpush1.bf16.msra.mxu0 0
      %1315 = vmatprep.mubr.bf16.mxu0 0
      %1316 = vmatmul.mubr.bf16.gmra.mrb[0].mxu0 %v1227
      %v1317 = vpop.f32.mrb[0].mxu0
      %v1318 = vadd.f32 0.0, %v1317
      %v1319 = vpop.f32.mrb[0].mxu0
      %v1320 = vpop.f32.mrb[0].mxu0
      %v1321 = vadd.f32 0.0, %v1320
      %v1322 = vpop.f32.mrb[0].mxu0
      %1323 = vmatprep.mubr.bf16.mxu0 0
      %1324 = vmatmul.mubr.bf16.gmra.mrb[0].mxu0 %v1228
      %v1325 = vpop.f32.mrb[0].mxu0
      %v1326 = vadd.f32 0.0, %v1325
      %v1327 = vpop.f32.mrb[0].mxu0
      %v1328 = vpop.f32.mrb[0].mxu0
      %v1329 = vadd.f32 0.0, %v1328
      %v1330 = vpop.f32.mrb[0].mxu0
      %1331 = vmatprep.mubr.bf16.mxu0 0
      %1332 = vmatmul.mubr.bf16.gmra.mrb[0].mxu0 %v1229
      %v1333 = vpop.f32.mrb[0].mxu0
      %v1334 = vadd.f32 0.0, %v1333
      %v1335 = vpop.f32.mrb[0].mxu0
      %v1336 = vpop.f32.mrb[0].mxu0
      %v1337 = vadd.f32 0.0, %v1336
      %v1338 = vpop.f32.mrb[0].mxu0
      %1339 = vmatprep.mubr.bf16.mxu0 0
      %1340 = vmatmul.mubr.bf16.gmra.mrb[0].mxu0 %v1230
      %v1341 = vpop.f32.mrb[0].mxu0
      %v1342 = vadd.f32 0.0, %v1341
      %v1343 = vpop.f32.mrb[0].mxu0
      %v1344 = vpop.f32.mrb[0].mxu0
      %v1345 = vadd.f32 0.0, %v1344
      %v1346 = vpop.f32.mrb[0].mxu0
      %1347 = vdwg.mxu0
      %v1348 = vadd.f32 %v1196, %v1318
      %v1349 = vadd.f32 %v1197, %v1321
      %v1350 = vadd.f32 %v1198, %v1326
      %v1351 = vadd.f32 %v1199, %v1329
      %v1352 = vadd.f32 %v1200, %v1334
      %v1353 = vadd.f32 %v1201, %v1337
      %v1354 = vadd.f32 %v1202, %v1342
      %v1355 = vadd.f32 %v1203, %v1345
      %s1356 = scalar_lea.vmem %s248, 384
      %v1357 = vld [vmem:[%s1356] sm:$0xf]
      %v1358 = vld [vmem:[%s1356 + $0x4] sm:$0xf]
      %v1359 = vld [vmem:[%s1356 + $0x8] sm:$0xf]
      %v1360 = vld [vmem:[%s1356 + $0xc] sm:$0xf]
      %v1361 = vld [vmem:[%s1356 + $0x10] sm:$0xf]
      %v1362 = vld [vmem:[%s1356 + $0x14] sm:$0xf]
      %v1363 = vld [vmem:[%s1356 + $0x18] sm:$0xf]
      %v1364 = vld [vmem:[%s1356 + $0x1c] sm:$0xf]
      %v1365 = vld [vmem:[%s1356 + $0x20] sm:$0xf]
      %v1366 = vld [vmem:[%s1356 + $0x24] sm:$0xf]
      %v1367 = vld [vmem:[%s1356 + $0x28] sm:$0xf]
      %v1368 = vld [vmem:[%s1356 + $0x2c] sm:$0xf]
      %v1369 = vld [vmem:[%s1356 + $0x30] sm:$0xf]
      %v1370 = vld [vmem:[%s1356 + $0x34] sm:$0xf]
      %v1371 = vld [vmem:[%s1356 + $0x38] sm:$0xf]
      %v1372 = vld [vmem:[%s1356 + $0x3c] sm:$0xf]
      %v1374 = vunpack.c.l.b16 %v282
      %v1375 = vpack.c.b16 %v1374, %v913
      %v1393 = vunpack.c.l.b16 %v1357
      %v1394 = vunpack.c.l.b16 %v1358
      %v1395 = vunpack.c.l.b16 %v1359
      %v1396 = vunpack.c.l.b16 %v1360
      %v1397 = vunpack.c.l.b16 %v1361
      %v1398 = vunpack.c.l.b16 %v1362
      %v1399 = vunpack.c.l.b16 %v1363
      %v1400 = vunpack.c.l.b16 %v1364
      %v1401 = vunpack.c.l.b16 %v1365
      %v1402 = vunpack.c.l.b16 %v1366
      %v1403 = vunpack.c.l.b16 %v1367
      %v1404 = vunpack.c.l.b16 %v1368
      %v1405 = vunpack.c.l.b16 %v1369
      %v1406 = vunpack.c.l.b16 %v1370
      %v1407 = vunpack.c.l.b16 %v1371
      %v1408 = vunpack.c.l.b16 %v1372
      %v1409 = vpack.c.b16 %v1394, %v1393
      %v1410 = vpack.c.b16 %v1396, %v1395
      %v1411 = vpack.c.b16 %v1398, %v1397
      %v1412 = vpack.c.b16 %v1400, %v1399
      %v1413 = vpack.c.b16 %v1402, %v1401
      %v1414 = vpack.c.b16 %v1404, %v1403
      %v1415 = vpack.c.b16 %v1406, %v1405
      %v1416 = vpack.c.b16 %v1408, %v1407
      %1425 = vmatprep.subr.bf16.mxu0 0
      %1426 = vmatpush1.bf16.msra.mxu0 %v1409
      %1427 = vmatprep.subr.bf16.mxu0 0
      %1428 = vmatpush1.bf16.msra.mxu0 %v1410
      %1429 = vmatprep.subr.bf16.mxu0 0
      %1430 = vmatpush1.bf16.msra.mxu0 %v1411
      %1431 = vmatprep.subr.bf16.mxu0 0
      %1432 = vmatpush1.bf16.msra.mxu0 %v1412
      %1433 = vmatprep.subr.bf16.mxu0 0
      %1434 = vmatpush1.bf16.msra.mxu0 %v1413
      %1435 = vmatprep.subr.bf16.mxu0 0
      %1436 = vmatpush1.bf16.msra.mxu0 %v1414
      %1437 = vmatprep.subr.bf16.mxu0 0
      %1438 = vmatpush1.bf16.msra.mxu0 %v1415
      %1439 = vmatprep.subr.bf16.mxu0 0
      %1440 = vmatpush1.bf16.msra.mxu0 %v1416
      %1441 = vmatprep.subr.bf16.mxu0 0
      %1442 = vmatpush1.bf16.msra.mxu0 0
      %1443 = vmatprep.subr.bf16.mxu0 0
      %1444 = vmatpush1.bf16.msra.mxu0 0
      %1445 = vmatprep.subr.bf16.mxu0 0
      %1446 = vmatpush1.bf16.msra.mxu0 0
      %1447 = vmatprep.subr.bf16.mxu0 0
      %1448 = vmatpush1.bf16.msra.mxu0 0
      %1449 = vmatprep.subr.bf16.mxu0 0
      %1450 = vmatpush1.bf16.msra.mxu0 0
      %1451 = vmatprep.subr.bf16.mxu0 0
      %1452 = vmatpush1.bf16.msra.mxu0 0
      %1453 = vmatprep.subr.bf16.mxu0 0
      %1454 = vmatpush1.bf16.msra.mxu0 0
      %1455 = vmatprep.subr.bf16.mxu0 0
      %1456 = vmatpush1.bf16.msra.mxu0 0
      %1457 = vmatprep.mubr.bf16.mxu0 0
      %1458 = vmatmul.mubr.bf16.gmra.mrb[0].mxu0 %v578
      %v1459 = vpop.f32.mrb[0].mxu0
      %v1460 = vadd.f32 0.0, %v1459
      %v1461 = vpop.f32.mrb[0].mxu0
      %v1462 = vpop.f32.mrb[0].mxu0
      %v1463 = vadd.f32 0.0, %v1462
      %v1464 = vpop.f32.mrb[0].mxu0
      %1465 = vmatprep.mubr.bf16.mxu0 0
      %1466 = vmatmul.mubr.bf16.gmra.mrb[0].mxu0 %v579
      %v1467 = vpop.f32.mrb[0].mxu0
      %v1468 = vadd.f32 0.0, %v1467
      %v1469 = vpop.f32.mrb[0].mxu0
      %v1470 = vpop.f32.mrb[0].mxu0
      %v1471 = vadd.f32 0.0, %v1470
      %v1472 = vpop.f32.mrb[0].mxu0
      %1473 = vmatprep.mubr.bf16.mxu0 0
      %1474 = vmatmul.mubr.bf16.gmra.mrb[0].mxu0 %v580
      %v1475 = vpop.f32.mrb[0].mxu0
      %v1476 = vadd.f32 0.0, %v1475
      %v1477 = vpop.f32.mrb[0].mxu0
      %v1478 = vpop.f32.mrb[0].mxu0
      %v1479 = vadd.f32 0.0, %v1478
      %v1480 = vpop.f32.mrb[0].mxu0
      %1481 = vmatprep.mubr.bf16.mxu0 0
      %1482 = vmatmul.mubr.bf16.gmra.mrb[0].mxu0 %v1375
      %v1483 = vpop.f32.mrb[0].mxu0
      %v1484 = vadd.f32 0.0, %v1483
      %v1485 = vpop.f32.mrb[0].mxu0
      %v1486 = vpop.f32.mrb[0].mxu0
      %v1487 = vadd.f32 0.0, %v1486
      %v1488 = vpop.f32.mrb[0].mxu0
      %1489 = vdwg.mxu0
      %v1490 = vadd.f32 %v1348, %v1460
      %v1491 = vadd.f32 %v1349, %v1463
      %v1492 = vadd.f32 %v1350, %v1468
      %v1493 = vadd.f32 %v1351, %v1471
      %v1494 = vadd.f32 %v1352, %v1476
      %v1495 = vadd.f32 %v1353, %v1479
      %v1496 = vadd.f32 %v1354, %v1484
      %v1497 = vadd.f32 %v1355, %v1487
      %v1499 = vshrl.u32 %v282, 16
      %v1501 = vrot.slane %v1499, 4
      %v1502 = vshll.u32 %v282, 16
      %v1504 = vrot.slane %v1502, 5
      %v1505 = vor.u32 %v1501, %v1504
      %v1506 = vrot.slane %v1505, 4
      %v1508 = vshll.u32 %v283, 16
      %v1510 = vrot.slane %v1508, 5
      %v1511 = vsel %vm302, %v1506, %v1510
      %s1512 = scalar_lea.vmem %s248, 448
      %v1513 = vld [vmem:[%s1512] sm:$0xf]
      %v1514 = vld [vmem:[%s1512 + $0x4] sm:$0xf]
      %v1515 = vld [vmem:[%s1512 + $0x8] sm:$0xf]
      %v1516 = vld [vmem:[%s1512 + $0xc] sm:$0xf]
      %v1517 = vld [vmem:[%s1512 + $0x10] sm:$0xf]
      %v1518 = vld [vmem:[%s1512 + $0x14] sm:$0xf]
      %v1519 = vld [vmem:[%s1512 + $0x18] sm:$0xf]
      %v1520 = vld [vmem:[%s1512 + $0x1c] sm:$0xf]
      %v1521 = vld [vmem:[%s1512 + $0x20] sm:$0xf]
      %v1522 = vld [vmem:[%s1512 + $0x24] sm:$0xf]
      %v1523 = vld [vmem:[%s1512 + $0x28] sm:$0xf]
      %v1524 = vld [vmem:[%s1512 + $0x2c] sm:$0xf]
      %v1525 = vld [vmem:[%s1512 + $0x30] sm:$0xf]
      %v1526 = vld [vmem:[%s1512 + $0x34] sm:$0xf]
      %v1527 = vld [vmem:[%s1512 + $0x38] sm:$0xf]
      %v1528 = vld [vmem:[%s1512 + $0x3c] sm:$0xf]
      %v1529 = vunpack.c.l.b16 %v1511
      %v1530 = vpack.c.b16 %v1529, %v1074
      %v1548 = vunpack.c.l.b16 %v1513
      %v1549 = vunpack.c.l.b16 %v1514
      %v1550 = vunpack.c.l.b16 %v1515
      %v1551 = vunpack.c.l.b16 %v1516
      %v1552 = vunpack.c.l.b16 %v1517
      %v1553 = vunpack.c.l.b16 %v1518
      %v1554 = vunpack.c.l.b16 %v1519
      %v1555 = vunpack.c.l.b16 %v1520
      %v1556 = vunpack.c.l.b16 %v1521
      %v1557 = vunpack.c.l.b16 %v1522
      %v1558 = vunpack.c.l.b16 %v1523
      %v1559 = vunpack.c.l.b16 %v1524
      %v1560 = vunpack.c.l.b16 %v1525
      %v1561 = vunpack.c.l.b16 %v1526
      %v1562 = vunpack.c.l.b16 %v1527
      %v1563 = vunpack.c.l.b16 %v1528
      %v1564 = vpack.c.b16 %v1549, %v1548
      %v1565 = vpack.c.b16 %v1551, %v1550
      %v1566 = vpack.c.b16 %v1553, %v1552
      %v1567 = vpack.c.b16 %v1555, %v1554
      %v1568 = vpack.c.b16 %v1557, %v1556
      %v1569 = vpack.c.b16 %v1559, %v1558
      %v1570 = vpack.c.b16 %v1561, %v1560
      %v1571 = vpack.c.b16 %v1563, %v1562
      %1580 = vmatprep.subr.bf16.mxu0 0
      %1581 = vmatpush1.bf16.msra.mxu0 %v1564
      %1582 = vmatprep.subr.bf16.mxu0 0
      %1583 = vmatpush1.bf16.msra.mxu0 %v1565
      %1584 = vmatprep.subr.bf16.mxu0 0
      %1585 = vmatpush1.bf16.msra.mxu0 %v1566
      %1586 = vmatprep.subr.bf16.mxu0 0
      %1587 = vmatpush1.bf16.msra.mxu0 %v1567
      %1588 = vmatprep.subr.bf16.mxu0 0
      %1589 = vmatpush1.bf16.msra.mxu0 %v1568
      %1590 = vmatprep.subr.bf16.mxu0 0
      %1591 = vmatpush1.bf16.msra.mxu0 %v1569
      %1592 = vmatprep.subr.bf16.mxu0 0
      %1593 = vmatpush1.bf16.msra.mxu0 %v1570
      %1594 = vmatprep.subr.bf16.mxu0 0
      %1595 = vmatpush1.bf16.msra.mxu0 %v1571
      %1596 = vmatprep.subr.bf16.mxu0 0
      %1597 = vmatpush1.bf16.msra.mxu0 0
      %1598 = vmatprep.subr.bf16.mxu0 0
      %1599 = vmatpush1.bf16.msra.mxu0 0
      %1600 = vmatprep.subr.bf16.mxu0 0
      %1601 = vmatpush1.bf16.msra.mxu0 0
      %1602 = vmatprep.subr.bf16.mxu0 0
      %1603 = vmatpush1.bf16.msra.mxu0 0
      %1604 = vmatprep.subr.bf16.mxu0 0
      %1605 = vmatpush1.bf16.msra.mxu0 0
      %1606 = vmatprep.subr.bf16.mxu0 0
      %1607 = vmatpush1.bf16.msra.mxu0 0
      %1608 = vmatprep.subr.bf16.mxu0 0
      %1609 = vmatpush1.bf16.msra.mxu0 0
      %1610 = vmatprep.subr.bf16.mxu0 0
      %1611 = vmatpush1.bf16.msra.mxu0 0
      %1612 = vmatprep.mubr.bf16.mxu0 0
      %1613 = vmatmul.mubr.bf16.gmra.mrb[0].mxu0 %v441
      %v1614 = vpop.f32.mrb[0].mxu0
      %v1615 = vadd.f32 0.0, %v1614
      %v1616 = vpop.f32.mrb[0].mxu0
      %v1617 = vpop.f32.mrb[0].mxu0
      %v1618 = vadd.f32 0.0, %v1617
      %v1619 = vpop.f32.mrb[0].mxu0
      %1620 = vmatprep.mubr.bf16.mxu0 0
      %1621 = vmatmul.mubr.bf16.gmra.mrb[0].mxu0 %v442
      %v1622 = vpop.f32.mrb[0].mxu0
      %v1623 = vadd.f32 0.0, %v1622
      %v1624 = vpop.f32.mrb[0].mxu0
      %v1625 = vpop.f32.mrb[0].mxu0
      %v1626 = vadd.f32 0.0, %v1625
      %v1627 = vpop.f32.mrb[0].mxu0
      %1628 = vmatprep.mubr.bf16.mxu0 0
      %1629 = vmatmul.mubr.bf16.gmra.mrb[0].mxu0 %v443
      %v1630 = vpop.f32.mrb[0].mxu0
      %v1631 = vadd.f32 0.0, %v1630
      %v1632 = vpop.f32.mrb[0].mxu0
      %v1633 = vpop.f32.mrb[0].mxu0
      %v1634 = vadd.f32 0.0, %v1633
      %v1635 = vpop.f32.mrb[0].mxu0
      %1636 = vmatprep.mubr.bf16.mxu0 0
      %1637 = vmatmul.mubr.bf16.gmra.mrb[0].mxu0 %v1530
      %v1638 = vpop.f32.mrb[0].mxu0
      %v1639 = vadd.f32 0.0, %v1638
      %v1640 = vpop.f32.mrb[0].mxu0
      %v1641 = vpop.f32.mrb[0].mxu0
      %v1642 = vadd.f32 0.0, %v1641
      %v1643 = vpop.f32.mrb[0].mxu0
      %1644 = vdwg.mxu0
      %v1645 = vadd.f32 %v1490, %v1615
      %v1646 = vadd.f32 %v1491, %v1618
      %v1647 = vadd.f32 %v1492, %v1623
      %v1648 = vadd.f32 %v1493, %v1626
      %v1649 = vadd.f32 %v1494, %v1631
      %v1650 = vadd.f32 %v1495, %v1634
      %v1651 = vadd.f32 %v1496, %v1639
      %v1652 = vadd.f32 %v1497, %v1642
      %v1654 = vrot.slane %v282, 5
      %v1655 = vrot.slane %v1654, 4
      %v1656 = vrot.slane %v283, 5
      %v1657 = vsel %vm708, %v1655, %v1656
      %s1658 = scalar_lea.vmem %s248, 512
      %v1659 = vld [vmem:[%s1658] sm:$0xf]
      %v1660 = vld [vmem:[%s1658 + $0x4] sm:$0xf]
      %v1661 = vld [vmem:[%s1658 + $0x8] sm:$0xf]
      %v1662 = vld [vmem:[%s1658 + $0xc] sm:$0xf]
      %v1663 = vld [vmem:[%s1658 + $0x10] sm:$0xf]
      %v1664 = vld [vmem:[%s1658 + $0x14] sm:$0xf]
      %v1665 = vld [vmem:[%s1658 + $0x18] sm:$0xf]
      %v1666 = vld [vmem:[%s1658 + $0x1c] sm:$0xf]
      %v1667 = vld [vmem:[%s1658 + $0x20] sm:$0xf]
      %v1668 = vld [vmem:[%s1658 + $0x24] sm:$0xf]
      %v1669 = vld [vmem:[%s1658 + $0x28] sm:$0xf]
      %v1670 = vld [vmem:[%s1658 + $0x2c] sm:$0xf]
      %v1671 = vld [vmem:[%s1658 + $0x30] sm:$0xf]
      %v1672 = vld [vmem:[%s1658 + $0x34] sm:$0xf]
      %v1673 = vld [vmem:[%s1658 + $0x38] sm:$0xf]
      %v1674 = vld [vmem:[%s1658 + $0x3c] sm:$0xf]
      %v1675 = vunpack.c.l.b16 %v1657
      %v1676 = vpack.c.b16 %v1675, %v1226
      %v1694 = vunpack.c.l.b16 %v1659
      %v1695 = vunpack.c.l.b16 %v1660
      %v1696 = vunpack.c.l.b16 %v1661
      %v1697 = vunpack.c.l.b16 %v1662
      %v1698 = vunpack.c.l.b16 %v1663
      %v1699 = vunpack.c.l.b16 %v1664
      %v1700 = vunpack.c.l.b16 %v1665
      %v1701 = vunpack.c.l.b16 %v1666
      %v1702 = vunpack.c.l.b16 %v1667
      %v1703 = vunpack.c.l.b16 %v1668
      %v1704 = vunpack.c.l.b16 %v1669
      %v1705 = vunpack.c.l.b16 %v1670
      %v1706 = vunpack.c.l.b16 %v1671
      %v1707 = vunpack.c.l.b16 %v1672
      %v1708 = vunpack.c.l.b16 %v1673
      %v1709 = vunpack.c.l.b16 %v1674
      %v1710 = vpack.c.b16 %v1695, %v1694
      %v1711 = vpack.c.b16 %v1697, %v1696
      %v1712 = vpack.c.b16 %v1699, %v1698
      %v1713 = vpack.c.b16 %v1701, %v1700
      %v1714 = vpack.c.b16 %v1703, %v1702
      %v1715 = vpack.c.b16 %v1705, %v1704
      %v1716 = vpack.c.b16 %v1707, %v1706
      %v1717 = vpack.c.b16 %v1709, %v1708
      %1726 = vmatprep.subr.bf16.mxu0 0
      %1727 = vmatpush1.bf16.msra.mxu0 %v1710
      %1728 = vmatprep.subr.bf16.mxu0 0
      %1729 = vmatpush1.bf16.msra.mxu0 %v1711
      %1730 = vmatprep.subr.bf16.mxu0 0
      %1731 = vmatpush1.bf16.msra.mxu0 %v1712
      %1732 = vmatprep.subr.bf16.mxu0 0
      %1733 = vmatpush1.bf16.msra.mxu0 %v1713
      %1734 = vmatprep.subr.bf16.mxu0 0
      %1735 = vmatpush1.bf16.msra.mxu0 %v1714
      %1736 = vmatprep.subr.bf16.mxu0 0
      %1737 = vmatpush1.bf16.msra.mxu0 %v1715
      %1738 = vmatprep.subr.bf16.mxu0 0
      %1739 = vmatpush1.bf16.msra.mxu0 %v1716
      %1740 = vmatprep.subr.bf16.mxu0 0
      %1741 = vmatpush1.bf16.msra.mxu0 %v1717
      %1742 = vmatprep.subr.bf16.mxu0 0
      %1743 = vmatpush1.bf16.msra.mxu0 0
      %1744 = vmatprep.subr.bf16.mxu0 0
      %1745 = vmatpush1.bf16.msra.mxu0 0
      %1746 = vmatprep.subr.bf16.mxu0 0
      %1747 = vmatpush1.bf16.msra.mxu0 0
      %1748 = vmatprep.subr.bf16.mxu0 0
      %1749 = vmatpush1.bf16.msra.mxu0 0
      %1750 = vmatprep.subr.bf16.mxu0 0
      %1751 = vmatpush1.bf16.msra.mxu0 0
      %1752 = vmatprep.subr.bf16.mxu0 0
      %1753 = vmatpush1.bf16.msra.mxu0 0
      %1754 = vmatprep.subr.bf16.mxu0 0
      %1755 = vmatpush1.bf16.msra.mxu0 0
      %1756 = vmatprep.subr.bf16.mxu0 0
      %1757 = vmatpush1.bf16.msra.mxu0 0
      %1758 = vmatprep.mubr.bf16.mxu0 0
      %1759 = vmatmul.mubr.bf16.gmra.mrb[0].mxu0 %v767
      %v1760 = vpop.f32.mrb[0].mxu0
      %v1761 = vadd.f32 0.0, %v1760
      %v1762 = vpop.f32.mrb[0].mxu0
      %v1763 = vpop.f32.mrb[0].mxu0
      %v1764 = vadd.f32 0.0, %v1763
      %v1765 = vpop.f32.mrb[0].mxu0
      %1766 = vmatprep.mubr.bf16.mxu0 0
      %1767 = vmatmul.mubr.bf16.gmra.mrb[0].mxu0 %v768
      %v1768 = vpop.f32.mrb[0].mxu0
      %v1769 = vadd.f32 0.0, %v1768
      %v1770 = vpop.f32.mrb[0].mxu0
      %v1771 = vpop.f32.mrb[0].mxu0
      %v1772 = vadd.f32 0.0, %v1771
      %v1773 = vpop.f32.mrb[0].mxu0
      %1774 = vmatprep.mubr.bf16.mxu0 0
      %1775 = vmatmul.mubr.bf16.gmra.mrb[0].mxu0 %v769
      %v1776 = vpop.f32.mrb[0].mxu0
      %v1777 = vadd.f32 0.0, %v1776
      %v1778 = vpop.f32.mrb[0].mxu0
      %v1779 = vpop.f32.mrb[0].mxu0
      %v1780 = vadd.f32 0.0, %v1779
      %v1781 = vpop.f32.mrb[0].mxu0
      %1782 = vmatprep.mubr.bf16.mxu0 0
      %1783 = vmatmul.mubr.bf16.gmra.mrb[0].mxu0 %v1676
      %v1784 = vpop.f32.mrb[0].mxu0
      %v1785 = vadd.f32 0.0, %v1784
      %v1786 = vpop.f32.mrb[0].mxu0
      %v1787 = vpop.f32.mrb[0].mxu0
      %v1788 = vadd.f32 0.0, %v1787
      %v1789 = vpop.f32.mrb[0].mxu0
      %1790 = vdwg.mxu0
      %v1791 = vadd.f32 %v1645, %v1761
      %v1792 = vadd.f32 %v1646, %v1764
      %v1793 = vadd.f32 %v1647, %v1769
      %v1794 = vadd.f32 %v1648, %v1772
      %v1795 = vadd.f32 %v1649, %v1777
      %v1796 = vadd.f32 %v1650, %v1780
      %v1797 = vadd.f32 %v1651, %v1785
      %v1798 = vadd.f32 %v1652, %v1788
      %v1799 = vld [vmem:[%s251] sm:$0x1]
      %v1801 = vlaneseq
      %v1802 = vshrl.u32 %v1801, 7
      %v1803 = vsub.s32 0, %v1802
      %v1804 = vrot.slane %v1799, %v1803
      %v1806 = vmul.f32 %v1791, %v1804
      %v1807 = vmul.f32 %v1792, %v1804
      %v1808 = vmul.f32 %v1793, %v1804
      %v1809 = vmul.f32 %v1794, %v1804
      %v1810 = vmul.f32 %v1795, %v1804
      %v1811 = vmul.f32 %v1796, %v1804
      %v1812 = vmul.f32 %v1797, %v1804
      %v1813 = vmul.f32 %v1798, %v1804
      %v1814 = vld [vmem:[%s254] sm:$0x1]
      %v1816 = vlaneseq
      %v1817 = vshrl.u32 %v1816, 7
      %v1818 = vsub.s32 0, %v1817
      %v1819 = vrot.slane %v1814, %v1818
      %v1821 = vadd.f32 %v1806, %v1819
      %v1822 = vadd.f32 %v1807, %v1819
      %v1823 = vadd.f32 %v1808, %v1819
      %v1824 = vadd.f32 %v1809, %v1819
      %v1825 = vadd.f32 %v1810, %v1819
      %v1826 = vadd.f32 %v1811, %v1819
      %v1827 = vadd.f32 %v1812, %v1819
      %v1828 = vadd.f32 %v1813, %v1819
      %v1829 = vmax.f32 %v1821, 0.0
      %v1830 = vmax.f32 %v1822, 0.0
      %v1831 = vmax.f32 %v1823, 0.0
      %v1832 = vmax.f32 %v1824, 0.0
      %v1833 = vmax.f32 %v1825, 0.0
      %v1834 = vmax.f32 %v1826, 0.0
      %v1835 = vmax.f32 %v1827, 0.0
      %v1836 = vmax.f32 %v1828, 0.0
      %v1837 = vpack.c.bf16 %v1829, %v1829
      %v1838 = vpack.c.bf16 %v1830, %v1830
      %v1839 = vpack.c.bf16 %v1831, %v1831
      %v1840 = vpack.c.bf16 %v1832, %v1832
      %v1841 = vpack.c.bf16 %v1833, %v1833
      %v1842 = vpack.c.bf16 %v1834, %v1834
      %v1843 = vpack.c.bf16 %v1835, %v1835
      %v1844 = vpack.c.bf16 %v1836, %v1836
      %1845 = vst [vmem:[%s262] sm:$0xf] %v1837
      %1846 = vst [vmem:[%s262 + $0x4] sm:$0xf] %v1838
      %1847 = vst [vmem:[%s262 + $0x8] sm:$0xf] %v1839
      %1848 = vst [vmem:[%s262 + $0xc] sm:$0xf] %v1840
      %1849 = vst [vmem:[%s262 + $0x10] sm:$0xf] %v1841
      %1850 = vst [vmem:[%s262 + $0x14] sm:$0xf] %v1842
      %1851 = vst [vmem:[%s262 + $0x18] sm:$0xf] %v1843
      %1852 = vst [vmem:[%s262 + $0x1c] sm:$0xf] %v1844
      %p1853 = scmp.lt.s32.totalorder %s19, 1
      %s1854 = scalar_select %p1853, %s19, 1
      %p1855 = scmp.lt.s32.totalorder %s20, 0
      %s1856 = scalar_select %p1855, %s20, 0
      %s1857 = smul.addr %s1854, 8
      %s1858 = sadd.s32 %s1856, %s1857
      %s1859 = smul.addr %s1858, 4
      %s1860 = scalar_lea.vmem %s4, %s1859
      // Predicated region
      $region37: #{fwd.8} parent=35 // pred_check
        %p1861 = pneg %p151
      $region38: #{fwd.8} parent=35 // pred_check_branch
        %1863 = sbr.rel (%p1861) target = $region40
      $region39: #{fwd.8} parent=35 // pred_region
        _
      $region40: #{fwd.8} parent=35 // pred_fallthru
        _
    $region36: #{fwd.8} parent=5 // pred_fallthru
      _
    %p1864 = scmp.le.s32.totalorder 2, %s10
    // Predicated region
    $region41: #{fwd.8} parent=5 // pred_check
      %p1865 = pneg %p1864
    $region42: #{fwd.8} parent=5 // pred_check_branch
      %1867 = sbr.rel (%p1865) target = $region44
    $region43: #{fwd.8} parent=5 // pred_region
      %s1868 = ssub.s32 %s10, 2
      // Predicated region
      $region45: #{fwd.8} parent=43 // pred_check
        %p1869 = pneg %p157
      $region46: #{fwd.8} parent=43 // pred_check_branch
        %1871 = sbr.rel (%p1869) target = $region48
      $region47: #{fwd.8} parent=43 // pred_region
        %p1872 = scmp.lt.s32.totalorder %s21, 1
        %s1873 = scalar_select %p1872, %s21, 1
        %p1874 = scmp.lt.s32.totalorder %s22, 0
        %s1875 = scalar_select %p1874, %s22, 0
        %s1876 = smul.addr %s1873, 8
        %s1877 = sadd.s32 %s1875, %s1876
        %s1878 = smul.addr %s1877, 4
        %s1879 = scalar_lea.vmem %s4, %s1878
      $region48: #{fwd.8} parent=43 // pred_fallthru
        _
    $region44: #{fwd.8} parent=5 // pred_fallthru
      _
  $region6: #{fwd.8} parent=0 // loop_footer
    %s14 = sadd.s32 1, %s10
  $region7: #{fwd.8} parent=0 // loop_footer_branch
    %9 = sbr.rel target = $region3
  $region8: #{fwd.8} parent=0 // loop_exit
    _

// kernel: fwd.7
$region0: #{fwd.7}
  #allocation0 [shape = 'u32[]', space=smem, size = 0x4, offset = 0x4, fixed_abs, tag = 'smem constant byte address 0x4 - core index']
  #allocation1 [shape = 'u32[144,128]{1,0:T(1,128)}', space=vmem, size = 0x12000, scoped, tag = 'internal scratch']
  %s0 = inlined_call_operand.vmem [shape: bf16[2,1,10,10,128], index: 0, kind: input, shape index: {}]
  %s1 = inlined_call_operand.vmem [shape: bf16[9,128,128], index: 1, kind: input, shape index: {}]
  %s2 = inlined_call_operand.vmem [shape: f32[1,128], index: 2, kind: input, shape index: {}]
  %s3 = inlined_call_operand.vmem [shape: f32[1,128], index: 3, kind: input, shape index: {}]
  %s4 = inlined_call_operand.vmem [shape: f32[2,8,8,128], index: 4, kind: input, shape index: {}]
  %s5 = inlined_call_operand.vmem [shape: f32[2,8,8,128], index: 5, kind: output, shape index: {}]
  %s6 = sld [smem:[#allocation0]]
  $region53: #{fwd.7} parent=0
    _
  %s8 = ssub.s32 1, %s6
  %s9 = scalar_select 0, %s8, %s6
  loop: start=0, step=1, limit=4
  $region2: #{fwd.7} parent=0 // loop_pre_header
    _
  $region3: #{fwd.7} parent=0 // loop_header
    %s11 = sphi 0, %s15
    %p12 = scmp.ge.s32.totalorder %s11, 4
    %s18 = sphi 0, %s30
    %s19 = sphi 0, %s26
    %s20 = sphi 0, %s18
    %s21 = sphi 0, %s19
    %s22 = sphi 0, %s20
    %s23 = sphi 0, %s21
    %s33 = sphi 0, %s35
    %s36 = sphi 0, %s33
    %s37 = sphi 0, %s36
    %s53 = sphi 0, %s37
    %s59 = sphi 0, %s61
    %s62 = sphi 0, %s59
    %s63 = sphi 0, %s62
    %s79 = sphi 0, %s63
    %s85 = sphi 0, %s87
    %s88 = sphi 0, %s85
    %s89 = sphi 0, %s88
    %s105 = sphi 0, %s89
    %s111 = sphi 0, %s113
    %s114 = sphi 0, %s111
    %s115 = sphi 0, %s114
    %s131 = sphi 0, %s115
    %s139 = sphi 0, %s141
    %s142 = sphi 0, %s139
    %s143 = sphi 0, %s142
    %s159 = sphi 0, %s143
    %s167 = sphi 0, %s169
    %s170 = sphi 0, %s167
    %s171 = sphi 0, %s170
    %s187 = sphi 0, %s171
  $region4: #{fwd.7} parent=0 // loop_header_branch
    %14 = sbr.rel (%p12) target = $region8
  $region5: #{fwd.7} parent=0 // loop_body
    %s16 = ssub.s32 %s11, 1
    %s17 = ssub.s32 %s11, 2
    %s24 = sadd.s32 1, %s19
    %p25 = scmp.ge.s32.totalorder %s24, 1
    %s26 = scalar_select %p25, 0, %s24
    %s27 = sadd.s32 1, %s18
    %s28 = scalar_select %p25, %s27, %s18
    %p29 = scmp.ge.s32.totalorder %s28, 2
    %s30 = scalar_select %p29, 0, %s28
    %s31 = ssub.s32 %s18, %s30
    %p32 = scmp.eq.s32.totalorder %s31, 0
    %s34 = sadd.s32 %s33, 1
    %s35 = scalar_select %p32, %s33, %s34
    %p38 = pneg %p32
    %p39 = scmp.eq.s32.totalorder %s11, 1
    %p40 = por %p38, %p39
    %p41 = scmp.ne.s32.totalorder %s33, %s36
    %p42 = scmp.eq.s32.totalorder %s11, 0
    %p43 = por %p41, %p42
    %p44 = scmp.ne.s32.totalorder %s33, %s36
    %p45 = scmp.eq.s32.totalorder %s16, 1
    %p46 = por %p44, %p45
    %p47 = scmp.ne.s32.totalorder %s36, %s37
    %p48 = scmp.eq.s32.totalorder %s16, 0
    %p49 = por %p47, %p48
    %p50 = scmp.ne.s32.totalorder %s36, %s37
    %p51 = scmp.eq.s32.totalorder %s17, 1
    %p52 = por %p50, %p51
    %p54 = scmp.ne.s32.totalorder %s37, %s53
    %p55 = scmp.eq.s32.totalorder %s17, 0
    %p56 = por %p54, %p55
    %s57 = ssub.s32 %s19, %s26
    %p58 = scmp.eq.s32.totalorder %s57, 0
    %s60 = sadd.s32 %s59, 1
    %s61 = scalar_select %p58, %s59, %s60
    %p64 = pneg %p58
    %p65 = scmp.eq.s32.totalorder %s11, 1
    %p66 = por %p64, %p65
    %p67 = scmp.ne.s32.totalorder %s59, %s62
    %p68 = scmp.eq.s32.totalorder %s11, 0
    %p69 = por %p67, %p68
    %p70 = scmp.ne.s32.totalorder %s59, %s62
    %p71 = scmp.eq.s32.totalorder %s16, 1
    %p72 = por %p70, %p71
    %p73 = scmp.ne.s32.totalorder %s62, %s63
    %p74 = scmp.eq.s32.totalorder %s16, 0
    %p75 = por %p73, %p74
    %p76 = scmp.ne.s32.totalorder %s62, %s63
    %p77 = scmp.eq.s32.totalorder %s17, 1
    %p78 = por %p76, %p77
    %p80 = scmp.ne.s32.totalorder %s63, %s79
    %p81 = scmp.eq.s32.totalorder %s17, 0
    %p82 = por %p80, %p81
    %s83 = ssub.s32 %s19, %s26
    %p84 = scmp.eq.s32.totalorder %s83, 0
    %s86 = sadd.s32 %s85, 1
    %s87 = scalar_select %p84, %s85, %s86
    %p90 = pneg %p84
    %p91 = scmp.eq.s32.totalorder %s11, 1
    %p92 = por %p90, %p91
    %p93 = scmp.ne.s32.totalorder %s85, %s88
    %p94 = scmp.eq.s32.totalorder %s11, 0
    %p95 = por %p93, %p94
    %p96 = scmp.ne.s32.totalorder %s85, %s88
    %p97 = scmp.eq.s32.totalorder %s16, 1
    %p98 = por %p96, %p97
    %p99 = scmp.ne.s32.totalorder %s88, %s89
    %p100 = scmp.eq.s32.totalorder %s16, 0
    %p101 = por %p99, %p100
    %p102 = scmp.ne.s32.totalorder %s88, %s89
    %p103 = scmp.eq.s32.totalorder %s17, 1
    %p104 = por %p102, %p103
    %p106 = scmp.ne.s32.totalorder %s89, %s105
    %p107 = scmp.eq.s32.totalorder %s17, 0
    %p108 = por %p106, %p107
    %s109 = ssub.s32 %s19, %s26
    %p110 = scmp.eq.s32.totalorder %s109, 0
    %s112 = sadd.s32 %s111, 1
    %s113 = scalar_select %p110, %s111, %s112
    %p116 = pneg %p110
    %p117 = scmp.eq.s32.totalorder %s11, 1
    %p118 = por %p116, %p117
    %p119 = scmp.ne.s32.totalorder %s111, %s114
    %p120 = scmp.eq.s32.totalorder %s11, 0
    %p121 = por %p119, %p120
    %p122 = scmp.ne.s32.totalorder %s111, %s114
    %p123 = scmp.eq.s32.totalorder %s16, 1
    %p124 = por %p122, %p123
    %p125 = scmp.ne.s32.totalorder %s114, %s115
    %p126 = scmp.eq.s32.totalorder %s16, 0
    %p127 = por %p125, %p126
    %p128 = scmp.ne.s32.totalorder %s114, %s115
    %p129 = scmp.eq.s32.totalorder %s17, 1
    %p130 = por %p128, %p129
    %p132 = scmp.ne.s32.totalorder %s115, %s131
    %p133 = scmp.eq.s32.totalorder %s17, 0
    %p134 = por %p132, %p133
    %s135 = ssub.s32 %s18, %s30
    %s136 = ssub.s32 %s19, %s26
    %s137 = sor.u32 %s135, %s136
    %p138 = scmp.eq.s32.totalorder %s137, 0
    %s140 = sadd.s32 %s139, 1
    %s141 = scalar_select %p138, %s139, %s140
    %p144 = pneg %p138
    %p145 = scmp.eq.s32.totalorder %s11, 1
    %p146 = por %p144, %p145
    %p147 = scmp.ne.s32.totalorder %s139, %s142
    %p148 = scmp.eq.s32.totalorder %s11, 0
    %p149 = por %p147, %p148
    %p150 = scmp.ne.s32.totalorder %s139, %s142
    %p151 = scmp.eq.s32.totalorder %s16, 1
    %p152 = por %p150, %p151
    %p153 = scmp.ne.s32.totalorder %s142, %s143
    %p154 = scmp.eq.s32.totalorder %s16, 0
    %p155 = por %p153, %p154
    %p156 = scmp.ne.s32.totalorder %s142, %s143
    %p157 = scmp.eq.s32.totalorder %s17, 1
    %p158 = por %p156, %p157
    %p160 = scmp.ne.s32.totalorder %s143, %s159
    %p161 = scmp.eq.s32.totalorder %s17, 0
    %p162 = por %p160, %p161
    %s163 = ssub.s32 %s18, %s30
    %s164 = ssub.s32 %s19, %s26
    %s165 = sor.u32 %s163, %s164
    %p166 = scmp.eq.s32.totalorder %s165, 0
    %s168 = sadd.s32 %s167, 1
    %s169 = scalar_select %p166, %s167, %s168
    %p172 = pneg %p166
    %p173 = scmp.eq.s32.totalorder %s11, 1
    %p174 = por %p172, %p173
    %p175 = scmp.ne.s32.totalorder %s167, %s170
    %p176 = scmp.eq.s32.totalorder %s11, 0
    %p177 = por %p175, %p176
    %p178 = scmp.ne.s32.totalorder %s167, %s170
    %p179 = scmp.eq.s32.totalorder %s16, 1
    %p180 = por %p178, %p179
    %p181 = scmp.ne.s32.totalorder %s170, %s171
    %p182 = scmp.eq.s32.totalorder %s16, 0
    %p183 = por %p181, %p182
    %p184 = scmp.ne.s32.totalorder %s170, %s171
    %p185 = scmp.eq.s32.totalorder %s17, 1
    %p186 = por %p184, %p185
    %p188 = scmp.ne.s32.totalorder %s171, %s187
    %p189 = scmp.eq.s32.totalorder %s17, 0
    %p190 = por %p188, %p189
    %p191 = scmp.le.s32.totalorder 1, %s11
    %p192 = scmp.lt.s32.totalorder %s11, 3
    %p193 = pnand %p191, %p192
    %p194 = pneg %p193
    // Predicated region
    $region9: #{fwd.7} parent=5 // pred_check
      _
    $region10: #{fwd.7} parent=5 // pred_check_branch
      %196 = sbr.rel (%p193) target = $region12
    $region11: #{fwd.7} parent=5 // pred_region
      %s197 = ssub.s32 %s11, 1
      // Predicated region
      $region13: #{fwd.7} parent=11 // pred_check
        %p198 = pneg %p75
      $region14: #{fwd.7} parent=11 // pred_check_branch
        %200 = sbr.rel (%p198) target = $region16
      $region15: #{fwd.7} parent=11 // pred_region
        %p201 = scmp.lt.s32.totalorder %s21, 0
        %s202 = scalar_select %p201, %s21, 0
        %s203 = smul.addr %s202, 4
        %s204 = scalar_lea.vmem %s1, %s203
      $region16: #{fwd.7} parent=11 // pred_fallthru
        _
      // Predicated region
      $region17: #{fwd.7} parent=11 // pred_check
        %p205 = pneg %p101
      $region18: #{fwd.7} parent=11 // pred_check_branch
        %207 = sbr.rel (%p205) target = $region20
      $region19: #{fwd.7} parent=11 // pred_region
        %p208 = scmp.lt.s32.totalorder %s21, 0
        %s209 = scalar_select %p208, %s21, 0
        %s210 = scalar_lea.vmem %s2, %s209
      $region20: #{fwd.7} parent=11 // pred_fallthru
        _
      // Predicated region
      $region21: #{fwd.7} parent=11 // pred_check
        %p211 = pneg %p127
      $region22: #{fwd.7} parent=11 // pred_check_branch
        %213 = sbr.rel (%p211) target = $region24
      $region23: #{fwd.7} parent=11 // pred_region
        %p214 = scmp.lt.s32.totalorder %s21, 0
        %s215 = scalar_select %p214, %s21, 0
        %s216 = scalar_lea.vmem %s3, %s215
      $region24: #{fwd.7} parent=11 // pred_fallthru
        _
    $region12: #{fwd.7} parent=5 // pred_fallthru
      _
    %p217 = scmp.lt.s32.totalorder %s11, 2
    // Predicated region
    $region25: #{fwd.7} parent=5 // pred_check
      %p218 = pneg %p217
    $region26: #{fwd.7} parent=5 // pred_check_branch
      %220 = sbr.rel (%p218) target = $region28
    $region27: #{fwd.7} parent=5 // pred_region
      // Predicated region
      $region29: #{fwd.7} parent=27 // pred_check
        %p221 = pneg %p43
      $region30: #{fwd.7} parent=27 // pred_check_branch
        %223 = sbr.rel (%p221) target = $region32
      $region31: #{fwd.7} parent=27 // pred_region
        %p224 = scmp.lt.s32.totalorder %s18, 1
        %s225 = scalar_select %p224, %s18, 1
        %s226 = smul.addr %s225, 20
        %s227 = smul.addr %s226, 4
        %s228 = scalar_lea.vmem %s0, %s227
      $region32: #{fwd.7} parent=27 // pred_fallthru
        _
      // Predicated region
      $region33: #{fwd.7} parent=27 // pred_check
        %p229 = pneg %p149
      $region34: #{fwd.7} parent=27 // pred_check_branch
        %231 = sbr.rel (%p229) target = $region36
      $region35: #{fwd.7} parent=27 // pred_region
        %p232 = scmp.lt.s32.totalorder %s18, 1
        %s233 = scalar_select %p232, %s18, 1
        %p234 = scmp.lt.s32.totalorder %s19, 0
        %s235 = scalar_select %p234, %s19, 0
        %s236 = smul.addr %s233, 8
        %s237 = sadd.s32 %s235, %s236
        %s238 = smul.addr %s237, 8
        %s239 = scalar_lea.vmem %s4, %s238
      $region36: #{fwd.7} parent=27 // pred_fallthru
        _
    $region28: #{fwd.7} parent=5 // pred_fallthru
      _
    %p240 = scmp.le.s32.totalorder 1, %s11
    %p241 = scmp.lt.s32.totalorder %s11, 3
    %p242 = pnand %p240, %p241
    %p243 = pneg %p242
    // Predicated region
    $region37: #{fwd.7} parent=5 // pred_check
      _
    $region38: #{fwd.7} parent=5 // pred_check_branch
      %245 = sbr.rel (%p242) target = $region40
    $region39: #{fwd.7} parent=5 // pred_region
      %s246 = ssub.s32 %s11, 1
      %p247 = scmp.lt.s32.totalorder %s20, 1
      %s248 = scalar_select %p247, %s20, 1
      %s249 = smul.addr %s248, 20
      %s250 = smul.addr %s249, 4
      %s251 = scalar_lea.vmem %s0, %s250
      %p252 = pneg %p49
      %p253 = pneg %p46
      %p254 = scmp.lt.s32.totalorder %s21, 0
      %s255 = scalar_select %p254, %s21, 0
      %s256 = smul.addr %s255, 4
      %s257 = scalar_lea.vmem %s1, %s256
      %p258 = pneg %p75
      %p259 = pneg %p72
      %p260 = scmp.lt.s32.totalorder %s21, 0
      %s261 = scalar_select %p260, %s21, 0
      %s262 = scalar_lea.vmem %s2, %s261
      %p263 = pneg %p101
      %p264 = pneg %p98
      %p265 = scmp.lt.s32.totalorder %s21, 0
      %s266 = scalar_select %p265, %s21, 0
      %s267 = scalar_lea.vmem %s3, %s266
      %p268 = pneg %p127
      %p269 = pneg %p124
      %p270 = scmp.lt.s32.totalorder %s20, 1
      %s271 = scalar_select %p270, %s20, 1
      %p272 = scmp.lt.s32.totalorder %s21, 0
      %s273 = scalar_select %p272, %s21, 0
      %s274 = smul.addr %s271, 8
      %s275 = sadd.s32 %s273, %s274
      %s276 = smul.addr %s275, 8
      %s277 = scalar_lea.vmem %s4, %s276
      %p278 = pneg %p155
      %p279 = pneg %p152
      %p280 = pneg %p183
      %p281 = pneg %p180
      %p282 = scmp.lt.s32.totalorder %s20, 1
      %s283 = scalar_select %p282, %s20, 1
      %p284 = scmp.lt.s32.totalorder %s21, 0
      %s285 = scalar_select %p284, %s21, 0
      %s286 = smul.addr %s283, 8
      %s287 = sadd.s32 %s285, %s286
      %s288 = smul.addr %s287, 8
      %s289 = scalar_lea.vmem %s5, %s288
      %p290 = scmp.lt.s32.totalorder %s20, 1
      %s291 = scalar_select %p290, %s20, 1
      %s292 = smul.addr %s291, 20
      %s293 = smul.addr %s292, 4
      %s294 = scalar_lea.vmem %s0, %s293
      %p295 = scmp.lt.s32.totalorder %s21, 0
      %s296 = scalar_select %p295, %s21, 0
      %s297 = smul.addr %s296, 4
      %s298 = scalar_lea.vmem %s1, %s297
      %p299 = scmp.lt.s32.totalorder %s21, 0
      %s300 = scalar_select %p299, %s21, 0
      %s301 = scalar_lea.vmem %s2, %s300
      %p302 = scmp.lt.s32.totalorder %s21, 0
      %s303 = scalar_select %p302, %s21, 0
      %s304 = scalar_lea.vmem %s3, %s303
      %p305 = scmp.lt.s32.totalorder %s20, 1
      %s306 = scalar_select %p305, %s20, 1
      %p307 = scmp.lt.s32.totalorder %s21, 0
      %s308 = scalar_select %p307, %s21, 0
      %s309 = smul.addr %s306, 8
      %s310 = sadd.s32 %s308, %s309
      %s311 = smul.addr %s310, 8
      %s312 = scalar_lea.vmem %s4, %s311
      %p313 = scmp.lt.s32.totalorder %s20, 1
      %s314 = scalar_select %p313, %s20, 1
      %p315 = scmp.lt.s32.totalorder %s21, 0
      %s316 = scalar_select %p315, %s21, 0
      %s317 = smul.addr %s314, 8
      %s318 = sadd.s32 %s316, %s317
      %s319 = smul.addr %s318, 8
      %s320 = scalar_lea.vmem %s5, %s319
      %v322 = vld [vmem:[%s294] sm:$0xf]
      %v323 = vld [vmem:[%s294 + $0x4] sm:$0x1]
      %v324 = vld [vmem:[%s294 + $0x8] sm:$0xf]
      %v325 = vld [vmem:[%s294 + $0xc] sm:$0x1]
      %v326 = vld [vmem:[%s294 + $0x10] sm:$0xf]
      %v327 = vld [vmem:[%s294 + $0x14] sm:$0x1]
      %v328 = vld [vmem:[%s294 + $0x18] sm:$0xf]
      %v329 = vld [vmem:[%s294 + $0x1c] sm:$0x1]
      %v330 = vld [vmem:[%s294 + $0x20] sm:$0xf]
      %v331 = vld [vmem:[%s294 + $0x24] sm:$0x1]
      %v332 = vld [vmem:[%s294 + $0x28] sm:$0xf]
      %v333 = vld [vmem:[%s294 + $0x2c] sm:$0x1]
      %v334 = vld [vmem:[%s294 + $0x30] sm:$0xf]
      %v335 = vld [vmem:[%s294 + $0x34] sm:$0x1]
      %v336 = vld [vmem:[%s294 + $0x38] sm:$0xf]
      %v337 = vld [vmem:[%s294 + $0x3c] sm:$0x1]
      %v338 = vld [vmem:[%s294 + $0x40] sm:$0xf]
      %v339 = vld [vmem:[%s294 + $0x44] sm:$0x1]
      %v340 = vld [vmem:[%s294 + $0x48] sm:$0xf]
      %v341 = vld [vmem:[%s294 + $0x4c] sm:$0x1]
      %v342 = vld [vmem:[%s298] sm:$0xf]
      %v343 = vld [vmem:[%s298 + $0x4] sm:$0xf]
      %v344 = vld [vmem:[%s298 + $0x8] sm:$0xf]
      %v345 = vld [vmem:[%s298 + $0xc] sm:$0xf]
      %v346 = vld [vmem:[%s298 + $0x10] sm:$0xf]
      %v347 = vld [vmem:[%s298 + $0x14] sm:$0xf]
      %v348 = vld [vmem:[%s298 + $0x18] sm:$0xf]
      %v349 = vld [vmem:[%s298 + $0x1c] sm:$0xf]
      %v350 = vld [vmem:[%s298 + $0x20] sm:$0xf]
      %v351 = vld [vmem:[%s298 + $0x24] sm:$0xf]
      %v352 = vld [vmem:[%s298 + $0x28] sm:$0xf]
      %v353 = vld [vmem:[%s298 + $0x2c] sm:$0xf]
      %v354 = vld [vmem:[%s298 + $0x30] sm:$0xf]
      %v355 = vld [vmem:[%s298 + $0x34] sm:$0xf]
      %v356 = vld [vmem:[%s298 + $0x38] sm:$0xf]
      %v357 = vld [vmem:[%s298 + $0x3c] sm:$0xf]
      %vm358 = vsmask.f32 3328
      %vm359 = vsmask.f32 7440
      %vm360 = vmor %vm358, %vm359
      %v362 = vshrl.u32 %v322, 16
      %v364 = vrot.slane %v362, 4
      %v365 = vshll.u32 %v322, 16
      %v367 = vrot.slane %v365, 5
      %v368 = vor.u32 %v364, %v367
      %v369 = vrot.slane %v368, 4
      %v371 = vshll.u32 %v323, 16
      %v373 = vrot.slane %v371, 5
      %v374 = vsel %vm360, %v369, %v373
      %v376 = vshrl.u32 %v324, 16
      %v378 = vrot.slane %v376, 4
      %v379 = vshll.u32 %v324, 16
      %v381 = vrot.slane %v379, 5
      %v382 = vor.u32 %v378, %v381
      %v383 = vrot.slane %v382, 4
      %v385 = vshll.u32 %v325, 16
      %v387 = vrot.slane %v385, 5
      %v388 = vsel %vm360, %v383, %v387
      %v390 = vshrl.u32 %v326, 16
      %v392 = vrot.slane %v390, 4
      %v393 = vshll.u32 %v326, 16
      %v395 = vrot.slane %v393, 5
      %v396 = vor.u32 %v392, %v395
      %v397 = vrot.slane %v396, 4
      %v399 = vshll.u32 %v327, 16
      %v401 = vrot.slane %v399, 5
      %v402 = vsel %vm360, %v397, %v401
      %v404 = vshrl.u32 %v328, 16
      %v406 = vrot.slane %v404, 4
      %v407 = vshll.u32 %v328, 16
      %v409 = vrot.slane %v407, 5
      %v410 = vor.u32 %v406, %v409
      %v411 = vrot.slane %v410, 4
      %v413 = vshll.u32 %v329, 16
      %v415 = vrot.slane %v413, 5
      %v416 = vsel %vm360, %v411, %v415
      %v418 = vshrl.u32 %v330, 16
      %v420 = vrot.slane %v418, 4
      %v421 = vshll.u32 %v330, 16
      %v423 = vrot.slane %v421, 5
      %v424 = vor.u32 %v420, %v423
      %v425 = vrot.slane %v424, 4
      %v427 = vshll.u32 %v331, 16
      %v429 = vrot.slane %v427, 5
      %v430 = vsel %vm360, %v425, %v429
      %v432 = vshrl.u32 %v332, 16
      %v434 = vrot.slane %v432, 4
      %v435 = vshll.u32 %v332, 16
      %v437 = vrot.slane %v435, 5
      %v438 = vor.u32 %v434, %v437
      %v439 = vrot.slane %v438, 4
      %v441 = vshll.u32 %v333, 16
      %v443 = vrot.slane %v441, 5
      %v444 = vsel %vm360, %v439, %v443
      %v446 = vshrl.u32 %v334, 16
      %v448 = vrot.slane %v446, 4
      %v449 = vshll.u32 %v334, 16
      %v451 = vrot.slane %v449, 5
      %v452 = vor.u32 %v448, %v451
      %v453 = vrot.slane %v452, 4
      %v455 = vshll.u32 %v335, 16
      %v457 = vrot.slane %v455, 5
      %v458 = vsel %vm360, %v453, %v457
      %v460 = vshrl.u32 %v336, 16
      %v462 = vrot.slane %v460, 4
      %v463 = vshll.u32 %v336, 16
      %v465 = vrot.slane %v463, 5
      %v466 = vor.u32 %v462, %v465
      %v467 = vrot.slane %v466, 4
      %v469 = vshll.u32 %v337, 16
      %v471 = vrot.slane %v469, 5
      %v472 = vsel %vm360, %v467, %v471
      %s473 = scalar_lea.vmem %s298, 64
      %v474 = vld [vmem:[%s473] sm:$0xf]
      %v475 = vld [vmem:[%s473 + $0x4] sm:$0xf]
      %v476 = vld [vmem:[%s473 + $0x8] sm:$0xf]
      %v477 = vld [vmem:[%s473 + $0xc] sm:$0xf]
      %v478 = vld [vmem:[%s473 + $0x10] sm:$0xf]
      %v479 = vld [vmem:[%s473 + $0x14] sm:$0xf]
      %v480 = vld [vmem:[%s473 + $0x18] sm:$0xf]
      %v481 = vld [vmem:[%s473 + $0x1c] sm:$0xf]
      %v482 = vld [vmem:[%s473 + $0x20] sm:$0xf]
      %v483 = vld [vmem:[%s473 + $0x24] sm:$0xf]
      %v484 = vld [vmem:[%s473 + $0x28] sm:$0xf]
      %v485 = vld [vmem:[%s473 + $0x2c] sm:$0xf]
      %v486 = vld [vmem:[%s473 + $0x30] sm:$0xf]
      %v487 = vld [vmem:[%s473 + $0x34] sm:$0xf]
      %v488 = vld [vmem:[%s473 + $0x38] sm:$0xf]
      %v489 = vld [vmem:[%s473 + $0x3c] sm:$0xf]
      %v490 = vunpack.c.l.b16 %v374
      %v491 = vunpack.c.l.b16 %v388
      %v492 = vunpack.c.l.b16 %v402
      %v493 = vunpack.c.l.b16 %v416
      %v494 = vunpack.c.l.b16 %v430
      %v495 = vunpack.c.l.b16 %v444
      %v496 = vunpack.c.l.b16 %v458
      %v497 = vunpack.c.l.b16 %v472
      %v498 = vpack.c.b16 %v491, %v490
      %v499 = vpack.c.b16 %v493, %v492
      %v500 = vpack.c.b16 %v495, %v494
      %v501 = vpack.c.b16 %v497, %v496
      %v522 = vunpack.c.l.b16 %v474
      %v523 = vunpack.c.l.b16 %v475
      %v524 = vunpack.c.l.b16 %v476
      %v525 = vunpack.c.l.b16 %v477
      %v526 = vunpack.c.l.b16 %v478
      %v527 = vunpack.c.l.b16 %v479
      %v528 = vunpack.c.l.b16 %v480
      %v529 = vunpack.c.l.b16 %v481
      %v530 = vunpack.c.l.b16 %v482
      %v531 = vunpack.c.l.b16 %v483
      %v532 = vunpack.c.l.b16 %v484
      %v533 = vunpack.c.l.b16 %v485
      %v534 = vunpack.c.l.b16 %v486
      %v535 = vunpack.c.l.b16 %v487
      %v536 = vunpack.c.l.b16 %v488
      %v537 = vunpack.c.l.b16 %v489
      %v538 = vpack.c.b16 %v523, %v522
      %v539 = vpack.c.b16 %v525, %v524
      %v540 = vpack.c.b16 %v527, %v526
      %v541 = vpack.c.b16 %v529, %v528
      %v542 = vpack.c.b16 %v531, %v530
      %v543 = vpack.c.b16 %v533, %v532
      %v544 = vpack.c.b16 %v535, %v534
      %v545 = vpack.c.b16 %v537, %v536
      %554 = vmatprep.subr.bf16.mxu0 0
      %555 = vmatpush1.bf16.msra.mxu0 %v538
      %556 = vmatprep.subr.bf16.mxu0 0
      %557 = vmatpush1.bf16.msra.mxu0 %v539
      %558 = vmatprep.subr.bf16.mxu0 0
      %559 = vmatpush1.bf16.msra.mxu0 %v540
      %560 = vmatprep.subr.bf16.mxu0 0
      %561 = vmatpush1.bf16.msra.mxu0 %v541
      %562 = vmatprep.subr.bf16.mxu0 0
      %563 = vmatpush1.bf16.msra.mxu0 %v542
      %564 = vmatprep.subr.bf16.mxu0 0
      %565 = vmatpush1.bf16.msra.mxu0 %v543
      %566 = vmatprep.subr.bf16.mxu0 0
      %567 = vmatpush1.bf16.msra.mxu0 %v544
      %568 = vmatprep.subr.bf16.mxu0 0
      %569 = vmatpush1.bf16.msra.mxu0 %v545
      %570 = vmatprep.subr.bf16.mxu0 0
      %571 = vmatpush1.bf16.msra.mxu0 0
      %572 = vmatprep.subr.bf16.mxu0 0
      %573 = vmatpush1.bf16.msra.mxu0 0
      %574 = vmatprep.subr.bf16.mxu0 0
      %575 = vmatpush1.bf16.msra.mxu0 0
      %576 = vmatprep.subr.bf16.mxu0 0
      %577 = vmatpush1.bf16.msra.mxu0 0
      %578 = vmatprep.subr.bf16.mxu0 0
      %579 = vmatpush1.bf16.msra.mxu0 0
      %580 = vmatprep.subr.bf16.mxu0 0
      %581 = vmatpush1.bf16.msra.mxu0 0
      %582 = vmatprep.subr.bf16.mxu0 0
      %583 = vmatpush1.bf16.msra.mxu0 0
      %584 = vmatprep.subr.bf16.mxu0 0
      %585 = vmatpush1.bf16.msra.mxu0 0
      %586 = vmatprep.mubr.bf16.mxu0 0
      %587 = vmatmul.mubr.bf16.gmra.mrb[0].mxu0 %v498
      %v588 = vpop.f32.mrb[0].mxu0
      %v589 = vadd.f32 0.0, %v588
      %v590 = vpop.f32.mrb[0].mxu0
      %v591 = vpop.f32.mrb[0].mxu0
      %v592 = vadd.f32 0.0, %v591
      %v593 = vpop.f32.mrb[0].mxu0
      %594 = vmatprep.mubr.bf16.mxu0 0
      %595 = vmatmul.mubr.bf16.gmra.mrb[0].mxu0 %v499
      %v596 = vpop.f32.mrb[0].mxu0
      %v597 = vadd.f32 0.0, %v596
      %v598 = vpop.f32.mrb[0].mxu0
      %v599 = vpop.f32.mrb[0].mxu0
      %v600 = vadd.f32 0.0, %v599
      %v601 = vpop.f32.mrb[0].mxu0
      %602 = vmatprep.mubr.bf16.mxu0 0
      %603 = vmatmul.mubr.bf16.gmra.mrb[0].mxu0 %v500
      %v604 = vpop.f32.mrb[0].mxu0
      %v605 = vadd.f32 0.0, %v604
      %v606 = vpop.f32.mrb[0].mxu0
      %v607 = vpop.f32.mrb[0].mxu0
      %v608 = vadd.f32 0.0, %v607
      %v609 = vpop.f32.mrb[0].mxu0
      %610 = vmatprep.mubr.bf16.mxu0 0
      %611 = vmatmul.mubr.bf16.gmra.mrb[0].mxu0 %v501
      %v612 = vpop.f32.mrb[0].mxu0
      %v613 = vadd.f32 0.0, %v612
      %v614 = vpop.f32.mrb[0].mxu0
      %v615 = vpop.f32.mrb[0].mxu0
      %v616 = vadd.f32 0.0, %v615
      %v617 = vpop.f32.mrb[0].mxu0
      %618 = vdwg.mxu0
      %v627 = vunpack.c.l.b16 %v322
      %v628 = vunpack.c.l.b16 %v324
      %v629 = vunpack.c.l.b16 %v326
      %v630 = vunpack.c.l.b16 %v328
      %v631 = vunpack.c.l.b16 %v330
      %v632 = vunpack.c.l.b16 %v332
      %v633 = vunpack.c.l.b16 %v334
      %v634 = vunpack.c.l.b16 %v336
      %v635 = vpack.c.b16 %v628, %v627
      %v636 = vpack.c.b16 %v630, %v629
      %v637 = vpack.c.b16 %v632, %v631
      %v638 = vpack.c.b16 %v634, %v633
      %v659 = vunpack.c.l.b16 %v342
      %v660 = vunpack.c.l.b16 %v343
      %v661 = vunpack.c.l.b16 %v344
      %v662 = vunpack.c.l.b16 %v345
      %v663 = vunpack.c.l.b16 %v346
      %v664 = vunpack.c.l.b16 %v347
      %v665 = vunpack.c.l.b16 %v348
      %v666 = vunpack.c.l.b16 %v349
      %v667 = vunpack.c.l.b16 %v350
      %v668 = vunpack.c.l.b16 %v351
      %v669 = vunpack.c.l.b16 %v352
      %v670 = vunpack.c.l.b16 %v353
      %v671 = vunpack.c.l.b16 %v354
      %v672 = vunpack.c.l.b16 %v355
      %v673 = vunpack.c.l.b16 %v356
      %v674 = vunpack.c.l.b16 %v357
      %v675 = vpack.c.b16 %v660, %v659
      %v676 = vpack.c.b16 %v662, %v661
      %v677 = vpack.c.b16 %v664, %v663
      %v678 = vpack.c.b16 %v666, %v665
      %v679 = vpack.c.b16 %v668, %v667
      %v680 = vpack.c.b16 %v670, %v669
      %v681 = vpack.c.b16 %v672, %v671
      %v682 = vpack.c.b16 %v674, %v673
      %691 = vmatprep.subr.bf16.mxu0 0
      %692 = vmatpush1.bf16.msra.mxu0 %v675
      %693 = vmatprep.subr.bf16.mxu0 0
      %694 = vmatpush1.bf16.msra.mxu0 %v676
      %695 = vmatprep.subr.bf16.mxu0 0
      %696 = vmatpush1.bf16.msra.mxu0 %v677
      %697 = vmatprep.subr.bf16.mxu0 0
      %698 = vmatpush1.bf16.msra.mxu0 %v678
      %699 = vmatprep.subr.bf16.mxu0 0
      %700 = vmatpush1.bf16.msra.mxu0 %v679
      %701 = vmatprep.subr.bf16.mxu0 0
      %702 = vmatpush1.bf16.msra.mxu0 %v680
      %703 = vmatprep.subr.bf16.mxu0 0
      %704 = vmatpush1.bf16.msra.mxu0 %v681
      %705 = vmatprep.subr.bf16.mxu0 0
      %706 = vmatpush1.bf16.msra.mxu0 %v682
      %707 = vmatprep.subr.bf16.mxu0 0
      %708 = vmatpush1.bf16.msra.mxu0 0
      %709 = vmatprep.subr.bf16.mxu0 0
      %710 = vmatpush1.bf16.msra.mxu0 0
      %711 = vmatprep.subr.bf16.mxu0 0
      %712 = vmatpush1.bf16.msra.mxu0 0
      %713 = vmatprep.subr.bf16.mxu0 0
      %714 = vmatpush1.bf16.msra.mxu0 0
      %715 = vmatprep.subr.bf16.mxu0 0
      %716 = vmatpush1.bf16.msra.mxu0 0
      %717 = vmatprep.subr.bf16.mxu0 0
      %718 = vmatpush1.bf16.msra.mxu0 0
      %719 = vmatprep.subr.bf16.mxu0 0
      %720 = vmatpush1.bf16.msra.mxu0 0
      %721 = vmatprep.subr.bf16.mxu0 0
      %722 = vmatpush1.bf16.msra.mxu0 0
      %723 = vmatprep.mubr.bf16.mxu0 0
      %724 = vmatmul.mubr.bf16.gmra.mrb[0].mxu0 %v635
      %v725 = vpop.f32.mrb[0].mxu0
      %v726 = vadd.f32 %v589, %v725
      %v727 = vpop.f32.mrb[0].mxu0
      %v728 = vpop.f32.mrb[0].mxu0
      %v729 = vadd.f32 %v592, %v728
      %v730 = vpop.f32.mrb[0].mxu0
      %731 = vmatprep.mubr.bf16.mxu0 0
      %732 = vmatmul.mubr.bf16.gmra.mrb[0].mxu0 %v636
      %v733 = vpop.f32.mrb[0].mxu0
      %v734 = vadd.f32 %v597, %v733
      %v735 = vpop.f32.mrb[0].mxu0
      %v736 = vpop.f32.mrb[0].mxu0
      %v737 = vadd.f32 %v600, %v736
      %v738 = vpop.f32.mrb[0].mxu0
      %739 = vmatprep.mubr.bf16.mxu0 0
      %740 = vmatmul.mubr.bf16.gmra.mrb[0].mxu0 %v637
      %v741 = vpop.f32.mrb[0].mxu0
      %v742 = vadd.f32 %v605, %v741
      %v743 = vpop.f32.mrb[0].mxu0
      %v744 = vpop.f32.mrb[0].mxu0
      %v745 = vadd.f32 %v608, %v744
      %v746 = vpop.f32.mrb[0].mxu0
      %747 = vmatprep.mubr.bf16.mxu0 0
      %748 = vmatmul.mubr.bf16.gmra.mrb[0].mxu0 %v638
      %v749 = vpop.f32.mrb[0].mxu0
      %v750 = vadd.f32 %v613, %v749
      %v751 = vpop.f32.mrb[0].mxu0
      %v752 = vpop.f32.mrb[0].mxu0
      %v753 = vadd.f32 %v616, %v752
      %v754 = vpop.f32.mrb[0].mxu0
      %755 = vdwg.mxu0
      %vm764 = vcmask 1042432
      %vm765 = vcmask 1046532
      %vm766 = vmor %vm764, %vm765
      %v767 = vrot.slane %v322, 5
      %v768 = vrot.slane %v767, 4
      %v769 = vrot.slane %v323, 5
      %v770 = vsel %vm766, %v768, %v769
      %v771 = vrot.slane %v324, 5
      %v772 = vrot.slane %v771, 4
      %v773 = vrot.slane %v325, 5
      %v774 = vsel %vm766, %v772, %v773
      %v775 = vrot.slane %v326, 5
      %v776 = vrot.slane %v775, 4
      %v777 = vrot.slane %v327, 5
      %v778 = vsel %vm766, %v776, %v777
      %v779 = vrot.slane %v328, 5
      %v780 = vrot.slane %v779, 4
      %v781 = vrot.slane %v329, 5
      %v782 = vsel %vm766, %v780, %v781
      %v783 = vrot.slane %v330, 5
      %v784 = vrot.slane %v783, 4
      %v785 = vrot.slane %v331, 5
      %v786 = vsel %vm766, %v784, %v785
      %v787 = vrot.slane %v332, 5
      %v788 = vrot.slane %v787, 4
      %v789 = vrot.slane %v333, 5
      %v790 = vsel %vm766, %v788, %v789
      %v791 = vrot.slane %v334, 5
      %v792 = vrot.slane %v791, 4
      %v793 = vrot.slane %v335, 5
      %v794 = vsel %vm766, %v792, %v793
      %v795 = vrot.slane %v336, 5
      %v796 = vrot.slane %v795, 4
      %v797 = vrot.slane %v337, 5
      %v798 = vsel %vm766, %v796, %v797
      %s799 = scalar_lea.vmem %s298, 128
      %v800 = vld [vmem:[%s799] sm:$0xf]
      %v801 = vld [vmem:[%s799 + $0x4] sm:$0xf]
      %v802 = vld [vmem:[%s799 + $0x8] sm:$0xf]
      %v803 = vld [vmem:[%s799 + $0xc] sm:$0xf]
      %v804 = vld [vmem:[%s799 + $0x10] sm:$0xf]
      %v805 = vld [vmem:[%s799 + $0x14] sm:$0xf]
      %v806 = vld [vmem:[%s799 + $0x18] sm:$0xf]
      %v807 = vld [vmem:[%s799 + $0x1c] sm:$0xf]
      %v808 = vld [vmem:[%s799 + $0x20] sm:$0xf]
      %v809 = vld [vmem:[%s799 + $0x24] sm:$0xf]
      %v810 = vld [vmem:[%s799 + $0x28] sm:$0xf]
      %v811 = vld [vmem:[%s799 + $0x2c] sm:$0xf]
      %v812 = vld [vmem:[%s799 + $0x30] sm:$0xf]
      %v813 = vld [vmem:[%s799 + $0x34] sm:$0xf]
      %v814 = vld [vmem:[%s799 + $0x38] sm:$0xf]
      %v815 = vld [vmem:[%s799 + $0x3c] sm:$0xf]
      %v816 = vunpack.c.l.b16 %v770
      %v817 = vunpack.c.l.b16 %v774
      %v818 = vunpack.c.l.b16 %v778
      %v819 = vunpack.c.l.b16 %v782
      %v820 = vunpack.c.l.b16 %v786
      %v821 = vunpack.c.l.b16 %v790
      %v822 = vunpack.c.l.b16 %v794
      %v823 = vunpack.c.l.b16 %v798
      %v824 = vpack.c.b16 %v817, %v816
      %v825 = vpack.c.b16 %v819, %v818
      %v826 = vpack.c.b16 %v821, %v820
      %v827 = vpack.c.b16 %v823, %v822
      %v848 = vunpack.c.l.b16 %v800
      %v849 = vunpack.c.l.b16 %v801
      %v850 = vunpack.c.l.b16 %v802
      %v851 = vunpack.c.l.b16 %v803
      %v852 = vunpack.c.l.b16 %v804
      %v853 = vunpack.c.l.b16 %v805
      %v854 = vunpack.c.l.b16 %v806
      %v855 = vunpack.c.l.b16 %v807
      %v856 = vunpack.c.l.b16 %v808
      %v857 = vunpack.c.l.b16 %v809
      %v858 = vunpack.c.l.b16 %v810
      %v859 = vunpack.c.l.b16 %v811
      %v860 = vunpack.c.l.b16 %v812
      %v861 = vunpack.c.l.b16 %v813
      %v862 = vunpack.c.l.b16 %v814
      %v863 = vunpack.c.l.b16 %v815
      %v864 = vpack.c.b16 %v849, %v848
      %v865 = vpack.c.b16 %v851, %v850
      %v866 = vpack.c.b16 %v853, %v852
      %v867 = vpack.c.b16 %v855, %v854
      %v868 = vpack.c.b16 %v857, %v856
      %v869 = vpack.c.b16 %v859, %v858
      %v870 = vpack.c.b16 %v861, %v860
      %v871 = vpack.c.b16 %v863, %v862
      %880 = vmatprep.subr.bf16.mxu0 0
      %881 = vmatpush1.bf16.msra.mxu0 %v864
      %882 = vmatprep.subr.bf16.mxu0 0
      %883 = vmatpush1.bf16.msra.mxu0 %v865
      %884 = vmatprep.subr.bf16.mxu0 0
      %885 = vmatpush1.bf16.msra.mxu0 %v866
      %886 = vmatprep.subr.bf16.mxu0 0
      %887 = vmatpush1.bf16.msra.mxu0 %v867
      %888 = vmatprep.subr.bf16.mxu0 0
      %889 = vmatpush1.bf16.msra.mxu0 %v868
      %890 = vmatprep.subr.bf16.mxu0 0
      %891 = vmatpush1.bf16.msra.mxu0 %v869
      %892 = vmatprep.subr.bf16.mxu0 0
      %893 = vmatpush1.bf16.msra.mxu0 %v870
      %894 = vmatprep.subr.bf16.mxu0 0
      %895 = vmatpush1.bf16.msra.mxu0 %v871
      %896 = vmatprep.subr.bf16.mxu0 0
      %897 = vmatpush1.bf16.msra.mxu0 0
      %898 = vmatprep.subr.bf16.mxu0 0
      %899 = vmatpush1.bf16.msra.mxu0 0
      %900 = vmatprep.subr.bf16.mxu0 0
      %901 = vmatpush1.bf16.msra.mxu0 0
      %902 = vmatprep.subr.bf16.mxu0 0
      %903 = vmatpush1.bf16.msra.mxu0 0
      %904 = vmatprep.subr.bf16.mxu0 0
      %905 = vmatpush1.bf16.msra.mxu0 0
      %906 = vmatprep.subr.bf16.mxu0 0
      %907 = vmatpush1.bf16.msra.mxu0 0
      %908 = vmatprep.subr.bf16.mxu0 0
      %909 = vmatpush1.bf16.msra.mxu0 0
      %910 = vmatprep.subr.bf16.mxu0 0
      %911 = vmatpush1.bf16.msra.mxu0 0
      %912 = vmatprep.mubr.bf16.mxu0 0
      %913 = vmatmul.mubr.bf16.gmra.mrb[0].mxu0 %v824
      %v914 = vpop.f32.mrb[0].mxu0
      %v915 = vadd.f32 0.0, %v914
      %v916 = vpop.f32.mrb[0].mxu0
      %v917 = vpop.f32.mrb[0].mxu0
      %v918 = vadd.f32 0.0, %v917
      %v919 = vpop.f32.mrb[0].mxu0
      %920 = vmatprep.mubr.bf16.mxu0 0
      %921 = vmatmul.mubr.bf16.gmra.mrb[0].mxu0 %v825
      %v922 = vpop.f32.mrb[0].mxu0
      %v923 = vadd.f32 0.0, %v922
      %v924 = vpop.f32.mrb[0].mxu0
      %v925 = vpop.f32.mrb[0].mxu0
      %v926 = vadd.f32 0.0, %v925
      %v927 = vpop.f32.mrb[0].mxu0
      %928 = vmatprep.mubr.bf16.mxu0 0
      %929 = vmatmul.mubr.bf16.gmra.mrb[0].mxu0 %v826
      %v930 = vpop.f32.mrb[0].mxu0
      %v931 = vadd.f32 0.0, %v930
      %v932 = vpop.f32.mrb[0].mxu0
      %v933 = vpop.f32.mrb[0].mxu0
      %v934 = vadd.f32 0.0, %v933
      %v935 = vpop.f32.mrb[0].mxu0
      %936 = vmatprep.mubr.bf16.mxu0 0
      %937 = vmatmul.mubr.bf16.gmra.mrb[0].mxu0 %v827
      %v938 = vpop.f32.mrb[0].mxu0
      %v939 = vadd.f32 0.0, %v938
      %v940 = vpop.f32.mrb[0].mxu0
      %v941 = vpop.f32.mrb[0].mxu0
      %v942 = vadd.f32 0.0, %v941
      %v943 = vpop.f32.mrb[0].mxu0
      %944 = vdwg.mxu0
      %v945 = vadd.f32 %v726, %v915
      %v946 = vadd.f32 %v729, %v918
      %v947 = vadd.f32 %v734, %v923
      %v948 = vadd.f32 %v737, %v926
      %v949 = vadd.f32 %v742, %v931
      %v950 = vadd.f32 %v745, %v934
      %v951 = vadd.f32 %v750, %v939
      %v952 = vadd.f32 %v753, %v942
      %s953 = scalar_lea.vmem %s298, 192
      %v954 = vld [vmem:[%s953] sm:$0xf]
      %v955 = vld [vmem:[%s953 + $0x4] sm:$0xf]
      %v956 = vld [vmem:[%s953 + $0x8] sm:$0xf]
      %v957 = vld [vmem:[%s953 + $0xc] sm:$0xf]
      %v958 = vld [vmem:[%s953 + $0x10] sm:$0xf]
      %v959 = vld [vmem:[%s953 + $0x14] sm:$0xf]
      %v960 = vld [vmem:[%s953 + $0x18] sm:$0xf]
      %v961 = vld [vmem:[%s953 + $0x1c] sm:$0xf]
      %v962 = vld [vmem:[%s953 + $0x20] sm:$0xf]
      %v963 = vld [vmem:[%s953 + $0x24] sm:$0xf]
      %v964 = vld [vmem:[%s953 + $0x28] sm:$0xf]
      %v965 = vld [vmem:[%s953 + $0x2c] sm:$0xf]
      %v966 = vld [vmem:[%s953 + $0x30] sm:$0xf]
      %v967 = vld [vmem:[%s953 + $0x34] sm:$0xf]
      %v968 = vld [vmem:[%s953 + $0x38] sm:$0xf]
      %v969 = vld [vmem:[%s953 + $0x3c] sm:$0xf]
      %v971 = vunpack.c.l.b16 %v338
      %v972 = vpack.c.b16 %v629, %v628
      %v973 = vpack.c.b16 %v631, %v630
      %v974 = vpack.c.b16 %v633, %v632
      %v975 = vpack.c.b16 %v971, %v634
      %v996 = vunpack.c.l.b16 %v954
      %v997 = vunpack.c.l.b16 %v955
      %v998 = vunpack.c.l.b16 %v956
      %v999 = vunpack.c.l.b16 %v957
      %v1000 = vunpack.c.l.b16 %v958
      %v1001 = vunpack.c.l.b16 %v959
      %v1002 = vunpack.c.l.b16 %v960
      %v1003 = vunpack.c.l.b16 %v961
      %v1004 = vunpack.c.l.b16 %v962
      %v1005 = vunpack.c.l.b16 %v963
      %v1006 = vunpack.c.l.b16 %v964
      %v1007 = vunpack.c.l.b16 %v965
      %v1008 = vunpack.c.l.b16 %v966
      %v1009 = vunpack.c.l.b16 %v967
      %v1010 = vunpack.c.l.b16 %v968
      %v1011 = vunpack.c.l.b16 %v969
      %v1012 = vpack.c.b16 %v997, %v996
      %v1013 = vpack.c.b16 %v999, %v998
      %v1014 = vpack.c.b16 %v1001, %v1000
      %v1015 = vpack.c.b16 %v1003, %v1002
      %v1016 = vpack.c.b16 %v1005, %v1004
      %v1017 = vpack.c.b16 %v1007, %v1006
      %v1018 = vpack.c.b16 %v1009, %v1008
      %v1019 = vpack.c.b16 %v1011, %v1010
      %1028 = vmatprep.subr.bf16.mxu0 0
      %1029 = vmatpush1.bf16.msra.mxu0 %v1012
      %1030 = vmatprep.subr.bf16.mxu0 0
      %1031 = vmatpush1.bf16.msra.mxu0 %v1013
      %1032 = vmatprep.subr.bf16.mxu0 0
      %1033 = vmatpush1.bf16.msra.mxu0 %v1014
      %1034 = vmatprep.subr.bf16.mxu0 0
      %1035 = vmatpush1.bf16.msra.mxu0 %v1015
      %1036 = vmatprep.subr.bf16.mxu0 0
      %1037 = vmatpush1.bf16.msra.mxu0 %v1016
      %1038 = vmatprep.subr.bf16.mxu0 0
      %1039 = vmatpush1.bf16.msra.mxu0 %v1017
      %1040 = vmatprep.subr.bf16.mxu0 0
      %1041 = vmatpush1.bf16.msra.mxu0 %v1018
      %1042 = vmatprep.subr.bf16.mxu0 0
      %1043 = vmatpush1.bf16.msra.mxu0 %v1019
      %1044 = vmatprep.subr.bf16.mxu0 0
      %1045 = vmatpush1.bf16.msra.mxu0 0
      %1046 = vmatprep.subr.bf16.mxu0 0
      %1047 = vmatpush1.bf16.msra.mxu0 0
      %1048 = vmatprep.subr.bf16.mxu0 0
      %1049 = vmatpush1.bf16.msra.mxu0 0
      %1050 = vmatprep.subr.bf16.mxu0 0
      %1051 = vmatpush1.bf16.msra.mxu0 0
      %1052 = vmatprep.subr.bf16.mxu0 0
      %1053 = vmatpush1.bf16.msra.mxu0 0
      %1054 = vmatprep.subr.bf16.mxu0 0
      %1055 = vmatpush1.bf16.msra.mxu0 0
      %1056 = vmatprep.subr.bf16.mxu0 0
      %1057 = vmatpush1.bf16.msra.mxu0 0
      %1058 = vmatprep.subr.bf16.mxu0 0
      %1059 = vmatpush1.bf16.msra.mxu0 0
      %1060 = vmatprep.mubr.bf16.mxu0 0
      %1061 = vmatmul.mubr.bf16.gmra.mrb[0].mxu0 %v972
      %v1062 = vpop.f32.mrb[0].mxu0
      %v1063 = vadd.f32 0.0, %v1062
      %v1064 = vpop.f32.mrb[0].mxu0
      %v1065 = vpop.f32.mrb[0].mxu0
      %v1066 = vadd.f32 0.0, %v1065
      %v1067 = vpop.f32.mrb[0].mxu0
      %1068 = vmatprep.mubr.bf16.mxu0 0
      %1069 = vmatmul.mubr.bf16.gmra.mrb[0].mxu0 %v973
      %v1070 = vpop.f32.mrb[0].mxu0
      %v1071 = vadd.f32 0.0, %v1070
      %v1072 = vpop.f32.mrb[0].mxu0
      %v1073 = vpop.f32.mrb[0].mxu0
      %v1074 = vadd.f32 0.0, %v1073
      %v1075 = vpop.f32.mrb[0].mxu0
      %1076 = vmatprep.mubr.bf16.mxu0 0
      %1077 = vmatmul.mubr.bf16.gmra.mrb[0].mxu0 %v974
      %v1078 = vpop.f32.mrb[0].mxu0
      %v1079 = vadd.f32 0.0, %v1078
      %v1080 = vpop.f32.mrb[0].mxu0
      %v1081 = vpop.f32.mrb[0].mxu0
      %v1082 = vadd.f32 0.0, %v1081
      %v1083 = vpop.f32.mrb[0].mxu0
      %1084 = vmatprep.mubr.bf16.mxu0 0
      %1085 = vmatmul.mubr.bf16.gmra.mrb[0].mxu0 %v975
      %v1086 = vpop.f32.mrb[0].mxu0
      %v1087 = vadd.f32 0.0, %v1086
      %v1088 = vpop.f32.mrb[0].mxu0
      %v1089 = vpop.f32.mrb[0].mxu0
      %v1090 = vadd.f32 0.0, %v1089
      %v1091 = vpop.f32.mrb[0].mxu0
      %1092 = vdwg.mxu0
      %v1093 = vadd.f32 %v945, %v1063
      %v1094 = vadd.f32 %v946, %v1066
      %v1095 = vadd.f32 %v947, %v1071
      %v1096 = vadd.f32 %v948, %v1074
      %v1097 = vadd.f32 %v949, %v1079
      %v1098 = vadd.f32 %v950, %v1082
      %v1099 = vadd.f32 %v951, %v1087
      %v1100 = vadd.f32 %v952, %v1090
      %v1102 = vshrl.u32 %v338, 16
      %v1104 = vrot.slane %v1102, 4
      %v1105 = vshll.u32 %v338, 16
      %v1107 = vrot.slane %v1105, 5
      %v1108 = vor.u32 %v1104, %v1107
      %v1109 = vrot.slane %v1108, 4
      %v1111 = vshll.u32 %v339, 16
      %v1113 = vrot.slane %v1111, 5
      %v1114 = vsel %vm360, %v1109, %v1113
      %s1115 = scalar_lea.vmem %s298, 256
      %v1116 = vld [vmem:[%s1115] sm:$0xf]
      %v1117 = vld [vmem:[%s1115 + $0x4] sm:$0xf]
      %v1118 = vld [vmem:[%s1115 + $0x8] sm:$0xf]
      %v1119 = vld [vmem:[%s1115 + $0xc] sm:$0xf]
      %v1120 = vld [vmem:[%s1115 + $0x10] sm:$0xf]
      %v1121 = vld [vmem:[%s1115 + $0x14] sm:$0xf]
      %v1122 = vld [vmem:[%s1115 + $0x18] sm:$0xf]
      %v1123 = vld [vmem:[%s1115 + $0x1c] sm:$0xf]
      %v1124 = vld [vmem:[%s1115 + $0x20] sm:$0xf]
      %v1125 = vld [vmem:[%s1115 + $0x24] sm:$0xf]
      %v1126 = vld [vmem:[%s1115 + $0x28] sm:$0xf]
      %v1127 = vld [vmem:[%s1115 + $0x2c] sm:$0xf]
      %v1128 = vld [vmem:[%s1115 + $0x30] sm:$0xf]
      %v1129 = vld [vmem:[%s1115 + $0x34] sm:$0xf]
      %v1130 = vld [vmem:[%s1115 + $0x38] sm:$0xf]
      %v1131 = vld [vmem:[%s1115 + $0x3c] sm:$0xf]
      %v1132 = vunpack.c.l.b16 %v1114
      %v1133 = vpack.c.b16 %v492, %v491
      %v1134 = vpack.c.b16 %v494, %v493
      %v1135 = vpack.c.b16 %v496, %v495
      %v1136 = vpack.c.b16 %v1132, %v497
      %v1157 = vunpack.c.l.b16 %v1116
      %v1158 = vunpack.c.l.b16 %v1117
      %v1159 = vunpack.c.l.b16 %v1118
      %v1160 = vunpack.c.l.b16 %v1119
      %v1161 = vunpack.c.l.b16 %v1120
      %v1162 = vunpack.c.l.b16 %v1121
      %v1163 = vunpack.c.l.b16 %v1122
      %v1164 = vunpack.c.l.b16 %v1123
      %v1165 = vunpack.c.l.b16 %v1124
      %v1166 = vunpack.c.l.b16 %v1125
      %v1167 = vunpack.c.l.b16 %v1126
      %v1168 = vunpack.c.l.b16 %v1127
      %v1169 = vunpack.c.l.b16 %v1128
      %v1170 = vunpack.c.l.b16 %v1129
      %v1171 = vunpack.c.l.b16 %v1130
      %v1172 = vunpack.c.l.b16 %v1131
      %v1173 = vpack.c.b16 %v1158, %v1157
      %v1174 = vpack.c.b16 %v1160, %v1159
      %v1175 = vpack.c.b16 %v1162, %v1161
      %v1176 = vpack.c.b16 %v1164, %v1163
      %v1177 = vpack.c.b16 %v1166, %v1165
      %v1178 = vpack.c.b16 %v1168, %v1167
      %v1179 = vpack.c.b16 %v1170, %v1169
      %v1180 = vpack.c.b16 %v1172, %v1171
      %1189 = vmatprep.subr.bf16.mxu0 0
      %1190 = vmatpush1.bf16.msra.mxu0 %v1173
      %1191 = vmatprep.subr.bf16.mxu0 0
      %1192 = vmatpush1.bf16.msra.mxu0 %v1174
      %1193 = vmatprep.subr.bf16.mxu0 0
      %1194 = vmatpush1.bf16.msra.mxu0 %v1175
      %1195 = vmatprep.subr.bf16.mxu0 0
      %1196 = vmatpush1.bf16.msra.mxu0 %v1176
      %1197 = vmatprep.subr.bf16.mxu0 0
      %1198 = vmatpush1.bf16.msra.mxu0 %v1177
      %1199 = vmatprep.subr.bf16.mxu0 0
      %1200 = vmatpush1.bf16.msra.mxu0 %v1178
      %1201 = vmatprep.subr.bf16.mxu0 0
      %1202 = vmatpush1.bf16.msra.mxu0 %v1179
      %1203 = vmatprep.subr.bf16.mxu0 0
      %1204 = vmatpush1.bf16.msra.mxu0 %v1180
      %1205 = vmatprep.subr.bf16.mxu0 0
      %1206 = vmatpush1.bf16.msra.mxu0 0
      %1207 = vmatprep.subr.bf16.mxu0 0
      %1208 = vmatpush1.bf16.msra.mxu0 0
      %1209 = vmatprep.subr.bf16.mxu0 0
      %1210 = vmatpush1.bf16.msra.mxu0 0
      %1211 = vmatprep.subr.bf16.mxu0 0
      %1212 = vmatpush1.bf16.msra.mxu0 0
      %1213 = vmatprep.subr.bf16.mxu0 0
      %1214 = vmatpush1.bf16.msra.mxu0 0
      %1215 = vmatprep.subr.bf16.mxu0 0
      %1216 = vmatpush1.bf16.msra.mxu0 0
      %1217 = vmatprep.subr.bf16.mxu0 0
      %1218 = vmatpush1.bf16.msra.mxu0 0
      %1219 = vmatprep.subr.bf16.mxu0 0
      %1220 = vmatpush1.bf16.msra.mxu0 0
      %1221 = vmatprep.mubr.bf16.mxu0 0
      %1222 = vmatmul.mubr.bf16.gmra.mrb[0].mxu0 %v1133
      %v1223 = vpop.f32.mrb[0].mxu0
      %v1224 = vadd.f32 0.0, %v1223
      %v1225 = vpop.f32.mrb[0].mxu0
      %v1226 = vpop.f32.mrb[0].mxu0
      %v1227 = vadd.f32 0.0, %v1226
      %v1228 = vpop.f32.mrb[0].mxu0
      %1229 = vmatprep.mubr.bf16.mxu0 0
      %1230 = vmatmul.mubr.bf16.gmra.mrb[0].mxu0 %v1134
      %v1231 = vpop.f32.mrb[0].mxu0
      %v1232 = vadd.f32 0.0, %v1231
      %v1233 = vpop.f32.mrb[0].mxu0
      %v1234 = vpop.f32.mrb[0].mxu0
      %v1235 = vadd.f32 0.0, %v1234
      %v1236 = vpop.f32.mrb[0].mxu0
      %1237 = vmatprep.mubr.bf16.mxu0 0
      %1238 = vmatmul.mubr.bf16.gmra.mrb[0].mxu0 %v1135
      %v1239 = vpop.f32.mrb[0].mxu0
      %v1240 = vadd.f32 0.0, %v1239
      %v1241 = vpop.f32.mrb[0].mxu0
      %v1242 = vpop.f32.mrb[0].mxu0
      %v1243 = vadd.f32 0.0, %v1242
      %v1244 = vpop.f32.mrb[0].mxu0
      %1245 = vmatprep.mubr.bf16.mxu0 0
      %1246 = vmatmul.mubr.bf16.gmra.mrb[0].mxu0 %v1136
      %v1247 = vpop.f32.mrb[0].mxu0
      %v1248 = vadd.f32 0.0, %v1247
      %v1249 = vpop.f32.mrb[0].mxu0
      %v1250 = vpop.f32.mrb[0].mxu0
      %v1251 = vadd.f32 0.0, %v1250
      %v1252 = vpop.f32.mrb[0].mxu0
      %1253 = vdwg.mxu0
      %v1254 = vadd.f32 %v1093, %v1224
      %v1255 = vadd.f32 %v1094, %v1227
      %v1256 = vadd.f32 %v1095, %v1232
      %v1257 = vadd.f32 %v1096, %v1235
      %v1258 = vadd.f32 %v1097, %v1240
      %v1259 = vadd.f32 %v1098, %v1243
      %v1260 = vadd.f32 %v1099, %v1248
      %v1261 = vadd.f32 %v1100, %v1251
      %v1263 = vrot.slane %v338, 5
      %v1264 = vrot.slane %v1263, 4
      %v1265 = vrot.slane %v339, 5
      %v1266 = vsel %vm766, %v1264, %v1265
      %s1267 = scalar_lea.vmem %s298, 320
      %v1268 = vld [vmem:[%s1267] sm:$0xf]
      %v1269 = vld [vmem:[%s1267 + $0x4] sm:$0xf]
      %v1270 = vld [vmem:[%s1267 + $0x8] sm:$0xf]
      %v1271 = vld [vmem:[%s1267 + $0xc] sm:$0xf]
      %v1272 = vld [vmem:[%s1267 + $0x10] sm:$0xf]
      %v1273 = vld [vmem:[%s1267 + $0x14] sm:$0xf]
      %v1274 = vld [vmem:[%s1267 + $0x18] sm:$0xf]
      %v1275 = vld [vmem:[%s1267 + $0x1c] sm:$0xf]
      %v1276 = vld [vmem:[%s1267 + $0x20] sm:$0xf]
      %v1277 = vld [vmem:[%s1267 + $0x24] sm:$0xf]
      %v1278 = vld [vmem:[%s1267 + $0x28] sm:$0xf]
      %v1279 = vld [vmem:[%s1267 + $0x2c] sm:$0xf]
      %v1280 = vld [vmem:[%s1267 + $0x30] sm:$0xf]
      %v1281 = vld [vmem:[%s1267 + $0x34] sm:$0xf]
      %v1282 = vld [vmem:[%s1267 + $0x38] sm:$0xf]
      %v1283 = vld [vmem:[%s1267 + $0x3c] sm:$0xf]
      %v1284 = vunpack.c.l.b16 %v1266
      %v1285 = vpack.c.b16 %v818, %v817
      %v1286 = vpack.c.b16 %v820, %v819
      %v1287 = vpack.c.b16 %v822, %v821
      %v1288 = vpack.c.b16 %v1284, %v823
      %v1309 = vunpack.c.l.b16 %v1268
      %v1310 = vunpack.c.l.b16 %v1269
      %v1311 = vunpack.c.l.b16 %v1270
      %v1312 = vunpack.c.l.b16 %v1271
      %v1313 = vunpack.c.l.b16 %v1272
      %v1314 = vunpack.c.l.b16 %v1273
      %v1315 = vunpack.c.l.b16 %v1274
      %v1316 = vunpack.c.l.b16 %v1275
      %v1317 = vunpack.c.l.b16 %v1276
      %v1318 = vunpack.c.l.b16 %v1277
      %v1319 = vunpack.c.l.b16 %v1278
      %v1320 = vunpack.c.l.b16 %v1279
      %v1321 = vunpack.c.l.b16 %v1280
      %v1322 = vunpack.c.l.b16 %v1281
      %v1323 = vunpack.c.l.b16 %v1282
      %v1324 = vunpack.c.l.b16 %v1283
      %v1325 = vpack.c.b16 %v1310, %v1309
      %v1326 = vpack.c.b16 %v1312, %v1311
      %v1327 = vpack.c.b16 %v1314, %v1313
      %v1328 = vpack.c.b16 %v1316, %v1315
      %v1329 = vpack.c.b16 %v1318, %v1317
      %v1330 = vpack.c.b16 %v1320, %v1319
      %v1331 = vpack.c.b16 %v1322, %v1321
      %v1332 = vpack.c.b16 %v1324, %v1323
      %1341 = vmatprep.subr.bf16.mxu0 0
      %1342 = vmatpush1.bf16.msra.mxu0 %v1325
      %1343 = vmatprep.subr.bf16.mxu0 0
      %1344 = vmatpush1.bf16.msra.mxu0 %v1326
      %1345 = vmatprep.subr.bf16.mxu0 0
      %1346 = vmatpush1.bf16.msra.mxu0 %v1327
      %1347 = vmatprep.subr.bf16.mxu0 0
      %1348 = vmatpush1.bf16.msra.mxu0 %v1328
      %1349 = vmatprep.subr.bf16.mxu0 0
      %1350 = vmatpush1.bf16.msra.mxu0 %v1329
      %1351 = vmatprep.subr.bf16.mxu0 0
      %1352 = vmatpush1.bf16.msra.mxu0 %v1330
      %1353 = vmatprep.subr.bf16.mxu0 0
      %1354 = vmatpush1.bf16.msra.mxu0 %v1331
      %1355 = vmatprep.subr.bf16.mxu0 0
      %1356 = vmatpush1.bf16.msra.mxu0 %v1332
      %1357 = vmatprep.subr.bf16.mxu0 0
      %1358 = vmatpush1.bf16.msra.mxu0 0
      %1359 = vmatprep.subr.bf16.mxu0 0
      %1360 = vmatpush1.bf16.msra.mxu0 0
      %1361 = vmatprep.subr.bf16.mxu0 0
      %1362 = vmatpush1.bf16.msra.mxu0 0
      %1363 = vmatprep.subr.bf16.mxu0 0
      %1364 = vmatpush1.bf16.msra.mxu0 0
      %1365 = vmatprep.subr.bf16.mxu0 0
      %1366 = vmatpush1.bf16.msra.mxu0 0
      %1367 = vmatprep.subr.bf16.mxu0 0
      %1368 = vmatpush1.bf16.msra.mxu0 0
      %1369 = vmatprep.subr.bf16.mxu0 0
      %1370 = vmatpush1.bf16.msra.mxu0 0
      %1371 = vmatprep.subr.bf16.mxu0 0
      %1372 = vmatpush1.bf16.msra.mxu0 0
      %1373 = vmatprep.mubr.bf16.mxu0 0
      %1374 = vmatmul.mubr.bf16.gmra.mrb[0].mxu0 %v1285
      %v1375 = vpop.f32.mrb[0].mxu0
      %v1376 = vadd.f32 0.0, %v1375
      %v1377 = vpop.f32.mrb[0].mxu0
      %v1378 = vpop.f32.mrb[0].mxu0
      %v1379 = vadd.f32 0.0, %v1378
      %v1380 = vpop.f32.mrb[0].mxu0
      %1381 = vmatprep.mubr.bf16.mxu0 0
      %1382 = vmatmul.mubr.bf16.gmra.mrb[0].mxu0 %v1286
      %v1383 = vpop.f32.mrb[0].mxu0
      %v1384 = vadd.f32 0.0, %v1383
      %v1385 = vpop.f32.mrb[0].mxu0
      %v1386 = vpop.f32.mrb[0].mxu0
      %v1387 = vadd.f32 0.0, %v1386
      %v1388 = vpop.f32.mrb[0].mxu0
      %1389 = vmatprep.mubr.bf16.mxu0 0
      %1390 = vmatmul.mubr.bf16.gmra.mrb[0].mxu0 %v1287
      %v1391 = vpop.f32.mrb[0].mxu0
      %v1392 = vadd.f32 0.0, %v1391
      %v1393 = vpop.f32.mrb[0].mxu0
      %v1394 = vpop.f32.mrb[0].mxu0
      %v1395 = vadd.f32 0.0, %v1394
      %v1396 = vpop.f32.mrb[0].mxu0
      %1397 = vmatprep.mubr.bf16.mxu0 0
      %1398 = vmatmul.mubr.bf16.gmra.mrb[0].mxu0 %v1288
      %v1399 = vpop.f32.mrb[0].mxu0
      %v1400 = vadd.f32 0.0, %v1399
      %v1401 = vpop.f32.mrb[0].mxu0
      %v1402 = vpop.f32.mrb[0].mxu0
      %v1403 = vadd.f32 0.0, %v1402
      %v1404 = vpop.f32.mrb[0].mxu0
      %1405 = vdwg.mxu0
      %v1406 = vadd.f32 %v1254, %v1376
      %v1407 = vadd.f32 %v1255, %v1379
      %v1408 = vadd.f32 %v1256, %v1384
      %v1409 = vadd.f32 %v1257, %v1387
      %v1410 = vadd.f32 %v1258, %v1392
      %v1411 = vadd.f32 %v1259, %v1395
      %v1412 = vadd.f32 %v1260, %v1400
      %v1413 = vadd.f32 %v1261, %v1403
      %s1414 = scalar_lea.vmem %s298, 384
      %v1415 = vld [vmem:[%s1414] sm:$0xf]
      %v1416 = vld [vmem:[%s1414 + $0x4] sm:$0xf]
      %v1417 = vld [vmem:[%s1414 + $0x8] sm:$0xf]
      %v1418 = vld [vmem:[%s1414 + $0xc] sm:$0xf]
      %v1419 = vld [vmem:[%s1414 + $0x10] sm:$0xf]
      %v1420 = vld [vmem:[%s1414 + $0x14] sm:$0xf]
      %v1421 = vld [vmem:[%s1414 + $0x18] sm:$0xf]
      %v1422 = vld [vmem:[%s1414 + $0x1c] sm:$0xf]
      %v1423 = vld [vmem:[%s1414 + $0x20] sm:$0xf]
      %v1424 = vld [vmem:[%s1414 + $0x24] sm:$0xf]
      %v1425 = vld [vmem:[%s1414 + $0x28] sm:$0xf]
      %v1426 = vld [vmem:[%s1414 + $0x2c] sm:$0xf]
      %v1427 = vld [vmem:[%s1414 + $0x30] sm:$0xf]
      %v1428 = vld [vmem:[%s1414 + $0x34] sm:$0xf]
      %v1429 = vld [vmem:[%s1414 + $0x38] sm:$0xf]
      %v1430 = vld [vmem:[%s1414 + $0x3c] sm:$0xf]
      %v1432 = vunpack.c.l.b16 %v340
      %v1433 = vpack.c.b16 %v1432, %v971
      %v1451 = vunpack.c.l.b16 %v1415
      %v1452 = vunpack.c.l.b16 %v1416
      %v1453 = vunpack.c.l.b16 %v1417
      %v1454 = vunpack.c.l.b16 %v1418
      %v1455 = vunpack.c.l.b16 %v1419
      %v1456 = vunpack.c.l.b16 %v1420
      %v1457 = vunpack.c.l.b16 %v1421
      %v1458 = vunpack.c.l.b16 %v1422
      %v1459 = vunpack.c.l.b16 %v1423
      %v1460 = vunpack.c.l.b16 %v1424
      %v1461 = vunpack.c.l.b16 %v1425
      %v1462 = vunpack.c.l.b16 %v1426
      %v1463 = vunpack.c.l.b16 %v1427
      %v1464 = vunpack.c.l.b16 %v1428
      %v1465 = vunpack.c.l.b16 %v1429
      %v1466 = vunpack.c.l.b16 %v1430
      %v1467 = vpack.c.b16 %v1452, %v1451
      %v1468 = vpack.c.b16 %v1454, %v1453
      %v1469 = vpack.c.b16 %v1456, %v1455
      %v1470 = vpack.c.b16 %v1458, %v1457
      %v1471 = vpack.c.b16 %v1460, %v1459
      %v1472 = vpack.c.b16 %v1462, %v1461
      %v1473 = vpack.c.b16 %v1464, %v1463
      %v1474 = vpack.c.b16 %v1466, %v1465
      %1483 = vmatprep.subr.bf16.mxu0 0
      %1484 = vmatpush1.bf16.msra.mxu0 %v1467
      %1485 = vmatprep.subr.bf16.mxu0 0
      %1486 = vmatpush1.bf16.msra.mxu0 %v1468
      %1487 = vmatprep.subr.bf16.mxu0 0
      %1488 = vmatpush1.bf16.msra.mxu0 %v1469
      %1489 = vmatprep.subr.bf16.mxu0 0
      %1490 = vmatpush1.bf16.msra.mxu0 %v1470
      %1491 = vmatprep.subr.bf16.mxu0 0
      %1492 = vmatpush1.bf16.msra.mxu0 %v1471
      %1493 = vmatprep.subr.bf16.mxu0 0
      %1494 = vmatpush1.bf16.msra.mxu0 %v1472
      %1495 = vmatprep.subr.bf16.mxu0 0
      %1496 = vmatpush1.bf16.msra.mxu0 %v1473
      %1497 = vmatprep.subr.bf16.mxu0 0
      %1498 = vmatpush1.bf16.msra.mxu0 %v1474
      %1499 = vmatprep.subr.bf16.mxu0 0
      %1500 = vmatpush1.bf16.msra.mxu0 0
      %1501 = vmatprep.subr.bf16.mxu0 0
      %1502 = vmatpush1.bf16.msra.mxu0 0
      %1503 = vmatprep.subr.bf16.mxu0 0
      %1504 = vmatpush1.bf16.msra.mxu0 0
      %1505 = vmatprep.subr.bf16.mxu0 0
      %1506 = vmatpush1.bf16.msra.mxu0 0
      %1507 = vmatprep.subr.bf16.mxu0 0
      %1508 = vmatpush1.bf16.msra.mxu0 0
      %1509 = vmatprep.subr.bf16.mxu0 0
      %1510 = vmatpush1.bf16.msra.mxu0 0
      %1511 = vmatprep.subr.bf16.mxu0 0
      %1512 = vmatpush1.bf16.msra.mxu0 0
      %1513 = vmatprep.subr.bf16.mxu0 0
      %1514 = vmatpush1.bf16.msra.mxu0 0
      %1515 = vmatprep.mubr.bf16.mxu0 0
      %1516 = vmatmul.mubr.bf16.gmra.mrb[0].mxu0 %v636
      %v1517 = vpop.f32.mrb[0].mxu0
      %v1518 = vadd.f32 0.0, %v1517
      %v1519 = vpop.f32.mrb[0].mxu0
      %v1520 = vpop.f32.mrb[0].mxu0
      %v1521 = vadd.f32 0.0, %v1520
      %v1522 = vpop.f32.mrb[0].mxu0
      %1523 = vmatprep.mubr.bf16.mxu0 0
      %1524 = vmatmul.mubr.bf16.gmra.mrb[0].mxu0 %v637
      %v1525 = vpop.f32.mrb[0].mxu0
      %v1526 = vadd.f32 0.0, %v1525
      %v1527 = vpop.f32.mrb[0].mxu0
      %v1528 = vpop.f32.mrb[0].mxu0
      %v1529 = vadd.f32 0.0, %v1528
      %v1530 = vpop.f32.mrb[0].mxu0
      %1531 = vmatprep.mubr.bf16.mxu0 0
      %1532 = vmatmul.mubr.bf16.gmra.mrb[0].mxu0 %v638
      %v1533 = vpop.f32.mrb[0].mxu0
      %v1534 = vadd.f32 0.0, %v1533
      %v1535 = vpop.f32.mrb[0].mxu0
      %v1536 = vpop.f32.mrb[0].mxu0
      %v1537 = vadd.f32 0.0, %v1536
      %v1538 = vpop.f32.mrb[0].mxu0
      %1539 = vmatprep.mubr.bf16.mxu0 0
      %1540 = vmatmul.mubr.bf16.gmra.mrb[0].mxu0 %v1433
      %v1541 = vpop.f32.mrb[0].mxu0
      %v1542 = vadd.f32 0.0, %v1541
      %v1543 = vpop.f32.mrb[0].mxu0
      %v1544 = vpop.f32.mrb[0].mxu0
      %v1545 = vadd.f32 0.0, %v1544
      %v1546 = vpop.f32.mrb[0].mxu0
      %1547 = vdwg.mxu0
      %v1548 = vadd.f32 %v1406, %v1518
      %v1549 = vadd.f32 %v1407, %v1521
      %v1550 = vadd.f32 %v1408, %v1526
      %v1551 = vadd.f32 %v1409, %v1529
      %v1552 = vadd.f32 %v1410, %v1534
      %v1553 = vadd.f32 %v1411, %v1537
      %v1554 = vadd.f32 %v1412, %v1542
      %v1555 = vadd.f32 %v1413, %v1545
      %v1557 = vshrl.u32 %v340, 16
      %v1559 = vrot.slane %v1557, 4
      %v1560 = vshll.u32 %v340, 16
      %v1562 = vrot.slane %v1560, 5
      %v1563 = vor.u32 %v1559, %v1562
      %v1564 = vrot.slane %v1563, 4
      %v1566 = vshll.u32 %v341, 16
      %v1568 = vrot.slane %v1566, 5
      %v1569 = vsel %vm360, %v1564, %v1568
      %s1570 = scalar_lea.vmem %s298, 448
      %v1571 = vld [vmem:[%s1570] sm:$0xf]
      %v1572 = vld [vmem:[%s1570 + $0x4] sm:$0xf]
      %v1573 = vld [vmem:[%s1570 + $0x8] sm:$0xf]
      %v1574 = vld [vmem:[%s1570 + $0xc] sm:$0xf]
      %v1575 = vld [vmem:[%s1570 + $0x10] sm:$0xf]
      %v1576 = vld [vmem:[%s1570 + $0x14] sm:$0xf]
      %v1577 = vld [vmem:[%s1570 + $0x18] sm:$0xf]
      %v1578 = vld [vmem:[%s1570 + $0x1c] sm:$0xf]
      %v1579 = vld [vmem:[%s1570 + $0x20] sm:$0xf]
      %v1580 = vld [vmem:[%s1570 + $0x24] sm:$0xf]
      %v1581 = vld [vmem:[%s1570 + $0x28] sm:$0xf]
      %v1582 = vld [vmem:[%s1570 + $0x2c] sm:$0xf]
      %v1583 = vld [vmem:[%s1570 + $0x30] sm:$0xf]
      %v1584 = vld [vmem:[%s1570 + $0x34] sm:$0xf]
      %v1585 = vld [vmem:[%s1570 + $0x38] sm:$0xf]
      %v1586 = vld [vmem:[%s1570 + $0x3c] sm:$0xf]
      %v1587 = vunpack.c.l.b16 %v1569
      %v1588 = vpack.c.b16 %v1587, %v1132
      %v1606 = vunpack.c.l.b16 %v1571
      %v1607 = vunpack.c.l.b16 %v1572
      %v1608 = vunpack.c.l.b16 %v1573
      %v1609 = vunpack.c.l.b16 %v1574
      %v1610 = vunpack.c.l.b16 %v1575
      %v1611 = vunpack.c.l.b16 %v1576
      %v1612 = vunpack.c.l.b16 %v1577
      %v1613 = vunpack.c.l.b16 %v1578
      %v1614 = vunpack.c.l.b16 %v1579
      %v1615 = vunpack.c.l.b16 %v1580
      %v1616 = vunpack.c.l.b16 %v1581
      %v1617 = vunpack.c.l.b16 %v1582
      %v1618 = vunpack.c.l.b16 %v1583
      %v1619 = vunpack.c.l.b16 %v1584
      %v1620 = vunpack.c.l.b16 %v1585
      %v1621 = vunpack.c.l.b16 %v1586
      %v1622 = vpack.c.b16 %v1607, %v1606
      %v1623 = vpack.c.b16 %v1609, %v1608
      %v1624 = vpack.c.b16 %v1611, %v1610
      %v1625 = vpack.c.b16 %v1613, %v1612
      %v1626 = vpack.c.b16 %v1615, %v1614
      %v1627 = vpack.c.b16 %v1617, %v1616
      %v1628 = vpack.c.b16 %v1619, %v1618
      %v1629 = vpack.c.b16 %v1621, %v1620
      %1638 = vmatprep.subr.bf16.mxu0 0
      %1639 = vmatpush1.bf16.msra.mxu0 %v1622
      %1640 = vmatprep.subr.bf16.mxu0 0
      %1641 = vmatpush1.bf16.msra.mxu0 %v1623
      %1642 = vmatprep.subr.bf16.mxu0 0
      %1643 = vmatpush1.bf16.msra.mxu0 %v1624
      %1644 = vmatprep.subr.bf16.mxu0 0
      %1645 = vmatpush1.bf16.msra.mxu0 %v1625
      %1646 = vmatprep.subr.bf16.mxu0 0
      %1647 = vmatpush1.bf16.msra.mxu0 %v1626
      %1648 = vmatprep.subr.bf16.mxu0 0
      %1649 = vmatpush1.bf16.msra.mxu0 %v1627
      %1650 = vmatprep.subr.bf16.mxu0 0
      %1651 = vmatpush1.bf16.msra.mxu0 %v1628
      %1652 = vmatprep.subr.bf16.mxu0 0
      %1653 = vmatpush1.bf16.msra.mxu0 %v1629
      %1654 = vmatprep.subr.bf16.mxu0 0
      %1655 = vmatpush1.bf16.msra.mxu0 0
      %1656 = vmatprep.subr.bf16.mxu0 0
      %1657 = vmatpush1.bf16.msra.mxu0 0
      %1658 = vmatprep.subr.bf16.mxu0 0
      %1659 = vmatpush1.bf16.msra.mxu0 0
      %1660 = vmatprep.subr.bf16.mxu0 0
      %1661 = vmatpush1.bf16.msra.mxu0 0
      %1662 = vmatprep.subr.bf16.mxu0 0
      %1663 = vmatpush1.bf16.msra.mxu0 0
      %1664 = vmatprep.subr.bf16.mxu0 0
      %1665 = vmatpush1.bf16.msra.mxu0 0
      %1666 = vmatprep.subr.bf16.mxu0 0
      %1667 = vmatpush1.bf16.msra.mxu0 0
      %1668 = vmatprep.subr.bf16.mxu0 0
      %1669 = vmatpush1.bf16.msra.mxu0 0
      %1670 = vmatprep.mubr.bf16.mxu0 0
      %1671 = vmatmul.mubr.bf16.gmra.mrb[0].mxu0 %v499
      %v1672 = vpop.f32.mrb[0].mxu0
      %v1673 = vadd.f32 0.0, %v1672
      %v1674 = vpop.f32.mrb[0].mxu0
      %v1675 = vpop.f32.mrb[0].mxu0
      %v1676 = vadd.f32 0.0, %v1675
      %v1677 = vpop.f32.mrb[0].mxu0
      %1678 = vmatprep.mubr.bf16.mxu0 0
      %1679 = vmatmul.mubr.bf16.gmra.mrb[0].mxu0 %v500
      %v1680 = vpop.f32.mrb[0].mxu0
      %v1681 = vadd.f32 0.0, %v1680
      %v1682 = vpop.f32.mrb[0].mxu0
      %v1683 = vpop.f32.mrb[0].mxu0
      %v1684 = vadd.f32 0.0, %v1683
      %v1685 = vpop.f32.mrb[0].mxu0
      %1686 = vmatprep.mubr.bf16.mxu0 0
      %1687 = vmatmul.mubr.bf16.gmra.mrb[0].mxu0 %v501
      %v1688 = vpop.f32.mrb[0].mxu0
      %v1689 = vadd.f32 0.0, %v1688
      %v1690 = vpop.f32.mrb[0].mxu0
      %v1691 = vpop.f32.mrb[0].mxu0
      %v1692 = vadd.f32 0.0, %v1691
      %v1693 = vpop.f32.mrb[0].mxu0
      %1694 = vmatprep.mubr.bf16.mxu0 0
      %1695 = vmatmul.mubr.bf16.gmra.mrb[0].mxu0 %v1588
      %v1696 = vpop.f32.mrb[0].mxu0
      %v1697 = vadd.f32 0.0, %v1696
      %v1698 = vpop.f32.mrb[0].mxu0
      %v1699 = vpop.f32.mrb[0].mxu0
      %v1700 = vadd.f32 0.0, %v1699
      %v1701 = vpop.f32.mrb[0].mxu0
      %1702 = vdwg.mxu0
      %v1703 = vadd.f32 %v1548, %v1673
      %v1704 = vadd.f32 %v1549, %v1676
      %v1705 = vadd.f32 %v1550, %v1681
      %v1706 = vadd.f32 %v1551, %v1684
      %v1707 = vadd.f32 %v1552, %v1689
      %v1708 = vadd.f32 %v1553, %v1692
      %v1709 = vadd.f32 %v1554, %v1697
      %v1710 = vadd.f32 %v1555, %v1700
      %v1712 = vrot.slane %v340, 5
      %v1713 = vrot.slane %v1712, 4
      %v1714 = vrot.slane %v341, 5
      %v1715 = vsel %vm766, %v1713, %v1714
      %s1716 = scalar_lea.vmem %s298, 512
      %v1717 = vld [vmem:[%s1716] sm:$0xf]
      %v1718 = vld [vmem:[%s1716 + $0x4] sm:$0xf]
      %v1719 = vld [vmem:[%s1716 + $0x8] sm:$0xf]
      %v1720 = vld [vmem:[%s1716 + $0xc] sm:$0xf]
      %v1721 = vld [vmem:[%s1716 + $0x10] sm:$0xf]
      %v1722 = vld [vmem:[%s1716 + $0x14] sm:$0xf]
      %v1723 = vld [vmem:[%s1716 + $0x18] sm:$0xf]
      %v1724 = vld [vmem:[%s1716 + $0x1c] sm:$0xf]
      %v1725 = vld [vmem:[%s1716 + $0x20] sm:$0xf]
      %v1726 = vld [vmem:[%s1716 + $0x24] sm:$0xf]
      %v1727 = vld [vmem:[%s1716 + $0x28] sm:$0xf]
      %v1728 = vld [vmem:[%s1716 + $0x2c] sm:$0xf]
      %v1729 = vld [vmem:[%s1716 + $0x30] sm:$0xf]
      %v1730 = vld [vmem:[%s1716 + $0x34] sm:$0xf]
      %v1731 = vld [vmem:[%s1716 + $0x38] sm:$0xf]
      %v1732 = vld [vmem:[%s1716 + $0x3c] sm:$0xf]
      %v1733 = vunpack.c.l.b16 %v1715
      %v1734 = vpack.c.b16 %v1733, %v1284
      %v1752 = vunpack.c.l.b16 %v1717
      %v1753 = vunpack.c.l.b16 %v1718
      %v1754 = vunpack.c.l.b16 %v1719
      %v1755 = vunpack.c.l.b16 %v1720
      %v1756 = vunpack.c.l.b16 %v1721
      %v1757 = vunpack.c.l.b16 %v1722
      %v1758 = vunpack.c.l.b16 %v1723
      %v1759 = vunpack.c.l.b16 %v1724
      %v1760 = vunpack.c.l.b16 %v1725
      %v1761 = vunpack.c.l.b16 %v1726
      %v1762 = vunpack.c.l.b16 %v1727
      %v1763 = vunpack.c.l.b16 %v1728
      %v1764 = vunpack.c.l.b16 %v1729
      %v1765 = vunpack.c.l.b16 %v1730
      %v1766 = vunpack.c.l.b16 %v1731
      %v1767 = vunpack.c.l.b16 %v1732
      %v1768 = vpack.c.b16 %v1753, %v1752
      %v1769 = vpack.c.b16 %v1755, %v1754
      %v1770 = vpack.c.b16 %v1757, %v1756
      %v1771 = vpack.c.b16 %v1759, %v1758
      %v1772 = vpack.c.b16 %v1761, %v1760
      %v1773 = vpack.c.b16 %v1763, %v1762
      %v1774 = vpack.c.b16 %v1765, %v1764
      %v1775 = vpack.c.b16 %v1767, %v1766
      %1784 = vmatprep.subr.bf16.mxu0 0
      %1785 = vmatpush1.bf16.msra.mxu0 %v1768
      %1786 = vmatprep.subr.bf16.mxu0 0
      %1787 = vmatpush1.bf16.msra.mxu0 %v1769
      %1788 = vmatprep.subr.bf16.mxu0 0
      %1789 = vmatpush1.bf16.msra.mxu0 %v1770
      %1790 = vmatprep.subr.bf16.mxu0 0
      %1791 = vmatpush1.bf16.msra.mxu0 %v1771
      %1792 = vmatprep.subr.bf16.mxu0 0
      %1793 = vmatpush1.bf16.msra.mxu0 %v1772
      %1794 = vmatprep.subr.bf16.mxu0 0
      %1795 = vmatpush1.bf16.msra.mxu0 %v1773
      %1796 = vmatprep.subr.bf16.mxu0 0
      %1797 = vmatpush1.bf16.msra.mxu0 %v1774
      %1798 = vmatprep.subr.bf16.mxu0 0
      %1799 = vmatpush1.bf16.msra.mxu0 %v1775
      %1800 = vmatprep.subr.bf16.mxu0 0
      %1801 = vmatpush1.bf16.msra.mxu0 0
      %1802 = vmatprep.subr.bf16.mxu0 0
      %1803 = vmatpush1.bf16.msra.mxu0 0
      %1804 = vmatprep.subr.bf16.mxu0 0
      %1805 = vmatpush1.bf16.msra.mxu0 0
      %1806 = vmatprep.subr.bf16.mxu0 0
      %1807 = vmatpush1.bf16.msra.mxu0 0
      %1808 = vmatprep.subr.bf16.mxu0 0
      %1809 = vmatpush1.bf16.msra.mxu0 0
      %1810 = vmatprep.subr.bf16.mxu0 0
      %1811 = vmatpush1.bf16.msra.mxu0 0
      %1812 = vmatprep.subr.bf16.mxu0 0
      %1813 = vmatpush1.bf16.msra.mxu0 0
      %1814 = vmatprep.subr.bf16.mxu0 0
      %1815 = vmatpush1.bf16.msra.mxu0 0
      %1816 = vmatprep.mubr.bf16.mxu0 0
      %1817 = vmatmul.mubr.bf16.gmra.mrb[0].mxu0 %v825
      %v1818 = vpop.f32.mrb[0].mxu0
      %v1819 = vadd.f32 0.0, %v1818
      %v1820 = vpop.f32.mrb[0].mxu0
      %v1821 = vpop.f32.mrb[0].mxu0
      %v1822 = vadd.f32 0.0, %v1821
      %v1823 = vpop.f32.mrb[0].mxu0
      %1824 = vmatprep.mubr.bf16.mxu0 0
      %1825 = vmatmul.mubr.bf16.gmra.mrb[0].mxu0 %v826
      %v1826 = vpop.f32.mrb[0].mxu0
      %v1827 = vadd.f32 0.0, %v1826
      %v1828 = vpop.f32.mrb[0].mxu0
      %v1829 = vpop.f32.mrb[0].mxu0
      %v1830 = vadd.f32 0.0, %v1829
      %v1831 = vpop.f32.mrb[0].mxu0
      %1832 = vmatprep.mubr.bf16.mxu0 0
      %1833 = vmatmul.mubr.bf16.gmra.mrb[0].mxu0 %v827
      %v1834 = vpop.f32.mrb[0].mxu0
      %v1835 = vadd.f32 0.0, %v1834
      %v1836 = vpop.f32.mrb[0].mxu0
      %v1837 = vpop.f32.mrb[0].mxu0
      %v1838 = vadd.f32 0.0, %v1837
      %v1839 = vpop.f32.mrb[0].mxu0
      %1840 = vmatprep.mubr.bf16.mxu0 0
      %1841 = vmatmul.mubr.bf16.gmra.mrb[0].mxu0 %v1734
      %v1842 = vpop.f32.mrb[0].mxu0
      %v1843 = vadd.f32 0.0, %v1842
      %v1844 = vpop.f32.mrb[0].mxu0
      %v1845 = vpop.f32.mrb[0].mxu0
      %v1846 = vadd.f32 0.0, %v1845
      %v1847 = vpop.f32.mrb[0].mxu0
      %1848 = vdwg.mxu0
      %v1849 = vadd.f32 %v1703, %v1819
      %v1850 = vadd.f32 %v1704, %v1822
      %v1851 = vadd.f32 %v1705, %v1827
      %v1852 = vadd.f32 %v1706, %v1830
      %v1853 = vadd.f32 %v1707, %v1835
      %v1854 = vadd.f32 %v1708, %v1838
      %v1855 = vadd.f32 %v1709, %v1843
      %v1856 = vadd.f32 %v1710, %v1846
      %v1857 = vld [vmem:[%s301] sm:$0x1]
      %v1859 = vlaneseq
      %v1860 = vshrl.u32 %v1859, 7
      %v1861 = vsub.s32 0, %v1860
      %v1862 = vrot.slane %v1857, %v1861
      %v1864 = vmul.f32 %v1849, %v1862
      %v1865 = vmul.f32 %v1850, %v1862
      %v1866 = vmul.f32 %v1851, %v1862
      %v1867 = vmul.f32 %v1852, %v1862
      %v1868 = vmul.f32 %v1853, %v1862
      %v1869 = vmul.f32 %v1854, %v1862
      %v1870 = vmul.f32 %v1855, %v1862
      %v1871 = vmul.f32 %v1856, %v1862
      %v1872 = vld [vmem:[%s304] sm:$0x1]
      %v1874 = vlaneseq
      %v1875 = vshrl.u32 %v1874, 7
      %v1876 = vsub.s32 0, %v1875
      %v1877 = vrot.slane %v1872, %v1876
      %v1879 = vadd.f32 %v1864, %v1877
      %v1880 = vadd.f32 %v1865, %v1877
      %v1881 = vadd.f32 %v1866, %v1877
      %v1882 = vadd.f32 %v1867, %v1877
      %v1883 = vadd.f32 %v1868, %v1877
      %v1884 = vadd.f32 %v1869, %v1877
      %v1885 = vadd.f32 %v1870, %v1877
      %v1886 = vadd.f32 %v1871, %v1877
      %v1887 = vld [vmem:[%s312] sm:$0xff]
      %v1888 = vld [vmem:[%s312 + $0x8] sm:$0xff]
      %v1889 = vld [vmem:[%s312 + $0x10] sm:$0xff]
      %v1890 = vld [vmem:[%s312 + $0x18] sm:$0xff]
      %v1891 = vld [vmem:[%s312 + $0x20] sm:$0xff]
      %v1892 = vld [vmem:[%s312 + $0x28] sm:$0xff]
      %v1893 = vld [vmem:[%s312 + $0x30] sm:$0xff]
      %v1894 = vld [vmem:[%s312 + $0x38] sm:$0xff]
      %v1895 = vadd.f32 %v1879, %v1887
      %v1896 = vadd.f32 %v1880, %v1888
      %v1897 = vadd.f32 %v1881, %v1889
      %v1898 = vadd.f32 %v1882, %v1890
      %v1899 = vadd.f32 %v1883, %v1891
      %v1900 = vadd.f32 %v1884, %v1892
      %v1901 = vadd.f32 %v1885, %v1893
      %v1902 = vadd.f32 %v1886, %v1894
      %v1903 = vmax.f32 %v1895, 0.0
      %v1904 = vmax.f32 %v1896, 0.0
      %v1905 = vmax.f32 %v1897, 0.0
      %v1906 = vmax.f32 %v1898, 0.0
      %v1907 = vmax.f32 %v1899, 0.0
      %v1908 = vmax.f32 %v1900, 0.0
      %v1909 = vmax.f32 %v1901, 0.0
      %v1910 = vmax.f32 %v1902, 0.0
      %1911 = vst [vmem:[%s320] sm:$0xff] %v1903
      %1912 = vst [vmem:[%s320 + $0x8] sm:$0xff] %v1904
      %1913 = vst [vmem:[%s320 + $0x10] sm:$0xff] %v1905
      %1914 = vst [vmem:[%s320 + $0x18] sm:$0xff] %v1906
      %1915 = vst [vmem:[%s320 + $0x20] sm:$0xff] %v1907
      %1916 = vst [vmem:[%s320 + $0x28] sm:$0xff] %v1908
      %1917 = vst [vmem:[%s320 + $0x30] sm:$0xff] %v1909
      %1918 = vst [vmem:[%s320 + $0x38] sm:$0xff] %v1910
      %p1919 = scmp.lt.s32.totalorder %s20, 1
      %s1920 = scalar_select %p1919, %s20, 1
      %p1921 = scmp.lt.s32.totalorder %s21, 0
      %s1922 = scalar_select %p1921, %s21, 0
      %s1923 = smul.addr %s1920, 8
      %s1924 = sadd.s32 %s1922, %s1923
      %s1925 = smul.addr %s1924, 8
      %s1926 = scalar_lea.vmem %s5, %s1925
      // Predicated region
      $region41: #{fwd.7} parent=39 // pred_check
        %p1927 = pneg %p180
      $region42: #{fwd.7} parent=39 // pred_check_branch
        %1929 = sbr.rel (%p1927) target = $region44
      $region43: #{fwd.7} parent=39 // pred_region
        _
      $region44: #{fwd.7} parent=39 // pred_fallthru
        _
    $region40: #{fwd.7} parent=5 // pred_fallthru
      _
    %p1930 = scmp.le.s32.totalorder 2, %s11
    // Predicated region
    $region45: #{fwd.7} parent=5 // pred_check
      %p1931 = pneg %p1930
    $region46: #{fwd.7} parent=5 // pred_check_branch
      %1933 = sbr.rel (%p1931) target = $region48
    $region47: #{fwd.7} parent=5 // pred_region
      %s1934 = ssub.s32 %s11, 2
      // Predicated region
      $region49: #{fwd.7} parent=47 // pred_check
        %p1935 = pneg %p186
      $region50: #{fwd.7} parent=47 // pred_check_branch
        %1937 = sbr.rel (%p1935) target = $region52
      $region51: #{fwd.7} parent=47 // pred_region
        %p1938 = scmp.lt.s32.totalorder %s22, 1
        %s1939 = scalar_select %p1938, %s22, 1
        %p1940 = scmp.lt.s32.totalorder %s23, 0
        %s1941 = scalar_select %p1940, %s23, 0
        %s1942 = smul.addr %s1939, 8
        %s1943 = sadd.s32 %s1941, %s1942
        %s1944 = smul.addr %s1943, 8
        %s1945 = scalar_lea.vmem %s5, %s1944
      $region52: #{fwd.7} parent=47 // pred_fallthru
        _
    $region48: #{fwd.7} parent=5 // pred_fallthru
      _
  $region6: #{fwd.7} parent=0 // loop_footer
    %s15 = sadd.s32 1, %s11
  $region7: #{fwd.7} parent=0 // loop_footer_branch
    %10 = sbr.rel target = $region3
  $region8: #{fwd.7} parent=0 // loop_exit
    _

// kernel: fwd.9
$region0: #{fwd.9}
  #allocation0 [shape = 'u32[]', space=smem, size = 0x4, offset = 0x4, fixed_abs, tag = 'smem constant byte address 0x4 - core index']
  #allocation1 [shape = 'u32[144,128]{1,0:T(1,128)}', space=vmem, size = 0x12000, scoped, tag = 'internal scratch']
  %s0 = inlined_call_operand.vmem [shape: bf16[2,1,10,10,128], index: 0, kind: input, shape index: {}]
  %s1 = inlined_call_operand.vmem [shape: bf16[9,128,128], index: 1, kind: input, shape index: {}]
  %s2 = inlined_call_operand.vmem [shape: f32[1,128], index: 2, kind: input, shape index: {}]
  %s3 = inlined_call_operand.vmem [shape: f32[1,128], index: 3, kind: input, shape index: {}]
  %s4 = inlined_call_operand.vmem [shape: f32[2,8,8,128], index: 4, kind: input, shape index: {}]
  %s5 = inlined_call_operand.hbm [shape: f32[2,8,8,128], index: 5, kind: output, shape index: {}]
  %s6 = sld [smem:[#allocation0]]
  $region53: #{fwd.9} parent=0
    _
  %s8 = ssub.s32 1, %s6
  %s9 = scalar_select 0, %s8, %s6
  $region1: #{fwd.9} parent=0
    #allocation2 [shape = 'u8[65536]{0}', space=vmem, size = 0x10000, scoped, tag = 'output window, operand 0']
    #allocation3 [shape = 's32[2]{0}', space=sflag, size = 0x8, scoped, tag = 'scoped memory for fwd.9']
    %10 = vsyncpa [#allocation3], 0
    %s11 = scalar_lea.sflag [#allocation3], 1
    %12 = vsyncpa %s11, 0
    loop: start=0, step=1, limit=4
    $region2: #{fwd.9} parent=1 // loop_pre_header
      _
    $region3: #{fwd.9} parent=1 // loop_header
      %s14 = sphi 0, %s18
      %p15 = scmp.ge.s32.totalorder %s14, 4
      %s21 = sphi 0, %s33
      %s22 = sphi 0, %s29
      %s23 = sphi 0, %s21
      %s24 = sphi 0, %s22
      %s25 = sphi 0, %s23
      %s26 = sphi 0, %s24
      %s36 = sphi 0, %s38
      %s39 = sphi 0, %s36
      %s40 = sphi 0, %s39
      %s56 = sphi 0, %s40
      %s62 = sphi 0, %s64
      %s65 = sphi 0, %s62
      %s66 = sphi 0, %s65
      %s82 = sphi 0, %s66
      %s88 = sphi 0, %s90
      %s91 = sphi 0, %s88
      %s92 = sphi 0, %s91
      %s108 = sphi 0, %s92
      %s114 = sphi 0, %s116
      %s117 = sphi 0, %s114
      %s118 = sphi 0, %s117
      %s134 = sphi 0, %s118
      %s142 = sphi 0, %s144
      %s145 = sphi 0, %s142
      %s146 = sphi 0, %s145
      %s162 = sphi 0, %s146
      %s170 = sphi 0, %s172
      %s173 = sphi 0, %s170
      %s174 = sphi 0, %s173
      %s190 = sphi 0, %s174
    $region4: #{fwd.9} parent=1 // loop_header_branch
      %17 = sbr.rel (%p15) target = $region8
    $region5: #{fwd.9} parent=1 // loop_body
      %s19 = ssub.s32 %s14, 1
      %s20 = ssub.s32 %s14, 2
      %s27 = sadd.s32 1, %s22
      %p28 = scmp.ge.s32.totalorder %s27, 1
      %s29 = scalar_select %p28, 0, %s27
      %s30 = sadd.s32 1, %s21
      %s31 = scalar_select %p28, %s30, %s21
      %p32 = scmp.ge.s32.totalorder %s31, 2
      %s33 = scalar_select %p32, 0, %s31
      %s34 = ssub.s32 %s21, %s33
      %p35 = scmp.eq.s32.totalorder %s34, 0
      %s37 = sadd.s32 %s36, 1
      %s38 = scalar_select %p35, %s36, %s37
      %p41 = pneg %p35
      %p42 = scmp.eq.s32.totalorder %s14, 1
      %p43 = por %p41, %p42
      %p44 = scmp.ne.s32.totalorder %s36, %s39
      %p45 = scmp.eq.s32.totalorder %s14, 0
      %p46 = por %p44, %p45
      %p47 = scmp.ne.s32.totalorder %s36, %s39
      %p48 = scmp.eq.s32.totalorder %s19, 1
      %p49 = por %p47, %p48
      %p50 = scmp.ne.s32.totalorder %s39, %s40
      %p51 = scmp.eq.s32.totalorder %s19, 0
      %p52 = por %p50, %p51
      %p53 = scmp.ne.s32.totalorder %s39, %s40
      %p54 = scmp.eq.s32.totalorder %s20, 1
      %p55 = por %p53, %p54
      %p57 = scmp.ne.s32.totalorder %s40, %s56
      %p58 = scmp.eq.s32.totalorder %s20, 0
      %p59 = por %p57, %p58
      %s60 = ssub.s32 %s22, %s29
      %p61 = scmp.eq.s32.totalorder %s60, 0
      %s63 = sadd.s32 %s62, 1
      %s64 = scalar_select %p61, %s62, %s63
      %p67 = pneg %p61
      %p68 = scmp.eq.s32.totalorder %s14, 1
      %p69 = por %p67, %p68
      %p70 = scmp.ne.s32.totalorder %s62, %s65
      %p71 = scmp.eq.s32.totalorder %s14, 0
      %p72 = por %p70, %p71
      %p73 = scmp.ne.s32.totalorder %s62, %s65
      %p74 = scmp.eq.s32.totalorder %s19, 1
      %p75 = por %p73, %p74
      %p76 = scmp.ne.s32.totalorder %s65, %s66
      %p77 = scmp.eq.s32.totalorder %s19, 0
      %p78 = por %p76, %p77
      %p79 = scmp.ne.s32.totalorder %s65, %s66
      %p80 = scmp.eq.s32.totalorder %s20, 1
      %p81 = por %p79, %p80
      %p83 = scmp.ne.s32.totalorder %s66, %s82
      %p84 = scmp.eq.s32.totalorder %s20, 0
      %p85 = por %p83, %p84
      %s86 = ssub.s32 %s22, %s29
      %p87 = scmp.eq.s32.totalorder %s86, 0
      %s89 = sadd.s32 %s88, 1
      %s90 = scalar_select %p87, %s88, %s89
      %p93 = pneg %p87
      %p94 = scmp.eq.s32.totalorder %s14, 1
      %p95 = por %p93, %p94
      %p96 = scmp.ne.s32.totalorder %s88, %s91
      %p97 = scmp.eq.s32.totalorder %s14, 0
      %p98 = por %p96, %p97
      %p99 = scmp.ne.s32.totalorder %s88, %s91
      %p100 = scmp.eq.s32.totalorder %s19, 1
      %p101 = por %p99, %p100
      %p102 = scmp.ne.s32.totalorder %s91, %s92
      %p103 = scmp.eq.s32.totalorder %s19, 0
      %p104 = por %p102, %p103
      %p105 = scmp.ne.s32.totalorder %s91, %s92
      %p106 = scmp.eq.s32.totalorder %s20, 1
      %p107 = por %p105, %p106
      %p109 = scmp.ne.s32.totalorder %s92, %s108
      %p110 = scmp.eq.s32.totalorder %s20, 0
      %p111 = por %p109, %p110
      %s112 = ssub.s32 %s22, %s29
      %p113 = scmp.eq.s32.totalorder %s112, 0
      %s115 = sadd.s32 %s114, 1
      %s116 = scalar_select %p113, %s114, %s115
      %p119 = pneg %p113
      %p120 = scmp.eq.s32.totalorder %s14, 1
      %p121 = por %p119, %p120
      %p122 = scmp.ne.s32.totalorder %s114, %s117
      %p123 = scmp.eq.s32.totalorder %s14, 0
      %p124 = por %p122, %p123
      %p125 = scmp.ne.s32.totalorder %s114, %s117
      %p126 = scmp.eq.s32.totalorder %s19, 1
      %p127 = por %p125, %p126
      %p128 = scmp.ne.s32.totalorder %s117, %s118
      %p129 = scmp.eq.s32.totalorder %s19, 0
      %p130 = por %p128, %p129
      %p131 = scmp.ne.s32.totalorder %s117, %s118
      %p132 = scmp.eq.s32.totalorder %s20, 1
      %p133 = por %p131, %p132
      %p135 = scmp.ne.s32.totalorder %s118, %s134
      %p136 = scmp.eq.s32.totalorder %s20, 0
      %p137 = por %p135, %p136
      %s138 = ssub.s32 %s21, %s33
      %s139 = ssub.s32 %s22, %s29
      %s140 = sor.u32 %s138, %s139
      %p141 = scmp.eq.s32.totalorder %s140, 0
      %s143 = sadd.s32 %s142, 1
      %s144 = scalar_select %p141, %s142, %s143
      %p147 = pneg %p141
      %p148 = scmp.eq.s32.totalorder %s14, 1
      %p149 = por %p147, %p148
      %p150 = scmp.ne.s32.totalorder %s142, %s145
      %p151 = scmp.eq.s32.totalorder %s14, 0
      %p152 = por %p150, %p151
      %p153 = scmp.ne.s32.totalorder %s142, %s145
      %p154 = scmp.eq.s32.totalorder %s19, 1
      %p155 = por %p153, %p154
      %p156 = scmp.ne.s32.totalorder %s145, %s146
      %p157 = scmp.eq.s32.totalorder %s19, 0
      %p158 = por %p156, %p157
      %p159 = scmp.ne.s32.totalorder %s145, %s146
      %p160 = scmp.eq.s32.totalorder %s20, 1
      %p161 = por %p159, %p160
      %p163 = scmp.ne.s32.totalorder %s146, %s162
      %p164 = scmp.eq.s32.totalorder %s20, 0
      %p165 = por %p163, %p164
      %s166 = ssub.s32 %s21, %s33
      %s167 = ssub.s32 %s22, %s29
      %s168 = sor.u32 %s166, %s167
      %p169 = scmp.eq.s32.totalorder %s168, 0
      %s171 = sadd.s32 %s170, 1
      %s172 = scalar_select %p169, %s170, %s171
      %p175 = pneg %p169
      %p176 = scmp.eq.s32.totalorder %s14, 1
      %p177 = por %p175, %p176
      %p178 = scmp.ne.s32.totalorder %s170, %s173
      %p179 = scmp.eq.s32.totalorder %s14, 0
      %p180 = por %p178, %p179
      %p181 = scmp.ne.s32.totalorder %s170, %s173
      %p182 = scmp.eq.s32.totalorder %s19, 1
      %p183 = por %p181, %p182
      %p184 = scmp.ne.s32.totalorder %s173, %s174
      %p185 = scmp.eq.s32.totalorder %s19, 0
      %p186 = por %p184, %p185
      %p187 = scmp.ne.s32.totalorder %s173, %s174
      %p188 = scmp.eq.s32.totalorder %s20, 1
      %p189 = por %p187, %p188
      %p191 = scmp.ne.s32.totalorder %s174, %s190
      %p192 = scmp.eq.s32.totalorder %s20, 0
      %p193 = por %p191, %p192
      %p194 = scmp.le.s32.totalorder 1, %s14
      %p195 = scmp.lt.s32.totalorder %s14, 3
      %p196 = pnand %p194, %p195
      %p197 = pneg %p196
      // Predicated region
      $region9: #{fwd.9} parent=5 // pred_check
        _
      $region10: #{fwd.9} parent=5 // pred_check_branch
        %199 = sbr.rel (%p196) target = $region12
      $region11: #{fwd.9} parent=5 // pred_region
        %s200 = ssub.s32 %s14, 1
        // Predicated region
        $region13: #{fwd.9} parent=11 // pred_check
          %p201 = pneg %p78
        $region14: #{fwd.9} parent=11 // pred_check_branch
          %203 = sbr.rel (%p201) target = $region16
        $region15: #{fwd.9} parent=11 // pred_region
          %p204 = scmp.lt.s32.totalorder %s24, 0
          %s205 = scalar_select %p204, %s24, 0
          %s206 = smul.addr %s205, 4
          %s207 = scalar_lea.vmem %s1, %s206
        $region16: #{fwd.9} parent=11 // pred_fallthru
          _
        // Predicated region
        $region17: #{fwd.9} parent=11 // pred_check
          %p208 = pneg %p104
        $region18: #{fwd.9} parent=11 // pred_check_branch
          %210 = sbr.rel (%p208) target = $region20
        $region19: #{fwd.9} parent=11 // pred_region
          %p211 = scmp.lt.s32.totalorder %s24, 0
          %s212 = scalar_select %p211, %s24, 0
          %s213 = scalar_lea.vmem %s2, %s212
        $region20: #{fwd.9} parent=11 // pred_fallthru
          _
        // Predicated region
        $region21: #{fwd.9} parent=11 // pred_check
          %p214 = pneg %p130
        $region22: #{fwd.9} parent=11 // pred_check_branch
          %216 = sbr.rel (%p214) target = $region24
        $region23: #{fwd.9} parent=11 // pred_region
          %p217 = scmp.lt.s32.totalorder %s24, 0
          %s218 = scalar_select %p217, %s24, 0
          %s219 = scalar_lea.vmem %s3, %s218
        $region24: #{fwd.9} parent=11 // pred_fallthru
          _
      $region12: #{fwd.9} parent=5 // pred_fallthru
        _
      %p220 = scmp.lt.s32.totalorder %s14, 2
      // Predicated region
      $region25: #{fwd.9} parent=5 // pred_check
        %p221 = pneg %p220
      $region26: #{fwd.9} parent=5 // pred_check_branch
        %223 = sbr.rel (%p221) target = $region28
      $region27: #{fwd.9} parent=5 // pred_region
        // Predicated region
        $region29: #{fwd.9} parent=27 // pred_check
          %p224 = pneg %p46
        $region30: #{fwd.9} parent=27 // pred_check_branch
          %226 = sbr.rel (%p224) target = $region32
        $region31: #{fwd.9} parent=27 // pred_region
          %p227 = scmp.lt.s32.totalorder %s21, 1
          %s228 = scalar_select %p227, %s21, 1
          %s229 = smul.addr %s228, 20
          %s230 = smul.addr %s229, 4
          %s231 = scalar_lea.vmem %s0, %s230
        $region32: #{fwd.9} parent=27 // pred_fallthru
          _
        // Predicated region
        $region33: #{fwd.9} parent=27 // pred_check
          %p232 = pneg %p152
        $region34: #{fwd.9} parent=27 // pred_check_branch
          %234 = sbr.rel (%p232) target = $region36
        $region35: #{fwd.9} parent=27 // pred_region
          %p235 = scmp.lt.s32.totalorder %s21, 1
          %s236 = scalar_select %p235, %s21, 1
          %p237 = scmp.lt.s32.totalorder %s22, 0
          %s238 = scalar_select %p237, %s22, 0
          %s239 = smul.addr %s236, 8
          %s240 = sadd.s32 %s238, %s239
          %s241 = smul.addr %s240, 8
          %s242 = scalar_lea.vmem %s4, %s241
        $region36: #{fwd.9} parent=27 // pred_fallthru
          _
      $region28: #{fwd.9} parent=5 // pred_fallthru
        _
      %p243 = scmp.le.s32.totalorder 1, %s14
      %p244 = scmp.lt.s32.totalorder %s14, 3
      %p245 = pnand %p243, %p244
      %p246 = pneg %p245
      // Predicated region
      $region37: #{fwd.9} parent=5 // pred_check
        _
      $region38: #{fwd.9} parent=5 // pred_check_branch
        %248 = sbr.rel (%p245) target = $region40
      $region39: #{fwd.9} parent=5 // pred_region
        %s249 = ssub.s32 %s14, 1
        %p250 = scmp.lt.s32.totalorder %s23, 1
        %s251 = scalar_select %p250, %s23, 1
        %s252 = smul.addr %s251, 20
        %s253 = smul.addr %s252, 4
        %s254 = scalar_lea.vmem %s0, %s253
        %p255 = pneg %p52
        %p256 = pneg %p49
        %p257 = scmp.lt.s32.totalorder %s24, 0
        %s258 = scalar_select %p257, %s24, 0
        %s259 = smul.addr %s258, 4
        %s260 = scalar_lea.vmem %s1, %s259
        %p261 = pneg %p78
        %p262 = pneg %p75
        %p263 = scmp.lt.s32.totalorder %s24, 0
        %s264 = scalar_select %p263, %s24, 0
        %s265 = scalar_lea.vmem %s2, %s264
        %p266 = pneg %p104
        %p267 = pneg %p101
        %p268 = scmp.lt.s32.totalorder %s24, 0
        %s269 = scalar_select %p268, %s24, 0
        %s270 = scalar_lea.vmem %s3, %s269
        %p271 = pneg %p130
        %p272 = pneg %p127
        %p273 = scmp.lt.s32.totalorder %s23, 1
        %s274 = scalar_select %p273, %s23, 1
        %p275 = scmp.lt.s32.totalorder %s24, 0
        %s276 = scalar_select %p275, %s24, 0
        %s277 = smul.addr %s274, 8
        %s278 = sadd.s32 %s276, %s277
        %s279 = smul.addr %s278, 8
        %s280 = scalar_lea.vmem %s4, %s279
        %p281 = pneg %p158
        %p282 = pneg %p155
        %p283 = pneg %p186
        %p284 = pneg %p183
        %s285 = sand.u32 %s173, 1
        %s286 = scalar_lea.sflag [#allocation3], %s285
        %s287 = sand.u32 %s173, 1
        %s288 = smul.addr %s287, 64
        %s289 = scalar_lea.vmem [#allocation2], %s288
        %p290 = scmp.lt.s32.totalorder %s23, 1
        %s291 = scalar_select %p290, %s23, 1
        %s292 = smul.addr %s291, 20
        %s293 = smul.addr %s292, 4
        %s294 = scalar_lea.vmem %s0, %s293
        %p295 = scmp.lt.s32.totalorder %s24, 0
        %s296 = scalar_select %p295, %s24, 0
        %s297 = smul.addr %s296, 4
        %s298 = scalar_lea.vmem %s1, %s297
        %p299 = scmp.lt.s32.totalorder %s24, 0
        %s300 = scalar_select %p299, %s24, 0
        %s301 = scalar_lea.vmem %s2, %s300
        %p302 = scmp.lt.s32.totalorder %s24, 0
        %s303 = scalar_select %p302, %s24, 0
        %s304 = scalar_lea.vmem %s3, %s303
        %p305 = scmp.lt.s32.totalorder %s23, 1
        %s306 = scalar_select %p305, %s23, 1
        %p307 = scmp.lt.s32.totalorder %s24, 0
        %s308 = scalar_select %p307, %s24, 0
        %s309 = smul.addr %s306, 8
        %s310 = sadd.s32 %s308, %s309
        %s311 = smul.addr %s310, 8
        %s312 = scalar_lea.vmem %s4, %s311
        %v314 = vld [vmem:[%s294] sm:$0xf]
        %v315 = vld [vmem:[%s294 + $0x4] sm:$0x1]
        %v316 = vld [vmem:[%s294 + $0x8] sm:$0xf]
        %v317 = vld [vmem:[%s294 + $0xc] sm:$0x1]
        %v318 = vld [vmem:[%s294 + $0x10] sm:$0xf]
        %v319 = vld [vmem:[%s294 + $0x14] sm:$0x1]
        %v320 = vld [vmem:[%s294 + $0x18] sm:$0xf]
        %v321 = vld [vmem:[%s294 + $0x1c] sm:$0x1]
        %v322 = vld [vmem:[%s294 + $0x20] sm:$0xf]
        %v323 = vld [vmem:[%s294 + $0x24] sm:$0x1]
        %v324 = vld [vmem:[%s294 + $0x28] sm:$0xf]
        %v325 = vld [vmem:[%s294 + $0x2c] sm:$0x1]
        %v326 = vld [vmem:[%s294 + $0x30] sm:$0xf]
        %v327 = vld [vmem:[%s294 + $0x34] sm:$0x1]
        %v328 = vld [vmem:[%s294 + $0x38] sm:$0xf]
        %v329 = vld [vmem:[%s294 + $0x3c] sm:$0x1]
        %v330 = vld [vmem:[%s294 + $0x40] sm:$0xf]
        %v331 = vld [vmem:[%s294 + $0x44] sm:$0x1]
        %v332 = vld [vmem:[%s294 + $0x48] sm:$0xf]
        %v333 = vld [vmem:[%s294 + $0x4c] sm:$0x1]
        %v334 = vld [vmem:[%s298] sm:$0xf]
        %v335 = vld [vmem:[%s298 + $0x4] sm:$0xf]
        %v336 = vld [vmem:[%s298 + $0x8] sm:$0xf]
        %v337 = vld [vmem:[%s298 + $0xc] sm:$0xf]
        %v338 = vld [vmem:[%s298 + $0x10] sm:$0xf]
        %v339 = vld [vmem:[%s298 + $0x14] sm:$0xf]
        %v340 = vld [vmem:[%s298 + $0x18] sm:$0xf]
        %v341 = vld [vmem:[%s298 + $0x1c] sm:$0xf]
        %v342 = vld [vmem:[%s298 + $0x20] sm:$0xf]
        %v343 = vld [vmem:[%s298 + $0x24] sm:$0xf]
        %v344 = vld [vmem:[%s298 + $0x28] sm:$0xf]
        %v345 = vld [vmem:[%s298 + $0x2c] sm:$0xf]
        %v346 = vld [vmem:[%s298 + $0x30] sm:$0xf]
        %v347 = vld [vmem:[%s298 + $0x34] sm:$0xf]
        %v348 = vld [vmem:[%s298 + $0x38] sm:$0xf]
        %v349 = vld [vmem:[%s298 + $0x3c] sm:$0xf]
        %vm350 = vsmask.f32 3328
        %vm351 = vsmask.f32 7440
        %vm352 = vmor %vm350, %vm351
        %v354 = vshrl.u32 %v314, 16
        %v356 = vrot.slane %v354, 4
        %v357 = vshll.u32 %v314, 16
        %v359 = vrot.slane %v357, 5
        %v360 = vor.u32 %v356, %v359
        %v361 = vrot.slane %v360, 4
        %v363 = vshll.u32 %v315, 16
        %v365 = vrot.slane %v363, 5
        %v366 = vsel %vm352, %v361, %v365
        %v368 = vshrl.u32 %v316, 16
        %v370 = vrot.slane %v368, 4
        %v371 = vshll.u32 %v316, 16
        %v373 = vrot.slane %v371, 5
        %v374 = vor.u32 %v370, %v373
        %v375 = vrot.slane %v374, 4
        %v377 = vshll.u32 %v317, 16
        %v379 = vrot.slane %v377, 5
        %v380 = vsel %vm352, %v375, %v379
        %v382 = vshrl.u32 %v318, 16
        %v384 = vrot.slane %v382, 4
        %v385 = vshll.u32 %v318, 16
        %v387 = vrot.slane %v385, 5
        %v388 = vor.u32 %v384, %v387
        %v389 = vrot.slane %v388, 4
        %v391 = vshll.u32 %v319, 16
        %v393 = vrot.slane %v391, 5
        %v394 = vsel %vm352, %v389, %v393
        %v396 = vshrl.u32 %v320, 16
        %v398 = vrot.slane %v396, 4
        %v399 = vshll.u32 %v320, 16
        %v401 = vrot.slane %v399, 5
        %v402 = vor.u32 %v398, %v401
        %v403 = vrot.slane %v402, 4
        %v405 = vshll.u32 %v321, 16
        %v407 = vrot.slane %v405, 5
        %v408 = vsel %vm352, %v403, %v407
        %v410 = vshrl.u32 %v322, 16
        %v412 = vrot.slane %v410, 4
        %v413 = vshll.u32 %v322, 16
        %v415 = vrot.slane %v413, 5
        %v416 = vor.u32 %v412, %v415
        %v417 = vrot.slane %v416, 4
        %v419 = vshll.u32 %v323, 16
        %v421 = vrot.slane %v419, 5
        %v422 = vsel %vm352, %v417, %v421
        %v424 = vshrl.u32 %v324, 16
        %v426 = vrot.slane %v424, 4
        %v427 = vshll.u32 %v324, 16
        %v429 = vrot.slane %v427, 5
        %v430 = vor.u32 %v426, %v429
        %v431 = vrot.slane %v430, 4
        %v433 = vshll.u32 %v325, 16
        %v435 = vrot.slane %v433, 5
        %v436 = vsel %vm352, %v431, %v435
        %v438 = vshrl.u32 %v326, 16
        %v440 = vrot.slane %v438, 4
        %v441 = vshll.u32 %v326, 16
        %v443 = vrot.slane %v441, 5
        %v444 = vor.u32 %v440, %v443
        %v445 = vrot.slane %v444, 4
        %v447 = vshll.u32 %v327, 16
        %v449 = vrot.slane %v447, 5
        %v450 = vsel %vm352, %v445, %v449
        %v452 = vshrl.u32 %v328, 16
        %v454 = vrot.slane %v452, 4
        %v455 = vshll.u32 %v328, 16
        %v457 = vrot.slane %v455, 5
        %v458 = vor.u32 %v454, %v457
        %v459 = vrot.slane %v458, 4
        %v461 = vshll.u32 %v329, 16
        %v463 = vrot.slane %v461, 5
        %v464 = vsel %vm352, %v459, %v463
        %s465 = scalar_lea.vmem %s298, 64
        %v466 = vld [vmem:[%s465] sm:$0xf]
        %v467 = vld [vmem:[%s465 + $0x4] sm:$0xf]
        %v468 = vld [vmem:[%s465 + $0x8] sm:$0xf]
        %v469 = vld [vmem:[%s465 + $0xc] sm:$0xf]
        %v470 = vld [vmem:[%s465 + $0x10] sm:$0xf]
        %v471 = vld [vmem:[%s465 + $0x14] sm:$0xf]
        %v472 = vld [vmem:[%s465 + $0x18] sm:$0xf]
        %v473 = vld [vmem:[%s465 + $0x1c] sm:$0xf]
        %v474 = vld [vmem:[%s465 + $0x20] sm:$0xf]
        %v475 = vld [vmem:[%s465 + $0x24] sm:$0xf]
        %v476 = vld [vmem:[%s465 + $0x28] sm:$0xf]
        %v477 = vld [vmem:[%s465 + $0x2c] sm:$0xf]
        %v478 = vld [vmem:[%s465 + $0x30] sm:$0xf]
        %v479 = vld [vmem:[%s465 + $0x34] sm:$0xf]
        %v480 = vld [vmem:[%s465 + $0x38] sm:$0xf]
        %v481 = vld [vmem:[%s465 + $0x3c] sm:$0xf]
        %v482 = vunpack.c.l.b16 %v366
        %v483 = vunpack.c.l.b16 %v380
        %v484 = vunpack.c.l.b16 %v394
        %v485 = vunpack.c.l.b16 %v408
        %v486 = vunpack.c.l.b16 %v422
        %v487 = vunpack.c.l.b16 %v436
        %v488 = vunpack.c.l.b16 %v450
        %v489 = vunpack.c.l.b16 %v464
        %v490 = vpack.c.b16 %v483, %v482
        %v491 = vpack.c.b16 %v485, %v484
        %v492 = vpack.c.b16 %v487, %v486
        %v493 = vpack.c.b16 %v489, %v488
        %v514 = vunpack.c.l.b16 %v466
        %v515 = vunpack.c.l.b16 %v467
        %v516 = vunpack.c.l.b16 %v468
        %v517 = vunpack.c.l.b16 %v469
        %v518 = vunpack.c.l.b16 %v470
        %v519 = vunpack.c.l.b16 %v471
        %v520 = vunpack.c.l.b16 %v472
        %v521 = vunpack.c.l.b16 %v473
        %v522 = vunpack.c.l.b16 %v474
        %v523 = vunpack.c.l.b16 %v475
        %v524 = vunpack.c.l.b16 %v476
        %v525 = vunpack.c.l.b16 %v477
        %v526 = vunpack.c.l.b16 %v478
        %v527 = vunpack.c.l.b16 %v479
        %v528 = vunpack.c.l.b16 %v480
        %v529 = vunpack.c.l.b16 %v481
        %v530 = vpack.c.b16 %v515, %v514
        %v531 = vpack.c.b16 %v517, %v516
        %v532 = vpack.c.b16 %v519, %v518
        %v533 = vpack.c.b16 %v521, %v520
        %v534 = vpack.c.b16 %v523, %v522
        %v535 = vpack.c.b16 %v525, %v524
        %v536 = vpack.c.b16 %v527, %v526
        %v537 = vpack.c.b16 %v529, %v528
        %546 = vmatprep.subr.bf16.mxu0 0
        %547 = vmatpush1.bf16.msra.mxu0 %v530
        %548 = vmatprep.subr.bf16.mxu0 0
        %549 = vmatpush1.bf16.msra.mxu0 %v531
        %550 = vmatprep.subr.bf16.mxu0 0
        %551 = vmatpush1.bf16.msra.mxu0 %v532
        %552 = vmatprep.subr.bf16.mxu0 0
        %553 = vmatpush1.bf16.msra.mxu0 %v533
        %554 = vmatprep.subr.bf16.mxu0 0
        %555 = vmatpush1.bf16.msra.mxu0 %v534
        %556 = vmatprep.subr.bf16.mxu0 0
        %557 = vmatpush1.bf16.msra.mxu0 %v535
        %558 = vmatprep.subr.bf16.mxu0 0
        %559 = vmatpush1.bf16.msra.mxu0 %v536
        %560 = vmatprep.subr.bf16.mxu0 0
        %561 = vmatpush1.bf16.msra.mxu0 %v537
        %562 = vmatprep.subr.bf16.mxu0 0
        %563 = vmatpush1.bf16.msra.mxu0 0
        %564 = vmatprep.subr.bf16.mxu0 0
        %565 = vmatpush1.bf16.msra.mxu0 0
        %566 = vmatprep.subr.bf16.mxu0 0
        %567 = vmatpush1.bf16.msra.mxu0 0
        %568 = vmatprep.subr.bf16.mxu0 0
        %569 = vmatpush1.bf16.msra.mxu0 0
        %570 = vmatprep.subr.bf16.mxu0 0
        %571 = vmatpush1.bf16.msra.mxu0 0
        %572 = vmatprep.subr.bf16.mxu0 0
        %573 = vmatpush1.bf16.msra.mxu0 0
        %574 = vmatprep.subr.bf16.mxu0 0
        %575 = vmatpush1.bf16.msra.mxu0 0
        %576 = vmatprep.subr.bf16.mxu0 0
        %577 = vmatpush1.bf16.msra.mxu0 0
        %578 = vmatprep.mubr.bf16.mxu0 0
        %579 = vmatmul.mubr.bf16.gmra.mrb[0].mxu0 %v490
        %v580 = vpop.f32.mrb[0].mxu0
        %v581 = vadd.f32 0.0, %v580
        %v582 = vpop.f32.mrb[0].mxu0
        %v583 = vpop.f32.mrb[0].mxu0
        %v584 = vadd.f32 0.0, %v583
        %v585 = vpop.f32.mrb[0].mxu0
        %586 = vmatprep.mubr.bf16.mxu0 0
        %587 = vmatmul.mubr.bf16.gmra.mrb[0].mxu0 %v491
        %v588 = vpop.f32.mrb[0].mxu0
        %v589 = vadd.f32 0.0, %v588
        %v590 = vpop.f32.mrb[0].mxu0
        %v591 = vpop.f32.mrb[0].mxu0
        %v592 = vadd.f32 0.0, %v591
        %v593 = vpop.f32.mrb[0].mxu0
        %594 = vmatprep.mubr.bf16.mxu0 0
        %595 = vmatmul.mubr.bf16.gmra.mrb[0].mxu0 %v492
        %v596 = vpop.f32.mrb[0].mxu0
        %v597 = vadd.f32 0.0, %v596
        %v598 = vpop.f32.mrb[0].mxu0
        %v599 = vpop.f32.mrb[0].mxu0
        %v600 = vadd.f32 0.0, %v599
        %v601 = vpop.f32.mrb[0].mxu0
        %602 = vmatprep.mubr.bf16.mxu0 0
        %603 = vmatmul.mubr.bf16.gmra.mrb[0].mxu0 %v493
        %v604 = vpop.f32.mrb[0].mxu0
        %v605 = vadd.f32 0.0, %v604
        %v606 = vpop.f32.mrb[0].mxu0
        %v607 = vpop.f32.mrb[0].mxu0
        %v608 = vadd.f32 0.0, %v607
        %v609 = vpop.f32.mrb[0].mxu0
        %610 = vdwg.mxu0
        %v619 = vunpack.c.l.b16 %v314
        %v620 = vunpack.c.l.b16 %v316
        %v621 = vunpack.c.l.b16 %v318
        %v622 = vunpack.c.l.b16 %v320
        %v623 = vunpack.c.l.b16 %v322
        %v624 = vunpack.c.l.b16 %v324
        %v625 = vunpack.c.l.b16 %v326
        %v626 = vunpack.c.l.b16 %v328
        %v627 = vpack.c.b16 %v620, %v619
        %v628 = vpack.c.b16 %v622, %v621
        %v629 = vpack.c.b16 %v624, %v623
        %v630 = vpack.c.b16 %v626, %v625
        %v651 = vunpack.c.l.b16 %v334
        %v652 = vunpack.c.l.b16 %v335
        %v653 = vunpack.c.l.b16 %v336
        %v654 = vunpack.c.l.b16 %v337
        %v655 = vunpack.c.l.b16 %v338
        %v656 = vunpack.c.l.b16 %v339
        %v657 = vunpack.c.l.b16 %v340
        %v658 = vunpack.c.l.b16 %v341
        %v659 = vunpack.c.l.b16 %v342
        %v660 = vunpack.c.l.b16 %v343
        %v661 = vunpack.c.l.b16 %v344
        %v662 = vunpack.c.l.b16 %v345
        %v663 = vunpack.c.l.b16 %v346
        %v664 = vunpack.c.l.b16 %v347
        %v665 = vunpack.c.l.b16 %v348
        %v666 = vunpack.c.l.b16 %v349
        %v667 = vpack.c.b16 %v652, %v651
        %v668 = vpack.c.b16 %v654, %v653
        %v669 = vpack.c.b16 %v656, %v655
        %v670 = vpack.c.b16 %v658, %v657
        %v671 = vpack.c.b16 %v660, %v659
        %v672 = vpack.c.b16 %v662, %v661
        %v673 = vpack.c.b16 %v664, %v663
        %v674 = vpack.c.b16 %v666, %v665
        %683 = vmatprep.subr.bf16.mxu0 0
        %684 = vmatpush1.bf16.msra.mxu0 %v667
        %685 = vmatprep.subr.bf16.mxu0 0
        %686 = vmatpush1.bf16.msra.mxu0 %v668
        %687 = vmatprep.subr.bf16.mxu0 0
        %688 = vmatpush1.bf16.msra.mxu0 %v669
        %689 = vmatprep.subr.bf16.mxu0 0
        %690 = vmatpush1.bf16.msra.mxu0 %v670
        %691 = vmatprep.subr.bf16.mxu0 0
        %692 = vmatpush1.bf16.msra.mxu0 %v671
        %693 = vmatprep.subr.bf16.mxu0 0
        %694 = vmatpush1.bf16.msra.mxu0 %v672
        %695 = vmatprep.subr.bf16.mxu0 0
        %696 = vmatpush1.bf16.msra.mxu0 %v673
        %697 = vmatprep.subr.bf16.mxu0 0
        %698 = vmatpush1.bf16.msra.mxu0 %v674
        %699 = vmatprep.subr.bf16.mxu0 0
        %700 = vmatpush1.bf16.msra.mxu0 0
        %701 = vmatprep.subr.bf16.mxu0 0
        %702 = vmatpush1.bf16.msra.mxu0 0
        %703 = vmatprep.subr.bf16.mxu0 0
        %704 = vmatpush1.bf16.msra.mxu0 0
        %705 = vmatprep.subr.bf16.mxu0 0
        %706 = vmatpush1.bf16.msra.mxu0 0
        %707 = vmatprep.subr.bf16.mxu0 0
        %708 = vmatpush1.bf16.msra.mxu0 0
        %709 = vmatprep.subr.bf16.mxu0 0
        %710 = vmatpush1.bf16.msra.mxu0 0
        %711 = vmatprep.subr.bf16.mxu0 0
        %712 = vmatpush1.bf16.msra.mxu0 0
        %713 = vmatprep.subr.bf16.mxu0 0
        %714 = vmatpush1.bf16.msra.mxu0 0
        %715 = vmatprep.mubr.bf16.mxu0 0
        %716 = vmatmul.mubr.bf16.gmra.mrb[0].mxu0 %v627
        %v717 = vpop.f32.mrb[0].mxu0
        %v718 = vadd.f32 %v581, %v717
        %v719 = vpop.f32.mrb[0].mxu0
        %v720 = vpop.f32.mrb[0].mxu0
        %v721 = vadd.f32 %v584, %v720
        %v722 = vpop.f32.mrb[0].mxu0
        %723 = vmatprep.mubr.bf16.mxu0 0
        %724 = vmatmul.mubr.bf16.gmra.mrb[0].mxu0 %v628
        %v725 = vpop.f32.mrb[0].mxu0
        %v726 = vadd.f32 %v589, %v725
        %v727 = vpop.f32.mrb[0].mxu0
        %v728 = vpop.f32.mrb[0].mxu0
        %v729 = vadd.f32 %v592, %v728
        %v730 = vpop.f32.mrb[0].mxu0
        %731 = vmatprep.mubr.bf16.mxu0 0
        %732 = vmatmul.mubr.bf16.gmra.mrb[0].mxu0 %v629
        %v733 = vpop.f32.mrb[0].mxu0
        %v734 = vadd.f32 %v597, %v733
        %v735 = vpop.f32.mrb[0].mxu0
        %v736 = vpop.f32.mrb[0].mxu0
        %v737 = vadd.f32 %v600, %v736
        %v738 = vpop.f32.mrb[0].mxu0
        %739 = vmatprep.mubr.bf16.mxu0 0
        %740 = vmatmul.mubr.bf16.gmra.mrb[0].mxu0 %v630
        %v741 = vpop.f32.mrb[0].mxu0
        %v742 = vadd.f32 %v605, %v741
        %v743 = vpop.f32.mrb[0].mxu0
        %v744 = vpop.f32.mrb[0].mxu0
        %v745 = vadd.f32 %v608, %v744
        %v746 = vpop.f32.mrb[0].mxu0
        %747 = vdwg.mxu0
        %vm756 = vcmask 1042432
        %vm757 = vcmask 1046532
        %vm758 = vmor %vm756, %vm757
        %v759 = vrot.slane %v314, 5
        %v760 = vrot.slane %v759, 4
        %v761 = vrot.slane %v315, 5
        %v762 = vsel %vm758, %v760, %v761
        %v763 = vrot.slane %v316, 5
        %v764 = vrot.slane %v763, 4
        %v765 = vrot.slane %v317, 5
        %v766 = vsel %vm758, %v764, %v765
        %v767 = vrot.slane %v318, 5
        %v768 = vrot.slane %v767, 4
        %v769 = vrot.slane %v319, 5
        %v770 = vsel %vm758, %v768, %v769
        %v771 = vrot.slane %v320, 5
        %v772 = vrot.slane %v771, 4
        %v773 = vrot.slane %v321, 5
        %v774 = vsel %vm758, %v772, %v773
        %v775 = vrot.slane %v322, 5
        %v776 = vrot.slane %v775, 4
        %v777 = vrot.slane %v323, 5
        %v778 = vsel %vm758, %v776, %v777
        %v779 = vrot.slane %v324, 5
        %v780 = vrot.slane %v779, 4
        %v781 = vrot.slane %v325, 5
        %v782 = vsel %vm758, %v780, %v781
        %v783 = vrot.slane %v326, 5
        %v784 = vrot.slane %v783, 4
        %v785 = vrot.slane %v327, 5
        %v786 = vsel %vm758, %v784, %v785
        %v787 = vrot.slane %v328, 5
        %v788 = vrot.slane %v787, 4
        %v789 = vrot.slane %v329, 5
        %v790 = vsel %vm758, %v788, %v789
        %s791 = scalar_lea.vmem %s298, 128
        %v792 = vld [vmem:[%s791] sm:$0xf]
        %v793 = vld [vmem:[%s791 + $0x4] sm:$0xf]
        %v794 = vld [vmem:[%s791 + $0x8] sm:$0xf]
        %v795 = vld [vmem:[%s791 + $0xc] sm:$0xf]
        %v796 = vld [vmem:[%s791 + $0x10] sm:$0xf]
        %v797 = vld [vmem:[%s791 + $0x14] sm:$0xf]
        %v798 = vld [vmem:[%s791 + $0x18] sm:$0xf]
        %v799 = vld [vmem:[%s791 + $0x1c] sm:$0xf]
        %v800 = vld [vmem:[%s791 + $0x20] sm:$0xf]
        %v801 = vld [vmem:[%s791 + $0x24] sm:$0xf]
        %v802 = vld [vmem:[%s791 + $0x28] sm:$0xf]
        %v803 = vld [vmem:[%s791 + $0x2c] sm:$0xf]
        %v804 = vld [vmem:[%s791 + $0x30] sm:$0xf]
        %v805 = vld [vmem:[%s791 + $0x34] sm:$0xf]
        %v806 = vld [vmem:[%s791 + $0x38] sm:$0xf]
        %v807 = vld [vmem:[%s791 + $0x3c] sm:$0xf]
        %v808 = vunpack.c.l.b16 %v762
        %v809 = vunpack.c.l.b16 %v766
        %v810 = vunpack.c.l.b16 %v770
        %v811 = vunpack.c.l.b16 %v774
        %v812 = vunpack.c.l.b16 %v778
        %v813 = vunpack.c.l.b16 %v782
        %v814 = vunpack.c.l.b16 %v786
        %v815 = vunpack.c.l.b16 %v790
        %v816 = vpack.c.b16 %v809, %v808
        %v817 = vpack.c.b16 %v811, %v810
        %v818 = vpack.c.b16 %v813, %v812
        %v819 = vpack.c.b16 %v815, %v814
        %v840 = vunpack.c.l.b16 %v792
        %v841 = vunpack.c.l.b16 %v793
        %v842 = vunpack.c.l.b16 %v794
        %v843 = vunpack.c.l.b16 %v795
        %v844 = vunpack.c.l.b16 %v796
        %v845 = vunpack.c.l.b16 %v797
        %v846 = vunpack.c.l.b16 %v798
        %v847 = vunpack.c.l.b16 %v799
        %v848 = vunpack.c.l.b16 %v800
        %v849 = vunpack.c.l.b16 %v801
        %v850 = vunpack.c.l.b16 %v802
        %v851 = vunpack.c.l.b16 %v803
        %v852 = vunpack.c.l.b16 %v804
        %v853 = vunpack.c.l.b16 %v805
        %v854 = vunpack.c.l.b16 %v806
        %v855 = vunpack.c.l.b16 %v807
        %v856 = vpack.c.b16 %v841, %v840
        %v857 = vpack.c.b16 %v843, %v842
        %v858 = vpack.c.b16 %v845, %v844
        %v859 = vpack.c.b16 %v847, %v846
        %v860 = vpack.c.b16 %v849, %v848
        %v861 = vpack.c.b16 %v851, %v850
        %v862 = vpack.c.b16 %v853, %v852
        %v863 = vpack.c.b16 %v855, %v854
        %872 = vmatprep.subr.bf16.mxu0 0
        %873 = vmatpush1.bf16.msra.mxu0 %v856
        %874 = vmatprep.subr.bf16.mxu0 0
        %875 = vmatpush1.bf16.msra.mxu0 %v857
        %876 = vmatprep.subr.bf16.mxu0 0
        %877 = vmatpush1.bf16.msra.mxu0 %v858
        %878 = vmatprep.subr.bf16.mxu0 0
        %879 = vmatpush1.bf16.msra.mxu0 %v859
        %880 = vmatprep.subr.bf16.mxu0 0
        %881 = vmatpush1.bf16.msra.mxu0 %v860
        %882 = vmatprep.subr.bf16.mxu0 0
        %883 = vmatpush1.bf16.msra.mxu0 %v861
        %884 = vmatprep.subr.bf16.mxu0 0
        %885 = vmatpush1.bf16.msra.mxu0 %v862
        %886 = vmatprep.subr.bf16.mxu0 0
        %887 = vmatpush1.bf16.msra.mxu0 %v863
        %888 = vmatprep.subr.bf16.mxu0 0
        %889 = vmatpush1.bf16.msra.mxu0 0
        %890 = vmatprep.subr.bf16.mxu0 0
        %891 = vmatpush1.bf16.msra.mxu0 0
        %892 = vmatprep.subr.bf16.mxu0 0
        %893 = vmatpush1.bf16.msra.mxu0 0
        %894 = vmatprep.subr.bf16.mxu0 0
        %895 = vmatpush1.bf16.msra.mxu0 0
        %896 = vmatprep.subr.bf16.mxu0 0
        %897 = vmatpush1.bf16.msra.mxu0 0
        %898 = vmatprep.subr.bf16.mxu0 0
        %899 = vmatpush1.bf16.msra.mxu0 0
        %900 = vmatprep.subr.bf16.mxu0 0
        %901 = vmatpush1.bf16.msra.mxu0 0
        %902 = vmatprep.subr.bf16.mxu0 0
        %903 = vmatpush1.bf16.msra.mxu0 0
        %904 = vmatprep.mubr.bf16.mxu0 0
        %905 = vmatmul.mubr.bf16.gmra.mrb[0].mxu0 %v816
        %v906 = vpop.f32.mrb[0].mxu0
        %v907 = vadd.f32 0.0, %v906
        %v908 = vpop.f32.mrb[0].mxu0
        %v909 = vpop.f32.mrb[0].mxu0
        %v910 = vadd.f32 0.0, %v909
        %v911 = vpop.f32.mrb[0].mxu0
        %912 = vmatprep.mubr.bf16.mxu0 0
        %913 = vmatmul.mubr.bf16.gmra.mrb[0].mxu0 %v817
        %v914 = vpop.f32.mrb[0].mxu0
        %v915 = vadd.f32 0.0, %v914
        %v916 = vpop.f32.mrb[0].mxu0
        %v917 = vpop.f32.mrb[0].mxu0
        %v918 = vadd.f32 0.0, %v917
        %v919 = vpop.f32.mrb[0].mxu0
        %920 = vmatprep.mubr.bf16.mxu0 0
        %921 = vmatmul.mubr.bf16.gmra.mrb[0].mxu0 %v818
        %v922 = vpop.f32.mrb[0].mxu0
        %v923 = vadd.f32 0.0, %v922
        %v924 = vpop.f32.mrb[0].mxu0
        %v925 = vpop.f32.mrb[0].mxu0
        %v926 = vadd.f32 0.0, %v925
        %v927 = vpop.f32.mrb[0].mxu0
        %928 = vmatprep.mubr.bf16.mxu0 0
        %929 = vmatmul.mubr.bf16.gmra.mrb[0].mxu0 %v819
        %v930 = vpop.f32.mrb[0].mxu0
        %v931 = vadd.f32 0.0, %v930
        %v932 = vpop.f32.mrb[0].mxu0
        %v933 = vpop.f32.mrb[0].mxu0
        %v934 = vadd.f32 0.0, %v933
        %v935 = vpop.f32.mrb[0].mxu0
        %936 = vdwg.mxu0
        %v937 = vadd.f32 %v718, %v907
        %v938 = vadd.f32 %v721, %v910
        %v939 = vadd.f32 %v726, %v915
        %v940 = vadd.f32 %v729, %v918
        %v941 = vadd.f32 %v734, %v923
        %v942 = vadd.f32 %v737, %v926
        %v943 = vadd.f32 %v742, %v931
        %v944 = vadd.f32 %v745, %v934
        %s945 = scalar_lea.vmem %s298, 192
        %v946 = vld [vmem:[%s945] sm:$0xf]
        %v947 = vld [vmem:[%s945 + $0x4] sm:$0xf]
        %v948 = vld [vmem:[%s945 + $0x8] sm:$0xf]
        %v949 = vld [vmem:[%s945 + $0xc] sm:$0xf]
        %v950 = vld [vmem:[%s945 + $0x10] sm:$0xf]
        %v951 = vld [vmem:[%s945 + $0x14] sm:$0xf]
        %v952 = vld [vmem:[%s945 + $0x18] sm:$0xf]
        %v953 = vld [vmem:[%s945 + $0x1c] sm:$0xf]
        %v954 = vld [vmem:[%s945 + $0x20] sm:$0xf]
        %v955 = vld [vmem:[%s945 + $0x24] sm:$0xf]
        %v956 = vld [vmem:[%s945 + $0x28] sm:$0xf]
        %v957 = vld [vmem:[%s945 + $0x2c] sm:$0xf]
        %v958 = vld [vmem:[%s945 + $0x30] sm:$0xf]
        %v959 = vld [vmem:[%s945 + $0x34] sm:$0xf]
        %v960 = vld [vmem:[%s945 + $0x38] sm:$0xf]
        %v961 = vld [vmem:[%s945 + $0x3c] sm:$0xf]
        %v963 = vunpack.c.l.b16 %v330
        %v964 = vpack.c.b16 %v621, %v620
        %v965 = vpack.c.b16 %v623, %v622
        %v966 = vpack.c.b16 %v625, %v624
        %v967 = vpack.c.b16 %v963, %v626
        %v988 = vunpack.c.l.b16 %v946
        %v989 = vunpack.c.l.b16 %v947
        %v990 = vunpack.c.l.b16 %v948
        %v991 = vunpack.c.l.b16 %v949
        %v992 = vunpack.c.l.b16 %v950
        %v993 = vunpack.c.l.b16 %v951
        %v994 = vunpack.c.l.b16 %v952
        %v995 = vunpack.c.l.b16 %v953
        %v996 = vunpack.c.l.b16 %v954
        %v997 = vunpack.c.l.b16 %v955
        %v998 = vunpack.c.l.b16 %v956
        %v999 = vunpack.c.l.b16 %v957
        %v1000 = vunpack.c.l.b16 %v958
        %v1001 = vunpack.c.l.b16 %v959
        %v1002 = vunpack.c.l.b16 %v960
        %v1003 = vunpack.c.l.b16 %v961
        %v1004 = vpack.c.b16 %v989, %v988
        %v1005 = vpack.c.b16 %v991, %v990
        %v1006 = vpack.c.b16 %v993, %v992
        %v1007 = vpack.c.b16 %v995, %v994
        %v1008 = vpack.c.b16 %v997, %v996
        %v1009 = vpack.c.b16 %v999, %v998
        %v1010 = vpack.c.b16 %v1001, %v1000
        %v1011 = vpack.c.b16 %v1003, %v1002
        %1020 = vmatprep.subr.bf16.mxu0 0
        %1021 = vmatpush1.bf16.msra.mxu0 %v1004
        %1022 = vmatprep.subr.bf16.mxu0 0
        %1023 = vmatpush1.bf16.msra.mxu0 %v1005
        %1024 = vmatprep.subr.bf16.mxu0 0
        %1025 = vmatpush1.bf16.msra.mxu0 %v1006
        %1026 = vmatprep.subr.bf16.mxu0 0
        %1027 = vmatpush1.bf16.msra.mxu0 %v1007
        %1028 = vmatprep.subr.bf16.mxu0 0
        %1029 = vmatpush1.bf16.msra.mxu0 %v1008
        %1030 = vmatprep.subr.bf16.mxu0 0
        %1031 = vmatpush1.bf16.msra.mxu0 %v1009
        %1032 = vmatprep.subr.bf16.mxu0 0
        %1033 = vmatpush1.bf16.msra.mxu0 %v1010
        %1034 = vmatprep.subr.bf16.mxu0 0
        %1035 = vmatpush1.bf16.msra.mxu0 %v1011
        %1036 = vmatprep.subr.bf16.mxu0 0
        %1037 = vmatpush1.bf16.msra.mxu0 0
        %1038 = vmatprep.subr.bf16.mxu0 0
        %1039 = vmatpush1.bf16.msra.mxu0 0
        %1040 = vmatprep.subr.bf16.mxu0 0
        %1041 = vmatpush1.bf16.msra.mxu0 0
        %1042 = vmatprep.subr.bf16.mxu0 0
        %1043 = vmatpush1.bf16.msra.mxu0 0
        %1044 = vmatprep.subr.bf16.mxu0 0
        %1045 = vmatpush1.bf16.msra.mxu0 0
        %1046 = vmatprep.subr.bf16.mxu0 0
        %1047 = vmatpush1.bf16.msra.mxu0 0
        %1048 = vmatprep.subr.bf16.mxu0 0
        %1049 = vmatpush1.bf16.msra.mxu0 0
        %1050 = vmatprep.subr.bf16.mxu0 0
        %1051 = vmatpush1.bf16.msra.mxu0 0
        %1052 = vmatprep.mubr.bf16.mxu0 0
        %1053 = vmatmul.mubr.bf16.gmra.mrb[0].mxu0 %v964
        %v1054 = vpop.f32.mrb[0].mxu0
        %v1055 = vadd.f32 0.0, %v1054
        %v1056 = vpop.f32.mrb[0].mxu0
        %v1057 = vpop.f32.mrb[0].mxu0
        %v1058 = vadd.f32 0.0, %v1057
        %v1059 = vpop.f32.mrb[0].mxu0
        %1060 = vmatprep.mubr.bf16.mxu0 0
        %1061 = vmatmul.mubr.bf16.gmra.mrb[0].mxu0 %v965
        %v1062 = vpop.f32.mrb[0].mxu0
        %v1063 = vadd.f32 0.0, %v1062
        %v1064 = vpop.f32.mrb[0].mxu0
        %v1065 = vpop.f32.mrb[0].mxu0
        %v1066 = vadd.f32 0.0, %v1065
        %v1067 = vpop.f32.mrb[0].mxu0
        %1068 = vmatprep.mubr.bf16.mxu0 0
        %1069 = vmatmul.mubr.bf16.gmra.mrb[0].mxu0 %v966
        %v1070 = vpop.f32.mrb[0].mxu0
        %v1071 = vadd.f32 0.0, %v1070
        %v1072 = vpop.f32.mrb[0].mxu0
        %v1073 = vpop.f32.mrb[0].mxu0
        %v1074 = vadd.f32 0.0, %v1073
        %v1075 = vpop.f32.mrb[0].mxu0
        %1076 = vmatprep.mubr.bf16.mxu0 0
        %1077 = vmatmul.mubr.bf16.gmra.mrb[0].mxu0 %v967
        %v1078 = vpop.f32.mrb[0].mxu0
        %v1079 = vadd.f32 0.0, %v1078
        %v1080 = vpop.f32.mrb[0].mxu0
        %v1081 = vpop.f32.mrb[0].mxu0
        %v1082 = vadd.f32 0.0, %v1081
        %v1083 = vpop.f32.mrb[0].mxu0
        %1084 = vdwg.mxu0
        %v1085 = vadd.f32 %v937, %v1055
        %v1086 = vadd.f32 %v938, %v1058
        %v1087 = vadd.f32 %v939, %v1063
        %v1088 = vadd.f32 %v940, %v1066
        %v1089 = vadd.f32 %v941, %v1071
        %v1090 = vadd.f32 %v942, %v1074
        %v1091 = vadd.f32 %v943, %v1079
        %v1092 = vadd.f32 %v944, %v1082
        %v1094 = vshrl.u32 %v330, 16
        %v1096 = vrot.slane %v1094, 4
        %v1097 = vshll.u32 %v330, 16
        %v1099 = vrot.slane %v1097, 5
        %v1100 = vor.u32 %v1096, %v1099
        %v1101 = vrot.slane %v1100, 4
        %v1103 = vshll.u32 %v331, 16
        %v1105 = vrot.slane %v1103, 5
        %v1106 = vsel %vm352, %v1101, %v1105
        %s1107 = scalar_lea.vmem %s298, 256
        %v1108 = vld [vmem:[%s1107] sm:$0xf]
        %v1109 = vld [vmem:[%s1107 + $0x4] sm:$0xf]
        %v1110 = vld [vmem:[%s1107 + $0x8] sm:$0xf]
        %v1111 = vld [vmem:[%s1107 + $0xc] sm:$0xf]
        %v1112 = vld [vmem:[%s1107 + $0x10] sm:$0xf]
        %v1113 = vld [vmem:[%s1107 + $0x14] sm:$0xf]
        %v1114 = vld [vmem:[%s1107 + $0x18] sm:$0xf]
        %v1115 = vld [vmem:[%s1107 + $0x1c] sm:$0xf]
        %v1116 = vld [vmem:[%s1107 + $0x20] sm:$0xf]
        %v1117 = vld [vmem:[%s1107 + $0x24] sm:$0xf]
        %v1118 = vld [vmem:[%s1107 + $0x28] sm:$0xf]
        %v1119 = vld [vmem:[%s1107 + $0x2c] sm:$0xf]
        %v1120 = vld [vmem:[%s1107 + $0x30] sm:$0xf]
        %v1121 = vld [vmem:[%s1107 + $0x34] sm:$0xf]
        %v1122 = vld [vmem:[%s1107 + $0x38] sm:$0xf]
        %v1123 = vld [vmem:[%s1107 + $0x3c] sm:$0xf]
        %v1124 = vunpack.c.l.b16 %v1106
        %v1125 = vpack.c.b16 %v484, %v483
        %v1126 = vpack.c.b16 %v486, %v485
        %v1127 = vpack.c.b16 %v488, %v487
        %v1128 = vpack.c.b16 %v1124, %v489
        %v1149 = vunpack.c.l.b16 %v1108
        %v1150 = vunpack.c.l.b16 %v1109
        %v1151 = vunpack.c.l.b16 %v1110
        %v1152 = vunpack.c.l.b16 %v1111
        %v1153 = vunpack.c.l.b16 %v1112
        %v1154 = vunpack.c.l.b16 %v1113
        %v1155 = vunpack.c.l.b16 %v1114
        %v1156 = vunpack.c.l.b16 %v1115
        %v1157 = vunpack.c.l.b16 %v1116
        %v1158 = vunpack.c.l.b16 %v1117
        %v1159 = vunpack.c.l.b16 %v1118
        %v1160 = vunpack.c.l.b16 %v1119
        %v1161 = vunpack.c.l.b16 %v1120
        %v1162 = vunpack.c.l.b16 %v1121
        %v1163 = vunpack.c.l.b16 %v1122
        %v1164 = vunpack.c.l.b16 %v1123
        %v1165 = vpack.c.b16 %v1150, %v1149
        %v1166 = vpack.c.b16 %v1152, %v1151
        %v1167 = vpack.c.b16 %v1154, %v1153
        %v1168 = vpack.c.b16 %v1156, %v1155
        %v1169 = vpack.c.b16 %v1158, %v1157
        %v1170 = vpack.c.b16 %v1160, %v1159
        %v1171 = vpack.c.b16 %v1162, %v1161
        %v1172 = vpack.c.b16 %v1164, %v1163
        %1181 = vmatprep.subr.bf16.mxu0 0
        %1182 = vmatpush1.bf16.msra.mxu0 %v1165
        %1183 = vmatprep.subr.bf16.mxu0 0
        %1184 = vmatpush1.bf16.msra.mxu0 %v1166
        %1185 = vmatprep.subr.bf16.mxu0 0
        %1186 = vmatpush1.bf16.msra.mxu0 %v1167
        %1187 = vmatprep.subr.bf16.mxu0 0
        %1188 = vmatpush1.bf16.msra.mxu0 %v1168
        %1189 = vmatprep.subr.bf16.mxu0 0
        %1190 = vmatpush1.bf16.msra.mxu0 %v1169
        %1191 = vmatprep.subr.bf16.mxu0 0
        %1192 = vmatpush1.bf16.msra.mxu0 %v1170
        %1193 = vmatprep.subr.bf16.mxu0 0
        %1194 = vmatpush1.bf16.msra.mxu0 %v1171
        %1195 = vmatprep.subr.bf16.mxu0 0
        %1196 = vmatpush1.bf16.msra.mxu0 %v1172
        %1197 = vmatprep.subr.bf16.mxu0 0
        %1198 = vmatpush1.bf16.msra.mxu0 0
        %1199 = vmatprep.subr.bf16.mxu0 0
        %1200 = vmatpush1.bf16.msra.mxu0 0
        %1201 = vmatprep.subr.bf16.mxu0 0
        %1202 = vmatpush1.bf16.msra.mxu0 0
        %1203 = vmatprep.subr.bf16.mxu0 0
        %1204 = vmatpush1.bf16.msra.mxu0 0
        %1205 = vmatprep.subr.bf16.mxu0 0
        %1206 = vmatpush1.bf16.msra.mxu0 0
        %1207 = vmatprep.subr.bf16.mxu0 0
        %1208 = vmatpush1.bf16.msra.mxu0 0
        %1209 = vmatprep.subr.bf16.mxu0 0
        %1210 = vmatpush1.bf16.msra.mxu0 0
        %1211 = vmatprep.subr.bf16.mxu0 0
        %1212 = vmatpush1.bf16.msra.mxu0 0
        %1213 = vmatprep.mubr.bf16.mxu0 0
        %1214 = vmatmul.mubr.bf16.gmra.mrb[0].mxu0 %v1125
        %v1215 = vpop.f32.mrb[0].mxu0
        %v1216 = vadd.f32 0.0, %v1215
        %v1217 = vpop.f32.mrb[0].mxu0
        %v1218 = vpop.f32.mrb[0].mxu0
        %v1219 = vadd.f32 0.0, %v1218
        %v1220 = vpop.f32.mrb[0].mxu0
        %1221 = vmatprep.mubr.bf16.mxu0 0
        %1222 = vmatmul.mubr.bf16.gmra.mrb[0].mxu0 %v1126
        %v1223 = vpop.f32.mrb[0].mxu0
        %v1224 = vadd.f32 0.0, %v1223
        %v1225 = vpop.f32.mrb[0].mxu0
        %v1226 = vpop.f32.mrb[0].mxu0
        %v1227 = vadd.f32 0.0, %v1226
        %v1228 = vpop.f32.mrb[0].mxu0
        %1229 = vmatprep.mubr.bf16.mxu0 0
        %1230 = vmatmul.mubr.bf16.gmra.mrb[0].mxu0 %v1127
        %v1231 = vpop.f32.mrb[0].mxu0
        %v1232 = vadd.f32 0.0, %v1231
        %v1233 = vpop.f32.mrb[0].mxu0
        %v1234 = vpop.f32.mrb[0].mxu0
        %v1235 = vadd.f32 0.0, %v1234
        %v1236 = vpop.f32.mrb[0].mxu0
        %1237 = vmatprep.mubr.bf16.mxu0 0
        %1238 = vmatmul.mubr.bf16.gmra.mrb[0].mxu0 %v1128
        %v1239 = vpop.f32.mrb[0].mxu0
        %v1240 = vadd.f32 0.0, %v1239
        %v1241 = vpop.f32.mrb[0].mxu0
        %v1242 = vpop.f32.mrb[0].mxu0
        %v1243 = vadd.f32 0.0, %v1242
        %v1244 = vpop.f32.mrb[0].mxu0
        %1245 = vdwg.mxu0
        %v1246 = vadd.f32 %v1085, %v1216
        %v1247 = vadd.f32 %v1086, %v1219
        %v1248 = vadd.f32 %v1087, %v1224
        %v1249 = vadd.f32 %v1088, %v1227
        %v1250 = vadd.f32 %v1089, %v1232
        %v1251 = vadd.f32 %v1090, %v1235
        %v1252 = vadd.f32 %v1091, %v1240
        %v1253 = vadd.f32 %v1092, %v1243
        %v1255 = vrot.slane %v330, 5
        %v1256 = vrot.slane %v1255, 4
        %v1257 = vrot.slane %v331, 5
        %v1258 = vsel %vm758, %v1256, %v1257
        %s1259 = scalar_lea.vmem %s298, 320
        %v1260 = vld [vmem:[%s1259] sm:$0xf]
        %v1261 = vld [vmem:[%s1259 + $0x4] sm:$0xf]
        %v1262 = vld [vmem:[%s1259 + $0x8] sm:$0xf]
        %v1263 = vld [vmem:[%s1259 + $0xc] sm:$0xf]
        %v1264 = vld [vmem:[%s1259 + $0x10] sm:$0xf]
        %v1265 = vld [vmem:[%s1259 + $0x14] sm:$0xf]
        %v1266 = vld [vmem:[%s1259 + $0x18] sm:$0xf]
        %v1267 = vld [vmem:[%s1259 + $0x1c] sm:$0xf]
        %v1268 = vld [vmem:[%s1259 + $0x20] sm:$0xf]
        %v1269 = vld [vmem:[%s1259 + $0x24] sm:$0xf]
        %v1270 = vld [vmem:[%s1259 + $0x28] sm:$0xf]
        %v1271 = vld [vmem:[%s1259 + $0x2c] sm:$0xf]
        %v1272 = vld [vmem:[%s1259 + $0x30] sm:$0xf]
        %v1273 = vld [vmem:[%s1259 + $0x34] sm:$0xf]
        %v1274 = vld [vmem:[%s1259 + $0x38] sm:$0xf]
        %v1275 = vld [vmem:[%s1259 + $0x3c] sm:$0xf]
        %v1276 = vunpack.c.l.b16 %v1258
        %v1277 = vpack.c.b16 %v810, %v809
        %v1278 = vpack.c.b16 %v812, %v811
        %v1279 = vpack.c.b16 %v814, %v813
        %v1280 = vpack.c.b16 %v1276, %v815
        %v1301 = vunpack.c.l.b16 %v1260
        %v1302 = vunpack.c.l.b16 %v1261
        %v1303 = vunpack.c.l.b16 %v1262
        %v1304 = vunpack.c.l.b16 %v1263
        %v1305 = vunpack.c.l.b16 %v1264
        %v1306 = vunpack.c.l.b16 %v1265
        %v1307 = vunpack.c.l.b16 %v1266
        %v1308 = vunpack.c.l.b16 %v1267
        %v1309 = vunpack.c.l.b16 %v1268
        %v1310 = vunpack.c.l.b16 %v1269
        %v1311 = vunpack.c.l.b16 %v1270
        %v1312 = vunpack.c.l.b16 %v1271
        %v1313 = vunpack.c.l.b16 %v1272
        %v1314 = vunpack.c.l.b16 %v1273
        %v1315 = vunpack.c.l.b16 %v1274
        %v1316 = vunpack.c.l.b16 %v1275
        %v1317 = vpack.c.b16 %v1302, %v1301
        %v1318 = vpack.c.b16 %v1304, %v1303
        %v1319 = vpack.c.b16 %v1306, %v1305
        %v1320 = vpack.c.b16 %v1308, %v1307
        %v1321 = vpack.c.b16 %v1310, %v1309
        %v1322 = vpack.c.b16 %v1312, %v1311
        %v1323 = vpack.c.b16 %v1314, %v1313
        %v1324 = vpack.c.b16 %v1316, %v1315
        %1333 = vmatprep.subr.bf16.mxu0 0
        %1334 = vmatpush1.bf16.msra.mxu0 %v1317
        %1335 = vmatprep.subr.bf16.mxu0 0
        %1336 = vmatpush1.bf16.msra.mxu0 %v1318
        %1337 = vmatprep.subr.bf16.mxu0 0
        %1338 = vmatpush1.bf16.msra.mxu0 %v1319
        %1339 = vmatprep.subr.bf16.mxu0 0
        %1340 = vmatpush1.bf16.msra.mxu0 %v1320
        %1341 = vmatprep.subr.bf16.mxu0 0
        %1342 = vmatpush1.bf16.msra.mxu0 %v1321
        %1343 = vmatprep.subr.bf16.mxu0 0
        %1344 = vmatpush1.bf16.msra.mxu0 %v1322
        %1345 = vmatprep.subr.bf16.mxu0 0
        %1346 = vmatpush1.bf16.msra.mxu0 %v1323
        %1347 = vmatprep.subr.bf16.mxu0 0
        %1348 = vmatpush1.bf16.msra.mxu0 %v1324
        %1349 = vmatprep.subr.bf16.mxu0 0
        %1350 = vmatpush1.bf16.msra.mxu0 0
        %1351 = vmatprep.subr.bf16.mxu0 0
        %1352 = vmatpush1.bf16.msra.mxu0 0
        %1353 = vmatprep.subr.bf16.mxu0 0
        %1354 = vmatpush1.bf16.msra.mxu0 0
        %1355 = vmatprep.subr.bf16.mxu0 0
        %1356 = vmatpush1.bf16.msra.mxu0 0
        %1357 = vmatprep.subr.bf16.mxu0 0
        %1358 = vmatpush1.bf16.msra.mxu0 0
        %1359 = vmatprep.subr.bf16.mxu0 0
        %1360 = vmatpush1.bf16.msra.mxu0 0
        %1361 = vmatprep.subr.bf16.mxu0 0
        %1362 = vmatpush1.bf16.msra.mxu0 0
        %1363 = vmatprep.subr.bf16.mxu0 0
        %1364 = vmatpush1.bf16.msra.mxu0 0
        %1365 = vmatprep.mubr.bf16.mxu0 0
        %1366 = vmatmul.mubr.bf16.gmra.mrb[0].mxu0 %v1277
        %v1367 = vpop.f32.mrb[0].mxu0
        %v1368 = vadd.f32 0.0, %v1367
        %v1369 = vpop.f32.mrb[0].mxu0
        %v1370 = vpop.f32.mrb[0].mxu0
        %v1371 = vadd.f32 0.0, %v1370
        %v1372 = vpop.f32.mrb[0].mxu0
        %1373 = vmatprep.mubr.bf16.mxu0 0
        %1374 = vmatmul.mubr.bf16.gmra.mrb[0].mxu0 %v1278
        %v1375 = vpop.f32.mrb[0].mxu0
        %v1376 = vadd.f32 0.0, %v1375
        %v1377 = vpop.f32.mrb[0].mxu0
        %v1378 = vpop.f32.mrb[0].mxu0
        %v1379 = vadd.f32 0.0, %v1378
        %v1380 = vpop.f32.mrb[0].mxu0
        %1381 = vmatprep.mubr.bf16.mxu0 0
        %1382 = vmatmul.mubr.bf16.gmra.mrb[0].mxu0 %v1279
        %v1383 = vpop.f32.mrb[0].mxu0
        %v1384 = vadd.f32 0.0, %v1383
        %v1385 = vpop.f32.mrb[0].mxu0
        %v1386 = vpop.f32.mrb[0].mxu0
        %v1387 = vadd.f32 0.0, %v1386
        %v1388 = vpop.f32.mrb[0].mxu0
        %1389 = vmatprep.mubr.bf16.mxu0 0
        %1390 = vmatmul.mubr.bf16.gmra.mrb[0].mxu0 %v1280
        %v1391 = vpop.f32.mrb[0].mxu0
        %v1392 = vadd.f32 0.0, %v1391
        %v1393 = vpop.f32.mrb[0].mxu0
        %v1394 = vpop.f32.mrb[0].mxu0
        %v1395 = vadd.f32 0.0, %v1394
        %v1396 = vpop.f32.mrb[0].mxu0
        %1397 = vdwg.mxu0
        %v1398 = vadd.f32 %v1246, %v1368
        %v1399 = vadd.f32 %v1247, %v1371
        %v1400 = vadd.f32 %v1248, %v1376
        %v1401 = vadd.f32 %v1249, %v1379
        %v1402 = vadd.f32 %v1250, %v1384
        %v1403 = vadd.f32 %v1251, %v1387
        %v1404 = vadd.f32 %v1252, %v1392
        %v1405 = vadd.f32 %v1253, %v1395
        %s1406 = scalar_lea.vmem %s298, 384
        %v1407 = vld [vmem:[%s1406] sm:$0xf]
        %v1408 = vld [vmem:[%s1406 + $0x4] sm:$0xf]
        %v1409 = vld [vmem:[%s1406 + $0x8] sm:$0xf]
        %v1410 = vld [vmem:[%s1406 + $0xc] sm:$0xf]
        %v1411 = vld [vmem:[%s1406 + $0x10] sm:$0xf]
        %v1412 = vld [vmem:[%s1406 + $0x14] sm:$0xf]
        %v1413 = vld [vmem:[%s1406 + $0x18] sm:$0xf]
        %v1414 = vld [vmem:[%s1406 + $0x1c] sm:$0xf]
        %v1415 = vld [vmem:[%s1406 + $0x20] sm:$0xf]
        %v1416 = vld [vmem:[%s1406 + $0x24] sm:$0xf]
        %v1417 = vld [vmem:[%s1406 + $0x28] sm:$0xf]
        %v1418 = vld [vmem:[%s1406 + $0x2c] sm:$0xf]
        %v1419 = vld [vmem:[%s1406 + $0x30] sm:$0xf]
        %v1420 = vld [vmem:[%s1406 + $0x34] sm:$0xf]
        %v1421 = vld [vmem:[%s1406 + $0x38] sm:$0xf]
        %v1422 = vld [vmem:[%s1406 + $0x3c] sm:$0xf]
        %v1424 = vunpack.c.l.b16 %v332
        %v1425 = vpack.c.b16 %v1424, %v963
        %v1443 = vunpack.c.l.b16 %v1407
        %v1444 = vunpack.c.l.b16 %v1408
        %v1445 = vunpack.c.l.b16 %v1409
        %v1446 = vunpack.c.l.b16 %v1410
        %v1447 = vunpack.c.l.b16 %v1411
        %v1448 = vunpack.c.l.b16 %v1412
        %v1449 = vunpack.c.l.b16 %v1413
        %v1450 = vunpack.c.l.b16 %v1414
        %v1451 = vunpack.c.l.b16 %v1415
        %v1452 = vunpack.c.l.b16 %v1416
        %v1453 = vunpack.c.l.b16 %v1417
        %v1454 = vunpack.c.l.b16 %v1418
        %v1455 = vunpack.c.l.b16 %v1419
        %v1456 = vunpack.c.l.b16 %v1420
        %v1457 = vunpack.c.l.b16 %v1421
        %v1458 = vunpack.c.l.b16 %v1422
        %v1459 = vpack.c.b16 %v1444, %v1443
        %v1460 = vpack.c.b16 %v1446, %v1445
        %v1461 = vpack.c.b16 %v1448, %v1447
        %v1462 = vpack.c.b16 %v1450, %v1449
        %v1463 = vpack.c.b16 %v1452, %v1451
        %v1464 = vpack.c.b16 %v1454, %v1453
        %v1465 = vpack.c.b16 %v1456, %v1455
        %v1466 = vpack.c.b16 %v1458, %v1457
        %1475 = vmatprep.subr.bf16.mxu0 0
        %1476 = vmatpush1.bf16.msra.mxu0 %v1459
        %1477 = vmatprep.subr.bf16.mxu0 0
        %1478 = vmatpush1.bf16.msra.mxu0 %v1460
        %1479 = vmatprep.subr.bf16.mxu0 0
        %1480 = vmatpush1.bf16.msra.mxu0 %v1461
        %1481 = vmatprep.subr.bf16.mxu0 0
        %1482 = vmatpush1.bf16.msra.mxu0 %v1462
        %1483 = vmatprep.subr.bf16.mxu0 0
        %1484 = vmatpush1.bf16.msra.mxu0 %v1463
        %1485 = vmatprep.subr.bf16.mxu0 0
        %1486 = vmatpush1.bf16.msra.mxu0 %v1464
        %1487 = vmatprep.subr.bf16.mxu0 0
        %1488 = vmatpush1.bf16.msra.mxu0 %v1465
        %1489 = vmatprep.subr.bf16.mxu0 0
        %1490 = vmatpush1.bf16.msra.mxu0 %v1466
        %1491 = vmatprep.subr.bf16.mxu0 0
        %1492 = vmatpush1.bf16.msra.mxu0 0
        %1493 = vmatprep.subr.bf16.mxu0 0
        %1494 = vmatpush1.bf16.msra.mxu0 0
        %1495 = vmatprep.subr.bf16.mxu0 0
        %1496 = vmatpush1.bf16.msra.mxu0 0
        %1497 = vmatprep.subr.bf16.mxu0 0
        %1498 = vmatpush1.bf16.msra.mxu0 0
        %1499 = vmatprep.subr.bf16.mxu0 0
        %1500 = vmatpush1.bf16.msra.mxu0 0
        %1501 = vmatprep.subr.bf16.mxu0 0
        %1502 = vmatpush1.bf16.msra.mxu0 0
        %1503 = vmatprep.subr.bf16.mxu0 0
        %1504 = vmatpush1.bf16.msra.mxu0 0
        %1505 = vmatprep.subr.bf16.mxu0 0
        %1506 = vmatpush1.bf16.msra.mxu0 0
        %1507 = vmatprep.mubr.bf16.mxu0 0
        %1508 = vmatmul.mubr.bf16.gmra.mrb[0].mxu0 %v628
        %v1509 = vpop.f32.mrb[0].mxu0
        %v1510 = vadd.f32 0.0, %v1509
        %v1511 = vpop.f32.mrb[0].mxu0
        %v1512 = vpop.f32.mrb[0].mxu0
        %v1513 = vadd.f32 0.0, %v1512
        %v1514 = vpop.f32.mrb[0].mxu0
        %1515 = vmatprep.mubr.bf16.mxu0 0
        %1516 = vmatmul.mubr.bf16.gmra.mrb[0].mxu0 %v629
        %v1517 = vpop.f32.mrb[0].mxu0
        %v1518 = vadd.f32 0.0, %v1517
        %v1519 = vpop.f32.mrb[0].mxu0
        %v1520 = vpop.f32.mrb[0].mxu0
        %v1521 = vadd.f32 0.0, %v1520
        %v1522 = vpop.f32.mrb[0].mxu0
        %1523 = vmatprep.mubr.bf16.mxu0 0
        %1524 = vmatmul.mubr.bf16.gmra.mrb[0].mxu0 %v630
        %v1525 = vpop.f32.mrb[0].mxu0
        %v1526 = vadd.f32 0.0, %v1525
        %v1527 = vpop.f32.mrb[0].mxu0
        %v1528 = vpop.f32.mrb[0].mxu0
        %v1529 = vadd.f32 0.0, %v1528
        %v1530 = vpop.f32.mrb[0].mxu0
        %1531 = vmatprep.mubr.bf16.mxu0 0
        %1532 = vmatmul.mubr.bf16.gmra.mrb[0].mxu0 %v1425
        %v1533 = vpop.f32.mrb[0].mxu0
        %v1534 = vadd.f32 0.0, %v1533
        %v1535 = vpop.f32.mrb[0].mxu0
        %v1536 = vpop.f32.mrb[0].mxu0
        %v1537 = vadd.f32 0.0, %v1536
        %v1538 = vpop.f32.mrb[0].mxu0
        %1539 = vdwg.mxu0
        %v1540 = vadd.f32 %v1398, %v1510
        %v1541 = vadd.f32 %v1399, %v1513
        %v1542 = vadd.f32 %v1400, %v1518
        %v1543 = vadd.f32 %v1401, %v1521
        %v1544 = vadd.f32 %v1402, %v1526
        %v1545 = vadd.f32 %v1403, %v1529
        %v1546 = vadd.f32 %v1404, %v1534
        %v1547 = vadd.f32 %v1405, %v1537
        %v1549 = vshrl.u32 %v332, 16
        %v1551 = vrot.slane %v1549, 4
        %v1552 = vshll.u32 %v332, 16
        %v1554 = vrot.slane %v1552, 5
        %v1555 = vor.u32 %v1551, %v1554
        %v1556 = vrot.slane %v1555, 4
        %v1558 = vshll.u32 %v333, 16
        %v1560 = vrot.slane %v1558, 5
        %v1561 = vsel %vm352, %v1556, %v1560
        %s1562 = scalar_lea.vmem %s298, 448
        %v1563 = vld [vmem:[%s1562] sm:$0xf]
        %v1564 = vld [vmem:[%s1562 + $0x4] sm:$0xf]
        %v1565 = vld [vmem:[%s1562 + $0x8] sm:$0xf]
        %v1566 = vld [vmem:[%s1562 + $0xc] sm:$0xf]
        %v1567 = vld [vmem:[%s1562 + $0x10] sm:$0xf]
        %v1568 = vld [vmem:[%s1562 + $0x14] sm:$0xf]
        %v1569 = vld [vmem:[%s1562 + $0x18] sm:$0xf]
        %v1570 = vld [vmem:[%s1562 + $0x1c] sm:$0xf]
        %v1571 = vld [vmem:[%s1562 + $0x20] sm:$0xf]
        %v1572 = vld [vmem:[%s1562 + $0x24] sm:$0xf]
        %v1573 = vld [vmem:[%s1562 + $0x28] sm:$0xf]
        %v1574 = vld [vmem:[%s1562 + $0x2c] sm:$0xf]
        %v1575 = vld [vmem:[%s1562 + $0x30] sm:$0xf]
        %v1576 = vld [vmem:[%s1562 + $0x34] sm:$0xf]
        %v1577 = vld [vmem:[%s1562 + $0x38] sm:$0xf]
        %v1578 = vld [vmem:[%s1562 + $0x3c] sm:$0xf]
        %v1579 = vunpack.c.l.b16 %v1561
        %v1580 = vpack.c.b16 %v1579, %v1124
        %v1598 = vunpack.c.l.b16 %v1563
        %v1599 = vunpack.c.l.b16 %v1564
        %v1600 = vunpack.c.l.b16 %v1565
        %v1601 = vunpack.c.l.b16 %v1566
        %v1602 = vunpack.c.l.b16 %v1567
        %v1603 = vunpack.c.l.b16 %v1568
        %v1604 = vunpack.c.l.b16 %v1569
        %v1605 = vunpack.c.l.b16 %v1570
        %v1606 = vunpack.c.l.b16 %v1571
        %v1607 = vunpack.c.l.b16 %v1572
        %v1608 = vunpack.c.l.b16 %v1573
        %v1609 = vunpack.c.l.b16 %v1574
        %v1610 = vunpack.c.l.b16 %v1575
        %v1611 = vunpack.c.l.b16 %v1576
        %v1612 = vunpack.c.l.b16 %v1577
        %v1613 = vunpack.c.l.b16 %v1578
        %v1614 = vpack.c.b16 %v1599, %v1598
        %v1615 = vpack.c.b16 %v1601, %v1600
        %v1616 = vpack.c.b16 %v1603, %v1602
        %v1617 = vpack.c.b16 %v1605, %v1604
        %v1618 = vpack.c.b16 %v1607, %v1606
        %v1619 = vpack.c.b16 %v1609, %v1608
        %v1620 = vpack.c.b16 %v1611, %v1610
        %v1621 = vpack.c.b16 %v1613, %v1612
        %1630 = vmatprep.subr.bf16.mxu0 0
        %1631 = vmatpush1.bf16.msra.mxu0 %v1614
        %1632 = vmatprep.subr.bf16.mxu0 0
        %1633 = vmatpush1.bf16.msra.mxu0 %v1615
        %1634 = vmatprep.subr.bf16.mxu0 0
        %1635 = vmatpush1.bf16.msra.mxu0 %v1616
        %1636 = vmatprep.subr.bf16.mxu0 0
        %1637 = vmatpush1.bf16.msra.mxu0 %v1617
        %1638 = vmatprep.subr.bf16.mxu0 0
        %1639 = vmatpush1.bf16.msra.mxu0 %v1618
        %1640 = vmatprep.subr.bf16.mxu0 0
        %1641 = vmatpush1.bf16.msra.mxu0 %v1619
        %1642 = vmatprep.subr.bf16.mxu0 0
        %1643 = vmatpush1.bf16.msra.mxu0 %v1620
        %1644 = vmatprep.subr.bf16.mxu0 0
        %1645 = vmatpush1.bf16.msra.mxu0 %v1621
        %1646 = vmatprep.subr.bf16.mxu0 0
        %1647 = vmatpush1.bf16.msra.mxu0 0
        %1648 = vmatprep.subr.bf16.mxu0 0
        %1649 = vmatpush1.bf16.msra.mxu0 0
        %1650 = vmatprep.subr.bf16.mxu0 0
        %1651 = vmatpush1.bf16.msra.mxu0 0
        %1652 = vmatprep.subr.bf16.mxu0 0
        %1653 = vmatpush1.bf16.msra.mxu0 0
        %1654 = vmatprep.subr.bf16.mxu0 0
        %1655 = vmatpush1.bf16.msra.mxu0 0
        %1656 = vmatprep.subr.bf16.mxu0 0
        %1657 = vmatpush1.bf16.msra.mxu0 0
        %1658 = vmatprep.subr.bf16.mxu0 0
        %1659 = vmatpush1.bf16.msra.mxu0 0
        %1660 = vmatprep.subr.bf16.mxu0 0
        %1661 = vmatpush1.bf16.msra.mxu0 0
        %1662 = vmatprep.mubr.bf16.mxu0 0
        %1663 = vmatmul.mubr.bf16.gmra.mrb[0].mxu0 %v491
        %v1664 = vpop.f32.mrb[0].mxu0
        %v1665 = vadd.f32 0.0, %v1664
        %v1666 = vpop.f32.mrb[0].mxu0
        %v1667 = vpop.f32.mrb[0].mxu0
        %v1668 = vadd.f32 0.0, %v1667
        %v1669 = vpop.f32.mrb[0].mxu0
        %1670 = vmatprep.mubr.bf16.mxu0 0
        %1671 = vmatmul.mubr.bf16.gmra.mrb[0].mxu0 %v492
        %v1672 = vpop.f32.mrb[0].mxu0
        %v1673 = vadd.f32 0.0, %v1672
        %v1674 = vpop.f32.mrb[0].mxu0
        %v1675 = vpop.f32.mrb[0].mxu0
        %v1676 = vadd.f32 0.0, %v1675
        %v1677 = vpop.f32.mrb[0].mxu0
        %1678 = vmatprep.mubr.bf16.mxu0 0
        %1679 = vmatmul.mubr.bf16.gmra.mrb[0].mxu0 %v493
        %v1680 = vpop.f32.mrb[0].mxu0
        %v1681 = vadd.f32 0.0, %v1680
        %v1682 = vpop.f32.mrb[0].mxu0
        %v1683 = vpop.f32.mrb[0].mxu0
        %v1684 = vadd.f32 0.0, %v1683
        %v1685 = vpop.f32.mrb[0].mxu0
        %1686 = vmatprep.mubr.bf16.mxu0 0
        %1687 = vmatmul.mubr.bf16.gmra.mrb[0].mxu0 %v1580
        %v1688 = vpop.f32.mrb[0].mxu0
        %v1689 = vadd.f32 0.0, %v1688
        %v1690 = vpop.f32.mrb[0].mxu0
        %v1691 = vpop.f32.mrb[0].mxu0
        %v1692 = vadd.f32 0.0, %v1691
        %v1693 = vpop.f32.mrb[0].mxu0
        %1694 = vdwg.mxu0
        %v1695 = vadd.f32 %v1540, %v1665
        %v1696 = vadd.f32 %v1541, %v1668
        %v1697 = vadd.f32 %v1542, %v1673
        %v1698 = vadd.f32 %v1543, %v1676
        %v1699 = vadd.f32 %v1544, %v1681
        %v1700 = vadd.f32 %v1545, %v1684
        %v1701 = vadd.f32 %v1546, %v1689
        %v1702 = vadd.f32 %v1547, %v1692
        %v1704 = vrot.slane %v332, 5
        %v1705 = vrot.slane %v1704, 4
        %v1706 = vrot.slane %v333, 5
        %v1707 = vsel %vm758, %v1705, %v1706
        %s1708 = scalar_lea.vmem %s298, 512
        %v1709 = vld [vmem:[%s1708] sm:$0xf]
        %v1710 = vld [vmem:[%s1708 + $0x4] sm:$0xf]
        %v1711 = vld [vmem:[%s1708 + $0x8] sm:$0xf]
        %v1712 = vld [vmem:[%s1708 + $0xc] sm:$0xf]
        %v1713 = vld [vmem:[%s1708 + $0x10] sm:$0xf]
        %v1714 = vld [vmem:[%s1708 + $0x14] sm:$0xf]
        %v1715 = vld [vmem:[%s1708 + $0x18] sm:$0xf]
        %v1716 = vld [vmem:[%s1708 + $0x1c] sm:$0xf]
        %v1717 = vld [vmem:[%s1708 + $0x20] sm:$0xf]
        %v1718 = vld [vmem:[%s1708 + $0x24] sm:$0xf]
        %v1719 = vld [vmem:[%s1708 + $0x28] sm:$0xf]
        %v1720 = vld [vmem:[%s1708 + $0x2c] sm:$0xf]
        %v1721 = vld [vmem:[%s1708 + $0x30] sm:$0xf]
        %v1722 = vld [vmem:[%s1708 + $0x34] sm:$0xf]
        %v1723 = vld [vmem:[%s1708 + $0x38] sm:$0xf]
        %v1724 = vld [vmem:[%s1708 + $0x3c] sm:$0xf]
        %v1725 = vunpack.c.l.b16 %v1707
        %v1726 = vpack.c.b16 %v1725, %v1276
        %v1744 = vunpack.c.l.b16 %v1709
        %v1745 = vunpack.c.l.b16 %v1710
        %v1746 = vunpack.c.l.b16 %v1711
        %v1747 = vunpack.c.l.b16 %v1712
        %v1748 = vunpack.c.l.b16 %v1713
        %v1749 = vunpack.c.l.b16 %v1714
        %v1750 = vunpack.c.l.b16 %v1715
        %v1751 = vunpack.c.l.b16 %v1716
        %v1752 = vunpack.c.l.b16 %v1717
        %v1753 = vunpack.c.l.b16 %v1718
        %v1754 = vunpack.c.l.b16 %v1719
        %v1755 = vunpack.c.l.b16 %v1720
        %v1756 = vunpack.c.l.b16 %v1721
        %v1757 = vunpack.c.l.b16 %v1722
        %v1758 = vunpack.c.l.b16 %v1723
        %v1759 = vunpack.c.l.b16 %v1724
        %v1760 = vpack.c.b16 %v1745, %v1744
        %v1761 = vpack.c.b16 %v1747, %v1746
        %v1762 = vpack.c.b16 %v1749, %v1748
        %v1763 = vpack.c.b16 %v1751, %v1750
        %v1764 = vpack.c.b16 %v1753, %v1752
        %v1765 = vpack.c.b16 %v1755, %v1754
        %v1766 = vpack.c.b16 %v1757, %v1756
        %v1767 = vpack.c.b16 %v1759, %v1758
        %1776 = vmatprep.subr.bf16.mxu0 0
        %1777 = vmatpush1.bf16.msra.mxu0 %v1760
        %1778 = vmatprep.subr.bf16.mxu0 0
        %1779 = vmatpush1.bf16.msra.mxu0 %v1761
        %1780 = vmatprep.subr.bf16.mxu0 0
        %1781 = vmatpush1.bf16.msra.mxu0 %v1762
        %1782 = vmatprep.subr.bf16.mxu0 0
        %1783 = vmatpush1.bf16.msra.mxu0 %v1763
        %1784 = vmatprep.subr.bf16.mxu0 0
        %1785 = vmatpush1.bf16.msra.mxu0 %v1764
        %1786 = vmatprep.subr.bf16.mxu0 0
        %1787 = vmatpush1.bf16.msra.mxu0 %v1765
        %1788 = vmatprep.subr.bf16.mxu0 0
        %1789 = vmatpush1.bf16.msra.mxu0 %v1766
        %1790 = vmatprep.subr.bf16.mxu0 0
        %1791 = vmatpush1.bf16.msra.mxu0 %v1767
        %1792 = vmatprep.subr.bf16.mxu0 0
        %1793 = vmatpush1.bf16.msra.mxu0 0
        %1794 = vmatprep.subr.bf16.mxu0 0
        %1795 = vmatpush1.bf16.msra.mxu0 0
        %1796 = vmatprep.subr.bf16.mxu0 0
        %1797 = vmatpush1.bf16.msra.mxu0 0
        %1798 = vmatprep.subr.bf16.mxu0 0
        %1799 = vmatpush1.bf16.msra.mxu0 0
        %1800 = vmatprep.subr.bf16.mxu0 0
        %1801 = vmatpush1.bf16.msra.mxu0 0
        %1802 = vmatprep.subr.bf16.mxu0 0
        %1803 = vmatpush1.bf16.msra.mxu0 0
        %1804 = vmatprep.subr.bf16.mxu0 0
        %1805 = vmatpush1.bf16.msra.mxu0 0
        %1806 = vmatprep.subr.bf16.mxu0 0
        %1807 = vmatpush1.bf16.msra.mxu0 0
        %1808 = vmatprep.mubr.bf16.mxu0 0
        %1809 = vmatmul.mubr.bf16.gmra.mrb[0].mxu0 %v817
        %v1810 = vpop.f32.mrb[0].mxu0
        %v1811 = vadd.f32 0.0, %v1810
        %v1812 = vpop.f32.mrb[0].mxu0
        %v1813 = vpop.f32.mrb[0].mxu0
        %v1814 = vadd.f32 0.0, %v1813
        %v1815 = vpop.f32.mrb[0].mxu0
        %1816 = vmatprep.mubr.bf16.mxu0 0
        %1817 = vmatmul.mubr.bf16.gmra.mrb[0].mxu0 %v818
        %v1818 = vpop.f32.mrb[0].mxu0
        %v1819 = vadd.f32 0.0, %v1818
        %v1820 = vpop.f32.mrb[0].mxu0
        %v1821 = vpop.f32.mrb[0].mxu0
        %v1822 = vadd.f32 0.0, %v1821
        %v1823 = vpop.f32.mrb[0].mxu0
        %1824 = vmatprep.mubr.bf16.mxu0 0
        %1825 = vmatmul.mubr.bf16.gmra.mrb[0].mxu0 %v819
        %v1826 = vpop.f32.mrb[0].mxu0
        %v1827 = vadd.f32 0.0, %v1826
        %v1828 = vpop.f32.mrb[0].mxu0
        %v1829 = vpop.f32.mrb[0].mxu0
        %v1830 = vadd.f32 0.0, %v1829
        %v1831 = vpop.f32.mrb[0].mxu0
        %1832 = vmatprep.mubr.bf16.mxu0 0
        %1833 = vmatmul.mubr.bf16.gmra.mrb[0].mxu0 %v1726
        %v1834 = vpop.f32.mrb[0].mxu0
        %v1835 = vadd.f32 0.0, %v1834
        %v1836 = vpop.f32.mrb[0].mxu0
        %v1837 = vpop.f32.mrb[0].mxu0
        %v1838 = vadd.f32 0.0, %v1837
        %v1839 = vpop.f32.mrb[0].mxu0
        %1840 = vdwg.mxu0
        %v1841 = vadd.f32 %v1695, %v1811
        %v1842 = vadd.f32 %v1696, %v1814
        %v1843 = vadd.f32 %v1697, %v1819
        %v1844 = vadd.f32 %v1698, %v1822
        %v1845 = vadd.f32 %v1699, %v1827
        %v1846 = vadd.f32 %v1700, %v1830
        %v1847 = vadd.f32 %v1701, %v1835
        %v1848 = vadd.f32 %v1702, %v1838
        %v1849 = vld [vmem:[%s301] sm:$0x1]
        %v1851 = vlaneseq
        %v1852 = vshrl.u32 %v1851, 7
        %v1853 = vsub.s32 0, %v1852
        %v1854 = vrot.slane %v1849, %v1853
        %v1856 = vmul.f32 %v1841, %v1854
        %v1857 = vmul.f32 %v1842, %v1854
        %v1858 = vmul.f32 %v1843, %v1854
        %v1859 = vmul.f32 %v1844, %v1854
        %v1860 = vmul.f32 %v1845, %v1854
        %v1861 = vmul.f32 %v1846, %v1854
        %v1862 = vmul.f32 %v1847, %v1854
        %v1863 = vmul.f32 %v1848, %v1854
        %v1864 = vld [vmem:[%s304] sm:$0x1]
        %v1866 = vlaneseq
        %v1867 = vshrl.u32 %v1866, 7
        %v1868 = vsub.s32 0, %v1867
        %v1869 = vrot.slane %v1864, %v1868
        %v1871 = vadd.f32 %v1856, %v1869
        %v1872 = vadd.f32 %v1857, %v1869
        %v1873 = vadd.f32 %v1858, %v1869
        %v1874 = vadd.f32 %v1859, %v1869
        %v1875 = vadd.f32 %v1860, %v1869
        %v1876 = vadd.f32 %v1861, %v1869
        %v1877 = vadd.f32 %v1862, %v1869
        %v1878 = vadd.f32 %v1863, %v1869
        %v1879 = vld [vmem:[%s312] sm:$0xff]
        %v1880 = vld [vmem:[%s312 + $0x8] sm:$0xff]
        %v1881 = vld [vmem:[%s312 + $0x10] sm:$0xff]
        %v1882 = vld [vmem:[%s312 + $0x18] sm:$0xff]
        %v1883 = vld [vmem:[%s312 + $0x20] sm:$0xff]
        %v1884 = vld [vmem:[%s312 + $0x28] sm:$0xff]
        %v1885 = vld [vmem:[%s312 + $0x30] sm:$0xff]
        %v1886 = vld [vmem:[%s312 + $0x38] sm:$0xff]
        %v1887 = vadd.f32 %v1871, %v1879
        %v1888 = vadd.f32 %v1872, %v1880
        %v1889 = vadd.f32 %v1873, %v1881
        %v1890 = vadd.f32 %v1874, %v1882
        %v1891 = vadd.f32 %v1875, %v1883
        %v1892 = vadd.f32 %v1876, %v1884
        %v1893 = vadd.f32 %v1877, %v1885
        %v1894 = vadd.f32 %v1878, %v1886
        %v1895 = vmax.f32 %v1887, 0.0
        %v1896 = vmax.f32 %v1888, 0.0
        %v1897 = vmax.f32 %v1889, 0.0
        %v1898 = vmax.f32 %v1890, 0.0
        %v1899 = vmax.f32 %v1891, 0.0
        %v1900 = vmax.f32 %v1892, 0.0
        %v1901 = vmax.f32 %v1893, 0.0
        %v1902 = vmax.f32 %v1894, 0.0
        %1903 = vst [vmem:[%s289] sm:$0xff] %v1895
        %1904 = vst [vmem:[%s289 + $0x8] sm:$0xff] %v1896
        %1905 = vst [vmem:[%s289 + $0x10] sm:$0xff] %v1897
        %1906 = vst [vmem:[%s289 + $0x18] sm:$0xff] %v1898
        %1907 = vst [vmem:[%s289 + $0x20] sm:$0xff] %v1899
        %1908 = vst [vmem:[%s289 + $0x28] sm:$0xff] %v1900
        %1909 = vst [vmem:[%s289 + $0x30] sm:$0xff] %v1901
        %1910 = vst [vmem:[%s289 + $0x38] sm:$0xff] %v1902
        %s1911 = sand.u32 %s173, 1
        %s1912 = scalar_lea.sflag [#allocation3], %s1911
        %s1913 = sand.u32 %s173, 1
        %s1914 = smul.addr %s1913, 64
        %s1915 = scalar_lea.vmem [#allocation2], %s1914
        // Predicated region
        $region41: #{fwd.9} parent=39 // pred_check
          %p1916 = pneg %p183
        $region42: #{fwd.9} parent=39 // pred_check_branch
          %1918 = sbr.rel (%p1916) target = $region44
        $region43: #{fwd.9} parent=39 // pred_region
          %s1920 = ssub.s32 1024, 1024
          %1921 = vsyncadd %s1912, %s1920
          %s1922 = smul.addr %s23, 8
          %s1923 = sadd.s32 %s24, %s1922
          %s1924 = smul.addr %s1923, 128
          %s1925 = scalar_lea.hbm %s5, %s1924
          %s1926 = sshll.u32 %s1915, 4
          %s1927 = int_to_ptr.vmem [resolvable:$true] %s1926
          %1932 = dma.vmem_to_hbm [thread:$0]  %s1927, 1024, %s1925, %s1912, 128, 128, 8
        $region44: #{fwd.9} parent=39 // pred_fallthru
          _
      $region40: #{fwd.9} parent=5 // pred_fallthru
        _
      %p1933 = scmp.le.s32.totalorder 2, %s14
      // Predicated region
      $region45: #{fwd.9} parent=5 // pred_check
        %p1934 = pneg %p1933
      $region46: #{fwd.9} parent=5 // pred_check_branch
        %1936 = sbr.rel (%p1934) target = $region48
      $region47: #{fwd.9} parent=5 // pred_region
        %s1937 = ssub.s32 %s14, 2
        // Predicated region
        $region49: #{fwd.9} parent=47 // pred_check
          %p1938 = pneg %p189
        $region50: #{fwd.9} parent=47 // pred_check_branch
          %1940 = sbr.rel (%p1938) target = $region52
        $region51: #{fwd.9} parent=47 // pred_region
          %s1941 = sand.u32 %s174, 1
          %s1942 = scalar_lea.sflag [#allocation3], %s1941
          %s1943 = sand.u32 %s174, 1
          %s1944 = smul.addr %s1943, 64
          %s1945 = scalar_lea.vmem [#allocation2], %s1944
          %1946 = dma.done %s1942, 1024
        $region52: #{fwd.9} parent=47 // pred_fallthru
          _
      $region48: #{fwd.9} parent=5 // pred_fallthru
        _
    $region6: #{fwd.9} parent=1 // loop_footer
      %s18 = sadd.s32 1, %s14
    $region7: #{fwd.9} parent=1 // loop_footer_branch
      %13 = sbr.rel target = $region3
    $region8: #{fwd.9} parent=1 // loop_exit
      _
    %1947 = vsyncpa [#allocation3], 1
    %s1948 = scalar_lea.sflag [#allocation3], 1
    %1949 = vsyncpa %s1948, 1

</llo_original>
